<compile_context>
chip_gen: v5e
topology: v5e:2x2
jax: 0.10.0
libtpu: 0.0.40
codegen_flags: <defaults>
</compile_context>

<pallas_src>
import jax
import jax.numpy as jnp
from jax.experimental import pallas as pl
from jax.experimental.pallas import tpu as pltpu


def _make_kernel(W, C, M, Cp, Kp):
    halo_rows = W + 1          # max |row offset| of a 3x3 neighbour is W + 1
    eps = 1e-5
    inv_m = 1.0 / M

    def kernel(x_ref, tm_ref, w1_ref, g1_ref, be1_ref,
               w2_ref, g2_ref, be2_ref, out_ref, pad_ref):
        # Zero only the 1-px halo borders once; the interior is fully
        # rewritten by each conv, so the borders stay zero for both.
        zero_halo = jnp.zeros((halo_rows, C), jnp.float32)
        pad_ref[0:halo_rows, :] = zero_halo
        pad_ref[halo_rows + M:2 * halo_rows + M, :] = zero_halo

        def conv3x3(a, w_ref):
            # Fused-K im2col: one (M, Kp=128) @ (Kp, Cp=128) MXU pass.
            # a: (M, C) activation with rows in (n, h, w) row-major order.
            pad_ref[halo_rows:halo_rows + M, :] = a
            taps = []
            for kh in range(3):
                for kw in range(3):
                    t = kh * 3 + kw
                    off = kh * W + kw        # = halo_rows + (kh-1)*W + (kw-1)
                    taps.append(pad_ref[off:off + M, :] * tm_ref[:, t:t + 1])
            if Kp > 9 * C:                   # zero-pad K up to the MXU tile
                taps.append(jnp.zeros((M, Kp - 9 * C), jnp.float32))
            patches = jnp.concatenate(taps, axis=-1)          # (M, Kp)
            return jnp.dot(patches, w_ref[...],
                           preferred_element_type=jnp.float32)  # (M, Cp)

        def batchnorm(h, g_ref, be_ref):
            # Training-mode BN, two-pass batch stats (mean, centered var).
            mu = jnp.sum(h, axis=0, keepdims=True) * inv_m
            cen = h - mu
            var = jnp.sum(cen * cen, axis=0, keepdims=True) * inv_m
            return cen * (jax.lax.rsqrt(var + eps) * g_ref[...]) + be_ref[...]

        x = x_ref[...]                                        # (M, C)

        # conv1 -> bn1 -> relu   (padded output channels stay exactly zero)
        h = jnp.maximum(batchnorm(conv3x3(x, w1_ref), g1_ref, be1_ref), 0.0)

        # conv2 -> bn2 -> +residual -> relu
        h2 = batchnorm(conv3x3(h[:, :C], w2_ref), g2_ref, be2_ref)
        xp = jnp.concatenate(
            [x, jnp.zeros((M, Cp - C), jnp.float32)], axis=-1)  # (M, Cp)
        out_ref[...] = jnp.maximum(h2 + xp, 0.0)                # lane-dense

    return kernel


def residual_block(x_nchw, params):
    """Forward pass of ResidualBlock. x_nchw: (N, C, H, W) float32."""
    x_nchw = x_nchw.astype(jnp.float32)
    N, C, H, W = x_nchw.shape
    M = N * H * W
    Cp = 128                      # lane-dense output-channel (MXU N) dim
    Kp = 128                      # padded im2col contraction dim (>= 9*C)
    assert 9 * C <= Kp and C <= Cp

    # NCHW -> (M, C) rows in (n, h, w) row-major order, natural channel width.
    x2d = jnp.transpose(x_nchw, (0, 2, 3, 1)).reshape(M, C)

    # Per-row 3x3 tap-validity masks ("SAME" padding) — pure index plumbing,
    # built once in the wrapper (18 KiB).
    hh = jnp.arange(H).reshape(1, H, 1)
    ww = jnp.arange(W).reshape(1, 1, W)
    cols = []
    for kh in range(3):
        for kw in range(3):
            v = ((hh + kh - 1 >= 0) & (hh + kh - 1 < H) &
                 (ww + kw - 1 >= 0) & (ww + kw - 1 < W))          # (1, H, W)
            cols.append(jnp.broadcast_to(v, (N, H, W)).reshape(M))
    tapmask = jnp.stack(cols, axis=-1).astype(jnp.float32)        # (M, 9)

    def pack_w(w_pt):
        # PyTorch (Cout, Cin, 3, 3) -> (3, 3, Cin, Cout) -> (9*Cin, Cout),
        # then zero-pad the K rows to Kp and Cout to Cp.
        w = jnp.transpose(w_pt, (2, 3, 1, 0)).reshape(9 * C, C)
        return jnp.pad(w, ((0, Kp - 9 * C), (0, Cp - C)))

    def pack_c(v):
        return jnp.pad(v, (0, Cp - C)).reshape(1, Cp)

    w1, w2 = pack_w(params["w1"]), pack_w(params["w2"])
    g1, be1 = pack_c(params["g1"]), pack_c(params["be1"])
    g2, be2 = pack_c(params["g2"]), pack_c(params["be2"])
    # Conv biases b1/b2 are intentionally not passed: under training-mode
    # BatchNorm the batch-mean subtraction removes any per-channel constant,
    # so they cancel exactly.

    vmem = pl.BlockSpec(memory_space=pltpu.MemorySpace.VMEM)
    out2d = pl.pallas_call(
        _make_kernel(W, C, M, Cp, Kp),
        out_shape=jax.ShapeDtypeStruct((M, Cp), jnp.float32),
        in_specs=[vmem] * 8,
        out_specs=vmem,
        scratch_shapes=[pltpu.VMEM((M + 2 * (W + 1), C), jnp.float32)],
        compiler_params=pltpu.CompilerParams(
            vmem_limit_bytes=32 * 1024 * 1024),
    )(x2d, tapmask, w1, g1, be1, w2, g2, be2)

    out = out2d[:, :C].reshape(N, H, W, C)
    return jnp.transpose(out, (0, 3, 1, 2))                      # back to NCHW


def residual_block_ref(x, p):
    """Pure-JAX reference (mirrors the PyTorch module in training mode)."""
    def conv(x, w, b):
        y = jax.lax.conv_general_dilated(
            x, w, window_strides=(1, 1), padding="SAME",
            dimension_numbers=("NCHW", "OIHW", "NCHW"))
        return y + b[None, :, None, None]

    def bn(x, g, be):
        mu = jnp.mean(x, axis=(0, 2, 3), keepdims=True)
        var = jnp.mean((x - mu) ** 2, axis=(0, 2, 3), keepdims=True)
        return ((x - mu) * jax.lax.rsqrt(var + 1e-5)
                * g[None, :, None, None] + be[None, :, None, None])

    h = jax.nn.relu(bn(conv(x, p["w1"], p["b1"]), p["g1"], p["be1"]))
    h = bn(conv(h, p["w2"], p["b2"]), p["g2"], p["be2"])
    return jax.nn.relu(h + x)


if __name__ == "__main__":
    N, C, H, W = 2, 4, 16, 16
    key = jax.random.PRNGKey(0)
    kx, kw1, kb1, kw2, kb2 = jax.random.split(key, 5)

    x = jax.random.normal(kx, (N, C, H, W), dtype=jnp.float32)
    params = {
        "w1": 0.1 * jax.random.normal(kw1, (C, C, 3, 3), dtype=jnp.float32),
        "b1": 0.1 * jax.random.normal(kb1, (C,), dtype=jnp.float32),
        "g1": jnp.ones((C,), jnp.float32),    # BatchNorm weight init (ones)
        "be1": jnp.zeros((C,), jnp.float32),  # BatchNorm bias init (zeros)
        "w2": 0.1 * jax.random.normal(kw2, (C, C, 3, 3), dtype=jnp.float32),
        "b2": 0.1 * jax.random.normal(kb2, (C,), dtype=jnp.float32),
        "g2": jnp.ones((C,), jnp.float32),
        "be2": jnp.zeros((C,), jnp.float32),
    }

    out = jax.block_until_ready(residual_block(x, params))
    ref = jax.block_until_ready(residual_block_ref(x, params))

    assert out.shape == (N, C, H, W)
    assert jnp.allclose(out, ref, atol=1e-4, rtol=1e-4)
    print("KERNEL_OK")
</pallas_src>

<mosaic_0001>
module attributes {stable_mosaic.version = 11 : i64} {
  func.func @kernel(%arg0: memref<512x4xf32, #tpu.memory_space<vmem>>, %arg1: memref<512x9xf32, #tpu.memory_space<vmem>>, %arg2: memref<128x128xf32, #tpu.memory_space<vmem>>, %arg3: memref<1x128xf32, #tpu.memory_space<vmem>>, %arg4: memref<1x128xf32, #tpu.memory_space<vmem>>, %arg5: memref<128x128xf32, #tpu.memory_space<vmem>>, %arg6: memref<1x128xf32, #tpu.memory_space<vmem>>, %arg7: memref<1x128xf32, #tpu.memory_space<vmem>>, %arg8: memref<512x128xf32, #tpu.memory_space<vmem>>, %arg9: memref<546x4xf32, #tpu.memory_space<vmem>>) attributes {dimension_semantics = [], scalar_prefetch = 0 : i64, scratch_operands = 1 : i64, tpu.core_type = #tpu.core_type<tc>} {
    %cst = arith.constant 0.000000e+00 : f32
    %0 = vector.broadcast %cst : f32 to vector<17x4xf32>
    %c0 = arith.constant 0 : index
    %c0_0 = arith.constant 0 : index
    %1 = vector.load %arg9[%c0, %c0_0] : memref<546x4xf32, #tpu.memory_space<vmem>>, vector<17x4xf32>
    tpu.vector_store %arg9[%c0, %c0_0], %0 {strides = array<i32>} : memref<546x4xf32, #tpu.memory_space<vmem>>, vector<17x4xf32>,
    %c529 = arith.constant 529 : index
    %c0_1 = arith.constant 0 : index
    %2 = vector.load %arg9[%c529, %c0_1] : memref<546x4xf32, #tpu.memory_space<vmem>>, vector<17x4xf32>
    tpu.vector_store %arg9[%c529, %c0_1], %0 {strides = array<i32>} : memref<546x4xf32, #tpu.memory_space<vmem>>, vector<17x4xf32>,
    %c0_2 = arith.constant 0 : index
    %c0_3 = arith.constant 0 : index
    %3 = vector.load %arg0[%c0_2, %c0_3] : memref<512x4xf32, #tpu.memory_space<vmem>>, vector<512x4xf32>
    %c17 = arith.constant 17 : index
    %c0_4 = arith.constant 0 : index
    %4 = vector.load %arg9[%c17, %c0_4] : memref<546x4xf32, #tpu.memory_space<vmem>>, vector<512x4xf32>
    tpu.vector_store %arg9[%c17, %c0_4], %3 {strides = array<i32>} : memref<546x4xf32, #tpu.memory_space<vmem>>, vector<512x4xf32>,
    %c0_5 = arith.constant 0 : index
    %c0_6 = arith.constant 0 : index
    %5 = vector.load %arg9[%c0_5, %c0_6] : memref<546x4xf32, #tpu.memory_space<vmem>>, vector<512x4xf32>
    %c0_7 = arith.constant 0 : index
    %c0_8 = arith.constant 0 : index
    %6 = vector.load %arg1[%c0_7, %c0_8] : memref<512x9xf32, #tpu.memory_space<vmem>>, vector<512x1xf32>
    %7 = vector.broadcast %6 : vector<512x1xf32> to vector<512x4xf32>
    %8 = arith.mulf %5, %7 : vector<512x4xf32>
    %c1 = arith.constant 1 : index
    %c0_9 = arith.constant 0 : index
    %9 = vector.load %arg9[%c1, %c0_9] : memref<546x4xf32, #tpu.memory_space<vmem>>, vector<512x4xf32>
    %c0_10 = arith.constant 0 : index
    %c1_11 = arith.constant 1 : index
    %10 = vector.load %arg1[%c0_10, %c1_11] : memref<512x9xf32, #tpu.memory_space<vmem>>, vector<512x1xf32>
    %11 = vector.broadcast %10 : vector<512x1xf32> to vector<512x4xf32>
    %12 = arith.mulf %9, %11 : vector<512x4xf32>
    %c2 = arith.constant 2 : index
    %c0_12 = arith.constant 0 : index
    %13 = vector.load %arg9[%c2, %c0_12] : memref<546x4xf32, #tpu.memory_space<vmem>>, vector<512x4xf32>
    %c0_13 = arith.constant 0 : index
    %c2_14 = arith.constant 2 : index
    %14 = vector.load %arg1[%c0_13, %c2_14] : memref<512x9xf32, #tpu.memory_space<vmem>>, vector<512x1xf32>
    %15 = vector.broadcast %14 : vector<512x1xf32> to vector<512x4xf32>
    %16 = arith.mulf %13, %15 : vector<512x4xf32>
    %c16 = arith.constant 16 : index
    %c0_15 = arith.constant 0 : index
    %17 = vector.load %arg9[%c16, %c0_15] : memref<546x4xf32, #tpu.memory_space<vmem>>, vector<512x4xf32>
    %c0_16 = arith.constant 0 : index
    %c3 = arith.constant 3 : index
    %18 = vector.load %arg1[%c0_16, %c3] : memref<512x9xf32, #tpu.memory_space<vmem>>, vector<512x1xf32>
    %19 = vector.broadcast %18 : vector<512x1xf32> to vector<512x4xf32>
    %20 = arith.mulf %17, %19 : vector<512x4xf32>
    %c17_17 = arith.constant 17 : index
    %c0_18 = arith.constant 0 : index
    %21 = vector.load %arg9[%c17_17, %c0_18] : memref<546x4xf32, #tpu.memory_space<vmem>>, vector<512x4xf32>
    %c0_19 = arith.constant 0 : index
    %c4 = arith.constant 4 : index
    %22 = vector.load %arg1[%c0_19, %c4] : memref<512x9xf32, #tpu.memory_space<vmem>>, vector<512x1xf32>
    %23 = vector.broadcast %22 : vector<512x1xf32> to vector<512x4xf32>
    %24 = arith.mulf %21, %23 : vector<512x4xf32>
    %c18 = arith.constant 18 : index
    %c0_20 = arith.constant 0 : index
    %25 = vector.load %arg9[%c18, %c0_20] : memref<546x4xf32, #tpu.memory_space<vmem>>, vector<512x4xf32>
    %c0_21 = arith.constant 0 : index
    %c5 = arith.constant 5 : index
    %26 = vector.load %arg1[%c0_21, %c5] : memref<512x9xf32, #tpu.memory_space<vmem>>, vector<512x1xf32>
    %27 = vector.broadcast %26 : vector<512x1xf32> to vector<512x4xf32>
    %28 = arith.mulf %25, %27 : vector<512x4xf32>
    %c32 = arith.constant 32 : index
    %c0_22 = arith.constant 0 : index
    %29 = vector.load %arg9[%c32, %c0_22] : memref<546x4xf32, #tpu.memory_space<vmem>>, vector<512x4xf32>
    %c0_23 = arith.constant 0 : index
    %c6 = arith.constant 6 : index
    %30 = vector.load %arg1[%c0_23, %c6] : memref<512x9xf32, #tpu.memory_space<vmem>>, vector<512x1xf32>
    %31 = vector.broadcast %30 : vector<512x1xf32> to vector<512x4xf32>
    %32 = arith.mulf %29, %31 : vector<512x4xf32>
    %c33 = arith.constant 33 : index
    %c0_24 = arith.constant 0 : index
    %33 = vector.load %arg9[%c33, %c0_24] : memref<546x4xf32, #tpu.memory_space<vmem>>, vector<512x4xf32>
    %c0_25 = arith.constant 0 : index
    %c7 = arith.constant 7 : index
    %34 = vector.load %arg1[%c0_25, %c7] : memref<512x9xf32, #tpu.memory_space<vmem>>, vector<512x1xf32>
    %35 = vector.broadcast %34 : vector<512x1xf32> to vector<512x4xf32>
    %36 = arith.mulf %33, %35 : vector<512x4xf32>
    %c34 = arith.constant 34 : index
    %c0_26 = arith.constant 0 : index
    %37 = vector.load %arg9[%c34, %c0_26] : memref<546x4xf32, #tpu.memory_space<vmem>>, vector<512x4xf32>
    %c0_27 = arith.constant 0 : index
    %c8 = arith.constant 8 : index
    %38 = vector.load %arg1[%c0_27, %c8] : memref<512x9xf32, #tpu.memory_space<vmem>>, vector<512x1xf32>
    %39 = vector.broadcast %38 : vector<512x1xf32> to vector<512x4xf32>
    %40 = arith.mulf %37, %39 : vector<512x4xf32>
    %cst_28 = arith.constant 0.000000e+00 : f32
    %41 = vector.broadcast %cst_28 : f32 to vector<512x92xf32>
    %42 = tpu.concatenate %8, %12, %16, %20, %24, %28, %32, %36, %40, %41 in 1 : vector<512x4xf32>, vector<512x4xf32>, vector<512x4xf32>, vector<512x4xf32>, vector<512x4xf32>, vector<512x4xf32>, vector<512x4xf32>, vector<512x4xf32>, vector<512x4xf32>, vector<512x92xf32> -> vector<512x128xf32>
    %c0_29 = arith.constant 0 : index
    %c0_30 = arith.constant 0 : index
    %43 = vector.load %arg2[%c0_29, %c0_30] : memref<128x128xf32, #tpu.memory_space<vmem>>, vector<128x128xf32>
    %cst_31 = arith.constant dense<0.000000e+00> : vector<512x128xf32>
    %44 = tpu.matmul %42, %43, %cst_31 {dimension_numbers = #tpu.dot_dimension_numbers<[1], [0], [0], [1], [0, 0, 1, 1], [], []>} : vector<512x128xf32>, vector<128x128xf32>, vector<512x128xf32> -> vector<512x128xf32>
    %cst_32 = arith.constant dense<0.000000e+00> : vector<128xf32>
    %45 = vector.multi_reduction <add>, %44, %cst_32 [0] : vector<512x128xf32> to vector<128xf32>
    %46 = vector.shape_cast %45 : vector<128xf32> to vector<1x128xf32>
    %cst_33 = arith.constant 0.001953125 : f32
    %47 = vector.broadcast %cst_33 : f32 to vector<1x128xf32>
    %48 = arith.mulf %46, %47 : vector<1x128xf32>
    %49 = vector.broadcast %48 : vector<1x128xf32> to vector<512x128xf32>
    %50 = arith.subf %44, %49 : vector<512x128xf32>
    %51 = arith.mulf %50, %50 : vector<512x128xf32>
    %cst_34 = arith.constant dense<0.000000e+00> : vector<128xf32>
    %52 = vector.multi_reduction <add>, %51, %cst_34 [0] : vector<512x128xf32> to vector<128xf32>
    %53 = vector.shape_cast %52 : vector<128xf32> to vector<1x128xf32>
    %cst_35 = arith.constant 0.001953125 : f32
    %54 = vector.broadcast %cst_35 : f32 to vector<1x128xf32>
    %55 = arith.mulf %53, %54 : vector<1x128xf32>
    %cst_36 = arith.constant 9.99999974E-6 : f32
    %56 = vector.broadcast %cst_36 : f32 to vector<1x128xf32>
    %57 = arith.addf %55, %56 : vector<1x128xf32>
    %58 = math.rsqrt %57 : vector<1x128xf32>
    %c0_37 = arith.constant 0 : index
    %c0_38 = arith.constant 0 : index
    %59 = vector.load %arg3[%c0_37, %c0_38] : memref<1x128xf32, #tpu.memory_space<vmem>>, vector<1x128xf32>
    %60 = arith.mulf %58, %59 : vector<1x128xf32>
    %61 = vector.broadcast %60 : vector<1x128xf32> to vector<512x128xf32>
    %62 = arith.mulf %50, %61 : vector<512x128xf32>
    %c0_39 = arith.constant 0 : index
    %c0_40 = arith.constant 0 : index
    %63 = vector.load %arg4[%c0_39, %c0_40] : memref<1x128xf32, #tpu.memory_space<vmem>>, vector<1x128xf32>
    %64 = vector.broadcast %63 : vector<1x128xf32> to vector<512x128xf32>
    %65 = arith.addf %62, %64 : vector<512x128xf32>
    %cst_41 = arith.constant 0.000000e+00 : f32
    %66 = vector.broadcast %cst_41 : f32 to vector<512x128xf32>
    %67 = arith.maximumf %65, %66 : vector<512x128xf32>
    %68 = vector.extract_strided_slice %67 {offsets = [0, 0], sizes = [512, 4], strides = [1, 1]} : vector<512x128xf32> to vector<512x4xf32>
    %c17_42 = arith.constant 17 : index
    %c0_43 = arith.constant 0 : index
    %69 = vector.load %arg9[%c17_42, %c0_43] : memref<546x4xf32, #tpu.memory_space<vmem>>, vector<512x4xf32>
    tpu.vector_store %arg9[%c17_42, %c0_43], %68 {strides = array<i32>} : memref<546x4xf32, #tpu.memory_space<vmem>>, vector<512x4xf32>,
    %c0_44 = arith.constant 0 : index
    %c0_45 = arith.constant 0 : index
    %70 = vector.load %arg9[%c0_44, %c0_45] : memref<546x4xf32, #tpu.memory_space<vmem>>, vector<512x4xf32>
    %c0_46 = arith.constant 0 : index
    %c0_47 = arith.constant 0 : index
    %71 = vector.load %arg1[%c0_46, %c0_47] : memref<512x9xf32, #tpu.memory_space<vmem>>, vector<512x1xf32>
    %72 = vector.broadcast %71 : vector<512x1xf32> to vector<512x4xf32>
    %73 = arith.mulf %70, %72 : vector<512x4xf32>
    %c1_48 = arith.constant 1 : index
    %c0_49 = arith.constant 0 : index
    %74 = vector.load %arg9[%c1_48, %c0_49] : memref<546x4xf32, #tpu.memory_space<vmem>>, vector<512x4xf32>
    %c0_50 = arith.constant 0 : index
    %c1_51 = arith.constant 1 : index
    %75 = vector.load %arg1[%c0_50, %c1_51] : memref<512x9xf32, #tpu.memory_space<vmem>>, vector<512x1xf32>
    %76 = vector.broadcast %75 : vector<512x1xf32> to vector<512x4xf32>
    %77 = arith.mulf %74, %76 : vector<512x4xf32>
    %c2_52 = arith.constant 2 : index
    %c0_53 = arith.constant 0 : index
    %78 = vector.load %arg9[%c2_52, %c0_53] : memref<546x4xf32, #tpu.memory_space<vmem>>, vector<512x4xf32>
    %c0_54 = arith.constant 0 : index
    %c2_55 = arith.constant 2 : index
    %79 = vector.load %arg1[%c0_54, %c2_55] : memref<512x9xf32, #tpu.memory_space<vmem>>, vector<512x1xf32>
    %80 = vector.broadcast %79 : vector<512x1xf32> to vector<512x4xf32>
    %81 = arith.mulf %78, %80 : vector<512x4xf32>
    %c16_56 = arith.constant 16 : index
    %c0_57 = arith.constant 0 : index
    %82 = vector.load %arg9[%c16_56, %c0_57] : memref<546x4xf32, #tpu.memory_space<vmem>>, vector<512x4xf32>
    %c0_58 = arith.constant 0 : index
    %c3_59 = arith.constant 3 : index
    %83 = vector.load %arg1[%c0_58, %c3_59] : memref<512x9xf32, #tpu.memory_space<vmem>>, vector<512x1xf32>
    %84 = vector.broadcast %83 : vector<512x1xf32> to vector<512x4xf32>
    %85 = arith.mulf %82, %84 : vector<512x4xf32>
    %c17_60 = arith.constant 17 : index
    %c0_61 = arith.constant 0 : index
    %86 = vector.load %arg9[%c17_60, %c0_61] : memref<546x4xf32, #tpu.memory_space<vmem>>, vector<512x4xf32>
    %c0_62 = arith.constant 0 : index
    %c4_63 = arith.constant 4 : index
    %87 = vector.load %arg1[%c0_62, %c4_63] : memref<512x9xf32, #tpu.memory_space<vmem>>, vector<512x1xf32>
    %88 = vector.broadcast %87 : vector<512x1xf32> to vector<512x4xf32>
    %89 = arith.mulf %86, %88 : vector<512x4xf32>
    %c18_64 = arith.constant 18 : index
    %c0_65 = arith.constant 0 : index
    %90 = vector.load %arg9[%c18_64, %c0_65] : memref<546x4xf32, #tpu.memory_space<vmem>>, vector<512x4xf32>
    %c0_66 = arith.constant 0 : index
    %c5_67 = arith.constant 5 : index
    %91 = vector.load %arg1[%c0_66, %c5_67] : memref<512x9xf32, #tpu.memory_space<vmem>>, vector<512x1xf32>
    %92 = vector.broadcast %91 : vector<512x1xf32> to vector<512x4xf32>
    %93 = arith.mulf %90, %92 : vector<512x4xf32>
    %c32_68 = arith.constant 32 : index
    %c0_69 = arith.constant 0 : index
    %94 = vector.load %arg9[%c32_68, %c0_69] : memref<546x4xf32, #tpu.memory_space<vmem>>, vector<512x4xf32>
    %c0_70 = arith.constant 0 : index
    %c6_71 = arith.constant 6 : index
    %95 = vector.load %arg1[%c0_70, %c6_71] : memref<512x9xf32, #tpu.memory_space<vmem>>, vector<512x1xf32>
    %96 = vector.broadcast %95 : vector<512x1xf32> to vector<512x4xf32>
    %97 = arith.mulf %94, %96 : vector<512x4xf32>
    %c33_72 = arith.constant 33 : index
    %c0_73 = arith.constant 0 : index
    %98 = vector.load %arg9[%c33_72, %c0_73] : memref<546x4xf32, #tpu.memory_space<vmem>>, vector<512x4xf32>
    %c0_74 = arith.constant 0 : index
    %c7_75 = arith.constant 7 : index
    %99 = vector.load %arg1[%c0_74, %c7_75] : memref<512x9xf32, #tpu.memory_space<vmem>>, vector<512x1xf32>
    %100 = vector.broadcast %99 : vector<512x1xf32> to vector<512x4xf32>
    %101 = arith.mulf %98, %100 : vector<512x4xf32>
    %c34_76 = arith.constant 34 : index
    %c0_77 = arith.constant 0 : index
    %102 = vector.load %arg9[%c34_76, %c0_77] : memref<546x4xf32, #tpu.memory_space<vmem>>, vector<512x4xf32>
    %c0_78 = arith.constant 0 : index
    %c8_79 = arith.constant 8 : index
    %103 = vector.load %arg1[%c0_78, %c8_79] : memref<512x9xf32, #tpu.memory_space<vmem>>, vector<512x1xf32>
    %104 = vector.broadcast %103 : vector<512x1xf32> to vector<512x4xf32>
    %105 = arith.mulf %102, %104 : vector<512x4xf32>
    %cst_80 = arith.constant 0.000000e+00 : f32
    %106 = vector.broadcast %cst_80 : f32 to vector<512x92xf32>
    %107 = tpu.concatenate %73, %77, %81, %85, %89, %93, %97, %101, %105, %106 in 1 : vector<512x4xf32>, vector<512x4xf32>, vector<512x4xf32>, vector<512x4xf32>, vector<512x4xf32>, vector<512x4xf32>, vector<512x4xf32>, vector<512x4xf32>, vector<512x4xf32>, vector<512x92xf32> -> vector<512x128xf32>
    %c0_81 = arith.constant 0 : index
    %c0_82 = arith.constant 0 : index
    %108 = vector.load %arg5[%c0_81, %c0_82] : memref<128x128xf32, #tpu.memory_space<vmem>>, vector<128x128xf32>
    %cst_83 = arith.constant dense<0.000000e+00> : vector<512x128xf32>
    %109 = tpu.matmul %107, %108, %cst_83 {dimension_numbers = #tpu.dot_dimension_numbers<[1], [0], [0], [1], [0, 0, 1, 1], [], []>} : vector<512x128xf32>, vector<128x128xf32>, vector<512x128xf32> -> vector<512x128xf32>
    %cst_84 = arith.constant dense<0.000000e+00> : vector<128xf32>
    %110 = vector.multi_reduction <add>, %109, %cst_84 [0] : vector<512x128xf32> to vector<128xf32>
    %111 = vector.shape_cast %110 : vector<128xf32> to vector<1x128xf32>
    %cst_85 = arith.constant 0.001953125 : f32
    %112 = vector.broadcast %cst_85 : f32 to vector<1x128xf32>
    %113 = arith.mulf %111, %112 : vector<1x128xf32>
    %114 = vector.broadcast %113 : vector<1x128xf32> to vector<512x128xf32>
    %115 = arith.subf %109, %114 : vector<512x128xf32>
    %116 = arith.mulf %115, %115 : vector<512x128xf32>
    %cst_86 = arith.constant dense<0.000000e+00> : vector<128xf32>
    %117 = vector.multi_reduction <add>, %116, %cst_86 [0] : vector<512x128xf32> to vector<128xf32>
    %118 = vector.shape_cast %117 : vector<128xf32> to vector<1x128xf32>
    %cst_87 = arith.constant 0.001953125 : f32
    %119 = vector.broadcast %cst_87 : f32 to vector<1x128xf32>
    %120 = arith.mulf %118, %119 : vector<1x128xf32>
    %cst_88 = arith.constant 9.99999974E-6 : f32
    %121 = vector.broadcast %cst_88 : f32 to vector<1x128xf32>
    %122 = arith.addf %120, %121 : vector<1x128xf32>
    %123 = math.rsqrt %122 : vector<1x128xf32>
    %c0_89 = arith.constant 0 : index
    %c0_90 = arith.constant 0 : index
    %124 = vector.load %arg6[%c0_89, %c0_90] : memref<1x128xf32, #tpu.memory_space<vmem>>, vector<1x128xf32>
    %125 = arith.mulf %123, %124 : vector<1x128xf32>
    %126 = vector.broadcast %125 : vector<1x128xf32> to vector<512x128xf32>
    %127 = arith.mulf %115, %126 : vector<512x128xf32>
    %c0_91 = arith.constant 0 : index
    %c0_92 = arith.constant 0 : index
    %128 = vector.load %arg7[%c0_91, %c0_92] : memref<1x128xf32, #tpu.memory_space<vmem>>, vector<1x128xf32>
    %129 = vector.broadcast %128 : vector<1x128xf32> to vector<512x128xf32>
    %130 = arith.addf %127, %129 : vector<512x128xf32>
    %cst_93 = arith.constant 0.000000e+00 : f32
    %131 = vector.broadcast %cst_93 : f32 to vector<512x124xf32>
    %132 = tpu.concatenate %3, %131 in 1 : vector<512x4xf32>, vector<512x124xf32> -> vector<512x128xf32>
    %133 = arith.addf %130, %132 : vector<512x128xf32>
    %cst_94 = arith.constant 0.000000e+00 : f32
    %134 = vector.broadcast %cst_94 : f32 to vector<512x128xf32>
    %135 = arith.maximumf %133, %134 : vector<512x128xf32>
    %c0_95 = arith.constant 0 : index
    %c0_96 = arith.constant 0 : index
    %136 = vector.load %arg8[%c0_95, %c0_96] : memref<512x128xf32, #tpu.memory_space<vmem>>, vector<512x128xf32>
    tpu.vector_store %arg8[%c0_95, %c0_96], %135 {strides = array<i32>} : memref<512x128xf32, #tpu.memory_space<vmem>>, vector<512x128xf32>,
    return
  }
}

</mosaic_0001>

<llo_original>
// kernel: tpu_custom_call.1
$region0: #{tpu_custom_call.1}
  #allocation0 [shape = 'u32[]', space=smem, size = 0x4, offset = 0x4, fixed_abs, tag = 'smem constant byte address 0x4 - core index']
  #allocation1 [shape = 'u32[72,128]{1,0:T(1,128)}', space=vmem, size = 0x9000, scoped, tag = 'internal scratch']
  #allocation2 [shape = 'f32[546,4]{1,0:T(8,128)}', space=vmem, size = 0x45000, scoped, tag = 'scratch operand']
  %s0 = inlined_call_operand.vmem [shape: f32[512,4], index: 0, kind: input, shape index: {}]
  %s1 = inlined_call_operand.vmem [shape: f32[512,9], index: 1, kind: input, shape index: {}]
  %s2 = inlined_call_operand.vmem [shape: f32[128,128], index: 2, kind: input, shape index: {}]
  %s3 = inlined_call_operand.vmem [shape: f32[1,128], index: 3, kind: input, shape index: {}]
  %s4 = inlined_call_operand.vmem [shape: f32[1,128], index: 4, kind: input, shape index: {}]
  %s5 = inlined_call_operand.vmem [shape: f32[128,128], index: 5, kind: input, shape index: {}]
  %s6 = inlined_call_operand.vmem [shape: f32[1,128], index: 6, kind: input, shape index: {}]
  %s7 = inlined_call_operand.vmem [shape: f32[1,128], index: 7, kind: input, shape index: {}]
  %s8 = inlined_call_operand.hbm [shape: f32[512,128], index: 8, kind: output, shape index: {}]
  %s9 = sld [smem:[#allocation0]]
  $region42: #{tpu_custom_call.1} parent=0
    _
  %s11 = ssub.s32 1, %s9
  %s12 = scalar_select 0, %s11, %s9
  $region1: #{tpu_custom_call.1} parent=0
    #allocation3 [shape = 'u8[262144]{0}', space=vmem, size = 0x40000, scoped, tag = 'output window, operand 0, single buffered']
    #allocation4 [shape = 's32[1]{0}', space=sflag, size = 0x4, scoped, tag = 'scoped memory for tpu_custom_call.1']
    %13 = vsyncpa [#allocation4], 0
    // Predicated region
    $region2: #{tpu_custom_call.1} parent=1 // pred_check
      _
    $region3: #{tpu_custom_call.1} parent=1 // pred_check_branch
      %15 = sbr.rel (0) target = $region5
    $region4: #{tpu_custom_call.1} parent=1 // pred_region
      _
    $region5: #{tpu_custom_call.1} parent=1 // pred_fallthru
      _
    // Predicated region
    $region6: #{tpu_custom_call.1} parent=1 // pred_check
      _
    $region7: #{tpu_custom_call.1} parent=1 // pred_check_branch
      %17 = sbr.rel (0) target = $region9
    $region8: #{tpu_custom_call.1} parent=1 // pred_region
      _
    $region9: #{tpu_custom_call.1} parent=1 // pred_fallthru
      _
    // Predicated region
    $region10: #{tpu_custom_call.1} parent=1 // pred_check
      _
    $region11: #{tpu_custom_call.1} parent=1 // pred_check_branch
      %19 = sbr.rel (0) target = $region13
    $region12: #{tpu_custom_call.1} parent=1 // pred_region
      _
    $region13: #{tpu_custom_call.1} parent=1 // pred_fallthru
      _
    // Predicated region
    $region14: #{tpu_custom_call.1} parent=1 // pred_check
      _
    $region15: #{tpu_custom_call.1} parent=1 // pred_check_branch
      %21 = sbr.rel (0) target = $region17
    $region16: #{tpu_custom_call.1} parent=1 // pred_region
      _
    $region17: #{tpu_custom_call.1} parent=1 // pred_fallthru
      _
    // Predicated region
    $region18: #{tpu_custom_call.1} parent=1 // pred_check
      _
    $region19: #{tpu_custom_call.1} parent=1 // pred_check_branch
      %23 = sbr.rel (0) target = $region21
    $region20: #{tpu_custom_call.1} parent=1 // pred_region
      _
    $region21: #{tpu_custom_call.1} parent=1 // pred_fallthru
      _
    // Predicated region
    $region22: #{tpu_custom_call.1} parent=1 // pred_check
      _
    $region23: #{tpu_custom_call.1} parent=1 // pred_check_branch
      %25 = sbr.rel (0) target = $region25
    $region24: #{tpu_custom_call.1} parent=1 // pred_region
      _
    $region25: #{tpu_custom_call.1} parent=1 // pred_fallthru
      _
    // Predicated region
    $region26: #{tpu_custom_call.1} parent=1 // pred_check
      _
    $region27: #{tpu_custom_call.1} parent=1 // pred_check_branch
      %27 = sbr.rel (0) target = $region29
    $region28: #{tpu_custom_call.1} parent=1 // pred_region
      _
    $region29: #{tpu_custom_call.1} parent=1 // pred_fallthru
      _
    // Predicated region
    $region30: #{tpu_custom_call.1} parent=1 // pred_check
      _
    $region31: #{tpu_custom_call.1} parent=1 // pred_check_branch
      %29 = sbr.rel (0) target = $region33
    $region32: #{tpu_custom_call.1} parent=1 // pred_region
      _
    $region33: #{tpu_custom_call.1} parent=1 // pred_fallthru
      _
    %vm30 = vcmask 31744
    %31 = vst.msk [vmem:[#allocation2] sm:$0xff] %vm30, 0.0
    %32 = vst.msk [vmem:[#allocation2 + $0x8] sm:$0xff] %vm30, 0.0
    %vm33 = vcmask 24576
    %34 = vst.msk [vmem:[#allocation2 + $0x10] sm:$0x1] %vm33, 0.0
    %35 = vst.msk [vmem:[#allocation2 + $0x211] sm:$0xff] %vm30, 0.0
    %36 = vst.msk [vmem:[#allocation2 + $0x219] sm:$0xff] %vm30, 0.0
    %37 = vst.msk [vmem:[#allocation2 + $0x221] sm:$0x1] %vm33, 0.0
    %v38 = vld [vmem:[%s0] sm:$0xff]
    %v39 = vld [vmem:[%s0 + $0x8] sm:$0xff]
    %v40 = vld [vmem:[%s0 + $0x10] sm:$0xff]
    %v41 = vld [vmem:[%s0 + $0x18] sm:$0xff]
    %v42 = vld [vmem:[%s0 + $0x20] sm:$0xff]
    %v43 = vld [vmem:[%s0 + $0x28] sm:$0xff]
    %v44 = vld [vmem:[%s0 + $0x30] sm:$0xff]
    %v45 = vld [vmem:[%s0 + $0x38] sm:$0xff]
    %v46 = vld [vmem:[%s0 + $0x40] sm:$0xff]
    %v47 = vld [vmem:[%s0 + $0x48] sm:$0xff]
    %v48 = vld [vmem:[%s0 + $0x50] sm:$0xff]
    %v49 = vld [vmem:[%s0 + $0x58] sm:$0xff]
    %v50 = vld [vmem:[%s0 + $0x60] sm:$0xff]
    %v51 = vld [vmem:[%s0 + $0x68] sm:$0xff]
    %v52 = vld [vmem:[%s0 + $0x70] sm:$0xff]
    %v53 = vld [vmem:[%s0 + $0x78] sm:$0xff]
    %v54 = vld [vmem:[%s0 + $0x80] sm:$0xff]
    %v55 = vld [vmem:[%s0 + $0x88] sm:$0xff]
    %v56 = vld [vmem:[%s0 + $0x90] sm:$0xff]
    %v57 = vld [vmem:[%s0 + $0x98] sm:$0xff]
    %v58 = vld [vmem:[%s0 + $0xa0] sm:$0xff]
    %v59 = vld [vmem:[%s0 + $0xa8] sm:$0xff]
    %v60 = vld [vmem:[%s0 + $0xb0] sm:$0xff]
    %v61 = vld [vmem:[%s0 + $0xb8] sm:$0xff]
    %v62 = vld [vmem:[%s0 + $0xc0] sm:$0xff]
    %v63 = vld [vmem:[%s0 + $0xc8] sm:$0xff]
    %v64 = vld [vmem:[%s0 + $0xd0] sm:$0xff]
    %v65 = vld [vmem:[%s0 + $0xd8] sm:$0xff]
    %v66 = vld [vmem:[%s0 + $0xe0] sm:$0xff]
    %v67 = vld [vmem:[%s0 + $0xe8] sm:$0xff]
    %v68 = vld [vmem:[%s0 + $0xf0] sm:$0xff]
    %v69 = vld [vmem:[%s0 + $0xf8] sm:$0xff]
    %v70 = vld [vmem:[%s0 + $0x100] sm:$0xff]
    %v71 = vld [vmem:[%s0 + $0x108] sm:$0xff]
    %v72 = vld [vmem:[%s0 + $0x110] sm:$0xff]
    %v73 = vld [vmem:[%s0 + $0x118] sm:$0xff]
    %v74 = vld [vmem:[%s0 + $0x120] sm:$0xff]
    %v75 = vld [vmem:[%s0 + $0x128] sm:$0xff]
    %v76 = vld [vmem:[%s0 + $0x130] sm:$0xff]
    %v77 = vld [vmem:[%s0 + $0x138] sm:$0xff]
    %v78 = vld [vmem:[%s0 + $0x140] sm:$0xff]
    %v79 = vld [vmem:[%s0 + $0x148] sm:$0xff]
    %v80 = vld [vmem:[%s0 + $0x150] sm:$0xff]
    %v81 = vld [vmem:[%s0 + $0x158] sm:$0xff]
    %v82 = vld [vmem:[%s0 + $0x160] sm:$0xff]
    %v83 = vld [vmem:[%s0 + $0x168] sm:$0xff]
    %v84 = vld [vmem:[%s0 + $0x170] sm:$0xff]
    %v85 = vld [vmem:[%s0 + $0x178] sm:$0xff]
    %v86 = vld [vmem:[%s0 + $0x180] sm:$0xff]
    %v87 = vld [vmem:[%s0 + $0x188] sm:$0xff]
    %v88 = vld [vmem:[%s0 + $0x190] sm:$0xff]
    %v89 = vld [vmem:[%s0 + $0x198] sm:$0xff]
    %v90 = vld [vmem:[%s0 + $0x1a0] sm:$0xff]
    %v91 = vld [vmem:[%s0 + $0x1a8] sm:$0xff]
    %v92 = vld [vmem:[%s0 + $0x1b0] sm:$0xff]
    %v93 = vld [vmem:[%s0 + $0x1b8] sm:$0xff]
    %v94 = vld [vmem:[%s0 + $0x1c0] sm:$0xff]
    %v95 = vld [vmem:[%s0 + $0x1c8] sm:$0xff]
    %v96 = vld [vmem:[%s0 + $0x1d0] sm:$0xff]
    %v97 = vld [vmem:[%s0 + $0x1d8] sm:$0xff]
    %v98 = vld [vmem:[%s0 + $0x1e0] sm:$0xff]
    %v99 = vld [vmem:[%s0 + $0x1e8] sm:$0xff]
    %v100 = vld [vmem:[%s0 + $0x1f0] sm:$0xff]
    %v101 = vld [vmem:[%s0 + $0x1f8] sm:$0xff]
    %102 = vst.msk [vmem:[#allocation2 + $0x11] sm:$0xff] %vm30, %v38
    %103 = vst.msk [vmem:[#allocation2 + $0x19] sm:$0xff] %vm30, %v39
    %104 = vst.msk [vmem:[#allocation2 + $0x21] sm:$0xff] %vm30, %v40
    %105 = vst.msk [vmem:[#allocation2 + $0x29] sm:$0xff] %vm30, %v41
    %106 = vst.msk [vmem:[#allocation2 + $0x31] sm:$0xff] %vm30, %v42
    %107 = vst.msk [vmem:[#allocation2 + $0x39] sm:$0xff] %vm30, %v43
    %108 = vst.msk [vmem:[#allocation2 + $0x41] sm:$0xff] %vm30, %v44
    %109 = vst.msk [vmem:[#allocation2 + $0x49] sm:$0xff] %vm30, %v45
    %110 = vst.msk [vmem:[#allocation2 + $0x51] sm:$0xff] %vm30, %v46
    %111 = vst.msk [vmem:[#allocation2 + $0x59] sm:$0xff] %vm30, %v47
    %112 = vst.msk [vmem:[#allocation2 + $0x61] sm:$0xff] %vm30, %v48
    %113 = vst.msk [vmem:[#allocation2 + $0x69] sm:$0xff] %vm30, %v49
    %114 = vst.msk [vmem:[#allocation2 + $0x71] sm:$0xff] %vm30, %v50
    %115 = vst.msk [vmem:[#allocation2 + $0x79] sm:$0xff] %vm30, %v51
    %116 = vst.msk [vmem:[#allocation2 + $0x81] sm:$0xff] %vm30, %v52
    %117 = vst.msk [vmem:[#allocation2 + $0x89] sm:$0xff] %vm30, %v53
    %118 = vst.msk [vmem:[#allocation2 + $0x91] sm:$0xff] %vm30, %v54
    %119 = vst.msk [vmem:[#allocation2 + $0x99] sm:$0xff] %vm30, %v55
    %120 = vst.msk [vmem:[#allocation2 + $0xa1] sm:$0xff] %vm30, %v56
    %121 = vst.msk [vmem:[#allocation2 + $0xa9] sm:$0xff] %vm30, %v57
    %122 = vst.msk [vmem:[#allocation2 + $0xb1] sm:$0xff] %vm30, %v58
    %123 = vst.msk [vmem:[#allocation2 + $0xb9] sm:$0xff] %vm30, %v59
    %124 = vst.msk [vmem:[#allocation2 + $0xc1] sm:$0xff] %vm30, %v60
    %125 = vst.msk [vmem:[#allocation2 + $0xc9] sm:$0xff] %vm30, %v61
    %126 = vst.msk [vmem:[#allocation2 + $0xd1] sm:$0xff] %vm30, %v62
    %127 = vst.msk [vmem:[#allocation2 + $0xd9] sm:$0xff] %vm30, %v63
    %128 = vst.msk [vmem:[#allocation2 + $0xe1] sm:$0xff] %vm30, %v64
    %129 = vst.msk [vmem:[#allocation2 + $0xe9] sm:$0xff] %vm30, %v65
    %130 = vst.msk [vmem:[#allocation2 + $0xf1] sm:$0xff] %vm30, %v66
    %131 = vst.msk [vmem:[#allocation2 + $0xf9] sm:$0xff] %vm30, %v67
    %132 = vst.msk [vmem:[#allocation2 + $0x101] sm:$0xff] %vm30, %v68
    %133 = vst.msk [vmem:[#allocation2 + $0x109] sm:$0xff] %vm30, %v69
    %134 = vst.msk [vmem:[#allocation2 + $0x111] sm:$0xff] %vm30, %v70
    %135 = vst.msk [vmem:[#allocation2 + $0x119] sm:$0xff] %vm30, %v71
    %136 = vst.msk [vmem:[#allocation2 + $0x121] sm:$0xff] %vm30, %v72
    %137 = vst.msk [vmem:[#allocation2 + $0x129] sm:$0xff] %vm30, %v73
    %138 = vst.msk [vmem:[#allocation2 + $0x131] sm:$0xff] %vm30, %v74
    %139 = vst.msk [vmem:[#allocation2 + $0x139] sm:$0xff] %vm30, %v75
    %140 = vst.msk [vmem:[#allocation2 + $0x141] sm:$0xff] %vm30, %v76
    %141 = vst.msk [vmem:[#allocation2 + $0x149] sm:$0xff] %vm30, %v77
    %142 = vst.msk [vmem:[#allocation2 + $0x151] sm:$0xff] %vm30, %v78
    %143 = vst.msk [vmem:[#allocation2 + $0x159] sm:$0xff] %vm30, %v79
    %144 = vst.msk [vmem:[#allocation2 + $0x161] sm:$0xff] %vm30, %v80
    %145 = vst.msk [vmem:[#allocation2 + $0x169] sm:$0xff] %vm30, %v81
    %146 = vst.msk [vmem:[#allocation2 + $0x171] sm:$0xff] %vm30, %v82
    %147 = vst.msk [vmem:[#allocation2 + $0x179] sm:$0xff] %vm30, %v83
    %148 = vst.msk [vmem:[#allocation2 + $0x181] sm:$0xff] %vm30, %v84
    %149 = vst.msk [vmem:[#allocation2 + $0x189] sm:$0xff] %vm30, %v85
    %150 = vst.msk [vmem:[#allocation2 + $0x191] sm:$0xff] %vm30, %v86
    %151 = vst.msk [vmem:[#allocation2 + $0x199] sm:$0xff] %vm30, %v87
    %152 = vst.msk [vmem:[#allocation2 + $0x1a1] sm:$0xff] %vm30, %v88
    %153 = vst.msk [vmem:[#allocation2 + $0x1a9] sm:$0xff] %vm30, %v89
    %154 = vst.msk [vmem:[#allocation2 + $0x1b1] sm:$0xff] %vm30, %v90
    %155 = vst.msk [vmem:[#allocation2 + $0x1b9] sm:$0xff] %vm30, %v91
    %156 = vst.msk [vmem:[#allocation2 + $0x1c1] sm:$0xff] %vm30, %v92
    %157 = vst.msk [vmem:[#allocation2 + $0x1c9] sm:$0xff] %vm30, %v93
    %158 = vst.msk [vmem:[#allocation2 + $0x1d1] sm:$0xff] %vm30, %v94
    %159 = vst.msk [vmem:[#allocation2 + $0x1d9] sm:$0xff] %vm30, %v95
    %160 = vst.msk [vmem:[#allocation2 + $0x1e1] sm:$0xff] %vm30, %v96
    %161 = vst.msk [vmem:[#allocation2 + $0x1e9] sm:$0xff] %vm30, %v97
    %162 = vst.msk [vmem:[#allocation2 + $0x1f1] sm:$0xff] %vm30, %v98
    %163 = vst.msk [vmem:[#allocation2 + $0x1f9] sm:$0xff] %vm30, %v99
    %164 = vst.msk [vmem:[#allocation2 + $0x201] sm:$0xff] %vm30, %v100
    %165 = vst.msk [vmem:[#allocation2 + $0x209] sm:$0xff] %vm30, %v101
    %v166 = vld [vmem:[#allocation2] sm:$0xff]
    %v167 = vld [vmem:[#allocation2 + $0x8] sm:$0xff]
    %v168 = vld [vmem:[#allocation2 + $0x10] sm:$0xff]
    %v169 = vld [vmem:[#allocation2 + $0x18] sm:$0xff]
    %v170 = vld [vmem:[#allocation2 + $0x20] sm:$0xff]
    %v171 = vld [vmem:[#allocation2 + $0x28] sm:$0xff]
    %v172 = vld [vmem:[#allocation2 + $0x30] sm:$0xff]
    %v173 = vld [vmem:[#allocation2 + $0x38] sm:$0xff]
    %v174 = vld [vmem:[#allocation2 + $0x40] sm:$0xff]
    %v175 = vld [vmem:[#allocation2 + $0x48] sm:$0xff]
    %v176 = vld [vmem:[#allocation2 + $0x50] sm:$0xff]
    %v177 = vld [vmem:[#allocation2 + $0x58] sm:$0xff]
    %v178 = vld [vmem:[#allocation2 + $0x60] sm:$0xff]
    %v179 = vld [vmem:[#allocation2 + $0x68] sm:$0xff]
    %v180 = vld [vmem:[#allocation2 + $0x70] sm:$0xff]
    %v181 = vld [vmem:[#allocation2 + $0x78] sm:$0xff]
    %v182 = vld [vmem:[#allocation2 + $0x80] sm:$0xff]
    %v183 = vld [vmem:[#allocation2 + $0x88] sm:$0xff]
    %v184 = vld [vmem:[#allocation2 + $0x90] sm:$0xff]
    %v185 = vld [vmem:[#allocation2 + $0x98] sm:$0xff]
    %v186 = vld [vmem:[#allocation2 + $0xa0] sm:$0xff]
    %v187 = vld [vmem:[#allocation2 + $0xa8] sm:$0xff]
    %v188 = vld [vmem:[#allocation2 + $0xb0] sm:$0xff]
    %v189 = vld [vmem:[#allocation2 + $0xb8] sm:$0xff]
    %v190 = vld [vmem:[#allocation2 + $0xc0] sm:$0xff]
    %v191 = vld [vmem:[#allocation2 + $0xc8] sm:$0xff]
    %v192 = vld [vmem:[#allocation2 + $0xd0] sm:$0xff]
    %v193 = vld [vmem:[#allocation2 + $0xd8] sm:$0xff]
    %v194 = vld [vmem:[#allocation2 + $0xe0] sm:$0xff]
    %v195 = vld [vmem:[#allocation2 + $0xe8] sm:$0xff]
    %v196 = vld [vmem:[#allocation2 + $0xf0] sm:$0xff]
    %v197 = vld [vmem:[#allocation2 + $0xf8] sm:$0xff]
    %v198 = vld [vmem:[#allocation2 + $0x100] sm:$0xff]
    %v199 = vld [vmem:[#allocation2 + $0x108] sm:$0xff]
    %v200 = vld [vmem:[#allocation2 + $0x110] sm:$0xff]
    %v201 = vld [vmem:[#allocation2 + $0x118] sm:$0xff]
    %v202 = vld [vmem:[#allocation2 + $0x120] sm:$0xff]
    %v203 = vld [vmem:[#allocation2 + $0x128] sm:$0xff]
    %v204 = vld [vmem:[#allocation2 + $0x130] sm:$0xff]
    %v205 = vld [vmem:[#allocation2 + $0x138] sm:$0xff]
    %v206 = vld [vmem:[#allocation2 + $0x140] sm:$0xff]
    %v207 = vld [vmem:[#allocation2 + $0x148] sm:$0xff]
    %v208 = vld [vmem:[#allocation2 + $0x150] sm:$0xff]
    %v209 = vld [vmem:[#allocation2 + $0x158] sm:$0xff]
    %v210 = vld [vmem:[#allocation2 + $0x160] sm:$0xff]
    %v211 = vld [vmem:[#allocation2 + $0x168] sm:$0xff]
    %v212 = vld [vmem:[#allocation2 + $0x170] sm:$0xff]
    %v213 = vld [vmem:[#allocation2 + $0x178] sm:$0xff]
    %v214 = vld [vmem:[#allocation2 + $0x180] sm:$0xff]
    %v215 = vld [vmem:[#allocation2 + $0x188] sm:$0xff]
    %v216 = vld [vmem:[#allocation2 + $0x190] sm:$0xff]
    %v217 = vld [vmem:[#allocation2 + $0x198] sm:$0xff]
    %v218 = vld [vmem:[#allocation2 + $0x1a0] sm:$0xff]
    %v219 = vld [vmem:[#allocation2 + $0x1a8] sm:$0xff]
    %v220 = vld [vmem:[#allocation2 + $0x1b0] sm:$0xff]
    %v221 = vld [vmem:[#allocation2 + $0x1b8] sm:$0xff]
    %v222 = vld [vmem:[#allocation2 + $0x1c0] sm:$0xff]
    %v223 = vld [vmem:[#allocation2 + $0x1c8] sm:$0xff]
    %v224 = vld [vmem:[#allocation2 + $0x1d0] sm:$0xff]
    %v225 = vld [vmem:[#allocation2 + $0x1d8] sm:$0xff]
    %v226 = vld [vmem:[#allocation2 + $0x1e0] sm:$0xff]
    %v227 = vld [vmem:[#allocation2 + $0x1e8] sm:$0xff]
    %v228 = vld [vmem:[#allocation2 + $0x1f0] sm:$0xff]
    %v229 = vld [vmem:[#allocation2 + $0x1f8] sm:$0xff]
    %v230 = vld [vmem:[%s1] sm:$0xff]
    %v231 = vld [vmem:[%s1 + $0x8] sm:$0xff]
    %v232 = vld [vmem:[%s1 + $0x10] sm:$0xff]
    %v233 = vld [vmem:[%s1 + $0x18] sm:$0xff]
    %v234 = vld [vmem:[%s1 + $0x20] sm:$0xff]
    %v235 = vld [vmem:[%s1 + $0x28] sm:$0xff]
    %v236 = vld [vmem:[%s1 + $0x30] sm:$0xff]
    %v237 = vld [vmem:[%s1 + $0x38] sm:$0xff]
    %v238 = vld [vmem:[%s1 + $0x40] sm:$0xff]
    %v239 = vld [vmem:[%s1 + $0x48] sm:$0xff]
    %v240 = vld [vmem:[%s1 + $0x50] sm:$0xff]
    %v241 = vld [vmem:[%s1 + $0x58] sm:$0xff]
    %v242 = vld [vmem:[%s1 + $0x60] sm:$0xff]
    %v243 = vld [vmem:[%s1 + $0x68] sm:$0xff]
    %v244 = vld [vmem:[%s1 + $0x70] sm:$0xff]
    %v245 = vld [vmem:[%s1 + $0x78] sm:$0xff]
    %v246 = vld [vmem:[%s1 + $0x80] sm:$0xff]
    %v247 = vld [vmem:[%s1 + $0x88] sm:$0xff]
    %v248 = vld [vmem:[%s1 + $0x90] sm:$0xff]
    %v249 = vld [vmem:[%s1 + $0x98] sm:$0xff]
    %v250 = vld [vmem:[%s1 + $0xa0] sm:$0xff]
    %v251 = vld [vmem:[%s1 + $0xa8] sm:$0xff]
    %v252 = vld [vmem:[%s1 + $0xb0] sm:$0xff]
    %v253 = vld [vmem:[%s1 + $0xb8] sm:$0xff]
    %v254 = vld [vmem:[%s1 + $0xc0] sm:$0xff]
    %v255 = vld [vmem:[%s1 + $0xc8] sm:$0xff]
    %v256 = vld [vmem:[%s1 + $0xd0] sm:$0xff]
    %v257 = vld [vmem:[%s1 + $0xd8] sm:$0xff]
    %v258 = vld [vmem:[%s1 + $0xe0] sm:$0xff]
    %v259 = vld [vmem:[%s1 + $0xe8] sm:$0xff]
    %v260 = vld [vmem:[%s1 + $0xf0] sm:$0xff]
    %v261 = vld [vmem:[%s1 + $0xf8] sm:$0xff]
    %v262 = vld [vmem:[%s1 + $0x100] sm:$0xff]
    %v263 = vld [vmem:[%s1 + $0x108] sm:$0xff]
    %v264 = vld [vmem:[%s1 + $0x110] sm:$0xff]
    %v265 = vld [vmem:[%s1 + $0x118] sm:$0xff]
    %v266 = vld [vmem:[%s1 + $0x120] sm:$0xff]
    %v267 = vld [vmem:[%s1 + $0x128] sm:$0xff]
    %v268 = vld [vmem:[%s1 + $0x130] sm:$0xff]
    %v269 = vld [vmem:[%s1 + $0x138] sm:$0xff]
    %v270 = vld [vmem:[%s1 + $0x140] sm:$0xff]
    %v271 = vld [vmem:[%s1 + $0x148] sm:$0xff]
    %v272 = vld [vmem:[%s1 + $0x150] sm:$0xff]
    %v273 = vld [vmem:[%s1 + $0x158] sm:$0xff]
    %v274 = vld [vmem:[%s1 + $0x160] sm:$0xff]
    %v275 = vld [vmem:[%s1 + $0x168] sm:$0xff]
    %v276 = vld [vmem:[%s1 + $0x170] sm:$0xff]
    %v277 = vld [vmem:[%s1 + $0x178] sm:$0xff]
    %v278 = vld [vmem:[%s1 + $0x180] sm:$0xff]
    %v279 = vld [vmem:[%s1 + $0x188] sm:$0xff]
    %v280 = vld [vmem:[%s1 + $0x190] sm:$0xff]
    %v281 = vld [vmem:[%s1 + $0x198] sm:$0xff]
    %v282 = vld [vmem:[%s1 + $0x1a0] sm:$0xff]
    %v283 = vld [vmem:[%s1 + $0x1a8] sm:$0xff]
    %v284 = vld [vmem:[%s1 + $0x1b0] sm:$0xff]
    %v285 = vld [vmem:[%s1 + $0x1b8] sm:$0xff]
    %v286 = vld [vmem:[%s1 + $0x1c0] sm:$0xff]
    %v287 = vld [vmem:[%s1 + $0x1c8] sm:$0xff]
    %v288 = vld [vmem:[%s1 + $0x1d0] sm:$0xff]
    %v289 = vld [vmem:[%s1 + $0x1d8] sm:$0xff]
    %v290 = vld [vmem:[%s1 + $0x1e0] sm:$0xff]
    %v291 = vld [vmem:[%s1 + $0x1e8] sm:$0xff]
    %v292 = vld [vmem:[%s1 + $0x1f0] sm:$0xff]
    %v293 = vld [vmem:[%s1 + $0x1f8] sm:$0xff]
    %295 = vset.pattern.permute.xlu0 0
    %296 = vperm.xlu0 %295, %v230
    %v297 = vpop.permute.xlu0 %296
    %300 = vset.pattern.permute.xlu0 0
    %301 = vperm.xlu0 %300, %v231
    %v302 = vpop.permute.xlu0 %301
    %305 = vset.pattern.permute.xlu0 0
    %306 = vperm.xlu0 %305, %v232
    %v307 = vpop.permute.xlu0 %306
    %310 = vset.pattern.permute.xlu0 0
    %311 = vperm.xlu0 %310, %v233
    %v312 = vpop.permute.xlu0 %311
    %315 = vset.pattern.permute.xlu0 0
    %316 = vperm.xlu0 %315, %v234
    %v317 = vpop.permute.xlu0 %316
    %320 = vset.pattern.permute.xlu0 0
    %321 = vperm.xlu0 %320, %v235
    %v322 = vpop.permute.xlu0 %321
    %325 = vset.pattern.permute.xlu0 0
    %326 = vperm.xlu0 %325, %v236
    %v327 = vpop.permute.xlu0 %326
    %330 = vset.pattern.permute.xlu0 0
    %331 = vperm.xlu0 %330, %v237
    %v332 = vpop.permute.xlu0 %331
    %335 = vset.pattern.permute.xlu0 0
    %336 = vperm.xlu0 %335, %v238
    %v337 = vpop.permute.xlu0 %336
    %340 = vset.pattern.permute.xlu0 0
    %341 = vperm.xlu0 %340, %v239
    %v342 = vpop.permute.xlu0 %341
    %345 = vset.pattern.permute.xlu0 0
    %346 = vperm.xlu0 %345, %v240
    %v347 = vpop.permute.xlu0 %346
    %350 = vset.pattern.permute.xlu0 0
    %351 = vperm.xlu0 %350, %v241
    %v352 = vpop.permute.xlu0 %351
    %355 = vset.pattern.permute.xlu0 0
    %356 = vperm.xlu0 %355, %v242
    %v357 = vpop.permute.xlu0 %356
    %360 = vset.pattern.permute.xlu0 0
    %361 = vperm.xlu0 %360, %v243
    %v362 = vpop.permute.xlu0 %361
    %365 = vset.pattern.permute.xlu0 0
    %366 = vperm.xlu0 %365, %v244
    %v367 = vpop.permute.xlu0 %366
    %370 = vset.pattern.permute.xlu0 0
    %371 = vperm.xlu0 %370, %v245
    %v372 = vpop.permute.xlu0 %371
    %375 = vset.pattern.permute.xlu0 0
    %376 = vperm.xlu0 %375, %v246
    %v377 = vpop.permute.xlu0 %376
    %380 = vset.pattern.permute.xlu0 0
    %381 = vperm.xlu0 %380, %v247
    %v382 = vpop.permute.xlu0 %381
    %385 = vset.pattern.permute.xlu0 0
    %386 = vperm.xlu0 %385, %v248
    %v387 = vpop.permute.xlu0 %386
    %390 = vset.pattern.permute.xlu0 0
    %391 = vperm.xlu0 %390, %v249
    %v392 = vpop.permute.xlu0 %391
    %395 = vset.pattern.permute.xlu0 0
    %396 = vperm.xlu0 %395, %v250
    %v397 = vpop.permute.xlu0 %396
    %400 = vset.pattern.permute.xlu0 0
    %401 = vperm.xlu0 %400, %v251
    %v402 = vpop.permute.xlu0 %401
    %405 = vset.pattern.permute.xlu0 0
    %406 = vperm.xlu0 %405, %v252
    %v407 = vpop.permute.xlu0 %406
    %410 = vset.pattern.permute.xlu0 0
    %411 = vperm.xlu0 %410, %v253
    %v412 = vpop.permute.xlu0 %411
    %415 = vset.pattern.permute.xlu0 0
    %416 = vperm.xlu0 %415, %v254
    %v417 = vpop.permute.xlu0 %416
    %420 = vset.pattern.permute.xlu0 0
    %421 = vperm.xlu0 %420, %v255
    %v422 = vpop.permute.xlu0 %421
    %425 = vset.pattern.permute.xlu0 0
    %426 = vperm.xlu0 %425, %v256
    %v427 = vpop.permute.xlu0 %426
    %430 = vset.pattern.permute.xlu0 0
    %431 = vperm.xlu0 %430, %v257
    %v432 = vpop.permute.xlu0 %431
    %435 = vset.pattern.permute.xlu0 0
    %436 = vperm.xlu0 %435, %v258
    %v437 = vpop.permute.xlu0 %436
    %440 = vset.pattern.permute.xlu0 0
    %441 = vperm.xlu0 %440, %v259
    %v442 = vpop.permute.xlu0 %441
    %445 = vset.pattern.permute.xlu0 0
    %446 = vperm.xlu0 %445, %v260
    %v447 = vpop.permute.xlu0 %446
    %450 = vset.pattern.permute.xlu0 0
    %451 = vperm.xlu0 %450, %v261
    %v452 = vpop.permute.xlu0 %451
    %455 = vset.pattern.permute.xlu0 0
    %456 = vperm.xlu0 %455, %v262
    %v457 = vpop.permute.xlu0 %456
    %460 = vset.pattern.permute.xlu0 0
    %461 = vperm.xlu0 %460, %v263
    %v462 = vpop.permute.xlu0 %461
    %465 = vset.pattern.permute.xlu0 0
    %466 = vperm.xlu0 %465, %v264
    %v467 = vpop.permute.xlu0 %466
    %470 = vset.pattern.permute.xlu0 0
    %471 = vperm.xlu0 %470, %v265
    %v472 = vpop.permute.xlu0 %471
    %475 = vset.pattern.permute.xlu0 0
    %476 = vperm.xlu0 %475, %v266
    %v477 = vpop.permute.xlu0 %476
    %480 = vset.pattern.permute.xlu0 0
    %481 = vperm.xlu0 %480, %v267
    %v482 = vpop.permute.xlu0 %481
    %485 = vset.pattern.permute.xlu0 0
    %486 = vperm.xlu0 %485, %v268
    %v487 = vpop.permute.xlu0 %486
    %490 = vset.pattern.permute.xlu0 0
    %491 = vperm.xlu0 %490, %v269
    %v492 = vpop.permute.xlu0 %491
    %495 = vset.pattern.permute.xlu0 0
    %496 = vperm.xlu0 %495, %v270
    %v497 = vpop.permute.xlu0 %496
    %500 = vset.pattern.permute.xlu0 0
    %501 = vperm.xlu0 %500, %v271
    %v502 = vpop.permute.xlu0 %501
    %505 = vset.pattern.permute.xlu0 0
    %506 = vperm.xlu0 %505, %v272
    %v507 = vpop.permute.xlu0 %506
    %510 = vset.pattern.permute.xlu0 0
    %511 = vperm.xlu0 %510, %v273
    %v512 = vpop.permute.xlu0 %511
    %515 = vset.pattern.permute.xlu0 0
    %516 = vperm.xlu0 %515, %v274
    %v517 = vpop.permute.xlu0 %516
    %520 = vset.pattern.permute.xlu0 0
    %521 = vperm.xlu0 %520, %v275
    %v522 = vpop.permute.xlu0 %521
    %525 = vset.pattern.permute.xlu0 0
    %526 = vperm.xlu0 %525, %v276
    %v527 = vpop.permute.xlu0 %526
    %530 = vset.pattern.permute.xlu0 0
    %531 = vperm.xlu0 %530, %v277
    %v532 = vpop.permute.xlu0 %531
    %535 = vset.pattern.permute.xlu0 0
    %536 = vperm.xlu0 %535, %v278
    %v537 = vpop.permute.xlu0 %536
    %540 = vset.pattern.permute.xlu0 0
    %541 = vperm.xlu0 %540, %v279
    %v542 = vpop.permute.xlu0 %541
    %545 = vset.pattern.permute.xlu0 0
    %546 = vperm.xlu0 %545, %v280
    %v547 = vpop.permute.xlu0 %546
    %550 = vset.pattern.permute.xlu0 0
    %551 = vperm.xlu0 %550, %v281
    %v552 = vpop.permute.xlu0 %551
    %555 = vset.pattern.permute.xlu0 0
    %556 = vperm.xlu0 %555, %v282
    %v557 = vpop.permute.xlu0 %556
    %560 = vset.pattern.permute.xlu0 0
    %561 = vperm.xlu0 %560, %v283
    %v562 = vpop.permute.xlu0 %561
    %565 = vset.pattern.permute.xlu0 0
    %566 = vperm.xlu0 %565, %v284
    %v567 = vpop.permute.xlu0 %566
    %570 = vset.pattern.permute.xlu0 0
    %571 = vperm.xlu0 %570, %v285
    %v572 = vpop.permute.xlu0 %571
    %575 = vset.pattern.permute.xlu0 0
    %576 = vperm.xlu0 %575, %v286
    %v577 = vpop.permute.xlu0 %576
    %580 = vset.pattern.permute.xlu0 0
    %581 = vperm.xlu0 %580, %v287
    %v582 = vpop.permute.xlu0 %581
    %585 = vset.pattern.permute.xlu0 0
    %586 = vperm.xlu0 %585, %v288
    %v587 = vpop.permute.xlu0 %586
    %590 = vset.pattern.permute.xlu0 0
    %591 = vperm.xlu0 %590, %v289
    %v592 = vpop.permute.xlu0 %591
    %595 = vset.pattern.permute.xlu0 0
    %596 = vperm.xlu0 %595, %v290
    %v597 = vpop.permute.xlu0 %596
    %600 = vset.pattern.permute.xlu0 0
    %601 = vperm.xlu0 %600, %v291
    %v602 = vpop.permute.xlu0 %601
    %605 = vset.pattern.permute.xlu0 0
    %606 = vperm.xlu0 %605, %v292
    %v607 = vpop.permute.xlu0 %606
    %610 = vset.pattern.permute.xlu0 0
    %611 = vperm.xlu0 %610, %v293
    %v612 = vpop.permute.xlu0 %611
    %v614 = vmul.f32 %v166, %v297
    %v615 = vmul.f32 %v167, %v302
    %v616 = vmul.f32 %v168, %v307
    %v617 = vmul.f32 %v169, %v312
    %v618 = vmul.f32 %v170, %v317
    %v619 = vmul.f32 %v171, %v322
    %v620 = vmul.f32 %v172, %v327
    %v621 = vmul.f32 %v173, %v332
    %v622 = vmul.f32 %v174, %v337
    %v623 = vmul.f32 %v175, %v342
    %v624 = vmul.f32 %v176, %v347
    %v625 = vmul.f32 %v177, %v352
    %v626 = vmul.f32 %v178, %v357
    %v627 = vmul.f32 %v179, %v362
    %v628 = vmul.f32 %v180, %v367
    %v629 = vmul.f32 %v181, %v372
    %v630 = vmul.f32 %v182, %v377
    %v631 = vmul.f32 %v183, %v382
    %v632 = vmul.f32 %v184, %v387
    %v633 = vmul.f32 %v185, %v392
    %v634 = vmul.f32 %v186, %v397
    %v635 = vmul.f32 %v187, %v402
    %v636 = vmul.f32 %v188, %v407
    %v637 = vmul.f32 %v189, %v412
    %v638 = vmul.f32 %v190, %v417
    %v639 = vmul.f32 %v191, %v422
    %v640 = vmul.f32 %v192, %v427
    %v641 = vmul.f32 %v193, %v432
    %v642 = vmul.f32 %v194, %v437
    %v643 = vmul.f32 %v195, %v442
    %v644 = vmul.f32 %v196, %v447
    %v645 = vmul.f32 %v197, %v452
    %v646 = vmul.f32 %v198, %v457
    %v647 = vmul.f32 %v199, %v462
    %v648 = vmul.f32 %v200, %v467
    %v649 = vmul.f32 %v201, %v472
    %v650 = vmul.f32 %v202, %v477
    %v651 = vmul.f32 %v203, %v482
    %v652 = vmul.f32 %v204, %v487
    %v653 = vmul.f32 %v205, %v492
    %v654 = vmul.f32 %v206, %v497
    %v655 = vmul.f32 %v207, %v502
    %v656 = vmul.f32 %v208, %v507
    %v657 = vmul.f32 %v209, %v512
    %v658 = vmul.f32 %v210, %v517
    %v659 = vmul.f32 %v211, %v522
    %v660 = vmul.f32 %v212, %v527
    %v661 = vmul.f32 %v213, %v532
    %v662 = vmul.f32 %v214, %v537
    %v663 = vmul.f32 %v215, %v542
    %v664 = vmul.f32 %v216, %v547
    %v665 = vmul.f32 %v217, %v552
    %v666 = vmul.f32 %v218, %v557
    %v667 = vmul.f32 %v219, %v562
    %v668 = vmul.f32 %v220, %v567
    %v669 = vmul.f32 %v221, %v572
    %v670 = vmul.f32 %v222, %v577
    %v671 = vmul.f32 %v223, %v582
    %v672 = vmul.f32 %v224, %v587
    %v673 = vmul.f32 %v225, %v592
    %v674 = vmul.f32 %v226, %v597
    %v675 = vmul.f32 %v227, %v602
    %v676 = vmul.f32 %v228, %v607
    %v677 = vmul.f32 %v229, %v612
    %v678 = vld [vmem:[#allocation2 + $0x1] sm:$0xff]
    %v679 = vld [vmem:[#allocation2 + $0x9] sm:$0xff]
    %v680 = vld [vmem:[#allocation2 + $0x11] sm:$0xff]
    %v681 = vld [vmem:[#allocation2 + $0x19] sm:$0xff]
    %v682 = vld [vmem:[#allocation2 + $0x21] sm:$0xff]
    %v683 = vld [vmem:[#allocation2 + $0x29] sm:$0xff]
    %v684 = vld [vmem:[#allocation2 + $0x31] sm:$0xff]
    %v685 = vld [vmem:[#allocation2 + $0x39] sm:$0xff]
    %v686 = vld [vmem:[#allocation2 + $0x41] sm:$0xff]
    %v687 = vld [vmem:[#allocation2 + $0x49] sm:$0xff]
    %v688 = vld [vmem:[#allocation2 + $0x51] sm:$0xff]
    %v689 = vld [vmem:[#allocation2 + $0x59] sm:$0xff]
    %v690 = vld [vmem:[#allocation2 + $0x61] sm:$0xff]
    %v691 = vld [vmem:[#allocation2 + $0x69] sm:$0xff]
    %v692 = vld [vmem:[#allocation2 + $0x71] sm:$0xff]
    %v693 = vld [vmem:[#allocation2 + $0x79] sm:$0xff]
    %v694 = vld [vmem:[#allocation2 + $0x81] sm:$0xff]
    %v695 = vld [vmem:[#allocation2 + $0x89] sm:$0xff]
    %v696 = vld [vmem:[#allocation2 + $0x91] sm:$0xff]
    %v697 = vld [vmem:[#allocation2 + $0x99] sm:$0xff]
    %v698 = vld [vmem:[#allocation2 + $0xa1] sm:$0xff]
    %v699 = vld [vmem:[#allocation2 + $0xa9] sm:$0xff]
    %v700 = vld [vmem:[#allocation2 + $0xb1] sm:$0xff]
    %v701 = vld [vmem:[#allocation2 + $0xb9] sm:$0xff]
    %v702 = vld [vmem:[#allocation2 + $0xc1] sm:$0xff]
    %v703 = vld [vmem:[#allocation2 + $0xc9] sm:$0xff]
    %v704 = vld [vmem:[#allocation2 + $0xd1] sm:$0xff]
    %v705 = vld [vmem:[#allocation2 + $0xd9] sm:$0xff]
    %v706 = vld [vmem:[#allocation2 + $0xe1] sm:$0xff]
    %v707 = vld [vmem:[#allocation2 + $0xe9] sm:$0xff]
    %v708 = vld [vmem:[#allocation2 + $0xf1] sm:$0xff]
    %v709 = vld [vmem:[#allocation2 + $0xf9] sm:$0xff]
    %v710 = vld [vmem:[#allocation2 + $0x101] sm:$0xff]
    %v711 = vld [vmem:[#allocation2 + $0x109] sm:$0xff]
    %v712 = vld [vmem:[#allocation2 + $0x111] sm:$0xff]
    %v713 = vld [vmem:[#allocation2 + $0x119] sm:$0xff]
    %v714 = vld [vmem:[#allocation2 + $0x121] sm:$0xff]
    %v715 = vld [vmem:[#allocation2 + $0x129] sm:$0xff]
    %v716 = vld [vmem:[#allocation2 + $0x131] sm:$0xff]
    %v717 = vld [vmem:[#allocation2 + $0x139] sm:$0xff]
    %v718 = vld [vmem:[#allocation2 + $0x141] sm:$0xff]
    %v719 = vld [vmem:[#allocation2 + $0x149] sm:$0xff]
    %v720 = vld [vmem:[#allocation2 + $0x151] sm:$0xff]
    %v721 = vld [vmem:[#allocation2 + $0x159] sm:$0xff]
    %v722 = vld [vmem:[#allocation2 + $0x161] sm:$0xff]
    %v723 = vld [vmem:[#allocation2 + $0x169] sm:$0xff]
    %v724 = vld [vmem:[#allocation2 + $0x171] sm:$0xff]
    %v725 = vld [vmem:[#allocation2 + $0x179] sm:$0xff]
    %v726 = vld [vmem:[#allocation2 + $0x181] sm:$0xff]
    %v727 = vld [vmem:[#allocation2 + $0x189] sm:$0xff]
    %v728 = vld [vmem:[#allocation2 + $0x191] sm:$0xff]
    %v729 = vld [vmem:[#allocation2 + $0x199] sm:$0xff]
    %v730 = vld [vmem:[#allocation2 + $0x1a1] sm:$0xff]
    %v731 = vld [vmem:[#allocation2 + $0x1a9] sm:$0xff]
    %v732 = vld [vmem:[#allocation2 + $0x1b1] sm:$0xff]
    %v733 = vld [vmem:[#allocation2 + $0x1b9] sm:$0xff]
    %v734 = vld [vmem:[#allocation2 + $0x1c1] sm:$0xff]
    %v735 = vld [vmem:[#allocation2 + $0x1c9] sm:$0xff]
    %v736 = vld [vmem:[#allocation2 + $0x1d1] sm:$0xff]
    %v737 = vld [vmem:[#allocation2 + $0x1d9] sm:$0xff]
    %v738 = vld [vmem:[#allocation2 + $0x1e1] sm:$0xff]
    %v739 = vld [vmem:[#allocation2 + $0x1e9] sm:$0xff]
    %v740 = vld [vmem:[#allocation2 + $0x1f1] sm:$0xff]
    %v741 = vld [vmem:[#allocation2 + $0x1f9] sm:$0xff]
    %742 = vset.pattern.permute.xlu0 1
    %743 = vperm.xlu0 %742, %v230
    %v744 = vpop.permute.xlu0 %743
    %746 = vset.pattern.permute.xlu0 1
    %747 = vperm.xlu0 %746, %v231
    %v748 = vpop.permute.xlu0 %747
    %750 = vset.pattern.permute.xlu0 1
    %751 = vperm.xlu0 %750, %v232
    %v752 = vpop.permute.xlu0 %751
    %754 = vset.pattern.permute.xlu0 1
    %755 = vperm.xlu0 %754, %v233
    %v756 = vpop.permute.xlu0 %755
    %758 = vset.pattern.permute.xlu0 1
    %759 = vperm.xlu0 %758, %v234
    %v760 = vpop.permute.xlu0 %759
    %762 = vset.pattern.permute.xlu0 1
    %763 = vperm.xlu0 %762, %v235
    %v764 = vpop.permute.xlu0 %763
    %766 = vset.pattern.permute.xlu0 1
    %767 = vperm.xlu0 %766, %v236
    %v768 = vpop.permute.xlu0 %767
    %770 = vset.pattern.permute.xlu0 1
    %771 = vperm.xlu0 %770, %v237
    %v772 = vpop.permute.xlu0 %771
    %774 = vset.pattern.permute.xlu0 1
    %775 = vperm.xlu0 %774, %v238
    %v776 = vpop.permute.xlu0 %775
    %778 = vset.pattern.permute.xlu0 1
    %779 = vperm.xlu0 %778, %v239
    %v780 = vpop.permute.xlu0 %779
    %782 = vset.pattern.permute.xlu0 1
    %783 = vperm.xlu0 %782, %v240
    %v784 = vpop.permute.xlu0 %783
    %786 = vset.pattern.permute.xlu0 1
    %787 = vperm.xlu0 %786, %v241
    %v788 = vpop.permute.xlu0 %787
    %790 = vset.pattern.permute.xlu0 1
    %791 = vperm.xlu0 %790, %v242
    %v792 = vpop.permute.xlu0 %791
    %794 = vset.pattern.permute.xlu0 1
    %795 = vperm.xlu0 %794, %v243
    %v796 = vpop.permute.xlu0 %795
    %798 = vset.pattern.permute.xlu0 1
    %799 = vperm.xlu0 %798, %v244
    %v800 = vpop.permute.xlu0 %799
    %802 = vset.pattern.permute.xlu0 1
    %803 = vperm.xlu0 %802, %v245
    %v804 = vpop.permute.xlu0 %803
    %806 = vset.pattern.permute.xlu0 1
    %807 = vperm.xlu0 %806, %v246
    %v808 = vpop.permute.xlu0 %807
    %810 = vset.pattern.permute.xlu0 1
    %811 = vperm.xlu0 %810, %v247
    %v812 = vpop.permute.xlu0 %811
    %814 = vset.pattern.permute.xlu0 1
    %815 = vperm.xlu0 %814, %v248
    %v816 = vpop.permute.xlu0 %815
    %818 = vset.pattern.permute.xlu0 1
    %819 = vperm.xlu0 %818, %v249
    %v820 = vpop.permute.xlu0 %819
    %822 = vset.pattern.permute.xlu0 1
    %823 = vperm.xlu0 %822, %v250
    %v824 = vpop.permute.xlu0 %823
    %826 = vset.pattern.permute.xlu0 1
    %827 = vperm.xlu0 %826, %v251
    %v828 = vpop.permute.xlu0 %827
    %830 = vset.pattern.permute.xlu0 1
    %831 = vperm.xlu0 %830, %v252
    %v832 = vpop.permute.xlu0 %831
    %834 = vset.pattern.permute.xlu0 1
    %835 = vperm.xlu0 %834, %v253
    %v836 = vpop.permute.xlu0 %835
    %838 = vset.pattern.permute.xlu0 1
    %839 = vperm.xlu0 %838, %v254
    %v840 = vpop.permute.xlu0 %839
    %842 = vset.pattern.permute.xlu0 1
    %843 = vperm.xlu0 %842, %v255
    %v844 = vpop.permute.xlu0 %843
    %846 = vset.pattern.permute.xlu0 1
    %847 = vperm.xlu0 %846, %v256
    %v848 = vpop.permute.xlu0 %847
    %850 = vset.pattern.permute.xlu0 1
    %851 = vperm.xlu0 %850, %v257
    %v852 = vpop.permute.xlu0 %851
    %854 = vset.pattern.permute.xlu0 1
    %855 = vperm.xlu0 %854, %v258
    %v856 = vpop.permute.xlu0 %855
    %858 = vset.pattern.permute.xlu0 1
    %859 = vperm.xlu0 %858, %v259
    %v860 = vpop.permute.xlu0 %859
    %862 = vset.pattern.permute.xlu0 1
    %863 = vperm.xlu0 %862, %v260
    %v864 = vpop.permute.xlu0 %863
    %866 = vset.pattern.permute.xlu0 1
    %867 = vperm.xlu0 %866, %v261
    %v868 = vpop.permute.xlu0 %867
    %870 = vset.pattern.permute.xlu0 1
    %871 = vperm.xlu0 %870, %v262
    %v872 = vpop.permute.xlu0 %871
    %874 = vset.pattern.permute.xlu0 1
    %875 = vperm.xlu0 %874, %v263
    %v876 = vpop.permute.xlu0 %875
    %878 = vset.pattern.permute.xlu0 1
    %879 = vperm.xlu0 %878, %v264
    %v880 = vpop.permute.xlu0 %879
    %882 = vset.pattern.permute.xlu0 1
    %883 = vperm.xlu0 %882, %v265
    %v884 = vpop.permute.xlu0 %883
    %886 = vset.pattern.permute.xlu0 1
    %887 = vperm.xlu0 %886, %v266
    %v888 = vpop.permute.xlu0 %887
    %890 = vset.pattern.permute.xlu0 1
    %891 = vperm.xlu0 %890, %v267
    %v892 = vpop.permute.xlu0 %891
    %894 = vset.pattern.permute.xlu0 1
    %895 = vperm.xlu0 %894, %v268
    %v896 = vpop.permute.xlu0 %895
    %898 = vset.pattern.permute.xlu0 1
    %899 = vperm.xlu0 %898, %v269
    %v900 = vpop.permute.xlu0 %899
    %902 = vset.pattern.permute.xlu0 1
    %903 = vperm.xlu0 %902, %v270
    %v904 = vpop.permute.xlu0 %903
    %906 = vset.pattern.permute.xlu0 1
    %907 = vperm.xlu0 %906, %v271
    %v908 = vpop.permute.xlu0 %907
    %910 = vset.pattern.permute.xlu0 1
    %911 = vperm.xlu0 %910, %v272
    %v912 = vpop.permute.xlu0 %911
    %914 = vset.pattern.permute.xlu0 1
    %915 = vperm.xlu0 %914, %v273
    %v916 = vpop.permute.xlu0 %915
    %918 = vset.pattern.permute.xlu0 1
    %919 = vperm.xlu0 %918, %v274
    %v920 = vpop.permute.xlu0 %919
    %922 = vset.pattern.permute.xlu0 1
    %923 = vperm.xlu0 %922, %v275
    %v924 = vpop.permute.xlu0 %923
    %926 = vset.pattern.permute.xlu0 1
    %927 = vperm.xlu0 %926, %v276
    %v928 = vpop.permute.xlu0 %927
    %930 = vset.pattern.permute.xlu0 1
    %931 = vperm.xlu0 %930, %v277
    %v932 = vpop.permute.xlu0 %931
    %934 = vset.pattern.permute.xlu0 1
    %935 = vperm.xlu0 %934, %v278
    %v936 = vpop.permute.xlu0 %935
    %938 = vset.pattern.permute.xlu0 1
    %939 = vperm.xlu0 %938, %v279
    %v940 = vpop.permute.xlu0 %939
    %942 = vset.pattern.permute.xlu0 1
    %943 = vperm.xlu0 %942, %v280
    %v944 = vpop.permute.xlu0 %943
    %946 = vset.pattern.permute.xlu0 1
    %947 = vperm.xlu0 %946, %v281
    %v948 = vpop.permute.xlu0 %947
    %950 = vset.pattern.permute.xlu0 1
    %951 = vperm.xlu0 %950, %v282
    %v952 = vpop.permute.xlu0 %951
    %954 = vset.pattern.permute.xlu0 1
    %955 = vperm.xlu0 %954, %v283
    %v956 = vpop.permute.xlu0 %955
    %958 = vset.pattern.permute.xlu0 1
    %959 = vperm.xlu0 %958, %v284
    %v960 = vpop.permute.xlu0 %959
    %962 = vset.pattern.permute.xlu0 1
    %963 = vperm.xlu0 %962, %v285
    %v964 = vpop.permute.xlu0 %963
    %966 = vset.pattern.permute.xlu0 1
    %967 = vperm.xlu0 %966, %v286
    %v968 = vpop.permute.xlu0 %967
    %970 = vset.pattern.permute.xlu0 1
    %971 = vperm.xlu0 %970, %v287
    %v972 = vpop.permute.xlu0 %971
    %974 = vset.pattern.permute.xlu0 1
    %975 = vperm.xlu0 %974, %v288
    %v976 = vpop.permute.xlu0 %975
    %978 = vset.pattern.permute.xlu0 1
    %979 = vperm.xlu0 %978, %v289
    %v980 = vpop.permute.xlu0 %979
    %982 = vset.pattern.permute.xlu0 1
    %983 = vperm.xlu0 %982, %v290
    %v984 = vpop.permute.xlu0 %983
    %986 = vset.pattern.permute.xlu0 1
    %987 = vperm.xlu0 %986, %v291
    %v988 = vpop.permute.xlu0 %987
    %990 = vset.pattern.permute.xlu0 1
    %991 = vperm.xlu0 %990, %v292
    %v992 = vpop.permute.xlu0 %991
    %994 = vset.pattern.permute.xlu0 1
    %995 = vperm.xlu0 %994, %v293
    %v996 = vpop.permute.xlu0 %995
    %v998 = vmul.f32 %v678, %v744
    %v999 = vmul.f32 %v679, %v748
    %v1000 = vmul.f32 %v680, %v752
    %v1001 = vmul.f32 %v681, %v756
    %v1002 = vmul.f32 %v682, %v760
    %v1003 = vmul.f32 %v683, %v764
    %v1004 = vmul.f32 %v684, %v768
    %v1005 = vmul.f32 %v685, %v772
    %v1006 = vmul.f32 %v686, %v776
    %v1007 = vmul.f32 %v687, %v780
    %v1008 = vmul.f32 %v688, %v784
    %v1009 = vmul.f32 %v689, %v788
    %v1010 = vmul.f32 %v690, %v792
    %v1011 = vmul.f32 %v691, %v796
    %v1012 = vmul.f32 %v692, %v800
    %v1013 = vmul.f32 %v693, %v804
    %v1014 = vmul.f32 %v694, %v808
    %v1015 = vmul.f32 %v695, %v812
    %v1016 = vmul.f32 %v696, %v816
    %v1017 = vmul.f32 %v697, %v820
    %v1018 = vmul.f32 %v698, %v824
    %v1019 = vmul.f32 %v699, %v828
    %v1020 = vmul.f32 %v700, %v832
    %v1021 = vmul.f32 %v701, %v836
    %v1022 = vmul.f32 %v702, %v840
    %v1023 = vmul.f32 %v703, %v844
    %v1024 = vmul.f32 %v704, %v848
    %v1025 = vmul.f32 %v705, %v852
    %v1026 = vmul.f32 %v706, %v856
    %v1027 = vmul.f32 %v707, %v860
    %v1028 = vmul.f32 %v708, %v864
    %v1029 = vmul.f32 %v709, %v868
    %v1030 = vmul.f32 %v710, %v872
    %v1031 = vmul.f32 %v711, %v876
    %v1032 = vmul.f32 %v712, %v880
    %v1033 = vmul.f32 %v713, %v884
    %v1034 = vmul.f32 %v714, %v888
    %v1035 = vmul.f32 %v715, %v892
    %v1036 = vmul.f32 %v716, %v896
    %v1037 = vmul.f32 %v717, %v900
    %v1038 = vmul.f32 %v718, %v904
    %v1039 = vmul.f32 %v719, %v908
    %v1040 = vmul.f32 %v720, %v912
    %v1041 = vmul.f32 %v721, %v916
    %v1042 = vmul.f32 %v722, %v920
    %v1043 = vmul.f32 %v723, %v924
    %v1044 = vmul.f32 %v724, %v928
    %v1045 = vmul.f32 %v725, %v932
    %v1046 = vmul.f32 %v726, %v936
    %v1047 = vmul.f32 %v727, %v940
    %v1048 = vmul.f32 %v728, %v944
    %v1049 = vmul.f32 %v729, %v948
    %v1050 = vmul.f32 %v730, %v952
    %v1051 = vmul.f32 %v731, %v956
    %v1052 = vmul.f32 %v732, %v960
    %v1053 = vmul.f32 %v733, %v964
    %v1054 = vmul.f32 %v734, %v968
    %v1055 = vmul.f32 %v735, %v972
    %v1056 = vmul.f32 %v736, %v976
    %v1057 = vmul.f32 %v737, %v980
    %v1058 = vmul.f32 %v738, %v984
    %v1059 = vmul.f32 %v739, %v988
    %v1060 = vmul.f32 %v740, %v992
    %v1061 = vmul.f32 %v741, %v996
    %v1062 = vld [vmem:[#allocation2 + $0x2] sm:$0xff]
    %v1063 = vld [vmem:[#allocation2 + $0xa] sm:$0xff]
    %v1064 = vld [vmem:[#allocation2 + $0x12] sm:$0xff]
    %v1065 = vld [vmem:[#allocation2 + $0x1a] sm:$0xff]
    %v1066 = vld [vmem:[#allocation2 + $0x22] sm:$0xff]
    %v1067 = vld [vmem:[#allocation2 + $0x2a] sm:$0xff]
    %v1068 = vld [vmem:[#allocation2 + $0x32] sm:$0xff]
    %v1069 = vld [vmem:[#allocation2 + $0x3a] sm:$0xff]
    %v1070 = vld [vmem:[#allocation2 + $0x42] sm:$0xff]
    %v1071 = vld [vmem:[#allocation2 + $0x4a] sm:$0xff]
    %v1072 = vld [vmem:[#allocation2 + $0x52] sm:$0xff]
    %v1073 = vld [vmem:[#allocation2 + $0x5a] sm:$0xff]
    %v1074 = vld [vmem:[#allocation2 + $0x62] sm:$0xff]
    %v1075 = vld [vmem:[#allocation2 + $0x6a] sm:$0xff]
    %v1076 = vld [vmem:[#allocation2 + $0x72] sm:$0xff]
    %v1077 = vld [vmem:[#allocation2 + $0x7a] sm:$0xff]
    %v1078 = vld [vmem:[#allocation2 + $0x82] sm:$0xff]
    %v1079 = vld [vmem:[#allocation2 + $0x8a] sm:$0xff]
    %v1080 = vld [vmem:[#allocation2 + $0x92] sm:$0xff]
    %v1081 = vld [vmem:[#allocation2 + $0x9a] sm:$0xff]
    %v1082 = vld [vmem:[#allocation2 + $0xa2] sm:$0xff]
    %v1083 = vld [vmem:[#allocation2 + $0xaa] sm:$0xff]
    %v1084 = vld [vmem:[#allocation2 + $0xb2] sm:$0xff]
    %v1085 = vld [vmem:[#allocation2 + $0xba] sm:$0xff]
    %v1086 = vld [vmem:[#allocation2 + $0xc2] sm:$0xff]
    %v1087 = vld [vmem:[#allocation2 + $0xca] sm:$0xff]
    %v1088 = vld [vmem:[#allocation2 + $0xd2] sm:$0xff]
    %v1089 = vld [vmem:[#allocation2 + $0xda] sm:$0xff]
    %v1090 = vld [vmem:[#allocation2 + $0xe2] sm:$0xff]
    %v1091 = vld [vmem:[#allocation2 + $0xea] sm:$0xff]
    %v1092 = vld [vmem:[#allocation2 + $0xf2] sm:$0xff]
    %v1093 = vld [vmem:[#allocation2 + $0xfa] sm:$0xff]
    %v1094 = vld [vmem:[#allocation2 + $0x102] sm:$0xff]
    %v1095 = vld [vmem:[#allocation2 + $0x10a] sm:$0xff]
    %v1096 = vld [vmem:[#allocation2 + $0x112] sm:$0xff]
    %v1097 = vld [vmem:[#allocation2 + $0x11a] sm:$0xff]
    %v1098 = vld [vmem:[#allocation2 + $0x122] sm:$0xff]
    %v1099 = vld [vmem:[#allocation2 + $0x12a] sm:$0xff]
    %v1100 = vld [vmem:[#allocation2 + $0x132] sm:$0xff]
    %v1101 = vld [vmem:[#allocation2 + $0x13a] sm:$0xff]
    %v1102 = vld [vmem:[#allocation2 + $0x142] sm:$0xff]
    %v1103 = vld [vmem:[#allocation2 + $0x14a] sm:$0xff]
    %v1104 = vld [vmem:[#allocation2 + $0x152] sm:$0xff]
    %v1105 = vld [vmem:[#allocation2 + $0x15a] sm:$0xff]
    %v1106 = vld [vmem:[#allocation2 + $0x162] sm:$0xff]
    %v1107 = vld [vmem:[#allocation2 + $0x16a] sm:$0xff]
    %v1108 = vld [vmem:[#allocation2 + $0x172] sm:$0xff]
    %v1109 = vld [vmem:[#allocation2 + $0x17a] sm:$0xff]
    %v1110 = vld [vmem:[#allocation2 + $0x182] sm:$0xff]
    %v1111 = vld [vmem:[#allocation2 + $0x18a] sm:$0xff]
    %v1112 = vld [vmem:[#allocation2 + $0x192] sm:$0xff]
    %v1113 = vld [vmem:[#allocation2 + $0x19a] sm:$0xff]
    %v1114 = vld [vmem:[#allocation2 + $0x1a2] sm:$0xff]
    %v1115 = vld [vmem:[#allocation2 + $0x1aa] sm:$0xff]
    %v1116 = vld [vmem:[#allocation2 + $0x1b2] sm:$0xff]
    %v1117 = vld [vmem:[#allocation2 + $0x1ba] sm:$0xff]
    %v1118 = vld [vmem:[#allocation2 + $0x1c2] sm:$0xff]
    %v1119 = vld [vmem:[#allocation2 + $0x1ca] sm:$0xff]
    %v1120 = vld [vmem:[#allocation2 + $0x1d2] sm:$0xff]
    %v1121 = vld [vmem:[#allocation2 + $0x1da] sm:$0xff]
    %v1122 = vld [vmem:[#allocation2 + $0x1e2] sm:$0xff]
    %v1123 = vld [vmem:[#allocation2 + $0x1ea] sm:$0xff]
    %v1124 = vld [vmem:[#allocation2 + $0x1f2] sm:$0xff]
    %v1125 = vld [vmem:[#allocation2 + $0x1fa] sm:$0xff]
    %1126 = vset.pattern.permute.xlu0 2
    %1127 = vperm.xlu0 %1126, %v230
    %v1128 = vpop.permute.xlu0 %1127
    %1130 = vset.pattern.permute.xlu0 2
    %1131 = vperm.xlu0 %1130, %v231
    %v1132 = vpop.permute.xlu0 %1131
    %1134 = vset.pattern.permute.xlu0 2
    %1135 = vperm.xlu0 %1134, %v232
    %v1136 = vpop.permute.xlu0 %1135
    %1138 = vset.pattern.permute.xlu0 2
    %1139 = vperm.xlu0 %1138, %v233
    %v1140 = vpop.permute.xlu0 %1139
    %1142 = vset.pattern.permute.xlu0 2
    %1143 = vperm.xlu0 %1142, %v234
    %v1144 = vpop.permute.xlu0 %1143
    %1146 = vset.pattern.permute.xlu0 2
    %1147 = vperm.xlu0 %1146, %v235
    %v1148 = vpop.permute.xlu0 %1147
    %1150 = vset.pattern.permute.xlu0 2
    %1151 = vperm.xlu0 %1150, %v236
    %v1152 = vpop.permute.xlu0 %1151
    %1154 = vset.pattern.permute.xlu0 2
    %1155 = vperm.xlu0 %1154, %v237
    %v1156 = vpop.permute.xlu0 %1155
    %1158 = vset.pattern.permute.xlu0 2
    %1159 = vperm.xlu0 %1158, %v238
    %v1160 = vpop.permute.xlu0 %1159
    %1162 = vset.pattern.permute.xlu0 2
    %1163 = vperm.xlu0 %1162, %v239
    %v1164 = vpop.permute.xlu0 %1163
    %1166 = vset.pattern.permute.xlu0 2
    %1167 = vperm.xlu0 %1166, %v240
    %v1168 = vpop.permute.xlu0 %1167
    %1170 = vset.pattern.permute.xlu0 2
    %1171 = vperm.xlu0 %1170, %v241
    %v1172 = vpop.permute.xlu0 %1171
    %1174 = vset.pattern.permute.xlu0 2
    %1175 = vperm.xlu0 %1174, %v242
    %v1176 = vpop.permute.xlu0 %1175
    %1178 = vset.pattern.permute.xlu0 2
    %1179 = vperm.xlu0 %1178, %v243
    %v1180 = vpop.permute.xlu0 %1179
    %1182 = vset.pattern.permute.xlu0 2
    %1183 = vperm.xlu0 %1182, %v244
    %v1184 = vpop.permute.xlu0 %1183
    %1186 = vset.pattern.permute.xlu0 2
    %1187 = vperm.xlu0 %1186, %v245
    %v1188 = vpop.permute.xlu0 %1187
    %1190 = vset.pattern.permute.xlu0 2
    %1191 = vperm.xlu0 %1190, %v246
    %v1192 = vpop.permute.xlu0 %1191
    %1194 = vset.pattern.permute.xlu0 2
    %1195 = vperm.xlu0 %1194, %v247
    %v1196 = vpop.permute.xlu0 %1195
    %1198 = vset.pattern.permute.xlu0 2
    %1199 = vperm.xlu0 %1198, %v248
    %v1200 = vpop.permute.xlu0 %1199
    %1202 = vset.pattern.permute.xlu0 2
    %1203 = vperm.xlu0 %1202, %v249
    %v1204 = vpop.permute.xlu0 %1203
    %1206 = vset.pattern.permute.xlu0 2
    %1207 = vperm.xlu0 %1206, %v250
    %v1208 = vpop.permute.xlu0 %1207
    %1210 = vset.pattern.permute.xlu0 2
    %1211 = vperm.xlu0 %1210, %v251
    %v1212 = vpop.permute.xlu0 %1211
    %1214 = vset.pattern.permute.xlu0 2
    %1215 = vperm.xlu0 %1214, %v252
    %v1216 = vpop.permute.xlu0 %1215
    %1218 = vset.pattern.permute.xlu0 2
    %1219 = vperm.xlu0 %1218, %v253
    %v1220 = vpop.permute.xlu0 %1219
    %1222 = vset.pattern.permute.xlu0 2
    %1223 = vperm.xlu0 %1222, %v254
    %v1224 = vpop.permute.xlu0 %1223
    %1226 = vset.pattern.permute.xlu0 2
    %1227 = vperm.xlu0 %1226, %v255
    %v1228 = vpop.permute.xlu0 %1227
    %1230 = vset.pattern.permute.xlu0 2
    %1231 = vperm.xlu0 %1230, %v256
    %v1232 = vpop.permute.xlu0 %1231
    %1234 = vset.pattern.permute.xlu0 2
    %1235 = vperm.xlu0 %1234, %v257
    %v1236 = vpop.permute.xlu0 %1235
    %1238 = vset.pattern.permute.xlu0 2
    %1239 = vperm.xlu0 %1238, %v258
    %v1240 = vpop.permute.xlu0 %1239
    %1242 = vset.pattern.permute.xlu0 2
    %1243 = vperm.xlu0 %1242, %v259
    %v1244 = vpop.permute.xlu0 %1243
    %1246 = vset.pattern.permute.xlu0 2
    %1247 = vperm.xlu0 %1246, %v260
    %v1248 = vpop.permute.xlu0 %1247
    %1250 = vset.pattern.permute.xlu0 2
    %1251 = vperm.xlu0 %1250, %v261
    %v1252 = vpop.permute.xlu0 %1251
    %1254 = vset.pattern.permute.xlu0 2
    %1255 = vperm.xlu0 %1254, %v262
    %v1256 = vpop.permute.xlu0 %1255
    %1258 = vset.pattern.permute.xlu0 2
    %1259 = vperm.xlu0 %1258, %v263
    %v1260 = vpop.permute.xlu0 %1259
    %1262 = vset.pattern.permute.xlu0 2
    %1263 = vperm.xlu0 %1262, %v264
    %v1264 = vpop.permute.xlu0 %1263
    %1266 = vset.pattern.permute.xlu0 2
    %1267 = vperm.xlu0 %1266, %v265
    %v1268 = vpop.permute.xlu0 %1267
    %1270 = vset.pattern.permute.xlu0 2
    %1271 = vperm.xlu0 %1270, %v266
    %v1272 = vpop.permute.xlu0 %1271
    %1274 = vset.pattern.permute.xlu0 2
    %1275 = vperm.xlu0 %1274, %v267
    %v1276 = vpop.permute.xlu0 %1275
    %1278 = vset.pattern.permute.xlu0 2
    %1279 = vperm.xlu0 %1278, %v268
    %v1280 = vpop.permute.xlu0 %1279
    %1282 = vset.pattern.permute.xlu0 2
    %1283 = vperm.xlu0 %1282, %v269
    %v1284 = vpop.permute.xlu0 %1283
    %1286 = vset.pattern.permute.xlu0 2
    %1287 = vperm.xlu0 %1286, %v270
    %v1288 = vpop.permute.xlu0 %1287
    %1290 = vset.pattern.permute.xlu0 2
    %1291 = vperm.xlu0 %1290, %v271
    %v1292 = vpop.permute.xlu0 %1291
    %1294 = vset.pattern.permute.xlu0 2
    %1295 = vperm.xlu0 %1294, %v272
    %v1296 = vpop.permute.xlu0 %1295
    %1298 = vset.pattern.permute.xlu0 2
    %1299 = vperm.xlu0 %1298, %v273
    %v1300 = vpop.permute.xlu0 %1299
    %1302 = vset.pattern.permute.xlu0 2
    %1303 = vperm.xlu0 %1302, %v274
    %v1304 = vpop.permute.xlu0 %1303
    %1306 = vset.pattern.permute.xlu0 2
    %1307 = vperm.xlu0 %1306, %v275
    %v1308 = vpop.permute.xlu0 %1307
    %1310 = vset.pattern.permute.xlu0 2
    %1311 = vperm.xlu0 %1310, %v276
    %v1312 = vpop.permute.xlu0 %1311
    %1314 = vset.pattern.permute.xlu0 2
    %1315 = vperm.xlu0 %1314, %v277
    %v1316 = vpop.permute.xlu0 %1315
    %1318 = vset.pattern.permute.xlu0 2
    %1319 = vperm.xlu0 %1318, %v278
    %v1320 = vpop.permute.xlu0 %1319
    %1322 = vset.pattern.permute.xlu0 2
    %1323 = vperm.xlu0 %1322, %v279
    %v1324 = vpop.permute.xlu0 %1323
    %1326 = vset.pattern.permute.xlu0 2
    %1327 = vperm.xlu0 %1326, %v280
    %v1328 = vpop.permute.xlu0 %1327
    %1330 = vset.pattern.permute.xlu0 2
    %1331 = vperm.xlu0 %1330, %v281
    %v1332 = vpop.permute.xlu0 %1331
    %1334 = vset.pattern.permute.xlu0 2
    %1335 = vperm.xlu0 %1334, %v282
    %v1336 = vpop.permute.xlu0 %1335
    %1338 = vset.pattern.permute.xlu0 2
    %1339 = vperm.xlu0 %1338, %v283
    %v1340 = vpop.permute.xlu0 %1339
    %1342 = vset.pattern.permute.xlu0 2
    %1343 = vperm.xlu0 %1342, %v284
    %v1344 = vpop.permute.xlu0 %1343
    %1346 = vset.pattern.permute.xlu0 2
    %1347 = vperm.xlu0 %1346, %v285
    %v1348 = vpop.permute.xlu0 %1347
    %1350 = vset.pattern.permute.xlu0 2
    %1351 = vperm.xlu0 %1350, %v286
    %v1352 = vpop.permute.xlu0 %1351
    %1354 = vset.pattern.permute.xlu0 2
    %1355 = vperm.xlu0 %1354, %v287
    %v1356 = vpop.permute.xlu0 %1355
    %1358 = vset.pattern.permute.xlu0 2
    %1359 = vperm.xlu0 %1358, %v288
    %v1360 = vpop.permute.xlu0 %1359
    %1362 = vset.pattern.permute.xlu0 2
    %1363 = vperm.xlu0 %1362, %v289
    %v1364 = vpop.permute.xlu0 %1363
    %1366 = vset.pattern.permute.xlu0 2
    %1367 = vperm.xlu0 %1366, %v290
    %v1368 = vpop.permute.xlu0 %1367
    %1370 = vset.pattern.permute.xlu0 2
    %1371 = vperm.xlu0 %1370, %v291
    %v1372 = vpop.permute.xlu0 %1371
    %1374 = vset.pattern.permute.xlu0 2
    %1375 = vperm.xlu0 %1374, %v292
    %v1376 = vpop.permute.xlu0 %1375
    %1378 = vset.pattern.permute.xlu0 2
    %1379 = vperm.xlu0 %1378, %v293
    %v1380 = vpop.permute.xlu0 %1379
    %v1382 = vmul.f32 %v1062, %v1128
    %v1383 = vmul.f32 %v1063, %v1132
    %v1384 = vmul.f32 %v1064, %v1136
    %v1385 = vmul.f32 %v1065, %v1140
    %v1386 = vmul.f32 %v1066, %v1144
    %v1387 = vmul.f32 %v1067, %v1148
    %v1388 = vmul.f32 %v1068, %v1152
    %v1389 = vmul.f32 %v1069, %v1156
    %v1390 = vmul.f32 %v1070, %v1160
    %v1391 = vmul.f32 %v1071, %v1164
    %v1392 = vmul.f32 %v1072, %v1168
    %v1393 = vmul.f32 %v1073, %v1172
    %v1394 = vmul.f32 %v1074, %v1176
    %v1395 = vmul.f32 %v1075, %v1180
    %v1396 = vmul.f32 %v1076, %v1184
    %v1397 = vmul.f32 %v1077, %v1188
    %v1398 = vmul.f32 %v1078, %v1192
    %v1399 = vmul.f32 %v1079, %v1196
    %v1400 = vmul.f32 %v1080, %v1200
    %v1401 = vmul.f32 %v1081, %v1204
    %v1402 = vmul.f32 %v1082, %v1208
    %v1403 = vmul.f32 %v1083, %v1212
    %v1404 = vmul.f32 %v1084, %v1216
    %v1405 = vmul.f32 %v1085, %v1220
    %v1406 = vmul.f32 %v1086, %v1224
    %v1407 = vmul.f32 %v1087, %v1228
    %v1408 = vmul.f32 %v1088, %v1232
    %v1409 = vmul.f32 %v1089, %v1236
    %v1410 = vmul.f32 %v1090, %v1240
    %v1411 = vmul.f32 %v1091, %v1244
    %v1412 = vmul.f32 %v1092, %v1248
    %v1413 = vmul.f32 %v1093, %v1252
    %v1414 = vmul.f32 %v1094, %v1256
    %v1415 = vmul.f32 %v1095, %v1260
    %v1416 = vmul.f32 %v1096, %v1264
    %v1417 = vmul.f32 %v1097, %v1268
    %v1418 = vmul.f32 %v1098, %v1272
    %v1419 = vmul.f32 %v1099, %v1276
    %v1420 = vmul.f32 %v1100, %v1280
    %v1421 = vmul.f32 %v1101, %v1284
    %v1422 = vmul.f32 %v1102, %v1288
    %v1423 = vmul.f32 %v1103, %v1292
    %v1424 = vmul.f32 %v1104, %v1296
    %v1425 = vmul.f32 %v1105, %v1300
    %v1426 = vmul.f32 %v1106, %v1304
    %v1427 = vmul.f32 %v1107, %v1308
    %v1428 = vmul.f32 %v1108, %v1312
    %v1429 = vmul.f32 %v1109, %v1316
    %v1430 = vmul.f32 %v1110, %v1320
    %v1431 = vmul.f32 %v1111, %v1324
    %v1432 = vmul.f32 %v1112, %v1328
    %v1433 = vmul.f32 %v1113, %v1332
    %v1434 = vmul.f32 %v1114, %v1336
    %v1435 = vmul.f32 %v1115, %v1340
    %v1436 = vmul.f32 %v1116, %v1344
    %v1437 = vmul.f32 %v1117, %v1348
    %v1438 = vmul.f32 %v1118, %v1352
    %v1439 = vmul.f32 %v1119, %v1356
    %v1440 = vmul.f32 %v1120, %v1360
    %v1441 = vmul.f32 %v1121, %v1364
    %v1442 = vmul.f32 %v1122, %v1368
    %v1443 = vmul.f32 %v1123, %v1372
    %v1444 = vmul.f32 %v1124, %v1376
    %v1445 = vmul.f32 %v1125, %v1380
    %v1446 = vld [vmem:[#allocation2 + $0x10] sm:$0xff]
    %v1447 = vld [vmem:[#allocation2 + $0x18] sm:$0xff]
    %v1448 = vld [vmem:[#allocation2 + $0x20] sm:$0xff]
    %v1449 = vld [vmem:[#allocation2 + $0x28] sm:$0xff]
    %v1450 = vld [vmem:[#allocation2 + $0x30] sm:$0xff]
    %v1451 = vld [vmem:[#allocation2 + $0x38] sm:$0xff]
    %v1452 = vld [vmem:[#allocation2 + $0x40] sm:$0xff]
    %v1453 = vld [vmem:[#allocation2 + $0x48] sm:$0xff]
    %v1454 = vld [vmem:[#allocation2 + $0x50] sm:$0xff]
    %v1455 = vld [vmem:[#allocation2 + $0x58] sm:$0xff]
    %v1456 = vld [vmem:[#allocation2 + $0x60] sm:$0xff]
    %v1457 = vld [vmem:[#allocation2 + $0x68] sm:$0xff]
    %v1458 = vld [vmem:[#allocation2 + $0x70] sm:$0xff]
    %v1459 = vld [vmem:[#allocation2 + $0x78] sm:$0xff]
    %v1460 = vld [vmem:[#allocation2 + $0x80] sm:$0xff]
    %v1461 = vld [vmem:[#allocation2 + $0x88] sm:$0xff]
    %v1462 = vld [vmem:[#allocation2 + $0x90] sm:$0xff]
    %v1463 = vld [vmem:[#allocation2 + $0x98] sm:$0xff]
    %v1464 = vld [vmem:[#allocation2 + $0xa0] sm:$0xff]
    %v1465 = vld [vmem:[#allocation2 + $0xa8] sm:$0xff]
    %v1466 = vld [vmem:[#allocation2 + $0xb0] sm:$0xff]
    %v1467 = vld [vmem:[#allocation2 + $0xb8] sm:$0xff]
    %v1468 = vld [vmem:[#allocation2 + $0xc0] sm:$0xff]
    %v1469 = vld [vmem:[#allocation2 + $0xc8] sm:$0xff]
    %v1470 = vld [vmem:[#allocation2 + $0xd0] sm:$0xff]
    %v1471 = vld [vmem:[#allocation2 + $0xd8] sm:$0xff]
    %v1472 = vld [vmem:[#allocation2 + $0xe0] sm:$0xff]
    %v1473 = vld [vmem:[#allocation2 + $0xe8] sm:$0xff]
    %v1474 = vld [vmem:[#allocation2 + $0xf0] sm:$0xff]
    %v1475 = vld [vmem:[#allocation2 + $0xf8] sm:$0xff]
    %v1476 = vld [vmem:[#allocation2 + $0x100] sm:$0xff]
    %v1477 = vld [vmem:[#allocation2 + $0x108] sm:$0xff]
    %v1478 = vld [vmem:[#allocation2 + $0x110] sm:$0xff]
    %v1479 = vld [vmem:[#allocation2 + $0x118] sm:$0xff]
    %v1480 = vld [vmem:[#allocation2 + $0x120] sm:$0xff]
    %v1481 = vld [vmem:[#allocation2 + $0x128] sm:$0xff]
    %v1482 = vld [vmem:[#allocation2 + $0x130] sm:$0xff]
    %v1483 = vld [vmem:[#allocation2 + $0x138] sm:$0xff]
    %v1484 = vld [vmem:[#allocation2 + $0x140] sm:$0xff]
    %v1485 = vld [vmem:[#allocation2 + $0x148] sm:$0xff]
    %v1486 = vld [vmem:[#allocation2 + $0x150] sm:$0xff]
    %v1487 = vld [vmem:[#allocation2 + $0x158] sm:$0xff]
    %v1488 = vld [vmem:[#allocation2 + $0x160] sm:$0xff]
    %v1489 = vld [vmem:[#allocation2 + $0x168] sm:$0xff]
    %v1490 = vld [vmem:[#allocation2 + $0x170] sm:$0xff]
    %v1491 = vld [vmem:[#allocation2 + $0x178] sm:$0xff]
    %v1492 = vld [vmem:[#allocation2 + $0x180] sm:$0xff]
    %v1493 = vld [vmem:[#allocation2 + $0x188] sm:$0xff]
    %v1494 = vld [vmem:[#allocation2 + $0x190] sm:$0xff]
    %v1495 = vld [vmem:[#allocation2 + $0x198] sm:$0xff]
    %v1496 = vld [vmem:[#allocation2 + $0x1a0] sm:$0xff]
    %v1497 = vld [vmem:[#allocation2 + $0x1a8] sm:$0xff]
    %v1498 = vld [vmem:[#allocation2 + $0x1b0] sm:$0xff]
    %v1499 = vld [vmem:[#allocation2 + $0x1b8] sm:$0xff]
    %v1500 = vld [vmem:[#allocation2 + $0x1c0] sm:$0xff]
    %v1501 = vld [vmem:[#allocation2 + $0x1c8] sm:$0xff]
    %v1502 = vld [vmem:[#allocation2 + $0x1d0] sm:$0xff]
    %v1503 = vld [vmem:[#allocation2 + $0x1d8] sm:$0xff]
    %v1504 = vld [vmem:[#allocation2 + $0x1e0] sm:$0xff]
    %v1505 = vld [vmem:[#allocation2 + $0x1e8] sm:$0xff]
    %v1506 = vld [vmem:[#allocation2 + $0x1f0] sm:$0xff]
    %v1507 = vld [vmem:[#allocation2 + $0x1f8] sm:$0xff]
    %v1508 = vld [vmem:[#allocation2 + $0x200] sm:$0xff]
    %v1509 = vld [vmem:[#allocation2 + $0x208] sm:$0xff]
    %1510 = vset.pattern.permute.xlu0 3
    %1511 = vperm.xlu0 %1510, %v230
    %v1512 = vpop.permute.xlu0 %1511
    %1514 = vset.pattern.permute.xlu0 3
    %1515 = vperm.xlu0 %1514, %v231
    %v1516 = vpop.permute.xlu0 %1515
    %1518 = vset.pattern.permute.xlu0 3
    %1519 = vperm.xlu0 %1518, %v232
    %v1520 = vpop.permute.xlu0 %1519
    %1522 = vset.pattern.permute.xlu0 3
    %1523 = vperm.xlu0 %1522, %v233
    %v1524 = vpop.permute.xlu0 %1523
    %1526 = vset.pattern.permute.xlu0 3
    %1527 = vperm.xlu0 %1526, %v234
    %v1528 = vpop.permute.xlu0 %1527
    %1530 = vset.pattern.permute.xlu0 3
    %1531 = vperm.xlu0 %1530, %v235
    %v1532 = vpop.permute.xlu0 %1531
    %1534 = vset.pattern.permute.xlu0 3
    %1535 = vperm.xlu0 %1534, %v236
    %v1536 = vpop.permute.xlu0 %1535
    %1538 = vset.pattern.permute.xlu0 3
    %1539 = vperm.xlu0 %1538, %v237
    %v1540 = vpop.permute.xlu0 %1539
    %1542 = vset.pattern.permute.xlu0 3
    %1543 = vperm.xlu0 %1542, %v238
    %v1544 = vpop.permute.xlu0 %1543
    %1546 = vset.pattern.permute.xlu0 3
    %1547 = vperm.xlu0 %1546, %v239
    %v1548 = vpop.permute.xlu0 %1547
    %1550 = vset.pattern.permute.xlu0 3
    %1551 = vperm.xlu0 %1550, %v240
    %v1552 = vpop.permute.xlu0 %1551
    %1554 = vset.pattern.permute.xlu0 3
    %1555 = vperm.xlu0 %1554, %v241
    %v1556 = vpop.permute.xlu0 %1555
    %1558 = vset.pattern.permute.xlu0 3
    %1559 = vperm.xlu0 %1558, %v242
    %v1560 = vpop.permute.xlu0 %1559
    %1562 = vset.pattern.permute.xlu0 3
    %1563 = vperm.xlu0 %1562, %v243
    %v1564 = vpop.permute.xlu0 %1563
    %1566 = vset.pattern.permute.xlu0 3
    %1567 = vperm.xlu0 %1566, %v244
    %v1568 = vpop.permute.xlu0 %1567
    %1570 = vset.pattern.permute.xlu0 3
    %1571 = vperm.xlu0 %1570, %v245
    %v1572 = vpop.permute.xlu0 %1571
    %1574 = vset.pattern.permute.xlu0 3
    %1575 = vperm.xlu0 %1574, %v246
    %v1576 = vpop.permute.xlu0 %1575
    %1578 = vset.pattern.permute.xlu0 3
    %1579 = vperm.xlu0 %1578, %v247
    %v1580 = vpop.permute.xlu0 %1579
    %1582 = vset.pattern.permute.xlu0 3
    %1583 = vperm.xlu0 %1582, %v248
    %v1584 = vpop.permute.xlu0 %1583
    %1586 = vset.pattern.permute.xlu0 3
    %1587 = vperm.xlu0 %1586, %v249
    %v1588 = vpop.permute.xlu0 %1587
    %1590 = vset.pattern.permute.xlu0 3
    %1591 = vperm.xlu0 %1590, %v250
    %v1592 = vpop.permute.xlu0 %1591
    %1594 = vset.pattern.permute.xlu0 3
    %1595 = vperm.xlu0 %1594, %v251
    %v1596 = vpop.permute.xlu0 %1595
    %1598 = vset.pattern.permute.xlu0 3
    %1599 = vperm.xlu0 %1598, %v252
    %v1600 = vpop.permute.xlu0 %1599
    %1602 = vset.pattern.permute.xlu0 3
    %1603 = vperm.xlu0 %1602, %v253
    %v1604 = vpop.permute.xlu0 %1603
    %1606 = vset.pattern.permute.xlu0 3
    %1607 = vperm.xlu0 %1606, %v254
    %v1608 = vpop.permute.xlu0 %1607
    %1610 = vset.pattern.permute.xlu0 3
    %1611 = vperm.xlu0 %1610, %v255
    %v1612 = vpop.permute.xlu0 %1611
    %1614 = vset.pattern.permute.xlu0 3
    %1615 = vperm.xlu0 %1614, %v256
    %v1616 = vpop.permute.xlu0 %1615
    %1618 = vset.pattern.permute.xlu0 3
    %1619 = vperm.xlu0 %1618, %v257
    %v1620 = vpop.permute.xlu0 %1619
    %1622 = vset.pattern.permute.xlu0 3
    %1623 = vperm.xlu0 %1622, %v258
    %v1624 = vpop.permute.xlu0 %1623
    %1626 = vset.pattern.permute.xlu0 3
    %1627 = vperm.xlu0 %1626, %v259
    %v1628 = vpop.permute.xlu0 %1627
    %1630 = vset.pattern.permute.xlu0 3
    %1631 = vperm.xlu0 %1630, %v260
    %v1632 = vpop.permute.xlu0 %1631
    %1634 = vset.pattern.permute.xlu0 3
    %1635 = vperm.xlu0 %1634, %v261
    %v1636 = vpop.permute.xlu0 %1635
    %1638 = vset.pattern.permute.xlu0 3
    %1639 = vperm.xlu0 %1638, %v262
    %v1640 = vpop.permute.xlu0 %1639
    %1642 = vset.pattern.permute.xlu0 3
    %1643 = vperm.xlu0 %1642, %v263
    %v1644 = vpop.permute.xlu0 %1643
    %1646 = vset.pattern.permute.xlu0 3
    %1647 = vperm.xlu0 %1646, %v264
    %v1648 = vpop.permute.xlu0 %1647
    %1650 = vset.pattern.permute.xlu0 3
    %1651 = vperm.xlu0 %1650, %v265
    %v1652 = vpop.permute.xlu0 %1651
    %1654 = vset.pattern.permute.xlu0 3
    %1655 = vperm.xlu0 %1654, %v266
    %v1656 = vpop.permute.xlu0 %1655
    %1658 = vset.pattern.permute.xlu0 3
    %1659 = vperm.xlu0 %1658, %v267
    %v1660 = vpop.permute.xlu0 %1659
    %1662 = vset.pattern.permute.xlu0 3
    %1663 = vperm.xlu0 %1662, %v268
    %v1664 = vpop.permute.xlu0 %1663
    %1666 = vset.pattern.permute.xlu0 3
    %1667 = vperm.xlu0 %1666, %v269
    %v1668 = vpop.permute.xlu0 %1667
    %1670 = vset.pattern.permute.xlu0 3
    %1671 = vperm.xlu0 %1670, %v270
    %v1672 = vpop.permute.xlu0 %1671
    %1674 = vset.pattern.permute.xlu0 3
    %1675 = vperm.xlu0 %1674, %v271
    %v1676 = vpop.permute.xlu0 %1675
    %1678 = vset.pattern.permute.xlu0 3
    %1679 = vperm.xlu0 %1678, %v272
    %v1680 = vpop.permute.xlu0 %1679
    %1682 = vset.pattern.permute.xlu0 3
    %1683 = vperm.xlu0 %1682, %v273
    %v1684 = vpop.permute.xlu0 %1683
    %1686 = vset.pattern.permute.xlu0 3
    %1687 = vperm.xlu0 %1686, %v274
    %v1688 = vpop.permute.xlu0 %1687
    %1690 = vset.pattern.permute.xlu0 3
    %1691 = vperm.xlu0 %1690, %v275
    %v1692 = vpop.permute.xlu0 %1691
    %1694 = vset.pattern.permute.xlu0 3
    %1695 = vperm.xlu0 %1694, %v276
    %v1696 = vpop.permute.xlu0 %1695
    %1698 = vset.pattern.permute.xlu0 3
    %1699 = vperm.xlu0 %1698, %v277
    %v1700 = vpop.permute.xlu0 %1699
    %1702 = vset.pattern.permute.xlu0 3
    %1703 = vperm.xlu0 %1702, %v278
    %v1704 = vpop.permute.xlu0 %1703
    %1706 = vset.pattern.permute.xlu0 3
    %1707 = vperm.xlu0 %1706, %v279
    %v1708 = vpop.permute.xlu0 %1707
    %1710 = vset.pattern.permute.xlu0 3
    %1711 = vperm.xlu0 %1710, %v280
    %v1712 = vpop.permute.xlu0 %1711
    %1714 = vset.pattern.permute.xlu0 3
    %1715 = vperm.xlu0 %1714, %v281
    %v1716 = vpop.permute.xlu0 %1715
    %1718 = vset.pattern.permute.xlu0 3
    %1719 = vperm.xlu0 %1718, %v282
    %v1720 = vpop.permute.xlu0 %1719
    %1722 = vset.pattern.permute.xlu0 3
    %1723 = vperm.xlu0 %1722, %v283
    %v1724 = vpop.permute.xlu0 %1723
    %1726 = vset.pattern.permute.xlu0 3
    %1727 = vperm.xlu0 %1726, %v284
    %v1728 = vpop.permute.xlu0 %1727
    %1730 = vset.pattern.permute.xlu0 3
    %1731 = vperm.xlu0 %1730, %v285
    %v1732 = vpop.permute.xlu0 %1731
    %1734 = vset.pattern.permute.xlu0 3
    %1735 = vperm.xlu0 %1734, %v286
    %v1736 = vpop.permute.xlu0 %1735
    %1738 = vset.pattern.permute.xlu0 3
    %1739 = vperm.xlu0 %1738, %v287
    %v1740 = vpop.permute.xlu0 %1739
    %1742 = vset.pattern.permute.xlu0 3
    %1743 = vperm.xlu0 %1742, %v288
    %v1744 = vpop.permute.xlu0 %1743
    %1746 = vset.pattern.permute.xlu0 3
    %1747 = vperm.xlu0 %1746, %v289
    %v1748 = vpop.permute.xlu0 %1747
    %1750 = vset.pattern.permute.xlu0 3
    %1751 = vperm.xlu0 %1750, %v290
    %v1752 = vpop.permute.xlu0 %1751
    %1754 = vset.pattern.permute.xlu0 3
    %1755 = vperm.xlu0 %1754, %v291
    %v1756 = vpop.permute.xlu0 %1755
    %1758 = vset.pattern.permute.xlu0 3
    %1759 = vperm.xlu0 %1758, %v292
    %v1760 = vpop.permute.xlu0 %1759
    %1762 = vset.pattern.permute.xlu0 3
    %1763 = vperm.xlu0 %1762, %v293
    %v1764 = vpop.permute.xlu0 %1763
    %v1766 = vmul.f32 %v1446, %v1512
    %v1767 = vmul.f32 %v1447, %v1516
    %v1768 = vmul.f32 %v1448, %v1520
    %v1769 = vmul.f32 %v1449, %v1524
    %v1770 = vmul.f32 %v1450, %v1528
    %v1771 = vmul.f32 %v1451, %v1532
    %v1772 = vmul.f32 %v1452, %v1536
    %v1773 = vmul.f32 %v1453, %v1540
    %v1774 = vmul.f32 %v1454, %v1544
    %v1775 = vmul.f32 %v1455, %v1548
    %v1776 = vmul.f32 %v1456, %v1552
    %v1777 = vmul.f32 %v1457, %v1556
    %v1778 = vmul.f32 %v1458, %v1560
    %v1779 = vmul.f32 %v1459, %v1564
    %v1780 = vmul.f32 %v1460, %v1568
    %v1781 = vmul.f32 %v1461, %v1572
    %v1782 = vmul.f32 %v1462, %v1576
    %v1783 = vmul.f32 %v1463, %v1580
    %v1784 = vmul.f32 %v1464, %v1584
    %v1785 = vmul.f32 %v1465, %v1588
    %v1786 = vmul.f32 %v1466, %v1592
    %v1787 = vmul.f32 %v1467, %v1596
    %v1788 = vmul.f32 %v1468, %v1600
    %v1789 = vmul.f32 %v1469, %v1604
    %v1790 = vmul.f32 %v1470, %v1608
    %v1791 = vmul.f32 %v1471, %v1612
    %v1792 = vmul.f32 %v1472, %v1616
    %v1793 = vmul.f32 %v1473, %v1620
    %v1794 = vmul.f32 %v1474, %v1624
    %v1795 = vmul.f32 %v1475, %v1628
    %v1796 = vmul.f32 %v1476, %v1632
    %v1797 = vmul.f32 %v1477, %v1636
    %v1798 = vmul.f32 %v1478, %v1640
    %v1799 = vmul.f32 %v1479, %v1644
    %v1800 = vmul.f32 %v1480, %v1648
    %v1801 = vmul.f32 %v1481, %v1652
    %v1802 = vmul.f32 %v1482, %v1656
    %v1803 = vmul.f32 %v1483, %v1660
    %v1804 = vmul.f32 %v1484, %v1664
    %v1805 = vmul.f32 %v1485, %v1668
    %v1806 = vmul.f32 %v1486, %v1672
    %v1807 = vmul.f32 %v1487, %v1676
    %v1808 = vmul.f32 %v1488, %v1680
    %v1809 = vmul.f32 %v1489, %v1684
    %v1810 = vmul.f32 %v1490, %v1688
    %v1811 = vmul.f32 %v1491, %v1692
    %v1812 = vmul.f32 %v1492, %v1696
    %v1813 = vmul.f32 %v1493, %v1700
    %v1814 = vmul.f32 %v1494, %v1704
    %v1815 = vmul.f32 %v1495, %v1708
    %v1816 = vmul.f32 %v1496, %v1712
    %v1817 = vmul.f32 %v1497, %v1716
    %v1818 = vmul.f32 %v1498, %v1720
    %v1819 = vmul.f32 %v1499, %v1724
    %v1820 = vmul.f32 %v1500, %v1728
    %v1821 = vmul.f32 %v1501, %v1732
    %v1822 = vmul.f32 %v1502, %v1736
    %v1823 = vmul.f32 %v1503, %v1740
    %v1824 = vmul.f32 %v1504, %v1744
    %v1825 = vmul.f32 %v1505, %v1748
    %v1826 = vmul.f32 %v1506, %v1752
    %v1827 = vmul.f32 %v1507, %v1756
    %v1828 = vmul.f32 %v1508, %v1760
    %v1829 = vmul.f32 %v1509, %v1764
    %v1830 = vld [vmem:[#allocation2 + $0x11] sm:$0xff]
    %v1831 = vld [vmem:[#allocation2 + $0x19] sm:$0xff]
    %v1832 = vld [vmem:[#allocation2 + $0x21] sm:$0xff]
    %v1833 = vld [vmem:[#allocation2 + $0x29] sm:$0xff]
    %v1834 = vld [vmem:[#allocation2 + $0x31] sm:$0xff]
    %v1835 = vld [vmem:[#allocation2 + $0x39] sm:$0xff]
    %v1836 = vld [vmem:[#allocation2 + $0x41] sm:$0xff]
    %v1837 = vld [vmem:[#allocation2 + $0x49] sm:$0xff]
    %v1838 = vld [vmem:[#allocation2 + $0x51] sm:$0xff]
    %v1839 = vld [vmem:[#allocation2 + $0x59] sm:$0xff]
    %v1840 = vld [vmem:[#allocation2 + $0x61] sm:$0xff]
    %v1841 = vld [vmem:[#allocation2 + $0x69] sm:$0xff]
    %v1842 = vld [vmem:[#allocation2 + $0x71] sm:$0xff]
    %v1843 = vld [vmem:[#allocation2 + $0x79] sm:$0xff]
    %v1844 = vld [vmem:[#allocation2 + $0x81] sm:$0xff]
    %v1845 = vld [vmem:[#allocation2 + $0x89] sm:$0xff]
    %v1846 = vld [vmem:[#allocation2 + $0x91] sm:$0xff]
    %v1847 = vld [vmem:[#allocation2 + $0x99] sm:$0xff]
    %v1848 = vld [vmem:[#allocation2 + $0xa1] sm:$0xff]
    %v1849 = vld [vmem:[#allocation2 + $0xa9] sm:$0xff]
    %v1850 = vld [vmem:[#allocation2 + $0xb1] sm:$0xff]
    %v1851 = vld [vmem:[#allocation2 + $0xb9] sm:$0xff]
    %v1852 = vld [vmem:[#allocation2 + $0xc1] sm:$0xff]
    %v1853 = vld [vmem:[#allocation2 + $0xc9] sm:$0xff]
    %v1854 = vld [vmem:[#allocation2 + $0xd1] sm:$0xff]
    %v1855 = vld [vmem:[#allocation2 + $0xd9] sm:$0xff]
    %v1856 = vld [vmem:[#allocation2 + $0xe1] sm:$0xff]
    %v1857 = vld [vmem:[#allocation2 + $0xe9] sm:$0xff]
    %v1858 = vld [vmem:[#allocation2 + $0xf1] sm:$0xff]
    %v1859 = vld [vmem:[#allocation2 + $0xf9] sm:$0xff]
    %v1860 = vld [vmem:[#allocation2 + $0x101] sm:$0xff]
    %v1861 = vld [vmem:[#allocation2 + $0x109] sm:$0xff]
    %v1862 = vld [vmem:[#allocation2 + $0x111] sm:$0xff]
    %v1863 = vld [vmem:[#allocation2 + $0x119] sm:$0xff]
    %v1864 = vld [vmem:[#allocation2 + $0x121] sm:$0xff]
    %v1865 = vld [vmem:[#allocation2 + $0x129] sm:$0xff]
    %v1866 = vld [vmem:[#allocation2 + $0x131] sm:$0xff]
    %v1867 = vld [vmem:[#allocation2 + $0x139] sm:$0xff]
    %v1868 = vld [vmem:[#allocation2 + $0x141] sm:$0xff]
    %v1869 = vld [vmem:[#allocation2 + $0x149] sm:$0xff]
    %v1870 = vld [vmem:[#allocation2 + $0x151] sm:$0xff]
    %v1871 = vld [vmem:[#allocation2 + $0x159] sm:$0xff]
    %v1872 = vld [vmem:[#allocation2 + $0x161] sm:$0xff]
    %v1873 = vld [vmem:[#allocation2 + $0x169] sm:$0xff]
    %v1874 = vld [vmem:[#allocation2 + $0x171] sm:$0xff]
    %v1875 = vld [vmem:[#allocation2 + $0x179] sm:$0xff]
    %v1876 = vld [vmem:[#allocation2 + $0x181] sm:$0xff]
    %v1877 = vld [vmem:[#allocation2 + $0x189] sm:$0xff]
    %v1878 = vld [vmem:[#allocation2 + $0x191] sm:$0xff]
    %v1879 = vld [vmem:[#allocation2 + $0x199] sm:$0xff]
    %v1880 = vld [vmem:[#allocation2 + $0x1a1] sm:$0xff]
    %v1881 = vld [vmem:[#allocation2 + $0x1a9] sm:$0xff]
    %v1882 = vld [vmem:[#allocation2 + $0x1b1] sm:$0xff]
    %v1883 = vld [vmem:[#allocation2 + $0x1b9] sm:$0xff]
    %v1884 = vld [vmem:[#allocation2 + $0x1c1] sm:$0xff]
    %v1885 = vld [vmem:[#allocation2 + $0x1c9] sm:$0xff]
    %v1886 = vld [vmem:[#allocation2 + $0x1d1] sm:$0xff]
    %v1887 = vld [vmem:[#allocation2 + $0x1d9] sm:$0xff]
    %v1888 = vld [vmem:[#allocation2 + $0x1e1] sm:$0xff]
    %v1889 = vld [vmem:[#allocation2 + $0x1e9] sm:$0xff]
    %v1890 = vld [vmem:[#allocation2 + $0x1f1] sm:$0xff]
    %v1891 = vld [vmem:[#allocation2 + $0x1f9] sm:$0xff]
    %v1892 = vld [vmem:[#allocation2 + $0x201] sm:$0xff]
    %v1893 = vld [vmem:[#allocation2 + $0x209] sm:$0xff]
    %1894 = vset.pattern.permute.xlu0 4
    %1895 = vperm.xlu0 %1894, %v230
    %v1896 = vpop.permute.xlu0 %1895
    %1898 = vset.pattern.permute.xlu0 4
    %1899 = vperm.xlu0 %1898, %v231
    %v1900 = vpop.permute.xlu0 %1899
    %1902 = vset.pattern.permute.xlu0 4
    %1903 = vperm.xlu0 %1902, %v232
    %v1904 = vpop.permute.xlu0 %1903
    %1906 = vset.pattern.permute.xlu0 4
    %1907 = vperm.xlu0 %1906, %v233
    %v1908 = vpop.permute.xlu0 %1907
    %1910 = vset.pattern.permute.xlu0 4
    %1911 = vperm.xlu0 %1910, %v234
    %v1912 = vpop.permute.xlu0 %1911
    %1914 = vset.pattern.permute.xlu0 4
    %1915 = vperm.xlu0 %1914, %v235
    %v1916 = vpop.permute.xlu0 %1915
    %1918 = vset.pattern.permute.xlu0 4
    %1919 = vperm.xlu0 %1918, %v236
    %v1920 = vpop.permute.xlu0 %1919
    %1922 = vset.pattern.permute.xlu0 4
    %1923 = vperm.xlu0 %1922, %v237
    %v1924 = vpop.permute.xlu0 %1923
    %1926 = vset.pattern.permute.xlu0 4
    %1927 = vperm.xlu0 %1926, %v238
    %v1928 = vpop.permute.xlu0 %1927
    %1930 = vset.pattern.permute.xlu0 4
    %1931 = vperm.xlu0 %1930, %v239
    %v1932 = vpop.permute.xlu0 %1931
    %1934 = vset.pattern.permute.xlu0 4
    %1935 = vperm.xlu0 %1934, %v240
    %v1936 = vpop.permute.xlu0 %1935
    %1938 = vset.pattern.permute.xlu0 4
    %1939 = vperm.xlu0 %1938, %v241
    %v1940 = vpop.permute.xlu0 %1939
    %1942 = vset.pattern.permute.xlu0 4
    %1943 = vperm.xlu0 %1942, %v242
    %v1944 = vpop.permute.xlu0 %1943
    %1946 = vset.pattern.permute.xlu0 4
    %1947 = vperm.xlu0 %1946, %v243
    %v1948 = vpop.permute.xlu0 %1947
    %1950 = vset.pattern.permute.xlu0 4
    %1951 = vperm.xlu0 %1950, %v244
    %v1952 = vpop.permute.xlu0 %1951
    %1954 = vset.pattern.permute.xlu0 4
    %1955 = vperm.xlu0 %1954, %v245
    %v1956 = vpop.permute.xlu0 %1955
    %1958 = vset.pattern.permute.xlu0 4
    %1959 = vperm.xlu0 %1958, %v246
    %v1960 = vpop.permute.xlu0 %1959
    %1962 = vset.pattern.permute.xlu0 4
    %1963 = vperm.xlu0 %1962, %v247
    %v1964 = vpop.permute.xlu0 %1963
    %1966 = vset.pattern.permute.xlu0 4
    %1967 = vperm.xlu0 %1966, %v248
    %v1968 = vpop.permute.xlu0 %1967
    %1970 = vset.pattern.permute.xlu0 4
    %1971 = vperm.xlu0 %1970, %v249
    %v1972 = vpop.permute.xlu0 %1971
    %1974 = vset.pattern.permute.xlu0 4
    %1975 = vperm.xlu0 %1974, %v250
    %v1976 = vpop.permute.xlu0 %1975
    %1978 = vset.pattern.permute.xlu0 4
    %1979 = vperm.xlu0 %1978, %v251
    %v1980 = vpop.permute.xlu0 %1979
    %1982 = vset.pattern.permute.xlu0 4
    %1983 = vperm.xlu0 %1982, %v252
    %v1984 = vpop.permute.xlu0 %1983
    %1986 = vset.pattern.permute.xlu0 4
    %1987 = vperm.xlu0 %1986, %v253
    %v1988 = vpop.permute.xlu0 %1987
    %1990 = vset.pattern.permute.xlu0 4
    %1991 = vperm.xlu0 %1990, %v254
    %v1992 = vpop.permute.xlu0 %1991
    %1994 = vset.pattern.permute.xlu0 4
    %1995 = vperm.xlu0 %1994, %v255
    %v1996 = vpop.permute.xlu0 %1995
    %1998 = vset.pattern.permute.xlu0 4
    %1999 = vperm.xlu0 %1998, %v256
    %v2000 = vpop.permute.xlu0 %1999
    %2002 = vset.pattern.permute.xlu0 4
    %2003 = vperm.xlu0 %2002, %v257
    %v2004 = vpop.permute.xlu0 %2003
    %2006 = vset.pattern.permute.xlu0 4
    %2007 = vperm.xlu0 %2006, %v258
    %v2008 = vpop.permute.xlu0 %2007
    %2010 = vset.pattern.permute.xlu0 4
    %2011 = vperm.xlu0 %2010, %v259
    %v2012 = vpop.permute.xlu0 %2011
    %2014 = vset.pattern.permute.xlu0 4
    %2015 = vperm.xlu0 %2014, %v260
    %v2016 = vpop.permute.xlu0 %2015
    %2018 = vset.pattern.permute.xlu0 4
    %2019 = vperm.xlu0 %2018, %v261
    %v2020 = vpop.permute.xlu0 %2019
    %2022 = vset.pattern.permute.xlu0 4
    %2023 = vperm.xlu0 %2022, %v262
    %v2024 = vpop.permute.xlu0 %2023
    %2026 = vset.pattern.permute.xlu0 4
    %2027 = vperm.xlu0 %2026, %v263
    %v2028 = vpop.permute.xlu0 %2027
    %2030 = vset.pattern.permute.xlu0 4
    %2031 = vperm.xlu0 %2030, %v264
    %v2032 = vpop.permute.xlu0 %2031
    %2034 = vset.pattern.permute.xlu0 4
    %2035 = vperm.xlu0 %2034, %v265
    %v2036 = vpop.permute.xlu0 %2035
    %2038 = vset.pattern.permute.xlu0 4
    %2039 = vperm.xlu0 %2038, %v266
    %v2040 = vpop.permute.xlu0 %2039
    %2042 = vset.pattern.permute.xlu0 4
    %2043 = vperm.xlu0 %2042, %v267
    %v2044 = vpop.permute.xlu0 %2043
    %2046 = vset.pattern.permute.xlu0 4
    %2047 = vperm.xlu0 %2046, %v268
    %v2048 = vpop.permute.xlu0 %2047
    %2050 = vset.pattern.permute.xlu0 4
    %2051 = vperm.xlu0 %2050, %v269
    %v2052 = vpop.permute.xlu0 %2051
    %2054 = vset.pattern.permute.xlu0 4
    %2055 = vperm.xlu0 %2054, %v270
    %v2056 = vpop.permute.xlu0 %2055
    %2058 = vset.pattern.permute.xlu0 4
    %2059 = vperm.xlu0 %2058, %v271
    %v2060 = vpop.permute.xlu0 %2059
    %2062 = vset.pattern.permute.xlu0 4
    %2063 = vperm.xlu0 %2062, %v272
    %v2064 = vpop.permute.xlu0 %2063
    %2066 = vset.pattern.permute.xlu0 4
    %2067 = vperm.xlu0 %2066, %v273
    %v2068 = vpop.permute.xlu0 %2067
    %2070 = vset.pattern.permute.xlu0 4
    %2071 = vperm.xlu0 %2070, %v274
    %v2072 = vpop.permute.xlu0 %2071
    %2074 = vset.pattern.permute.xlu0 4
    %2075 = vperm.xlu0 %2074, %v275
    %v2076 = vpop.permute.xlu0 %2075
    %2078 = vset.pattern.permute.xlu0 4
    %2079 = vperm.xlu0 %2078, %v276
    %v2080 = vpop.permute.xlu0 %2079
    %2082 = vset.pattern.permute.xlu0 4
    %2083 = vperm.xlu0 %2082, %v277
    %v2084 = vpop.permute.xlu0 %2083
    %2086 = vset.pattern.permute.xlu0 4
    %2087 = vperm.xlu0 %2086, %v278
    %v2088 = vpop.permute.xlu0 %2087
    %2090 = vset.pattern.permute.xlu0 4
    %2091 = vperm.xlu0 %2090, %v279
    %v2092 = vpop.permute.xlu0 %2091
    %2094 = vset.pattern.permute.xlu0 4
    %2095 = vperm.xlu0 %2094, %v280
    %v2096 = vpop.permute.xlu0 %2095
    %2098 = vset.pattern.permute.xlu0 4
    %2099 = vperm.xlu0 %2098, %v281
    %v2100 = vpop.permute.xlu0 %2099
    %2102 = vset.pattern.permute.xlu0 4
    %2103 = vperm.xlu0 %2102, %v282
    %v2104 = vpop.permute.xlu0 %2103
    %2106 = vset.pattern.permute.xlu0 4
    %2107 = vperm.xlu0 %2106, %v283
    %v2108 = vpop.permute.xlu0 %2107
    %2110 = vset.pattern.permute.xlu0 4
    %2111 = vperm.xlu0 %2110, %v284
    %v2112 = vpop.permute.xlu0 %2111
    %2114 = vset.pattern.permute.xlu0 4
    %2115 = vperm.xlu0 %2114, %v285
    %v2116 = vpop.permute.xlu0 %2115
    %2118 = vset.pattern.permute.xlu0 4
    %2119 = vperm.xlu0 %2118, %v286
    %v2120 = vpop.permute.xlu0 %2119
    %2122 = vset.pattern.permute.xlu0 4
    %2123 = vperm.xlu0 %2122, %v287
    %v2124 = vpop.permute.xlu0 %2123
    %2126 = vset.pattern.permute.xlu0 4
    %2127 = vperm.xlu0 %2126, %v288
    %v2128 = vpop.permute.xlu0 %2127
    %2130 = vset.pattern.permute.xlu0 4
    %2131 = vperm.xlu0 %2130, %v289
    %v2132 = vpop.permute.xlu0 %2131
    %2134 = vset.pattern.permute.xlu0 4
    %2135 = vperm.xlu0 %2134, %v290
    %v2136 = vpop.permute.xlu0 %2135
    %2138 = vset.pattern.permute.xlu0 4
    %2139 = vperm.xlu0 %2138, %v291
    %v2140 = vpop.permute.xlu0 %2139
    %2142 = vset.pattern.permute.xlu0 4
    %2143 = vperm.xlu0 %2142, %v292
    %v2144 = vpop.permute.xlu0 %2143
    %2146 = vset.pattern.permute.xlu0 4
    %2147 = vperm.xlu0 %2146, %v293
    %v2148 = vpop.permute.xlu0 %2147
    %v2150 = vmul.f32 %v1830, %v1896
    %v2151 = vmul.f32 %v1831, %v1900
    %v2152 = vmul.f32 %v1832, %v1904
    %v2153 = vmul.f32 %v1833, %v1908
    %v2154 = vmul.f32 %v1834, %v1912
    %v2155 = vmul.f32 %v1835, %v1916
    %v2156 = vmul.f32 %v1836, %v1920
    %v2157 = vmul.f32 %v1837, %v1924
    %v2158 = vmul.f32 %v1838, %v1928
    %v2159 = vmul.f32 %v1839, %v1932
    %v2160 = vmul.f32 %v1840, %v1936
    %v2161 = vmul.f32 %v1841, %v1940
    %v2162 = vmul.f32 %v1842, %v1944
    %v2163 = vmul.f32 %v1843, %v1948
    %v2164 = vmul.f32 %v1844, %v1952
    %v2165 = vmul.f32 %v1845, %v1956
    %v2166 = vmul.f32 %v1846, %v1960
    %v2167 = vmul.f32 %v1847, %v1964
    %v2168 = vmul.f32 %v1848, %v1968
    %v2169 = vmul.f32 %v1849, %v1972
    %v2170 = vmul.f32 %v1850, %v1976
    %v2171 = vmul.f32 %v1851, %v1980
    %v2172 = vmul.f32 %v1852, %v1984
    %v2173 = vmul.f32 %v1853, %v1988
    %v2174 = vmul.f32 %v1854, %v1992
    %v2175 = vmul.f32 %v1855, %v1996
    %v2176 = vmul.f32 %v1856, %v2000
    %v2177 = vmul.f32 %v1857, %v2004
    %v2178 = vmul.f32 %v1858, %v2008
    %v2179 = vmul.f32 %v1859, %v2012
    %v2180 = vmul.f32 %v1860, %v2016
    %v2181 = vmul.f32 %v1861, %v2020
    %v2182 = vmul.f32 %v1862, %v2024
    %v2183 = vmul.f32 %v1863, %v2028
    %v2184 = vmul.f32 %v1864, %v2032
    %v2185 = vmul.f32 %v1865, %v2036
    %v2186 = vmul.f32 %v1866, %v2040
    %v2187 = vmul.f32 %v1867, %v2044
    %v2188 = vmul.f32 %v1868, %v2048
    %v2189 = vmul.f32 %v1869, %v2052
    %v2190 = vmul.f32 %v1870, %v2056
    %v2191 = vmul.f32 %v1871, %v2060
    %v2192 = vmul.f32 %v1872, %v2064
    %v2193 = vmul.f32 %v1873, %v2068
    %v2194 = vmul.f32 %v1874, %v2072
    %v2195 = vmul.f32 %v1875, %v2076
    %v2196 = vmul.f32 %v1876, %v2080
    %v2197 = vmul.f32 %v1877, %v2084
    %v2198 = vmul.f32 %v1878, %v2088
    %v2199 = vmul.f32 %v1879, %v2092
    %v2200 = vmul.f32 %v1880, %v2096
    %v2201 = vmul.f32 %v1881, %v2100
    %v2202 = vmul.f32 %v1882, %v2104
    %v2203 = vmul.f32 %v1883, %v2108
    %v2204 = vmul.f32 %v1884, %v2112
    %v2205 = vmul.f32 %v1885, %v2116
    %v2206 = vmul.f32 %v1886, %v2120
    %v2207 = vmul.f32 %v1887, %v2124
    %v2208 = vmul.f32 %v1888, %v2128
    %v2209 = vmul.f32 %v1889, %v2132
    %v2210 = vmul.f32 %v1890, %v2136
    %v2211 = vmul.f32 %v1891, %v2140
    %v2212 = vmul.f32 %v1892, %v2144
    %v2213 = vmul.f32 %v1893, %v2148
    %v2214 = vld [vmem:[#allocation2 + $0x12] sm:$0xff]
    %v2215 = vld [vmem:[#allocation2 + $0x1a] sm:$0xff]
    %v2216 = vld [vmem:[#allocation2 + $0x22] sm:$0xff]
    %v2217 = vld [vmem:[#allocation2 + $0x2a] sm:$0xff]
    %v2218 = vld [vmem:[#allocation2 + $0x32] sm:$0xff]
    %v2219 = vld [vmem:[#allocation2 + $0x3a] sm:$0xff]
    %v2220 = vld [vmem:[#allocation2 + $0x42] sm:$0xff]
    %v2221 = vld [vmem:[#allocation2 + $0x4a] sm:$0xff]
    %v2222 = vld [vmem:[#allocation2 + $0x52] sm:$0xff]
    %v2223 = vld [vmem:[#allocation2 + $0x5a] sm:$0xff]
    %v2224 = vld [vmem:[#allocation2 + $0x62] sm:$0xff]
    %v2225 = vld [vmem:[#allocation2 + $0x6a] sm:$0xff]
    %v2226 = vld [vmem:[#allocation2 + $0x72] sm:$0xff]
    %v2227 = vld [vmem:[#allocation2 + $0x7a] sm:$0xff]
    %v2228 = vld [vmem:[#allocation2 + $0x82] sm:$0xff]
    %v2229 = vld [vmem:[#allocation2 + $0x8a] sm:$0xff]
    %v2230 = vld [vmem:[#allocation2 + $0x92] sm:$0xff]
    %v2231 = vld [vmem:[#allocation2 + $0x9a] sm:$0xff]
    %v2232 = vld [vmem:[#allocation2 + $0xa2] sm:$0xff]
    %v2233 = vld [vmem:[#allocation2 + $0xaa] sm:$0xff]
    %v2234 = vld [vmem:[#allocation2 + $0xb2] sm:$0xff]
    %v2235 = vld [vmem:[#allocation2 + $0xba] sm:$0xff]
    %v2236 = vld [vmem:[#allocation2 + $0xc2] sm:$0xff]
    %v2237 = vld [vmem:[#allocation2 + $0xca] sm:$0xff]
    %v2238 = vld [vmem:[#allocation2 + $0xd2] sm:$0xff]
    %v2239 = vld [vmem:[#allocation2 + $0xda] sm:$0xff]
    %v2240 = vld [vmem:[#allocation2 + $0xe2] sm:$0xff]
    %v2241 = vld [vmem:[#allocation2 + $0xea] sm:$0xff]
    %v2242 = vld [vmem:[#allocation2 + $0xf2] sm:$0xff]
    %v2243 = vld [vmem:[#allocation2 + $0xfa] sm:$0xff]
    %v2244 = vld [vmem:[#allocation2 + $0x102] sm:$0xff]
    %v2245 = vld [vmem:[#allocation2 + $0x10a] sm:$0xff]
    %v2246 = vld [vmem:[#allocation2 + $0x112] sm:$0xff]
    %v2247 = vld [vmem:[#allocation2 + $0x11a] sm:$0xff]
    %v2248 = vld [vmem:[#allocation2 + $0x122] sm:$0xff]
    %v2249 = vld [vmem:[#allocation2 + $0x12a] sm:$0xff]
    %v2250 = vld [vmem:[#allocation2 + $0x132] sm:$0xff]
    %v2251 = vld [vmem:[#allocation2 + $0x13a] sm:$0xff]
    %v2252 = vld [vmem:[#allocation2 + $0x142] sm:$0xff]
    %v2253 = vld [vmem:[#allocation2 + $0x14a] sm:$0xff]
    %v2254 = vld [vmem:[#allocation2 + $0x152] sm:$0xff]
    %v2255 = vld [vmem:[#allocation2 + $0x15a] sm:$0xff]
    %v2256 = vld [vmem:[#allocation2 + $0x162] sm:$0xff]
    %v2257 = vld [vmem:[#allocation2 + $0x16a] sm:$0xff]
    %v2258 = vld [vmem:[#allocation2 + $0x172] sm:$0xff]
    %v2259 = vld [vmem:[#allocation2 + $0x17a] sm:$0xff]
    %v2260 = vld [vmem:[#allocation2 + $0x182] sm:$0xff]
    %v2261 = vld [vmem:[#allocation2 + $0x18a] sm:$0xff]
    %v2262 = vld [vmem:[#allocation2 + $0x192] sm:$0xff]
    %v2263 = vld [vmem:[#allocation2 + $0x19a] sm:$0xff]
    %v2264 = vld [vmem:[#allocation2 + $0x1a2] sm:$0xff]
    %v2265 = vld [vmem:[#allocation2 + $0x1aa] sm:$0xff]
    %v2266 = vld [vmem:[#allocation2 + $0x1b2] sm:$0xff]
    %v2267 = vld [vmem:[#allocation2 + $0x1ba] sm:$0xff]
    %v2268 = vld [vmem:[#allocation2 + $0x1c2] sm:$0xff]
    %v2269 = vld [vmem:[#allocation2 + $0x1ca] sm:$0xff]
    %v2270 = vld [vmem:[#allocation2 + $0x1d2] sm:$0xff]
    %v2271 = vld [vmem:[#allocation2 + $0x1da] sm:$0xff]
    %v2272 = vld [vmem:[#allocation2 + $0x1e2] sm:$0xff]
    %v2273 = vld [vmem:[#allocation2 + $0x1ea] sm:$0xff]
    %v2274 = vld [vmem:[#allocation2 + $0x1f2] sm:$0xff]
    %v2275 = vld [vmem:[#allocation2 + $0x1fa] sm:$0xff]
    %v2276 = vld [vmem:[#allocation2 + $0x202] sm:$0xff]
    %v2277 = vld [vmem:[#allocation2 + $0x20a] sm:$0xff]
    %2278 = vset.pattern.permute.xlu0 5
    %2279 = vperm.xlu0 %2278, %v230
    %v2280 = vpop.permute.xlu0 %2279
    %2282 = vset.pattern.permute.xlu0 5
    %2283 = vperm.xlu0 %2282, %v231
    %v2284 = vpop.permute.xlu0 %2283
    %2286 = vset.pattern.permute.xlu0 5
    %2287 = vperm.xlu0 %2286, %v232
    %v2288 = vpop.permute.xlu0 %2287
    %2290 = vset.pattern.permute.xlu0 5
    %2291 = vperm.xlu0 %2290, %v233
    %v2292 = vpop.permute.xlu0 %2291
    %2294 = vset.pattern.permute.xlu0 5
    %2295 = vperm.xlu0 %2294, %v234
    %v2296 = vpop.permute.xlu0 %2295
    %2298 = vset.pattern.permute.xlu0 5
    %2299 = vperm.xlu0 %2298, %v235
    %v2300 = vpop.permute.xlu0 %2299
    %2302 = vset.pattern.permute.xlu0 5
    %2303 = vperm.xlu0 %2302, %v236
    %v2304 = vpop.permute.xlu0 %2303
    %2306 = vset.pattern.permute.xlu0 5
    %2307 = vperm.xlu0 %2306, %v237
    %v2308 = vpop.permute.xlu0 %2307
    %2310 = vset.pattern.permute.xlu0 5
    %2311 = vperm.xlu0 %2310, %v238
    %v2312 = vpop.permute.xlu0 %2311
    %2314 = vset.pattern.permute.xlu0 5
    %2315 = vperm.xlu0 %2314, %v239
    %v2316 = vpop.permute.xlu0 %2315
    %2318 = vset.pattern.permute.xlu0 5
    %2319 = vperm.xlu0 %2318, %v240
    %v2320 = vpop.permute.xlu0 %2319
    %2322 = vset.pattern.permute.xlu0 5
    %2323 = vperm.xlu0 %2322, %v241
    %v2324 = vpop.permute.xlu0 %2323
    %2326 = vset.pattern.permute.xlu0 5
    %2327 = vperm.xlu0 %2326, %v242
    %v2328 = vpop.permute.xlu0 %2327
    %2330 = vset.pattern.permute.xlu0 5
    %2331 = vperm.xlu0 %2330, %v243
    %v2332 = vpop.permute.xlu0 %2331
    %2334 = vset.pattern.permute.xlu0 5
    %2335 = vperm.xlu0 %2334, %v244
    %v2336 = vpop.permute.xlu0 %2335
    %2338 = vset.pattern.permute.xlu0 5
    %2339 = vperm.xlu0 %2338, %v245
    %v2340 = vpop.permute.xlu0 %2339
    %2342 = vset.pattern.permute.xlu0 5
    %2343 = vperm.xlu0 %2342, %v246
    %v2344 = vpop.permute.xlu0 %2343
    %2346 = vset.pattern.permute.xlu0 5
    %2347 = vperm.xlu0 %2346, %v247
    %v2348 = vpop.permute.xlu0 %2347
    %2350 = vset.pattern.permute.xlu0 5
    %2351 = vperm.xlu0 %2350, %v248
    %v2352 = vpop.permute.xlu0 %2351
    %2354 = vset.pattern.permute.xlu0 5
    %2355 = vperm.xlu0 %2354, %v249
    %v2356 = vpop.permute.xlu0 %2355
    %2358 = vset.pattern.permute.xlu0 5
    %2359 = vperm.xlu0 %2358, %v250
    %v2360 = vpop.permute.xlu0 %2359
    %2362 = vset.pattern.permute.xlu0 5
    %2363 = vperm.xlu0 %2362, %v251
    %v2364 = vpop.permute.xlu0 %2363
    %2366 = vset.pattern.permute.xlu0 5
    %2367 = vperm.xlu0 %2366, %v252
    %v2368 = vpop.permute.xlu0 %2367
    %2370 = vset.pattern.permute.xlu0 5
    %2371 = vperm.xlu0 %2370, %v253
    %v2372 = vpop.permute.xlu0 %2371
    %2374 = vset.pattern.permute.xlu0 5
    %2375 = vperm.xlu0 %2374, %v254
    %v2376 = vpop.permute.xlu0 %2375
    %2378 = vset.pattern.permute.xlu0 5
    %2379 = vperm.xlu0 %2378, %v255
    %v2380 = vpop.permute.xlu0 %2379
    %2382 = vset.pattern.permute.xlu0 5
    %2383 = vperm.xlu0 %2382, %v256
    %v2384 = vpop.permute.xlu0 %2383
    %2386 = vset.pattern.permute.xlu0 5
    %2387 = vperm.xlu0 %2386, %v257
    %v2388 = vpop.permute.xlu0 %2387
    %2390 = vset.pattern.permute.xlu0 5
    %2391 = vperm.xlu0 %2390, %v258
    %v2392 = vpop.permute.xlu0 %2391
    %2394 = vset.pattern.permute.xlu0 5
    %2395 = vperm.xlu0 %2394, %v259
    %v2396 = vpop.permute.xlu0 %2395
    %2398 = vset.pattern.permute.xlu0 5
    %2399 = vperm.xlu0 %2398, %v260
    %v2400 = vpop.permute.xlu0 %2399
    %2402 = vset.pattern.permute.xlu0 5
    %2403 = vperm.xlu0 %2402, %v261
    %v2404 = vpop.permute.xlu0 %2403
    %2406 = vset.pattern.permute.xlu0 5
    %2407 = vperm.xlu0 %2406, %v262
    %v2408 = vpop.permute.xlu0 %2407
    %2410 = vset.pattern.permute.xlu0 5
    %2411 = vperm.xlu0 %2410, %v263
    %v2412 = vpop.permute.xlu0 %2411
    %2414 = vset.pattern.permute.xlu0 5
    %2415 = vperm.xlu0 %2414, %v264
    %v2416 = vpop.permute.xlu0 %2415
    %2418 = vset.pattern.permute.xlu0 5
    %2419 = vperm.xlu0 %2418, %v265
    %v2420 = vpop.permute.xlu0 %2419
    %2422 = vset.pattern.permute.xlu0 5
    %2423 = vperm.xlu0 %2422, %v266
    %v2424 = vpop.permute.xlu0 %2423
    %2426 = vset.pattern.permute.xlu0 5
    %2427 = vperm.xlu0 %2426, %v267
    %v2428 = vpop.permute.xlu0 %2427
    %2430 = vset.pattern.permute.xlu0 5
    %2431 = vperm.xlu0 %2430, %v268
    %v2432 = vpop.permute.xlu0 %2431
    %2434 = vset.pattern.permute.xlu0 5
    %2435 = vperm.xlu0 %2434, %v269
    %v2436 = vpop.permute.xlu0 %2435
    %2438 = vset.pattern.permute.xlu0 5
    %2439 = vperm.xlu0 %2438, %v270
    %v2440 = vpop.permute.xlu0 %2439
    %2442 = vset.pattern.permute.xlu0 5
    %2443 = vperm.xlu0 %2442, %v271
    %v2444 = vpop.permute.xlu0 %2443
    %2446 = vset.pattern.permute.xlu0 5
    %2447 = vperm.xlu0 %2446, %v272
    %v2448 = vpop.permute.xlu0 %2447
    %2450 = vset.pattern.permute.xlu0 5
    %2451 = vperm.xlu0 %2450, %v273
    %v2452 = vpop.permute.xlu0 %2451
    %2454 = vset.pattern.permute.xlu0 5
    %2455 = vperm.xlu0 %2454, %v274
    %v2456 = vpop.permute.xlu0 %2455
    %2458 = vset.pattern.permute.xlu0 5
    %2459 = vperm.xlu0 %2458, %v275
    %v2460 = vpop.permute.xlu0 %2459
    %2462 = vset.pattern.permute.xlu0 5
    %2463 = vperm.xlu0 %2462, %v276
    %v2464 = vpop.permute.xlu0 %2463
    %2466 = vset.pattern.permute.xlu0 5
    %2467 = vperm.xlu0 %2466, %v277
    %v2468 = vpop.permute.xlu0 %2467
    %2470 = vset.pattern.permute.xlu0 5
    %2471 = vperm.xlu0 %2470, %v278
    %v2472 = vpop.permute.xlu0 %2471
    %2474 = vset.pattern.permute.xlu0 5
    %2475 = vperm.xlu0 %2474, %v279
    %v2476 = vpop.permute.xlu0 %2475
    %2478 = vset.pattern.permute.xlu0 5
    %2479 = vperm.xlu0 %2478, %v280
    %v2480 = vpop.permute.xlu0 %2479
    %2482 = vset.pattern.permute.xlu0 5
    %2483 = vperm.xlu0 %2482, %v281
    %v2484 = vpop.permute.xlu0 %2483
    %2486 = vset.pattern.permute.xlu0 5
    %2487 = vperm.xlu0 %2486, %v282
    %v2488 = vpop.permute.xlu0 %2487
    %2490 = vset.pattern.permute.xlu0 5
    %2491 = vperm.xlu0 %2490, %v283
    %v2492 = vpop.permute.xlu0 %2491
    %2494 = vset.pattern.permute.xlu0 5
    %2495 = vperm.xlu0 %2494, %v284
    %v2496 = vpop.permute.xlu0 %2495
    %2498 = vset.pattern.permute.xlu0 5
    %2499 = vperm.xlu0 %2498, %v285
    %v2500 = vpop.permute.xlu0 %2499
    %2502 = vset.pattern.permute.xlu0 5
    %2503 = vperm.xlu0 %2502, %v286
    %v2504 = vpop.permute.xlu0 %2503
    %2506 = vset.pattern.permute.xlu0 5
    %2507 = vperm.xlu0 %2506, %v287
    %v2508 = vpop.permute.xlu0 %2507
    %2510 = vset.pattern.permute.xlu0 5
    %2511 = vperm.xlu0 %2510, %v288
    %v2512 = vpop.permute.xlu0 %2511
    %2514 = vset.pattern.permute.xlu0 5
    %2515 = vperm.xlu0 %2514, %v289
    %v2516 = vpop.permute.xlu0 %2515
    %2518 = vset.pattern.permute.xlu0 5
    %2519 = vperm.xlu0 %2518, %v290
    %v2520 = vpop.permute.xlu0 %2519
    %2522 = vset.pattern.permute.xlu0 5
    %2523 = vperm.xlu0 %2522, %v291
    %v2524 = vpop.permute.xlu0 %2523
    %2526 = vset.pattern.permute.xlu0 5
    %2527 = vperm.xlu0 %2526, %v292
    %v2528 = vpop.permute.xlu0 %2527
    %2530 = vset.pattern.permute.xlu0 5
    %2531 = vperm.xlu0 %2530, %v293
    %v2532 = vpop.permute.xlu0 %2531
    %v2534 = vmul.f32 %v2214, %v2280
    %v2535 = vmul.f32 %v2215, %v2284
    %v2536 = vmul.f32 %v2216, %v2288
    %v2537 = vmul.f32 %v2217, %v2292
    %v2538 = vmul.f32 %v2218, %v2296
    %v2539 = vmul.f32 %v2219, %v2300
    %v2540 = vmul.f32 %v2220, %v2304
    %v2541 = vmul.f32 %v2221, %v2308
    %v2542 = vmul.f32 %v2222, %v2312
    %v2543 = vmul.f32 %v2223, %v2316
    %v2544 = vmul.f32 %v2224, %v2320
    %v2545 = vmul.f32 %v2225, %v2324
    %v2546 = vmul.f32 %v2226, %v2328
    %v2547 = vmul.f32 %v2227, %v2332
    %v2548 = vmul.f32 %v2228, %v2336
    %v2549 = vmul.f32 %v2229, %v2340
    %v2550 = vmul.f32 %v2230, %v2344
    %v2551 = vmul.f32 %v2231, %v2348
    %v2552 = vmul.f32 %v2232, %v2352
    %v2553 = vmul.f32 %v2233, %v2356
    %v2554 = vmul.f32 %v2234, %v2360
    %v2555 = vmul.f32 %v2235, %v2364
    %v2556 = vmul.f32 %v2236, %v2368
    %v2557 = vmul.f32 %v2237, %v2372
    %v2558 = vmul.f32 %v2238, %v2376
    %v2559 = vmul.f32 %v2239, %v2380
    %v2560 = vmul.f32 %v2240, %v2384
    %v2561 = vmul.f32 %v2241, %v2388
    %v2562 = vmul.f32 %v2242, %v2392
    %v2563 = vmul.f32 %v2243, %v2396
    %v2564 = vmul.f32 %v2244, %v2400
    %v2565 = vmul.f32 %v2245, %v2404
    %v2566 = vmul.f32 %v2246, %v2408
    %v2567 = vmul.f32 %v2247, %v2412
    %v2568 = vmul.f32 %v2248, %v2416
    %v2569 = vmul.f32 %v2249, %v2420
    %v2570 = vmul.f32 %v2250, %v2424
    %v2571 = vmul.f32 %v2251, %v2428
    %v2572 = vmul.f32 %v2252, %v2432
    %v2573 = vmul.f32 %v2253, %v2436
    %v2574 = vmul.f32 %v2254, %v2440
    %v2575 = vmul.f32 %v2255, %v2444
    %v2576 = vmul.f32 %v2256, %v2448
    %v2577 = vmul.f32 %v2257, %v2452
    %v2578 = vmul.f32 %v2258, %v2456
    %v2579 = vmul.f32 %v2259, %v2460
    %v2580 = vmul.f32 %v2260, %v2464
    %v2581 = vmul.f32 %v2261, %v2468
    %v2582 = vmul.f32 %v2262, %v2472
    %v2583 = vmul.f32 %v2263, %v2476
    %v2584 = vmul.f32 %v2264, %v2480
    %v2585 = vmul.f32 %v2265, %v2484
    %v2586 = vmul.f32 %v2266, %v2488
    %v2587 = vmul.f32 %v2267, %v2492
    %v2588 = vmul.f32 %v2268, %v2496
    %v2589 = vmul.f32 %v2269, %v2500
    %v2590 = vmul.f32 %v2270, %v2504
    %v2591 = vmul.f32 %v2271, %v2508
    %v2592 = vmul.f32 %v2272, %v2512
    %v2593 = vmul.f32 %v2273, %v2516
    %v2594 = vmul.f32 %v2274, %v2520
    %v2595 = vmul.f32 %v2275, %v2524
    %v2596 = vmul.f32 %v2276, %v2528
    %v2597 = vmul.f32 %v2277, %v2532
    %v2598 = vld [vmem:[#allocation2 + $0x20] sm:$0xff]
    %v2599 = vld [vmem:[#allocation2 + $0x28] sm:$0xff]
    %v2600 = vld [vmem:[#allocation2 + $0x30] sm:$0xff]
    %v2601 = vld [vmem:[#allocation2 + $0x38] sm:$0xff]
    %v2602 = vld [vmem:[#allocation2 + $0x40] sm:$0xff]
    %v2603 = vld [vmem:[#allocation2 + $0x48] sm:$0xff]
    %v2604 = vld [vmem:[#allocation2 + $0x50] sm:$0xff]
    %v2605 = vld [vmem:[#allocation2 + $0x58] sm:$0xff]
    %v2606 = vld [vmem:[#allocation2 + $0x60] sm:$0xff]
    %v2607 = vld [vmem:[#allocation2 + $0x68] sm:$0xff]
    %v2608 = vld [vmem:[#allocation2 + $0x70] sm:$0xff]
    %v2609 = vld [vmem:[#allocation2 + $0x78] sm:$0xff]
    %v2610 = vld [vmem:[#allocation2 + $0x80] sm:$0xff]
    %v2611 = vld [vmem:[#allocation2 + $0x88] sm:$0xff]
    %v2612 = vld [vmem:[#allocation2 + $0x90] sm:$0xff]
    %v2613 = vld [vmem:[#allocation2 + $0x98] sm:$0xff]
    %v2614 = vld [vmem:[#allocation2 + $0xa0] sm:$0xff]
    %v2615 = vld [vmem:[#allocation2 + $0xa8] sm:$0xff]
    %v2616 = vld [vmem:[#allocation2 + $0xb0] sm:$0xff]
    %v2617 = vld [vmem:[#allocation2 + $0xb8] sm:$0xff]
    %v2618 = vld [vmem:[#allocation2 + $0xc0] sm:$0xff]
    %v2619 = vld [vmem:[#allocation2 + $0xc8] sm:$0xff]
    %v2620 = vld [vmem:[#allocation2 + $0xd0] sm:$0xff]
    %v2621 = vld [vmem:[#allocation2 + $0xd8] sm:$0xff]
    %v2622 = vld [vmem:[#allocation2 + $0xe0] sm:$0xff]
    %v2623 = vld [vmem:[#allocation2 + $0xe8] sm:$0xff]
    %v2624 = vld [vmem:[#allocation2 + $0xf0] sm:$0xff]
    %v2625 = vld [vmem:[#allocation2 + $0xf8] sm:$0xff]
    %v2626 = vld [vmem:[#allocation2 + $0x100] sm:$0xff]
    %v2627 = vld [vmem:[#allocation2 + $0x108] sm:$0xff]
    %v2628 = vld [vmem:[#allocation2 + $0x110] sm:$0xff]
    %v2629 = vld [vmem:[#allocation2 + $0x118] sm:$0xff]
    %v2630 = vld [vmem:[#allocation2 + $0x120] sm:$0xff]
    %v2631 = vld [vmem:[#allocation2 + $0x128] sm:$0xff]
    %v2632 = vld [vmem:[#allocation2 + $0x130] sm:$0xff]
    %v2633 = vld [vmem:[#allocation2 + $0x138] sm:$0xff]
    %v2634 = vld [vmem:[#allocation2 + $0x140] sm:$0xff]
    %v2635 = vld [vmem:[#allocation2 + $0x148] sm:$0xff]
    %v2636 = vld [vmem:[#allocation2 + $0x150] sm:$0xff]
    %v2637 = vld [vmem:[#allocation2 + $0x158] sm:$0xff]
    %v2638 = vld [vmem:[#allocation2 + $0x160] sm:$0xff]
    %v2639 = vld [vmem:[#allocation2 + $0x168] sm:$0xff]
    %v2640 = vld [vmem:[#allocation2 + $0x170] sm:$0xff]
    %v2641 = vld [vmem:[#allocation2 + $0x178] sm:$0xff]
    %v2642 = vld [vmem:[#allocation2 + $0x180] sm:$0xff]
    %v2643 = vld [vmem:[#allocation2 + $0x188] sm:$0xff]
    %v2644 = vld [vmem:[#allocation2 + $0x190] sm:$0xff]
    %v2645 = vld [vmem:[#allocation2 + $0x198] sm:$0xff]
    %v2646 = vld [vmem:[#allocation2 + $0x1a0] sm:$0xff]
    %v2647 = vld [vmem:[#allocation2 + $0x1a8] sm:$0xff]
    %v2648 = vld [vmem:[#allocation2 + $0x1b0] sm:$0xff]
    %v2649 = vld [vmem:[#allocation2 + $0x1b8] sm:$0xff]
    %v2650 = vld [vmem:[#allocation2 + $0x1c0] sm:$0xff]
    %v2651 = vld [vmem:[#allocation2 + $0x1c8] sm:$0xff]
    %v2652 = vld [vmem:[#allocation2 + $0x1d0] sm:$0xff]
    %v2653 = vld [vmem:[#allocation2 + $0x1d8] sm:$0xff]
    %v2654 = vld [vmem:[#allocation2 + $0x1e0] sm:$0xff]
    %v2655 = vld [vmem:[#allocation2 + $0x1e8] sm:$0xff]
    %v2656 = vld [vmem:[#allocation2 + $0x1f0] sm:$0xff]
    %v2657 = vld [vmem:[#allocation2 + $0x1f8] sm:$0xff]
    %v2658 = vld [vmem:[#allocation2 + $0x200] sm:$0xff]
    %v2659 = vld [vmem:[#allocation2 + $0x208] sm:$0xff]
    %v2660 = vld [vmem:[#allocation2 + $0x210] sm:$0xff]
    %v2661 = vld [vmem:[#allocation2 + $0x218] sm:$0xff]
    %2662 = vset.pattern.permute.xlu0 6
    %2663 = vperm.xlu0 %2662, %v230
    %v2664 = vpop.permute.xlu0 %2663
    %2666 = vset.pattern.permute.xlu0 6
    %2667 = vperm.xlu0 %2666, %v231
    %v2668 = vpop.permute.xlu0 %2667
    %2670 = vset.pattern.permute.xlu0 6
    %2671 = vperm.xlu0 %2670, %v232
    %v2672 = vpop.permute.xlu0 %2671
    %2674 = vset.pattern.permute.xlu0 6
    %2675 = vperm.xlu0 %2674, %v233
    %v2676 = vpop.permute.xlu0 %2675
    %2678 = vset.pattern.permute.xlu0 6
    %2679 = vperm.xlu0 %2678, %v234
    %v2680 = vpop.permute.xlu0 %2679
    %2682 = vset.pattern.permute.xlu0 6
    %2683 = vperm.xlu0 %2682, %v235
    %v2684 = vpop.permute.xlu0 %2683
    %2686 = vset.pattern.permute.xlu0 6
    %2687 = vperm.xlu0 %2686, %v236
    %v2688 = vpop.permute.xlu0 %2687
    %2690 = vset.pattern.permute.xlu0 6
    %2691 = vperm.xlu0 %2690, %v237
    %v2692 = vpop.permute.xlu0 %2691
    %2694 = vset.pattern.permute.xlu0 6
    %2695 = vperm.xlu0 %2694, %v238
    %v2696 = vpop.permute.xlu0 %2695
    %2698 = vset.pattern.permute.xlu0 6
    %2699 = vperm.xlu0 %2698, %v239
    %v2700 = vpop.permute.xlu0 %2699
    %2702 = vset.pattern.permute.xlu0 6
    %2703 = vperm.xlu0 %2702, %v240
    %v2704 = vpop.permute.xlu0 %2703
    %2706 = vset.pattern.permute.xlu0 6
    %2707 = vperm.xlu0 %2706, %v241
    %v2708 = vpop.permute.xlu0 %2707
    %2710 = vset.pattern.permute.xlu0 6
    %2711 = vperm.xlu0 %2710, %v242
    %v2712 = vpop.permute.xlu0 %2711
    %2714 = vset.pattern.permute.xlu0 6
    %2715 = vperm.xlu0 %2714, %v243
    %v2716 = vpop.permute.xlu0 %2715
    %2718 = vset.pattern.permute.xlu0 6
    %2719 = vperm.xlu0 %2718, %v244
    %v2720 = vpop.permute.xlu0 %2719
    %2722 = vset.pattern.permute.xlu0 6
    %2723 = vperm.xlu0 %2722, %v245
    %v2724 = vpop.permute.xlu0 %2723
    %2726 = vset.pattern.permute.xlu0 6
    %2727 = vperm.xlu0 %2726, %v246
    %v2728 = vpop.permute.xlu0 %2727
    %2730 = vset.pattern.permute.xlu0 6
    %2731 = vperm.xlu0 %2730, %v247
    %v2732 = vpop.permute.xlu0 %2731
    %2734 = vset.pattern.permute.xlu0 6
    %2735 = vperm.xlu0 %2734, %v248
    %v2736 = vpop.permute.xlu0 %2735
    %2738 = vset.pattern.permute.xlu0 6
    %2739 = vperm.xlu0 %2738, %v249
    %v2740 = vpop.permute.xlu0 %2739
    %2742 = vset.pattern.permute.xlu0 6
    %2743 = vperm.xlu0 %2742, %v250
    %v2744 = vpop.permute.xlu0 %2743
    %2746 = vset.pattern.permute.xlu0 6
    %2747 = vperm.xlu0 %2746, %v251
    %v2748 = vpop.permute.xlu0 %2747
    %2750 = vset.pattern.permute.xlu0 6
    %2751 = vperm.xlu0 %2750, %v252
    %v2752 = vpop.permute.xlu0 %2751
    %2754 = vset.pattern.permute.xlu0 6
    %2755 = vperm.xlu0 %2754, %v253
    %v2756 = vpop.permute.xlu0 %2755
    %2758 = vset.pattern.permute.xlu0 6
    %2759 = vperm.xlu0 %2758, %v254
    %v2760 = vpop.permute.xlu0 %2759
    %2762 = vset.pattern.permute.xlu0 6
    %2763 = vperm.xlu0 %2762, %v255
    %v2764 = vpop.permute.xlu0 %2763
    %2766 = vset.pattern.permute.xlu0 6
    %2767 = vperm.xlu0 %2766, %v256
    %v2768 = vpop.permute.xlu0 %2767
    %2770 = vset.pattern.permute.xlu0 6
    %2771 = vperm.xlu0 %2770, %v257
    %v2772 = vpop.permute.xlu0 %2771
    %2774 = vset.pattern.permute.xlu0 6
    %2775 = vperm.xlu0 %2774, %v258
    %v2776 = vpop.permute.xlu0 %2775
    %2778 = vset.pattern.permute.xlu0 6
    %2779 = vperm.xlu0 %2778, %v259
    %v2780 = vpop.permute.xlu0 %2779
    %2782 = vset.pattern.permute.xlu0 6
    %2783 = vperm.xlu0 %2782, %v260
    %v2784 = vpop.permute.xlu0 %2783
    %2786 = vset.pattern.permute.xlu0 6
    %2787 = vperm.xlu0 %2786, %v261
    %v2788 = vpop.permute.xlu0 %2787
    %2790 = vset.pattern.permute.xlu0 6
    %2791 = vperm.xlu0 %2790, %v262
    %v2792 = vpop.permute.xlu0 %2791
    %2794 = vset.pattern.permute.xlu0 6
    %2795 = vperm.xlu0 %2794, %v263
    %v2796 = vpop.permute.xlu0 %2795
    %2798 = vset.pattern.permute.xlu0 6
    %2799 = vperm.xlu0 %2798, %v264
    %v2800 = vpop.permute.xlu0 %2799
    %2802 = vset.pattern.permute.xlu0 6
    %2803 = vperm.xlu0 %2802, %v265
    %v2804 = vpop.permute.xlu0 %2803
    %2806 = vset.pattern.permute.xlu0 6
    %2807 = vperm.xlu0 %2806, %v266
    %v2808 = vpop.permute.xlu0 %2807
    %2810 = vset.pattern.permute.xlu0 6
    %2811 = vperm.xlu0 %2810, %v267
    %v2812 = vpop.permute.xlu0 %2811
    %2814 = vset.pattern.permute.xlu0 6
    %2815 = vperm.xlu0 %2814, %v268
    %v2816 = vpop.permute.xlu0 %2815
    %2818 = vset.pattern.permute.xlu0 6
    %2819 = vperm.xlu0 %2818, %v269
    %v2820 = vpop.permute.xlu0 %2819
    %2822 = vset.pattern.permute.xlu0 6
    %2823 = vperm.xlu0 %2822, %v270
    %v2824 = vpop.permute.xlu0 %2823
    %2826 = vset.pattern.permute.xlu0 6
    %2827 = vperm.xlu0 %2826, %v271
    %v2828 = vpop.permute.xlu0 %2827
    %2830 = vset.pattern.permute.xlu0 6
    %2831 = vperm.xlu0 %2830, %v272
    %v2832 = vpop.permute.xlu0 %2831
    %2834 = vset.pattern.permute.xlu0 6
    %2835 = vperm.xlu0 %2834, %v273
    %v2836 = vpop.permute.xlu0 %2835
    %2838 = vset.pattern.permute.xlu0 6
    %2839 = vperm.xlu0 %2838, %v274
    %v2840 = vpop.permute.xlu0 %2839
    %2842 = vset.pattern.permute.xlu0 6
    %2843 = vperm.xlu0 %2842, %v275
    %v2844 = vpop.permute.xlu0 %2843
    %2846 = vset.pattern.permute.xlu0 6
    %2847 = vperm.xlu0 %2846, %v276
    %v2848 = vpop.permute.xlu0 %2847
    %2850 = vset.pattern.permute.xlu0 6
    %2851 = vperm.xlu0 %2850, %v277
    %v2852 = vpop.permute.xlu0 %2851
    %2854 = vset.pattern.permute.xlu0 6
    %2855 = vperm.xlu0 %2854, %v278
    %v2856 = vpop.permute.xlu0 %2855
    %2858 = vset.pattern.permute.xlu0 6
    %2859 = vperm.xlu0 %2858, %v279
    %v2860 = vpop.permute.xlu0 %2859
    %2862 = vset.pattern.permute.xlu0 6
    %2863 = vperm.xlu0 %2862, %v280
    %v2864 = vpop.permute.xlu0 %2863
    %2866 = vset.pattern.permute.xlu0 6
    %2867 = vperm.xlu0 %2866, %v281
    %v2868 = vpop.permute.xlu0 %2867
    %2870 = vset.pattern.permute.xlu0 6
    %2871 = vperm.xlu0 %2870, %v282
    %v2872 = vpop.permute.xlu0 %2871
    %2874 = vset.pattern.permute.xlu0 6
    %2875 = vperm.xlu0 %2874, %v283
    %v2876 = vpop.permute.xlu0 %2875
    %2878 = vset.pattern.permute.xlu0 6
    %2879 = vperm.xlu0 %2878, %v284
    %v2880 = vpop.permute.xlu0 %2879
    %2882 = vset.pattern.permute.xlu0 6
    %2883 = vperm.xlu0 %2882, %v285
    %v2884 = vpop.permute.xlu0 %2883
    %2886 = vset.pattern.permute.xlu0 6
    %2887 = vperm.xlu0 %2886, %v286
    %v2888 = vpop.permute.xlu0 %2887
    %2890 = vset.pattern.permute.xlu0 6
    %2891 = vperm.xlu0 %2890, %v287
    %v2892 = vpop.permute.xlu0 %2891
    %2894 = vset.pattern.permute.xlu0 6
    %2895 = vperm.xlu0 %2894, %v288
    %v2896 = vpop.permute.xlu0 %2895
    %2898 = vset.pattern.permute.xlu0 6
    %2899 = vperm.xlu0 %2898, %v289
    %v2900 = vpop.permute.xlu0 %2899
    %2902 = vset.pattern.permute.xlu0 6
    %2903 = vperm.xlu0 %2902, %v290
    %v2904 = vpop.permute.xlu0 %2903
    %2906 = vset.pattern.permute.xlu0 6
    %2907 = vperm.xlu0 %2906, %v291
    %v2908 = vpop.permute.xlu0 %2907
    %2910 = vset.pattern.permute.xlu0 6
    %2911 = vperm.xlu0 %2910, %v292
    %v2912 = vpop.permute.xlu0 %2911
    %2914 = vset.pattern.permute.xlu0 6
    %2915 = vperm.xlu0 %2914, %v293
    %v2916 = vpop.permute.xlu0 %2915
    %v2918 = vmul.f32 %v2598, %v2664
    %v2919 = vmul.f32 %v2599, %v2668
    %v2920 = vmul.f32 %v2600, %v2672
    %v2921 = vmul.f32 %v2601, %v2676
    %v2922 = vmul.f32 %v2602, %v2680
    %v2923 = vmul.f32 %v2603, %v2684
    %v2924 = vmul.f32 %v2604, %v2688
    %v2925 = vmul.f32 %v2605, %v2692
    %v2926 = vmul.f32 %v2606, %v2696
    %v2927 = vmul.f32 %v2607, %v2700
    %v2928 = vmul.f32 %v2608, %v2704
    %v2929 = vmul.f32 %v2609, %v2708
    %v2930 = vmul.f32 %v2610, %v2712
    %v2931 = vmul.f32 %v2611, %v2716
    %v2932 = vmul.f32 %v2612, %v2720
    %v2933 = vmul.f32 %v2613, %v2724
    %v2934 = vmul.f32 %v2614, %v2728
    %v2935 = vmul.f32 %v2615, %v2732
    %v2936 = vmul.f32 %v2616, %v2736
    %v2937 = vmul.f32 %v2617, %v2740
    %v2938 = vmul.f32 %v2618, %v2744
    %v2939 = vmul.f32 %v2619, %v2748
    %v2940 = vmul.f32 %v2620, %v2752
    %v2941 = vmul.f32 %v2621, %v2756
    %v2942 = vmul.f32 %v2622, %v2760
    %v2943 = vmul.f32 %v2623, %v2764
    %v2944 = vmul.f32 %v2624, %v2768
    %v2945 = vmul.f32 %v2625, %v2772
    %v2946 = vmul.f32 %v2626, %v2776
    %v2947 = vmul.f32 %v2627, %v2780
    %v2948 = vmul.f32 %v2628, %v2784
    %v2949 = vmul.f32 %v2629, %v2788
    %v2950 = vmul.f32 %v2630, %v2792
    %v2951 = vmul.f32 %v2631, %v2796
    %v2952 = vmul.f32 %v2632, %v2800
    %v2953 = vmul.f32 %v2633, %v2804
    %v2954 = vmul.f32 %v2634, %v2808
    %v2955 = vmul.f32 %v2635, %v2812
    %v2956 = vmul.f32 %v2636, %v2816
    %v2957 = vmul.f32 %v2637, %v2820
    %v2958 = vmul.f32 %v2638, %v2824
    %v2959 = vmul.f32 %v2639, %v2828
    %v2960 = vmul.f32 %v2640, %v2832
    %v2961 = vmul.f32 %v2641, %v2836
    %v2962 = vmul.f32 %v2642, %v2840
    %v2963 = vmul.f32 %v2643, %v2844
    %v2964 = vmul.f32 %v2644, %v2848
    %v2965 = vmul.f32 %v2645, %v2852
    %v2966 = vmul.f32 %v2646, %v2856
    %v2967 = vmul.f32 %v2647, %v2860
    %v2968 = vmul.f32 %v2648, %v2864
    %v2969 = vmul.f32 %v2649, %v2868
    %v2970 = vmul.f32 %v2650, %v2872
    %v2971 = vmul.f32 %v2651, %v2876
    %v2972 = vmul.f32 %v2652, %v2880
    %v2973 = vmul.f32 %v2653, %v2884
    %v2974 = vmul.f32 %v2654, %v2888
    %v2975 = vmul.f32 %v2655, %v2892
    %v2976 = vmul.f32 %v2656, %v2896
    %v2977 = vmul.f32 %v2657, %v2900
    %v2978 = vmul.f32 %v2658, %v2904
    %v2979 = vmul.f32 %v2659, %v2908
    %v2980 = vmul.f32 %v2660, %v2912
    %v2981 = vmul.f32 %v2661, %v2916
    %v2982 = vld [vmem:[#allocation2 + $0x21] sm:$0xff]
    %v2983 = vld [vmem:[#allocation2 + $0x29] sm:$0xff]
    %v2984 = vld [vmem:[#allocation2 + $0x31] sm:$0xff]
    %v2985 = vld [vmem:[#allocation2 + $0x39] sm:$0xff]
    %v2986 = vld [vmem:[#allocation2 + $0x41] sm:$0xff]
    %v2987 = vld [vmem:[#allocation2 + $0x49] sm:$0xff]
    %v2988 = vld [vmem:[#allocation2 + $0x51] sm:$0xff]
    %v2989 = vld [vmem:[#allocation2 + $0x59] sm:$0xff]
    %v2990 = vld [vmem:[#allocation2 + $0x61] sm:$0xff]
    %v2991 = vld [vmem:[#allocation2 + $0x69] sm:$0xff]
    %v2992 = vld [vmem:[#allocation2 + $0x71] sm:$0xff]
    %v2993 = vld [vmem:[#allocation2 + $0x79] sm:$0xff]
    %v2994 = vld [vmem:[#allocation2 + $0x81] sm:$0xff]
    %v2995 = vld [vmem:[#allocation2 + $0x89] sm:$0xff]
    %v2996 = vld [vmem:[#allocation2 + $0x91] sm:$0xff]
    %v2997 = vld [vmem:[#allocation2 + $0x99] sm:$0xff]
    %v2998 = vld [vmem:[#allocation2 + $0xa1] sm:$0xff]
    %v2999 = vld [vmem:[#allocation2 + $0xa9] sm:$0xff]
    %v3000 = vld [vmem:[#allocation2 + $0xb1] sm:$0xff]
    %v3001 = vld [vmem:[#allocation2 + $0xb9] sm:$0xff]
    %v3002 = vld [vmem:[#allocation2 + $0xc1] sm:$0xff]
    %v3003 = vld [vmem:[#allocation2 + $0xc9] sm:$0xff]
    %v3004 = vld [vmem:[#allocation2 + $0xd1] sm:$0xff]
    %v3005 = vld [vmem:[#allocation2 + $0xd9] sm:$0xff]
    %v3006 = vld [vmem:[#allocation2 + $0xe1] sm:$0xff]
    %v3007 = vld [vmem:[#allocation2 + $0xe9] sm:$0xff]
    %v3008 = vld [vmem:[#allocation2 + $0xf1] sm:$0xff]
    %v3009 = vld [vmem:[#allocation2 + $0xf9] sm:$0xff]
    %v3010 = vld [vmem:[#allocation2 + $0x101] sm:$0xff]
    %v3011 = vld [vmem:[#allocation2 + $0x109] sm:$0xff]
    %v3012 = vld [vmem:[#allocation2 + $0x111] sm:$0xff]
    %v3013 = vld [vmem:[#allocation2 + $0x119] sm:$0xff]
    %v3014 = vld [vmem:[#allocation2 + $0x121] sm:$0xff]
    %v3015 = vld [vmem:[#allocation2 + $0x129] sm:$0xff]
    %v3016 = vld [vmem:[#allocation2 + $0x131] sm:$0xff]
    %v3017 = vld [vmem:[#allocation2 + $0x139] sm:$0xff]
    %v3018 = vld [vmem:[#allocation2 + $0x141] sm:$0xff]
    %v3019 = vld [vmem:[#allocation2 + $0x149] sm:$0xff]
    %v3020 = vld [vmem:[#allocation2 + $0x151] sm:$0xff]
    %v3021 = vld [vmem:[#allocation2 + $0x159] sm:$0xff]
    %v3022 = vld [vmem:[#allocation2 + $0x161] sm:$0xff]
    %v3023 = vld [vmem:[#allocation2 + $0x169] sm:$0xff]
    %v3024 = vld [vmem:[#allocation2 + $0x171] sm:$0xff]
    %v3025 = vld [vmem:[#allocation2 + $0x179] sm:$0xff]
    %v3026 = vld [vmem:[#allocation2 + $0x181] sm:$0xff]
    %v3027 = vld [vmem:[#allocation2 + $0x189] sm:$0xff]
    %v3028 = vld [vmem:[#allocation2 + $0x191] sm:$0xff]
    %v3029 = vld [vmem:[#allocation2 + $0x199] sm:$0xff]
    %v3030 = vld [vmem:[#allocation2 + $0x1a1] sm:$0xff]
    %v3031 = vld [vmem:[#allocation2 + $0x1a9] sm:$0xff]
    %v3032 = vld [vmem:[#allocation2 + $0x1b1] sm:$0xff]
    %v3033 = vld [vmem:[#allocation2 + $0x1b9] sm:$0xff]
    %v3034 = vld [vmem:[#allocation2 + $0x1c1] sm:$0xff]
    %v3035 = vld [vmem:[#allocation2 + $0x1c9] sm:$0xff]
    %v3036 = vld [vmem:[#allocation2 + $0x1d1] sm:$0xff]
    %v3037 = vld [vmem:[#allocation2 + $0x1d9] sm:$0xff]
    %v3038 = vld [vmem:[#allocation2 + $0x1e1] sm:$0xff]
    %v3039 = vld [vmem:[#allocation2 + $0x1e9] sm:$0xff]
    %v3040 = vld [vmem:[#allocation2 + $0x1f1] sm:$0xff]
    %v3041 = vld [vmem:[#allocation2 + $0x1f9] sm:$0xff]
    %v3042 = vld [vmem:[#allocation2 + $0x201] sm:$0xff]
    %v3043 = vld [vmem:[#allocation2 + $0x209] sm:$0xff]
    %v3044 = vld [vmem:[#allocation2 + $0x211] sm:$0xff]
    %v3045 = vld [vmem:[#allocation2 + $0x219] sm:$0xff]
    %3046 = vset.pattern.permute.xlu0 7
    %3047 = vperm.xlu0 %3046, %v230
    %v3048 = vpop.permute.xlu0 %3047
    %3050 = vset.pattern.permute.xlu0 7
    %3051 = vperm.xlu0 %3050, %v231
    %v3052 = vpop.permute.xlu0 %3051
    %3054 = vset.pattern.permute.xlu0 7
    %3055 = vperm.xlu0 %3054, %v232
    %v3056 = vpop.permute.xlu0 %3055
    %3058 = vset.pattern.permute.xlu0 7
    %3059 = vperm.xlu0 %3058, %v233
    %v3060 = vpop.permute.xlu0 %3059
    %3062 = vset.pattern.permute.xlu0 7
    %3063 = vperm.xlu0 %3062, %v234
    %v3064 = vpop.permute.xlu0 %3063
    %3066 = vset.pattern.permute.xlu0 7
    %3067 = vperm.xlu0 %3066, %v235
    %v3068 = vpop.permute.xlu0 %3067
    %3070 = vset.pattern.permute.xlu0 7
    %3071 = vperm.xlu0 %3070, %v236
    %v3072 = vpop.permute.xlu0 %3071
    %3074 = vset.pattern.permute.xlu0 7
    %3075 = vperm.xlu0 %3074, %v237
    %v3076 = vpop.permute.xlu0 %3075
    %3078 = vset.pattern.permute.xlu0 7
    %3079 = vperm.xlu0 %3078, %v238
    %v3080 = vpop.permute.xlu0 %3079
    %3082 = vset.pattern.permute.xlu0 7
    %3083 = vperm.xlu0 %3082, %v239
    %v3084 = vpop.permute.xlu0 %3083
    %3086 = vset.pattern.permute.xlu0 7
    %3087 = vperm.xlu0 %3086, %v240
    %v3088 = vpop.permute.xlu0 %3087
    %3090 = vset.pattern.permute.xlu0 7
    %3091 = vperm.xlu0 %3090, %v241
    %v3092 = vpop.permute.xlu0 %3091
    %3094 = vset.pattern.permute.xlu0 7
    %3095 = vperm.xlu0 %3094, %v242
    %v3096 = vpop.permute.xlu0 %3095
    %3098 = vset.pattern.permute.xlu0 7
    %3099 = vperm.xlu0 %3098, %v243
    %v3100 = vpop.permute.xlu0 %3099
    %3102 = vset.pattern.permute.xlu0 7
    %3103 = vperm.xlu0 %3102, %v244
    %v3104 = vpop.permute.xlu0 %3103
    %3106 = vset.pattern.permute.xlu0 7
    %3107 = vperm.xlu0 %3106, %v245
    %v3108 = vpop.permute.xlu0 %3107
    %3110 = vset.pattern.permute.xlu0 7
    %3111 = vperm.xlu0 %3110, %v246
    %v3112 = vpop.permute.xlu0 %3111
    %3114 = vset.pattern.permute.xlu0 7
    %3115 = vperm.xlu0 %3114, %v247
    %v3116 = vpop.permute.xlu0 %3115
    %3118 = vset.pattern.permute.xlu0 7
    %3119 = vperm.xlu0 %3118, %v248
    %v3120 = vpop.permute.xlu0 %3119
    %3122 = vset.pattern.permute.xlu0 7
    %3123 = vperm.xlu0 %3122, %v249
    %v3124 = vpop.permute.xlu0 %3123
    %3126 = vset.pattern.permute.xlu0 7
    %3127 = vperm.xlu0 %3126, %v250
    %v3128 = vpop.permute.xlu0 %3127
    %3130 = vset.pattern.permute.xlu0 7
    %3131 = vperm.xlu0 %3130, %v251
    %v3132 = vpop.permute.xlu0 %3131
    %3134 = vset.pattern.permute.xlu0 7
    %3135 = vperm.xlu0 %3134, %v252
    %v3136 = vpop.permute.xlu0 %3135
    %3138 = vset.pattern.permute.xlu0 7
    %3139 = vperm.xlu0 %3138, %v253
    %v3140 = vpop.permute.xlu0 %3139
    %3142 = vset.pattern.permute.xlu0 7
    %3143 = vperm.xlu0 %3142, %v254
    %v3144 = vpop.permute.xlu0 %3143
    %3146 = vset.pattern.permute.xlu0 7
    %3147 = vperm.xlu0 %3146, %v255
    %v3148 = vpop.permute.xlu0 %3147
    %3150 = vset.pattern.permute.xlu0 7
    %3151 = vperm.xlu0 %3150, %v256
    %v3152 = vpop.permute.xlu0 %3151
    %3154 = vset.pattern.permute.xlu0 7
    %3155 = vperm.xlu0 %3154, %v257
    %v3156 = vpop.permute.xlu0 %3155
    %3158 = vset.pattern.permute.xlu0 7
    %3159 = vperm.xlu0 %3158, %v258
    %v3160 = vpop.permute.xlu0 %3159
    %3162 = vset.pattern.permute.xlu0 7
    %3163 = vperm.xlu0 %3162, %v259
    %v3164 = vpop.permute.xlu0 %3163
    %3166 = vset.pattern.permute.xlu0 7
    %3167 = vperm.xlu0 %3166, %v260
    %v3168 = vpop.permute.xlu0 %3167
    %3170 = vset.pattern.permute.xlu0 7
    %3171 = vperm.xlu0 %3170, %v261
    %v3172 = vpop.permute.xlu0 %3171
    %3174 = vset.pattern.permute.xlu0 7
    %3175 = vperm.xlu0 %3174, %v262
    %v3176 = vpop.permute.xlu0 %3175
    %3178 = vset.pattern.permute.xlu0 7
    %3179 = vperm.xlu0 %3178, %v263
    %v3180 = vpop.permute.xlu0 %3179
    %3182 = vset.pattern.permute.xlu0 7
    %3183 = vperm.xlu0 %3182, %v264
    %v3184 = vpop.permute.xlu0 %3183
    %3186 = vset.pattern.permute.xlu0 7
    %3187 = vperm.xlu0 %3186, %v265
    %v3188 = vpop.permute.xlu0 %3187
    %3190 = vset.pattern.permute.xlu0 7
    %3191 = vperm.xlu0 %3190, %v266
    %v3192 = vpop.permute.xlu0 %3191
    %3194 = vset.pattern.permute.xlu0 7
    %3195 = vperm.xlu0 %3194, %v267
    %v3196 = vpop.permute.xlu0 %3195
    %3198 = vset.pattern.permute.xlu0 7
    %3199 = vperm.xlu0 %3198, %v268
    %v3200 = vpop.permute.xlu0 %3199
    %3202 = vset.pattern.permute.xlu0 7
    %3203 = vperm.xlu0 %3202, %v269
    %v3204 = vpop.permute.xlu0 %3203
    %3206 = vset.pattern.permute.xlu0 7
    %3207 = vperm.xlu0 %3206, %v270
    %v3208 = vpop.permute.xlu0 %3207
    %3210 = vset.pattern.permute.xlu0 7
    %3211 = vperm.xlu0 %3210, %v271
    %v3212 = vpop.permute.xlu0 %3211
    %3214 = vset.pattern.permute.xlu0 7
    %3215 = vperm.xlu0 %3214, %v272
    %v3216 = vpop.permute.xlu0 %3215
    %3218 = vset.pattern.permute.xlu0 7
    %3219 = vperm.xlu0 %3218, %v273
    %v3220 = vpop.permute.xlu0 %3219
    %3222 = vset.pattern.permute.xlu0 7
    %3223 = vperm.xlu0 %3222, %v274
    %v3224 = vpop.permute.xlu0 %3223
    %3226 = vset.pattern.permute.xlu0 7
    %3227 = vperm.xlu0 %3226, %v275
    %v3228 = vpop.permute.xlu0 %3227
    %3230 = vset.pattern.permute.xlu0 7
    %3231 = vperm.xlu0 %3230, %v276
    %v3232 = vpop.permute.xlu0 %3231
    %3234 = vset.pattern.permute.xlu0 7
    %3235 = vperm.xlu0 %3234, %v277
    %v3236 = vpop.permute.xlu0 %3235
    %3238 = vset.pattern.permute.xlu0 7
    %3239 = vperm.xlu0 %3238, %v278
    %v3240 = vpop.permute.xlu0 %3239
    %3242 = vset.pattern.permute.xlu0 7
    %3243 = vperm.xlu0 %3242, %v279
    %v3244 = vpop.permute.xlu0 %3243
    %3246 = vset.pattern.permute.xlu0 7
    %3247 = vperm.xlu0 %3246, %v280
    %v3248 = vpop.permute.xlu0 %3247
    %3250 = vset.pattern.permute.xlu0 7
    %3251 = vperm.xlu0 %3250, %v281
    %v3252 = vpop.permute.xlu0 %3251
    %3254 = vset.pattern.permute.xlu0 7
    %3255 = vperm.xlu0 %3254, %v282
    %v3256 = vpop.permute.xlu0 %3255
    %3258 = vset.pattern.permute.xlu0 7
    %3259 = vperm.xlu0 %3258, %v283
    %v3260 = vpop.permute.xlu0 %3259
    %3262 = vset.pattern.permute.xlu0 7
    %3263 = vperm.xlu0 %3262, %v284
    %v3264 = vpop.permute.xlu0 %3263
    %3266 = vset.pattern.permute.xlu0 7
    %3267 = vperm.xlu0 %3266, %v285
    %v3268 = vpop.permute.xlu0 %3267
    %3270 = vset.pattern.permute.xlu0 7
    %3271 = vperm.xlu0 %3270, %v286
    %v3272 = vpop.permute.xlu0 %3271
    %3274 = vset.pattern.permute.xlu0 7
    %3275 = vperm.xlu0 %3274, %v287
    %v3276 = vpop.permute.xlu0 %3275
    %3278 = vset.pattern.permute.xlu0 7
    %3279 = vperm.xlu0 %3278, %v288
    %v3280 = vpop.permute.xlu0 %3279
    %3282 = vset.pattern.permute.xlu0 7
    %3283 = vperm.xlu0 %3282, %v289
    %v3284 = vpop.permute.xlu0 %3283
    %3286 = vset.pattern.permute.xlu0 7
    %3287 = vperm.xlu0 %3286, %v290
    %v3288 = vpop.permute.xlu0 %3287
    %3290 = vset.pattern.permute.xlu0 7
    %3291 = vperm.xlu0 %3290, %v291
    %v3292 = vpop.permute.xlu0 %3291
    %3294 = vset.pattern.permute.xlu0 7
    %3295 = vperm.xlu0 %3294, %v292
    %v3296 = vpop.permute.xlu0 %3295
    %3298 = vset.pattern.permute.xlu0 7
    %3299 = vperm.xlu0 %3298, %v293
    %v3300 = vpop.permute.xlu0 %3299
    %v3302 = vmul.f32 %v2982, %v3048
    %v3303 = vmul.f32 %v2983, %v3052
    %v3304 = vmul.f32 %v2984, %v3056
    %v3305 = vmul.f32 %v2985, %v3060
    %v3306 = vmul.f32 %v2986, %v3064
    %v3307 = vmul.f32 %v2987, %v3068
    %v3308 = vmul.f32 %v2988, %v3072
    %v3309 = vmul.f32 %v2989, %v3076
    %v3310 = vmul.f32 %v2990, %v3080
    %v3311 = vmul.f32 %v2991, %v3084
    %v3312 = vmul.f32 %v2992, %v3088
    %v3313 = vmul.f32 %v2993, %v3092
    %v3314 = vmul.f32 %v2994, %v3096
    %v3315 = vmul.f32 %v2995, %v3100
    %v3316 = vmul.f32 %v2996, %v3104
    %v3317 = vmul.f32 %v2997, %v3108
    %v3318 = vmul.f32 %v2998, %v3112
    %v3319 = vmul.f32 %v2999, %v3116
    %v3320 = vmul.f32 %v3000, %v3120
    %v3321 = vmul.f32 %v3001, %v3124
    %v3322 = vmul.f32 %v3002, %v3128
    %v3323 = vmul.f32 %v3003, %v3132
    %v3324 = vmul.f32 %v3004, %v3136
    %v3325 = vmul.f32 %v3005, %v3140
    %v3326 = vmul.f32 %v3006, %v3144
    %v3327 = vmul.f32 %v3007, %v3148
    %v3328 = vmul.f32 %v3008, %v3152
    %v3329 = vmul.f32 %v3009, %v3156
    %v3330 = vmul.f32 %v3010, %v3160
    %v3331 = vmul.f32 %v3011, %v3164
    %v3332 = vmul.f32 %v3012, %v3168
    %v3333 = vmul.f32 %v3013, %v3172
    %v3334 = vmul.f32 %v3014, %v3176
    %v3335 = vmul.f32 %v3015, %v3180
    %v3336 = vmul.f32 %v3016, %v3184
    %v3337 = vmul.f32 %v3017, %v3188
    %v3338 = vmul.f32 %v3018, %v3192
    %v3339 = vmul.f32 %v3019, %v3196
    %v3340 = vmul.f32 %v3020, %v3200
    %v3341 = vmul.f32 %v3021, %v3204
    %v3342 = vmul.f32 %v3022, %v3208
    %v3343 = vmul.f32 %v3023, %v3212
    %v3344 = vmul.f32 %v3024, %v3216
    %v3345 = vmul.f32 %v3025, %v3220
    %v3346 = vmul.f32 %v3026, %v3224
    %v3347 = vmul.f32 %v3027, %v3228
    %v3348 = vmul.f32 %v3028, %v3232
    %v3349 = vmul.f32 %v3029, %v3236
    %v3350 = vmul.f32 %v3030, %v3240
    %v3351 = vmul.f32 %v3031, %v3244
    %v3352 = vmul.f32 %v3032, %v3248
    %v3353 = vmul.f32 %v3033, %v3252
    %v3354 = vmul.f32 %v3034, %v3256
    %v3355 = vmul.f32 %v3035, %v3260
    %v3356 = vmul.f32 %v3036, %v3264
    %v3357 = vmul.f32 %v3037, %v3268
    %v3358 = vmul.f32 %v3038, %v3272
    %v3359 = vmul.f32 %v3039, %v3276
    %v3360 = vmul.f32 %v3040, %v3280
    %v3361 = vmul.f32 %v3041, %v3284
    %v3362 = vmul.f32 %v3042, %v3288
    %v3363 = vmul.f32 %v3043, %v3292
    %v3364 = vmul.f32 %v3044, %v3296
    %v3365 = vmul.f32 %v3045, %v3300
    %v3366 = vld [vmem:[#allocation2 + $0x22] sm:$0xff]
    %v3367 = vld [vmem:[#allocation2 + $0x2a] sm:$0xff]
    %v3368 = vld [vmem:[#allocation2 + $0x32] sm:$0xff]
    %v3369 = vld [vmem:[#allocation2 + $0x3a] sm:$0xff]
    %v3370 = vld [vmem:[#allocation2 + $0x42] sm:$0xff]
    %v3371 = vld [vmem:[#allocation2 + $0x4a] sm:$0xff]
    %v3372 = vld [vmem:[#allocation2 + $0x52] sm:$0xff]
    %v3373 = vld [vmem:[#allocation2 + $0x5a] sm:$0xff]
    %v3374 = vld [vmem:[#allocation2 + $0x62] sm:$0xff]
    %v3375 = vld [vmem:[#allocation2 + $0x6a] sm:$0xff]
    %v3376 = vld [vmem:[#allocation2 + $0x72] sm:$0xff]
    %v3377 = vld [vmem:[#allocation2 + $0x7a] sm:$0xff]
    %v3378 = vld [vmem:[#allocation2 + $0x82] sm:$0xff]
    %v3379 = vld [vmem:[#allocation2 + $0x8a] sm:$0xff]
    %v3380 = vld [vmem:[#allocation2 + $0x92] sm:$0xff]
    %v3381 = vld [vmem:[#allocation2 + $0x9a] sm:$0xff]
    %v3382 = vld [vmem:[#allocation2 + $0xa2] sm:$0xff]
    %v3383 = vld [vmem:[#allocation2 + $0xaa] sm:$0xff]
    %v3384 = vld [vmem:[#allocation2 + $0xb2] sm:$0xff]
    %v3385 = vld [vmem:[#allocation2 + $0xba] sm:$0xff]
    %v3386 = vld [vmem:[#allocation2 + $0xc2] sm:$0xff]
    %v3387 = vld [vmem:[#allocation2 + $0xca] sm:$0xff]
    %v3388 = vld [vmem:[#allocation2 + $0xd2] sm:$0xff]
    %v3389 = vld [vmem:[#allocation2 + $0xda] sm:$0xff]
    %v3390 = vld [vmem:[#allocation2 + $0xe2] sm:$0xff]
    %v3391 = vld [vmem:[#allocation2 + $0xea] sm:$0xff]
    %v3392 = vld [vmem:[#allocation2 + $0xf2] sm:$0xff]
    %v3393 = vld [vmem:[#allocation2 + $0xfa] sm:$0xff]
    %v3394 = vld [vmem:[#allocation2 + $0x102] sm:$0xff]
    %v3395 = vld [vmem:[#allocation2 + $0x10a] sm:$0xff]
    %v3396 = vld [vmem:[#allocation2 + $0x112] sm:$0xff]
    %v3397 = vld [vmem:[#allocation2 + $0x11a] sm:$0xff]
    %v3398 = vld [vmem:[#allocation2 + $0x122] sm:$0xff]
    %v3399 = vld [vmem:[#allocation2 + $0x12a] sm:$0xff]
    %v3400 = vld [vmem:[#allocation2 + $0x132] sm:$0xff]
    %v3401 = vld [vmem:[#allocation2 + $0x13a] sm:$0xff]
    %v3402 = vld [vmem:[#allocation2 + $0x142] sm:$0xff]
    %v3403 = vld [vmem:[#allocation2 + $0x14a] sm:$0xff]
    %v3404 = vld [vmem:[#allocation2 + $0x152] sm:$0xff]
    %v3405 = vld [vmem:[#allocation2 + $0x15a] sm:$0xff]
    %v3406 = vld [vmem:[#allocation2 + $0x162] sm:$0xff]
    %v3407 = vld [vmem:[#allocation2 + $0x16a] sm:$0xff]
    %v3408 = vld [vmem:[#allocation2 + $0x172] sm:$0xff]
    %v3409 = vld [vmem:[#allocation2 + $0x17a] sm:$0xff]
    %v3410 = vld [vmem:[#allocation2 + $0x182] sm:$0xff]
    %v3411 = vld [vmem:[#allocation2 + $0x18a] sm:$0xff]
    %v3412 = vld [vmem:[#allocation2 + $0x192] sm:$0xff]
    %v3413 = vld [vmem:[#allocation2 + $0x19a] sm:$0xff]
    %v3414 = vld [vmem:[#allocation2 + $0x1a2] sm:$0xff]
    %v3415 = vld [vmem:[#allocation2 + $0x1aa] sm:$0xff]
    %v3416 = vld [vmem:[#allocation2 + $0x1b2] sm:$0xff]
    %v3417 = vld [vmem:[#allocation2 + $0x1ba] sm:$0xff]
    %v3418 = vld [vmem:[#allocation2 + $0x1c2] sm:$0xff]
    %v3419 = vld [vmem:[#allocation2 + $0x1ca] sm:$0xff]
    %v3420 = vld [vmem:[#allocation2 + $0x1d2] sm:$0xff]
    %v3421 = vld [vmem:[#allocation2 + $0x1da] sm:$0xff]
    %v3422 = vld [vmem:[#allocation2 + $0x1e2] sm:$0xff]
    %v3423 = vld [vmem:[#allocation2 + $0x1ea] sm:$0xff]
    %v3424 = vld [vmem:[#allocation2 + $0x1f2] sm:$0xff]
    %v3425 = vld [vmem:[#allocation2 + $0x1fa] sm:$0xff]
    %v3426 = vld [vmem:[#allocation2 + $0x202] sm:$0xff]
    %v3427 = vld [vmem:[#allocation2 + $0x20a] sm:$0xff]
    %v3428 = vld [vmem:[#allocation2 + $0x212] sm:$0xff]
    %v3429 = vld [vmem:[#allocation2 + $0x21a] sm:$0xff]
    %3430 = vset.pattern.permute.xlu0 8
    %3431 = vperm.xlu0 %3430, %v230
    %v3432 = vpop.permute.xlu0 %3431
    %3434 = vset.pattern.permute.xlu0 8
    %3435 = vperm.xlu0 %3434, %v231
    %v3436 = vpop.permute.xlu0 %3435
    %3438 = vset.pattern.permute.xlu0 8
    %3439 = vperm.xlu0 %3438, %v232
    %v3440 = vpop.permute.xlu0 %3439
    %3442 = vset.pattern.permute.xlu0 8
    %3443 = vperm.xlu0 %3442, %v233
    %v3444 = vpop.permute.xlu0 %3443
    %3446 = vset.pattern.permute.xlu0 8
    %3447 = vperm.xlu0 %3446, %v234
    %v3448 = vpop.permute.xlu0 %3447
    %3450 = vset.pattern.permute.xlu0 8
    %3451 = vperm.xlu0 %3450, %v235
    %v3452 = vpop.permute.xlu0 %3451
    %3454 = vset.pattern.permute.xlu0 8
    %3455 = vperm.xlu0 %3454, %v236
    %v3456 = vpop.permute.xlu0 %3455
    %3458 = vset.pattern.permute.xlu0 8
    %3459 = vperm.xlu0 %3458, %v237
    %v3460 = vpop.permute.xlu0 %3459
    %3462 = vset.pattern.permute.xlu0 8
    %3463 = vperm.xlu0 %3462, %v238
    %v3464 = vpop.permute.xlu0 %3463
    %3466 = vset.pattern.permute.xlu0 8
    %3467 = vperm.xlu0 %3466, %v239
    %v3468 = vpop.permute.xlu0 %3467
    %3470 = vset.pattern.permute.xlu0 8
    %3471 = vperm.xlu0 %3470, %v240
    %v3472 = vpop.permute.xlu0 %3471
    %3474 = vset.pattern.permute.xlu0 8
    %3475 = vperm.xlu0 %3474, %v241
    %v3476 = vpop.permute.xlu0 %3475
    %3478 = vset.pattern.permute.xlu0 8
    %3479 = vperm.xlu0 %3478, %v242
    %v3480 = vpop.permute.xlu0 %3479
    %3482 = vset.pattern.permute.xlu0 8
    %3483 = vperm.xlu0 %3482, %v243
    %v3484 = vpop.permute.xlu0 %3483
    %3486 = vset.pattern.permute.xlu0 8
    %3487 = vperm.xlu0 %3486, %v244
    %v3488 = vpop.permute.xlu0 %3487
    %3490 = vset.pattern.permute.xlu0 8
    %3491 = vperm.xlu0 %3490, %v245
    %v3492 = vpop.permute.xlu0 %3491
    %3494 = vset.pattern.permute.xlu0 8
    %3495 = vperm.xlu0 %3494, %v246
    %v3496 = vpop.permute.xlu0 %3495
    %3498 = vset.pattern.permute.xlu0 8
    %3499 = vperm.xlu0 %3498, %v247
    %v3500 = vpop.permute.xlu0 %3499
    %3502 = vset.pattern.permute.xlu0 8
    %3503 = vperm.xlu0 %3502, %v248
    %v3504 = vpop.permute.xlu0 %3503
    %3506 = vset.pattern.permute.xlu0 8
    %3507 = vperm.xlu0 %3506, %v249
    %v3508 = vpop.permute.xlu0 %3507
    %3510 = vset.pattern.permute.xlu0 8
    %3511 = vperm.xlu0 %3510, %v250
    %v3512 = vpop.permute.xlu0 %3511
    %3514 = vset.pattern.permute.xlu0 8
    %3515 = vperm.xlu0 %3514, %v251
    %v3516 = vpop.permute.xlu0 %3515
    %3518 = vset.pattern.permute.xlu0 8
    %3519 = vperm.xlu0 %3518, %v252
    %v3520 = vpop.permute.xlu0 %3519
    %3522 = vset.pattern.permute.xlu0 8
    %3523 = vperm.xlu0 %3522, %v253
    %v3524 = vpop.permute.xlu0 %3523
    %3526 = vset.pattern.permute.xlu0 8
    %3527 = vperm.xlu0 %3526, %v254
    %v3528 = vpop.permute.xlu0 %3527
    %3530 = vset.pattern.permute.xlu0 8
    %3531 = vperm.xlu0 %3530, %v255
    %v3532 = vpop.permute.xlu0 %3531
    %3534 = vset.pattern.permute.xlu0 8
    %3535 = vperm.xlu0 %3534, %v256
    %v3536 = vpop.permute.xlu0 %3535
    %3538 = vset.pattern.permute.xlu0 8
    %3539 = vperm.xlu0 %3538, %v257
    %v3540 = vpop.permute.xlu0 %3539
    %3542 = vset.pattern.permute.xlu0 8
    %3543 = vperm.xlu0 %3542, %v258
    %v3544 = vpop.permute.xlu0 %3543
    %3546 = vset.pattern.permute.xlu0 8
    %3547 = vperm.xlu0 %3546, %v259
    %v3548 = vpop.permute.xlu0 %3547
    %3550 = vset.pattern.permute.xlu0 8
    %3551 = vperm.xlu0 %3550, %v260
    %v3552 = vpop.permute.xlu0 %3551
    %3554 = vset.pattern.permute.xlu0 8
    %3555 = vperm.xlu0 %3554, %v261
    %v3556 = vpop.permute.xlu0 %3555
    %3558 = vset.pattern.permute.xlu0 8
    %3559 = vperm.xlu0 %3558, %v262
    %v3560 = vpop.permute.xlu0 %3559
    %3562 = vset.pattern.permute.xlu0 8
    %3563 = vperm.xlu0 %3562, %v263
    %v3564 = vpop.permute.xlu0 %3563
    %3566 = vset.pattern.permute.xlu0 8
    %3567 = vperm.xlu0 %3566, %v264
    %v3568 = vpop.permute.xlu0 %3567
    %3570 = vset.pattern.permute.xlu0 8
    %3571 = vperm.xlu0 %3570, %v265
    %v3572 = vpop.permute.xlu0 %3571
    %3574 = vset.pattern.permute.xlu0 8
    %3575 = vperm.xlu0 %3574, %v266
    %v3576 = vpop.permute.xlu0 %3575
    %3578 = vset.pattern.permute.xlu0 8
    %3579 = vperm.xlu0 %3578, %v267
    %v3580 = vpop.permute.xlu0 %3579
    %3582 = vset.pattern.permute.xlu0 8
    %3583 = vperm.xlu0 %3582, %v268
    %v3584 = vpop.permute.xlu0 %3583
    %3586 = vset.pattern.permute.xlu0 8
    %3587 = vperm.xlu0 %3586, %v269
    %v3588 = vpop.permute.xlu0 %3587
    %3590 = vset.pattern.permute.xlu0 8
    %3591 = vperm.xlu0 %3590, %v270
    %v3592 = vpop.permute.xlu0 %3591
    %3594 = vset.pattern.permute.xlu0 8
    %3595 = vperm.xlu0 %3594, %v271
    %v3596 = vpop.permute.xlu0 %3595
    %3598 = vset.pattern.permute.xlu0 8
    %3599 = vperm.xlu0 %3598, %v272
    %v3600 = vpop.permute.xlu0 %3599
    %3602 = vset.pattern.permute.xlu0 8
    %3603 = vperm.xlu0 %3602, %v273
    %v3604 = vpop.permute.xlu0 %3603
    %3606 = vset.pattern.permute.xlu0 8
    %3607 = vperm.xlu0 %3606, %v274
    %v3608 = vpop.permute.xlu0 %3607
    %3610 = vset.pattern.permute.xlu0 8
    %3611 = vperm.xlu0 %3610, %v275
    %v3612 = vpop.permute.xlu0 %3611
    %3614 = vset.pattern.permute.xlu0 8
    %3615 = vperm.xlu0 %3614, %v276
    %v3616 = vpop.permute.xlu0 %3615
    %3618 = vset.pattern.permute.xlu0 8
    %3619 = vperm.xlu0 %3618, %v277
    %v3620 = vpop.permute.xlu0 %3619
    %3622 = vset.pattern.permute.xlu0 8
    %3623 = vperm.xlu0 %3622, %v278
    %v3624 = vpop.permute.xlu0 %3623
    %3626 = vset.pattern.permute.xlu0 8
    %3627 = vperm.xlu0 %3626, %v279
    %v3628 = vpop.permute.xlu0 %3627
    %3630 = vset.pattern.permute.xlu0 8
    %3631 = vperm.xlu0 %3630, %v280
    %v3632 = vpop.permute.xlu0 %3631
    %3634 = vset.pattern.permute.xlu0 8
    %3635 = vperm.xlu0 %3634, %v281
    %v3636 = vpop.permute.xlu0 %3635
    %3638 = vset.pattern.permute.xlu0 8
    %3639 = vperm.xlu0 %3638, %v282
    %v3640 = vpop.permute.xlu0 %3639
    %3642 = vset.pattern.permute.xlu0 8
    %3643 = vperm.xlu0 %3642, %v283
    %v3644 = vpop.permute.xlu0 %3643
    %3646 = vset.pattern.permute.xlu0 8
    %3647 = vperm.xlu0 %3646, %v284
    %v3648 = vpop.permute.xlu0 %3647
    %3650 = vset.pattern.permute.xlu0 8
    %3651 = vperm.xlu0 %3650, %v285
    %v3652 = vpop.permute.xlu0 %3651
    %3654 = vset.pattern.permute.xlu0 8
    %3655 = vperm.xlu0 %3654, %v286
    %v3656 = vpop.permute.xlu0 %3655
    %3658 = vset.pattern.permute.xlu0 8
    %3659 = vperm.xlu0 %3658, %v287
    %v3660 = vpop.permute.xlu0 %3659
    %3662 = vset.pattern.permute.xlu0 8
    %3663 = vperm.xlu0 %3662, %v288
    %v3664 = vpop.permute.xlu0 %3663
    %3666 = vset.pattern.permute.xlu0 8
    %3667 = vperm.xlu0 %3666, %v289
    %v3668 = vpop.permute.xlu0 %3667
    %3670 = vset.pattern.permute.xlu0 8
    %3671 = vperm.xlu0 %3670, %v290
    %v3672 = vpop.permute.xlu0 %3671
    %3674 = vset.pattern.permute.xlu0 8
    %3675 = vperm.xlu0 %3674, %v291
    %v3676 = vpop.permute.xlu0 %3675
    %3678 = vset.pattern.permute.xlu0 8
    %3679 = vperm.xlu0 %3678, %v292
    %v3680 = vpop.permute.xlu0 %3679
    %3682 = vset.pattern.permute.xlu0 8
    %3683 = vperm.xlu0 %3682, %v293
    %v3684 = vpop.permute.xlu0 %3683
    %v3686 = vmul.f32 %v3366, %v3432
    %v3687 = vmul.f32 %v3367, %v3436
    %v3688 = vmul.f32 %v3368, %v3440
    %v3689 = vmul.f32 %v3369, %v3444
    %v3690 = vmul.f32 %v3370, %v3448
    %v3691 = vmul.f32 %v3371, %v3452
    %v3692 = vmul.f32 %v3372, %v3456
    %v3693 = vmul.f32 %v3373, %v3460
    %v3694 = vmul.f32 %v3374, %v3464
    %v3695 = vmul.f32 %v3375, %v3468
    %v3696 = vmul.f32 %v3376, %v3472
    %v3697 = vmul.f32 %v3377, %v3476
    %v3698 = vmul.f32 %v3378, %v3480
    %v3699 = vmul.f32 %v3379, %v3484
    %v3700 = vmul.f32 %v3380, %v3488
    %v3701 = vmul.f32 %v3381, %v3492
    %v3702 = vmul.f32 %v3382, %v3496
    %v3703 = vmul.f32 %v3383, %v3500
    %v3704 = vmul.f32 %v3384, %v3504
    %v3705 = vmul.f32 %v3385, %v3508
    %v3706 = vmul.f32 %v3386, %v3512
    %v3707 = vmul.f32 %v3387, %v3516
    %v3708 = vmul.f32 %v3388, %v3520
    %v3709 = vmul.f32 %v3389, %v3524
    %v3710 = vmul.f32 %v3390, %v3528
    %v3711 = vmul.f32 %v3391, %v3532
    %v3712 = vmul.f32 %v3392, %v3536
    %v3713 = vmul.f32 %v3393, %v3540
    %v3714 = vmul.f32 %v3394, %v3544
    %v3715 = vmul.f32 %v3395, %v3548
    %v3716 = vmul.f32 %v3396, %v3552
    %v3717 = vmul.f32 %v3397, %v3556
    %v3718 = vmul.f32 %v3398, %v3560
    %v3719 = vmul.f32 %v3399, %v3564
    %v3720 = vmul.f32 %v3400, %v3568
    %v3721 = vmul.f32 %v3401, %v3572
    %v3722 = vmul.f32 %v3402, %v3576
    %v3723 = vmul.f32 %v3403, %v3580
    %v3724 = vmul.f32 %v3404, %v3584
    %v3725 = vmul.f32 %v3405, %v3588
    %v3726 = vmul.f32 %v3406, %v3592
    %v3727 = vmul.f32 %v3407, %v3596
    %v3728 = vmul.f32 %v3408, %v3600
    %v3729 = vmul.f32 %v3409, %v3604
    %v3730 = vmul.f32 %v3410, %v3608
    %v3731 = vmul.f32 %v3411, %v3612
    %v3732 = vmul.f32 %v3412, %v3616
    %v3733 = vmul.f32 %v3413, %v3620
    %v3734 = vmul.f32 %v3414, %v3624
    %v3735 = vmul.f32 %v3415, %v3628
    %v3736 = vmul.f32 %v3416, %v3632
    %v3737 = vmul.f32 %v3417, %v3636
    %v3738 = vmul.f32 %v3418, %v3640
    %v3739 = vmul.f32 %v3419, %v3644
    %v3740 = vmul.f32 %v3420, %v3648
    %v3741 = vmul.f32 %v3421, %v3652
    %v3742 = vmul.f32 %v3422, %v3656
    %v3743 = vmul.f32 %v3423, %v3660
    %v3744 = vmul.f32 %v3424, %v3664
    %v3745 = vmul.f32 %v3425, %v3668
    %v3746 = vmul.f32 %v3426, %v3672
    %v3747 = vmul.f32 %v3427, %v3676
    %v3748 = vmul.f32 %v3428, %v3680
    %v3749 = vmul.f32 %v3429, %v3684
    %3814 = vrot.lane.b32.xlu0 %v998, 4
    %v3815 = vpop.permute.xlu0 %3814
    %3816 = vrot.lane.b32.xlu0 %v999, 4
    %v3817 = vpop.permute.xlu0 %3816
    %3818 = vrot.lane.b32.xlu0 %v1000, 4
    %v3819 = vpop.permute.xlu0 %3818
    %3820 = vrot.lane.b32.xlu0 %v1001, 4
    %v3821 = vpop.permute.xlu0 %3820
    %3822 = vrot.lane.b32.xlu0 %v1002, 4
    %v3823 = vpop.permute.xlu0 %3822
    %3824 = vrot.lane.b32.xlu0 %v1003, 4
    %v3825 = vpop.permute.xlu0 %3824
    %3826 = vrot.lane.b32.xlu0 %v1004, 4
    %v3827 = vpop.permute.xlu0 %3826
    %3828 = vrot.lane.b32.xlu0 %v1005, 4
    %v3829 = vpop.permute.xlu0 %3828
    %3830 = vrot.lane.b32.xlu0 %v1006, 4
    %v3831 = vpop.permute.xlu0 %3830
    %3832 = vrot.lane.b32.xlu0 %v1007, 4
    %v3833 = vpop.permute.xlu0 %3832
    %3834 = vrot.lane.b32.xlu0 %v1008, 4
    %v3835 = vpop.permute.xlu0 %3834
    %3836 = vrot.lane.b32.xlu0 %v1009, 4
    %v3837 = vpop.permute.xlu0 %3836
    %3838 = vrot.lane.b32.xlu0 %v1010, 4
    %v3839 = vpop.permute.xlu0 %3838
    %3840 = vrot.lane.b32.xlu0 %v1011, 4
    %v3841 = vpop.permute.xlu0 %3840
    %3842 = vrot.lane.b32.xlu0 %v1012, 4
    %v3843 = vpop.permute.xlu0 %3842
    %3844 = vrot.lane.b32.xlu0 %v1013, 4
    %v3845 = vpop.permute.xlu0 %3844
    %3846 = vrot.lane.b32.xlu0 %v1014, 4
    %v3847 = vpop.permute.xlu0 %3846
    %3848 = vrot.lane.b32.xlu0 %v1015, 4
    %v3849 = vpop.permute.xlu0 %3848
    %3850 = vrot.lane.b32.xlu0 %v1016, 4
    %v3851 = vpop.permute.xlu0 %3850
    %3852 = vrot.lane.b32.xlu0 %v1017, 4
    %v3853 = vpop.permute.xlu0 %3852
    %3854 = vrot.lane.b32.xlu0 %v1018, 4
    %v3855 = vpop.permute.xlu0 %3854
    %3856 = vrot.lane.b32.xlu0 %v1019, 4
    %v3857 = vpop.permute.xlu0 %3856
    %3858 = vrot.lane.b32.xlu0 %v1020, 4
    %v3859 = vpop.permute.xlu0 %3858
    %3860 = vrot.lane.b32.xlu0 %v1021, 4
    %v3861 = vpop.permute.xlu0 %3860
    %3862 = vrot.lane.b32.xlu0 %v1022, 4
    %v3863 = vpop.permute.xlu0 %3862
    %3864 = vrot.lane.b32.xlu0 %v1023, 4
    %v3865 = vpop.permute.xlu0 %3864
    %3866 = vrot.lane.b32.xlu0 %v1024, 4
    %v3867 = vpop.permute.xlu0 %3866
    %3868 = vrot.lane.b32.xlu0 %v1025, 4
    %v3869 = vpop.permute.xlu0 %3868
    %3870 = vrot.lane.b32.xlu0 %v1026, 4
    %v3871 = vpop.permute.xlu0 %3870
    %3872 = vrot.lane.b32.xlu0 %v1027, 4
    %v3873 = vpop.permute.xlu0 %3872
    %3874 = vrot.lane.b32.xlu0 %v1028, 4
    %v3875 = vpop.permute.xlu0 %3874
    %3876 = vrot.lane.b32.xlu0 %v1029, 4
    %v3877 = vpop.permute.xlu0 %3876
    %3878 = vrot.lane.b32.xlu0 %v1030, 4
    %v3879 = vpop.permute.xlu0 %3878
    %3880 = vrot.lane.b32.xlu0 %v1031, 4
    %v3881 = vpop.permute.xlu0 %3880
    %3882 = vrot.lane.b32.xlu0 %v1032, 4
    %v3883 = vpop.permute.xlu0 %3882
    %3884 = vrot.lane.b32.xlu0 %v1033, 4
    %v3885 = vpop.permute.xlu0 %3884
    %3886 = vrot.lane.b32.xlu0 %v1034, 4
    %v3887 = vpop.permute.xlu0 %3886
    %3888 = vrot.lane.b32.xlu0 %v1035, 4
    %v3889 = vpop.permute.xlu0 %3888
    %3890 = vrot.lane.b32.xlu0 %v1036, 4
    %v3891 = vpop.permute.xlu0 %3890
    %3892 = vrot.lane.b32.xlu0 %v1037, 4
    %v3893 = vpop.permute.xlu0 %3892
    %3894 = vrot.lane.b32.xlu0 %v1038, 4
    %v3895 = vpop.permute.xlu0 %3894
    %3896 = vrot.lane.b32.xlu0 %v1039, 4
    %v3897 = vpop.permute.xlu0 %3896
    %3898 = vrot.lane.b32.xlu0 %v1040, 4
    %v3899 = vpop.permute.xlu0 %3898
    %3900 = vrot.lane.b32.xlu0 %v1041, 4
    %v3901 = vpop.permute.xlu0 %3900
    %3902 = vrot.lane.b32.xlu0 %v1042, 4
    %v3903 = vpop.permute.xlu0 %3902
    %3904 = vrot.lane.b32.xlu0 %v1043, 4
    %v3905 = vpop.permute.xlu0 %3904
    %3906 = vrot.lane.b32.xlu0 %v1044, 4
    %v3907 = vpop.permute.xlu0 %3906
    %3908 = vrot.lane.b32.xlu0 %v1045, 4
    %v3909 = vpop.permute.xlu0 %3908
    %3910 = vrot.lane.b32.xlu0 %v1046, 4
    %v3911 = vpop.permute.xlu0 %3910
    %3912 = vrot.lane.b32.xlu0 %v1047, 4
    %v3913 = vpop.permute.xlu0 %3912
    %3914 = vrot.lane.b32.xlu0 %v1048, 4
    %v3915 = vpop.permute.xlu0 %3914
    %3916 = vrot.lane.b32.xlu0 %v1049, 4
    %v3917 = vpop.permute.xlu0 %3916
    %3918 = vrot.lane.b32.xlu0 %v1050, 4
    %v3919 = vpop.permute.xlu0 %3918
    %3920 = vrot.lane.b32.xlu0 %v1051, 4
    %v3921 = vpop.permute.xlu0 %3920
    %3922 = vrot.lane.b32.xlu0 %v1052, 4
    %v3923 = vpop.permute.xlu0 %3922
    %3924 = vrot.lane.b32.xlu0 %v1053, 4
    %v3925 = vpop.permute.xlu0 %3924
    %3926 = vrot.lane.b32.xlu0 %v1054, 4
    %v3927 = vpop.permute.xlu0 %3926
    %3928 = vrot.lane.b32.xlu0 %v1055, 4
    %v3929 = vpop.permute.xlu0 %3928
    %3930 = vrot.lane.b32.xlu0 %v1056, 4
    %v3931 = vpop.permute.xlu0 %3930
    %3932 = vrot.lane.b32.xlu0 %v1057, 4
    %v3933 = vpop.permute.xlu0 %3932
    %3934 = vrot.lane.b32.xlu0 %v1058, 4
    %v3935 = vpop.permute.xlu0 %3934
    %3936 = vrot.lane.b32.xlu0 %v1059, 4
    %v3937 = vpop.permute.xlu0 %3936
    %3938 = vrot.lane.b32.xlu0 %v1060, 4
    %v3939 = vpop.permute.xlu0 %3938
    %3940 = vrot.lane.b32.xlu0 %v1061, 4
    %v3941 = vpop.permute.xlu0 %3940
    %4070 = vrot.lane.b32.xlu0 %v1382, 8
    %v4071 = vpop.permute.xlu0 %4070
    %4072 = vrot.lane.b32.xlu0 %v1383, 8
    %v4073 = vpop.permute.xlu0 %4072
    %4074 = vrot.lane.b32.xlu0 %v1384, 8
    %v4075 = vpop.permute.xlu0 %4074
    %4076 = vrot.lane.b32.xlu0 %v1385, 8
    %v4077 = vpop.permute.xlu0 %4076
    %4078 = vrot.lane.b32.xlu0 %v1386, 8
    %v4079 = vpop.permute.xlu0 %4078
    %4080 = vrot.lane.b32.xlu0 %v1387, 8
    %v4081 = vpop.permute.xlu0 %4080
    %4082 = vrot.lane.b32.xlu0 %v1388, 8
    %v4083 = vpop.permute.xlu0 %4082
    %4084 = vrot.lane.b32.xlu0 %v1389, 8
    %v4085 = vpop.permute.xlu0 %4084
    %4086 = vrot.lane.b32.xlu0 %v1390, 8
    %v4087 = vpop.permute.xlu0 %4086
    %4088 = vrot.lane.b32.xlu0 %v1391, 8
    %v4089 = vpop.permute.xlu0 %4088
    %4090 = vrot.lane.b32.xlu0 %v1392, 8
    %v4091 = vpop.permute.xlu0 %4090
    %4092 = vrot.lane.b32.xlu0 %v1393, 8
    %v4093 = vpop.permute.xlu0 %4092
    %4094 = vrot.lane.b32.xlu0 %v1394, 8
    %v4095 = vpop.permute.xlu0 %4094
    %4096 = vrot.lane.b32.xlu0 %v1395, 8
    %v4097 = vpop.permute.xlu0 %4096
    %4098 = vrot.lane.b32.xlu0 %v1396, 8
    %v4099 = vpop.permute.xlu0 %4098
    %4100 = vrot.lane.b32.xlu0 %v1397, 8
    %v4101 = vpop.permute.xlu0 %4100
    %4102 = vrot.lane.b32.xlu0 %v1398, 8
    %v4103 = vpop.permute.xlu0 %4102
    %4104 = vrot.lane.b32.xlu0 %v1399, 8
    %v4105 = vpop.permute.xlu0 %4104
    %4106 = vrot.lane.b32.xlu0 %v1400, 8
    %v4107 = vpop.permute.xlu0 %4106
    %4108 = vrot.lane.b32.xlu0 %v1401, 8
    %v4109 = vpop.permute.xlu0 %4108
    %4110 = vrot.lane.b32.xlu0 %v1402, 8
    %v4111 = vpop.permute.xlu0 %4110
    %4112 = vrot.lane.b32.xlu0 %v1403, 8
    %v4113 = vpop.permute.xlu0 %4112
    %4114 = vrot.lane.b32.xlu0 %v1404, 8
    %v4115 = vpop.permute.xlu0 %4114
    %4116 = vrot.lane.b32.xlu0 %v1405, 8
    %v4117 = vpop.permute.xlu0 %4116
    %4118 = vrot.lane.b32.xlu0 %v1406, 8
    %v4119 = vpop.permute.xlu0 %4118
    %4120 = vrot.lane.b32.xlu0 %v1407, 8
    %v4121 = vpop.permute.xlu0 %4120
    %4122 = vrot.lane.b32.xlu0 %v1408, 8
    %v4123 = vpop.permute.xlu0 %4122
    %4124 = vrot.lane.b32.xlu0 %v1409, 8
    %v4125 = vpop.permute.xlu0 %4124
    %4126 = vrot.lane.b32.xlu0 %v1410, 8
    %v4127 = vpop.permute.xlu0 %4126
    %4128 = vrot.lane.b32.xlu0 %v1411, 8
    %v4129 = vpop.permute.xlu0 %4128
    %4130 = vrot.lane.b32.xlu0 %v1412, 8
    %v4131 = vpop.permute.xlu0 %4130
    %4132 = vrot.lane.b32.xlu0 %v1413, 8
    %v4133 = vpop.permute.xlu0 %4132
    %4134 = vrot.lane.b32.xlu0 %v1414, 8
    %v4135 = vpop.permute.xlu0 %4134
    %4136 = vrot.lane.b32.xlu0 %v1415, 8
    %v4137 = vpop.permute.xlu0 %4136
    %4138 = vrot.lane.b32.xlu0 %v1416, 8
    %v4139 = vpop.permute.xlu0 %4138
    %4140 = vrot.lane.b32.xlu0 %v1417, 8
    %v4141 = vpop.permute.xlu0 %4140
    %4142 = vrot.lane.b32.xlu0 %v1418, 8
    %v4143 = vpop.permute.xlu0 %4142
    %4144 = vrot.lane.b32.xlu0 %v1419, 8
    %v4145 = vpop.permute.xlu0 %4144
    %4146 = vrot.lane.b32.xlu0 %v1420, 8
    %v4147 = vpop.permute.xlu0 %4146
    %4148 = vrot.lane.b32.xlu0 %v1421, 8
    %v4149 = vpop.permute.xlu0 %4148
    %4150 = vrot.lane.b32.xlu0 %v1422, 8
    %v4151 = vpop.permute.xlu0 %4150
    %4152 = vrot.lane.b32.xlu0 %v1423, 8
    %v4153 = vpop.permute.xlu0 %4152
    %4154 = vrot.lane.b32.xlu0 %v1424, 8
    %v4155 = vpop.permute.xlu0 %4154
    %4156 = vrot.lane.b32.xlu0 %v1425, 8
    %v4157 = vpop.permute.xlu0 %4156
    %4158 = vrot.lane.b32.xlu0 %v1426, 8
    %v4159 = vpop.permute.xlu0 %4158
    %4160 = vrot.lane.b32.xlu0 %v1427, 8
    %v4161 = vpop.permute.xlu0 %4160
    %4162 = vrot.lane.b32.xlu0 %v1428, 8
    %v4163 = vpop.permute.xlu0 %4162
    %4164 = vrot.lane.b32.xlu0 %v1429, 8
    %v4165 = vpop.permute.xlu0 %4164
    %4166 = vrot.lane.b32.xlu0 %v1430, 8
    %v4167 = vpop.permute.xlu0 %4166
    %4168 = vrot.lane.b32.xlu0 %v1431, 8
    %v4169 = vpop.permute.xlu0 %4168
    %4170 = vrot.lane.b32.xlu0 %v1432, 8
    %v4171 = vpop.permute.xlu0 %4170
    %4172 = vrot.lane.b32.xlu0 %v1433, 8
    %v4173 = vpop.permute.xlu0 %4172
    %4174 = vrot.lane.b32.xlu0 %v1434, 8
    %v4175 = vpop.permute.xlu0 %4174
    %4176 = vrot.lane.b32.xlu0 %v1435, 8
    %v4177 = vpop.permute.xlu0 %4176
    %4178 = vrot.lane.b32.xlu0 %v1436, 8
    %v4179 = vpop.permute.xlu0 %4178
    %4180 = vrot.lane.b32.xlu0 %v1437, 8
    %v4181 = vpop.permute.xlu0 %4180
    %4182 = vrot.lane.b32.xlu0 %v1438, 8
    %v4183 = vpop.permute.xlu0 %4182
    %4184 = vrot.lane.b32.xlu0 %v1439, 8
    %v4185 = vpop.permute.xlu0 %4184
    %4186 = vrot.lane.b32.xlu0 %v1440, 8
    %v4187 = vpop.permute.xlu0 %4186
    %4188 = vrot.lane.b32.xlu0 %v1441, 8
    %v4189 = vpop.permute.xlu0 %4188
    %4190 = vrot.lane.b32.xlu0 %v1442, 8
    %v4191 = vpop.permute.xlu0 %4190
    %4192 = vrot.lane.b32.xlu0 %v1443, 8
    %v4193 = vpop.permute.xlu0 %4192
    %4194 = vrot.lane.b32.xlu0 %v1444, 8
    %v4195 = vpop.permute.xlu0 %4194
    %4196 = vrot.lane.b32.xlu0 %v1445, 8
    %v4197 = vpop.permute.xlu0 %4196
    %4326 = vrot.lane.b32.xlu0 %v1766, 12
    %v4327 = vpop.permute.xlu0 %4326
    %4328 = vrot.lane.b32.xlu0 %v1767, 12
    %v4329 = vpop.permute.xlu0 %4328
    %4330 = vrot.lane.b32.xlu0 %v1768, 12
    %v4331 = vpop.permute.xlu0 %4330
    %4332 = vrot.lane.b32.xlu0 %v1769, 12
    %v4333 = vpop.permute.xlu0 %4332
    %4334 = vrot.lane.b32.xlu0 %v1770, 12
    %v4335 = vpop.permute.xlu0 %4334
    %4336 = vrot.lane.b32.xlu0 %v1771, 12
    %v4337 = vpop.permute.xlu0 %4336
    %4338 = vrot.lane.b32.xlu0 %v1772, 12
    %v4339 = vpop.permute.xlu0 %4338
    %4340 = vrot.lane.b32.xlu0 %v1773, 12
    %v4341 = vpop.permute.xlu0 %4340
    %4342 = vrot.lane.b32.xlu0 %v1774, 12
    %v4343 = vpop.permute.xlu0 %4342
    %4344 = vrot.lane.b32.xlu0 %v1775, 12
    %v4345 = vpop.permute.xlu0 %4344
    %4346 = vrot.lane.b32.xlu0 %v1776, 12
    %v4347 = vpop.permute.xlu0 %4346
    %4348 = vrot.lane.b32.xlu0 %v1777, 12
    %v4349 = vpop.permute.xlu0 %4348
    %4350 = vrot.lane.b32.xlu0 %v1778, 12
    %v4351 = vpop.permute.xlu0 %4350
    %4352 = vrot.lane.b32.xlu0 %v1779, 12
    %v4353 = vpop.permute.xlu0 %4352
    %4354 = vrot.lane.b32.xlu0 %v1780, 12
    %v4355 = vpop.permute.xlu0 %4354
    %4356 = vrot.lane.b32.xlu0 %v1781, 12
    %v4357 = vpop.permute.xlu0 %4356
    %4358 = vrot.lane.b32.xlu0 %v1782, 12
    %v4359 = vpop.permute.xlu0 %4358
    %4360 = vrot.lane.b32.xlu0 %v1783, 12
    %v4361 = vpop.permute.xlu0 %4360
    %4362 = vrot.lane.b32.xlu0 %v1784, 12
    %v4363 = vpop.permute.xlu0 %4362
    %4364 = vrot.lane.b32.xlu0 %v1785, 12
    %v4365 = vpop.permute.xlu0 %4364
    %4366 = vrot.lane.b32.xlu0 %v1786, 12
    %v4367 = vpop.permute.xlu0 %4366
    %4368 = vrot.lane.b32.xlu0 %v1787, 12
    %v4369 = vpop.permute.xlu0 %4368
    %4370 = vrot.lane.b32.xlu0 %v1788, 12
    %v4371 = vpop.permute.xlu0 %4370
    %4372 = vrot.lane.b32.xlu0 %v1789, 12
    %v4373 = vpop.permute.xlu0 %4372
    %4374 = vrot.lane.b32.xlu0 %v1790, 12
    %v4375 = vpop.permute.xlu0 %4374
    %4376 = vrot.lane.b32.xlu0 %v1791, 12
    %v4377 = vpop.permute.xlu0 %4376
    %4378 = vrot.lane.b32.xlu0 %v1792, 12
    %v4379 = vpop.permute.xlu0 %4378
    %4380 = vrot.lane.b32.xlu0 %v1793, 12
    %v4381 = vpop.permute.xlu0 %4380
    %4382 = vrot.lane.b32.xlu0 %v1794, 12
    %v4383 = vpop.permute.xlu0 %4382
    %4384 = vrot.lane.b32.xlu0 %v1795, 12
    %v4385 = vpop.permute.xlu0 %4384
    %4386 = vrot.lane.b32.xlu0 %v1796, 12
    %v4387 = vpop.permute.xlu0 %4386
    %4388 = vrot.lane.b32.xlu0 %v1797, 12
    %v4389 = vpop.permute.xlu0 %4388
    %4390 = vrot.lane.b32.xlu0 %v1798, 12
    %v4391 = vpop.permute.xlu0 %4390
    %4392 = vrot.lane.b32.xlu0 %v1799, 12
    %v4393 = vpop.permute.xlu0 %4392
    %4394 = vrot.lane.b32.xlu0 %v1800, 12
    %v4395 = vpop.permute.xlu0 %4394
    %4396 = vrot.lane.b32.xlu0 %v1801, 12
    %v4397 = vpop.permute.xlu0 %4396
    %4398 = vrot.lane.b32.xlu0 %v1802, 12
    %v4399 = vpop.permute.xlu0 %4398
    %4400 = vrot.lane.b32.xlu0 %v1803, 12
    %v4401 = vpop.permute.xlu0 %4400
    %4402 = vrot.lane.b32.xlu0 %v1804, 12
    %v4403 = vpop.permute.xlu0 %4402
    %4404 = vrot.lane.b32.xlu0 %v1805, 12
    %v4405 = vpop.permute.xlu0 %4404
    %4406 = vrot.lane.b32.xlu0 %v1806, 12
    %v4407 = vpop.permute.xlu0 %4406
    %4408 = vrot.lane.b32.xlu0 %v1807, 12
    %v4409 = vpop.permute.xlu0 %4408
    %4410 = vrot.lane.b32.xlu0 %v1808, 12
    %v4411 = vpop.permute.xlu0 %4410
    %4412 = vrot.lane.b32.xlu0 %v1809, 12
    %v4413 = vpop.permute.xlu0 %4412
    %4414 = vrot.lane.b32.xlu0 %v1810, 12
    %v4415 = vpop.permute.xlu0 %4414
    %4416 = vrot.lane.b32.xlu0 %v1811, 12
    %v4417 = vpop.permute.xlu0 %4416
    %4418 = vrot.lane.b32.xlu0 %v1812, 12
    %v4419 = vpop.permute.xlu0 %4418
    %4420 = vrot.lane.b32.xlu0 %v1813, 12
    %v4421 = vpop.permute.xlu0 %4420
    %4422 = vrot.lane.b32.xlu0 %v1814, 12
    %v4423 = vpop.permute.xlu0 %4422
    %4424 = vrot.lane.b32.xlu0 %v1815, 12
    %v4425 = vpop.permute.xlu0 %4424
    %4426 = vrot.lane.b32.xlu0 %v1816, 12
    %v4427 = vpop.permute.xlu0 %4426
    %4428 = vrot.lane.b32.xlu0 %v1817, 12
    %v4429 = vpop.permute.xlu0 %4428
    %4430 = vrot.lane.b32.xlu0 %v1818, 12
    %v4431 = vpop.permute.xlu0 %4430
    %4432 = vrot.lane.b32.xlu0 %v1819, 12
    %v4433 = vpop.permute.xlu0 %4432
    %4434 = vrot.lane.b32.xlu0 %v1820, 12
    %v4435 = vpop.permute.xlu0 %4434
    %4436 = vrot.lane.b32.xlu0 %v1821, 12
    %v4437 = vpop.permute.xlu0 %4436
    %4438 = vrot.lane.b32.xlu0 %v1822, 12
    %v4439 = vpop.permute.xlu0 %4438
    %4440 = vrot.lane.b32.xlu0 %v1823, 12
    %v4441 = vpop.permute.xlu0 %4440
    %4442 = vrot.lane.b32.xlu0 %v1824, 12
    %v4443 = vpop.permute.xlu0 %4442
    %4444 = vrot.lane.b32.xlu0 %v1825, 12
    %v4445 = vpop.permute.xlu0 %4444
    %4446 = vrot.lane.b32.xlu0 %v1826, 12
    %v4447 = vpop.permute.xlu0 %4446
    %4448 = vrot.lane.b32.xlu0 %v1827, 12
    %v4449 = vpop.permute.xlu0 %4448
    %4450 = vrot.lane.b32.xlu0 %v1828, 12
    %v4451 = vpop.permute.xlu0 %4450
    %4452 = vrot.lane.b32.xlu0 %v1829, 12
    %v4453 = vpop.permute.xlu0 %4452
    %4582 = vrot.lane.b32.xlu0 %v2150, 16
    %v4583 = vpop.permute.xlu0 %4582
    %4584 = vrot.lane.b32.xlu0 %v2151, 16
    %v4585 = vpop.permute.xlu0 %4584
    %4586 = vrot.lane.b32.xlu0 %v2152, 16
    %v4587 = vpop.permute.xlu0 %4586
    %4588 = vrot.lane.b32.xlu0 %v2153, 16
    %v4589 = vpop.permute.xlu0 %4588
    %4590 = vrot.lane.b32.xlu0 %v2154, 16
    %v4591 = vpop.permute.xlu0 %4590
    %4592 = vrot.lane.b32.xlu0 %v2155, 16
    %v4593 = vpop.permute.xlu0 %4592
    %4594 = vrot.lane.b32.xlu0 %v2156, 16
    %v4595 = vpop.permute.xlu0 %4594
    %4596 = vrot.lane.b32.xlu0 %v2157, 16
    %v4597 = vpop.permute.xlu0 %4596
    %4598 = vrot.lane.b32.xlu0 %v2158, 16
    %v4599 = vpop.permute.xlu0 %4598
    %4600 = vrot.lane.b32.xlu0 %v2159, 16
    %v4601 = vpop.permute.xlu0 %4600
    %4602 = vrot.lane.b32.xlu0 %v2160, 16
    %v4603 = vpop.permute.xlu0 %4602
    %4604 = vrot.lane.b32.xlu0 %v2161, 16
    %v4605 = vpop.permute.xlu0 %4604
    %4606 = vrot.lane.b32.xlu0 %v2162, 16
    %v4607 = vpop.permute.xlu0 %4606
    %4608 = vrot.lane.b32.xlu0 %v2163, 16
    %v4609 = vpop.permute.xlu0 %4608
    %4610 = vrot.lane.b32.xlu0 %v2164, 16
    %v4611 = vpop.permute.xlu0 %4610
    %4612 = vrot.lane.b32.xlu0 %v2165, 16
    %v4613 = vpop.permute.xlu0 %4612
    %4614 = vrot.lane.b32.xlu0 %v2166, 16
    %v4615 = vpop.permute.xlu0 %4614
    %4616 = vrot.lane.b32.xlu0 %v2167, 16
    %v4617 = vpop.permute.xlu0 %4616
    %4618 = vrot.lane.b32.xlu0 %v2168, 16
    %v4619 = vpop.permute.xlu0 %4618
    %4620 = vrot.lane.b32.xlu0 %v2169, 16
    %v4621 = vpop.permute.xlu0 %4620
    %4622 = vrot.lane.b32.xlu0 %v2170, 16
    %v4623 = vpop.permute.xlu0 %4622
    %4624 = vrot.lane.b32.xlu0 %v2171, 16
    %v4625 = vpop.permute.xlu0 %4624
    %4626 = vrot.lane.b32.xlu0 %v2172, 16
    %v4627 = vpop.permute.xlu0 %4626
    %4628 = vrot.lane.b32.xlu0 %v2173, 16
    %v4629 = vpop.permute.xlu0 %4628
    %4630 = vrot.lane.b32.xlu0 %v2174, 16
    %v4631 = vpop.permute.xlu0 %4630
    %4632 = vrot.lane.b32.xlu0 %v2175, 16
    %v4633 = vpop.permute.xlu0 %4632
    %4634 = vrot.lane.b32.xlu0 %v2176, 16
    %v4635 = vpop.permute.xlu0 %4634
    %4636 = vrot.lane.b32.xlu0 %v2177, 16
    %v4637 = vpop.permute.xlu0 %4636
    %4638 = vrot.lane.b32.xlu0 %v2178, 16
    %v4639 = vpop.permute.xlu0 %4638
    %4640 = vrot.lane.b32.xlu0 %v2179, 16
    %v4641 = vpop.permute.xlu0 %4640
    %4642 = vrot.lane.b32.xlu0 %v2180, 16
    %v4643 = vpop.permute.xlu0 %4642
    %4644 = vrot.lane.b32.xlu0 %v2181, 16
    %v4645 = vpop.permute.xlu0 %4644
    %4646 = vrot.lane.b32.xlu0 %v2182, 16
    %v4647 = vpop.permute.xlu0 %4646
    %4648 = vrot.lane.b32.xlu0 %v2183, 16
    %v4649 = vpop.permute.xlu0 %4648
    %4650 = vrot.lane.b32.xlu0 %v2184, 16
    %v4651 = vpop.permute.xlu0 %4650
    %4652 = vrot.lane.b32.xlu0 %v2185, 16
    %v4653 = vpop.permute.xlu0 %4652
    %4654 = vrot.lane.b32.xlu0 %v2186, 16
    %v4655 = vpop.permute.xlu0 %4654
    %4656 = vrot.lane.b32.xlu0 %v2187, 16
    %v4657 = vpop.permute.xlu0 %4656
    %4658 = vrot.lane.b32.xlu0 %v2188, 16
    %v4659 = vpop.permute.xlu0 %4658
    %4660 = vrot.lane.b32.xlu0 %v2189, 16
    %v4661 = vpop.permute.xlu0 %4660
    %4662 = vrot.lane.b32.xlu0 %v2190, 16
    %v4663 = vpop.permute.xlu0 %4662
    %4664 = vrot.lane.b32.xlu0 %v2191, 16
    %v4665 = vpop.permute.xlu0 %4664
    %4666 = vrot.lane.b32.xlu0 %v2192, 16
    %v4667 = vpop.permute.xlu0 %4666
    %4668 = vrot.lane.b32.xlu0 %v2193, 16
    %v4669 = vpop.permute.xlu0 %4668
    %4670 = vrot.lane.b32.xlu0 %v2194, 16
    %v4671 = vpop.permute.xlu0 %4670
    %4672 = vrot.lane.b32.xlu0 %v2195, 16
    %v4673 = vpop.permute.xlu0 %4672
    %4674 = vrot.lane.b32.xlu0 %v2196, 16
    %v4675 = vpop.permute.xlu0 %4674
    %4676 = vrot.lane.b32.xlu0 %v2197, 16
    %v4677 = vpop.permute.xlu0 %4676
    %4678 = vrot.lane.b32.xlu0 %v2198, 16
    %v4679 = vpop.permute.xlu0 %4678
    %4680 = vrot.lane.b32.xlu0 %v2199, 16
    %v4681 = vpop.permute.xlu0 %4680
    %4682 = vrot.lane.b32.xlu0 %v2200, 16
    %v4683 = vpop.permute.xlu0 %4682
    %4684 = vrot.lane.b32.xlu0 %v2201, 16
    %v4685 = vpop.permute.xlu0 %4684
    %4686 = vrot.lane.b32.xlu0 %v2202, 16
    %v4687 = vpop.permute.xlu0 %4686
    %4688 = vrot.lane.b32.xlu0 %v2203, 16
    %v4689 = vpop.permute.xlu0 %4688
    %4690 = vrot.lane.b32.xlu0 %v2204, 16
    %v4691 = vpop.permute.xlu0 %4690
    %4692 = vrot.lane.b32.xlu0 %v2205, 16
    %v4693 = vpop.permute.xlu0 %4692
    %4694 = vrot.lane.b32.xlu0 %v2206, 16
    %v4695 = vpop.permute.xlu0 %4694
    %4696 = vrot.lane.b32.xlu0 %v2207, 16
    %v4697 = vpop.permute.xlu0 %4696
    %4698 = vrot.lane.b32.xlu0 %v2208, 16
    %v4699 = vpop.permute.xlu0 %4698
    %4700 = vrot.lane.b32.xlu0 %v2209, 16
    %v4701 = vpop.permute.xlu0 %4700
    %4702 = vrot.lane.b32.xlu0 %v2210, 16
    %v4703 = vpop.permute.xlu0 %4702
    %4704 = vrot.lane.b32.xlu0 %v2211, 16
    %v4705 = vpop.permute.xlu0 %4704
    %4706 = vrot.lane.b32.xlu0 %v2212, 16
    %v4707 = vpop.permute.xlu0 %4706
    %4708 = vrot.lane.b32.xlu0 %v2213, 16
    %v4709 = vpop.permute.xlu0 %4708
    %4838 = vrot.lane.b32.xlu0 %v2534, 20
    %v4839 = vpop.permute.xlu0 %4838
    %4840 = vrot.lane.b32.xlu0 %v2535, 20
    %v4841 = vpop.permute.xlu0 %4840
    %4842 = vrot.lane.b32.xlu0 %v2536, 20
    %v4843 = vpop.permute.xlu0 %4842
    %4844 = vrot.lane.b32.xlu0 %v2537, 20
    %v4845 = vpop.permute.xlu0 %4844
    %4846 = vrot.lane.b32.xlu0 %v2538, 20
    %v4847 = vpop.permute.xlu0 %4846
    %4848 = vrot.lane.b32.xlu0 %v2539, 20
    %v4849 = vpop.permute.xlu0 %4848
    %4850 = vrot.lane.b32.xlu0 %v2540, 20
    %v4851 = vpop.permute.xlu0 %4850
    %4852 = vrot.lane.b32.xlu0 %v2541, 20
    %v4853 = vpop.permute.xlu0 %4852
    %4854 = vrot.lane.b32.xlu0 %v2542, 20
    %v4855 = vpop.permute.xlu0 %4854
    %4856 = vrot.lane.b32.xlu0 %v2543, 20
    %v4857 = vpop.permute.xlu0 %4856
    %4858 = vrot.lane.b32.xlu0 %v2544, 20
    %v4859 = vpop.permute.xlu0 %4858
    %4860 = vrot.lane.b32.xlu0 %v2545, 20
    %v4861 = vpop.permute.xlu0 %4860
    %4862 = vrot.lane.b32.xlu0 %v2546, 20
    %v4863 = vpop.permute.xlu0 %4862
    %4864 = vrot.lane.b32.xlu0 %v2547, 20
    %v4865 = vpop.permute.xlu0 %4864
    %4866 = vrot.lane.b32.xlu0 %v2548, 20
    %v4867 = vpop.permute.xlu0 %4866
    %4868 = vrot.lane.b32.xlu0 %v2549, 20
    %v4869 = vpop.permute.xlu0 %4868
    %4870 = vrot.lane.b32.xlu0 %v2550, 20
    %v4871 = vpop.permute.xlu0 %4870
    %4872 = vrot.lane.b32.xlu0 %v2551, 20
    %v4873 = vpop.permute.xlu0 %4872
    %4874 = vrot.lane.b32.xlu0 %v2552, 20
    %v4875 = vpop.permute.xlu0 %4874
    %4876 = vrot.lane.b32.xlu0 %v2553, 20
    %v4877 = vpop.permute.xlu0 %4876
    %4878 = vrot.lane.b32.xlu0 %v2554, 20
    %v4879 = vpop.permute.xlu0 %4878
    %4880 = vrot.lane.b32.xlu0 %v2555, 20
    %v4881 = vpop.permute.xlu0 %4880
    %4882 = vrot.lane.b32.xlu0 %v2556, 20
    %v4883 = vpop.permute.xlu0 %4882
    %4884 = vrot.lane.b32.xlu0 %v2557, 20
    %v4885 = vpop.permute.xlu0 %4884
    %4886 = vrot.lane.b32.xlu0 %v2558, 20
    %v4887 = vpop.permute.xlu0 %4886
    %4888 = vrot.lane.b32.xlu0 %v2559, 20
    %v4889 = vpop.permute.xlu0 %4888
    %4890 = vrot.lane.b32.xlu0 %v2560, 20
    %v4891 = vpop.permute.xlu0 %4890
    %4892 = vrot.lane.b32.xlu0 %v2561, 20
    %v4893 = vpop.permute.xlu0 %4892
    %4894 = vrot.lane.b32.xlu0 %v2562, 20
    %v4895 = vpop.permute.xlu0 %4894
    %4896 = vrot.lane.b32.xlu0 %v2563, 20
    %v4897 = vpop.permute.xlu0 %4896
    %4898 = vrot.lane.b32.xlu0 %v2564, 20
    %v4899 = vpop.permute.xlu0 %4898
    %4900 = vrot.lane.b32.xlu0 %v2565, 20
    %v4901 = vpop.permute.xlu0 %4900
    %4902 = vrot.lane.b32.xlu0 %v2566, 20
    %v4903 = vpop.permute.xlu0 %4902
    %4904 = vrot.lane.b32.xlu0 %v2567, 20
    %v4905 = vpop.permute.xlu0 %4904
    %4906 = vrot.lane.b32.xlu0 %v2568, 20
    %v4907 = vpop.permute.xlu0 %4906
    %4908 = vrot.lane.b32.xlu0 %v2569, 20
    %v4909 = vpop.permute.xlu0 %4908
    %4910 = vrot.lane.b32.xlu0 %v2570, 20
    %v4911 = vpop.permute.xlu0 %4910
    %4912 = vrot.lane.b32.xlu0 %v2571, 20
    %v4913 = vpop.permute.xlu0 %4912
    %4914 = vrot.lane.b32.xlu0 %v2572, 20
    %v4915 = vpop.permute.xlu0 %4914
    %4916 = vrot.lane.b32.xlu0 %v2573, 20
    %v4917 = vpop.permute.xlu0 %4916
    %4918 = vrot.lane.b32.xlu0 %v2574, 20
    %v4919 = vpop.permute.xlu0 %4918
    %4920 = vrot.lane.b32.xlu0 %v2575, 20
    %v4921 = vpop.permute.xlu0 %4920
    %4922 = vrot.lane.b32.xlu0 %v2576, 20
    %v4923 = vpop.permute.xlu0 %4922
    %4924 = vrot.lane.b32.xlu0 %v2577, 20
    %v4925 = vpop.permute.xlu0 %4924
    %4926 = vrot.lane.b32.xlu0 %v2578, 20
    %v4927 = vpop.permute.xlu0 %4926
    %4928 = vrot.lane.b32.xlu0 %v2579, 20
    %v4929 = vpop.permute.xlu0 %4928
    %4930 = vrot.lane.b32.xlu0 %v2580, 20
    %v4931 = vpop.permute.xlu0 %4930
    %4932 = vrot.lane.b32.xlu0 %v2581, 20
    %v4933 = vpop.permute.xlu0 %4932
    %4934 = vrot.lane.b32.xlu0 %v2582, 20
    %v4935 = vpop.permute.xlu0 %4934
    %4936 = vrot.lane.b32.xlu0 %v2583, 20
    %v4937 = vpop.permute.xlu0 %4936
    %4938 = vrot.lane.b32.xlu0 %v2584, 20
    %v4939 = vpop.permute.xlu0 %4938
    %4940 = vrot.lane.b32.xlu0 %v2585, 20
    %v4941 = vpop.permute.xlu0 %4940
    %4942 = vrot.lane.b32.xlu0 %v2586, 20
    %v4943 = vpop.permute.xlu0 %4942
    %4944 = vrot.lane.b32.xlu0 %v2587, 20
    %v4945 = vpop.permute.xlu0 %4944
    %4946 = vrot.lane.b32.xlu0 %v2588, 20
    %v4947 = vpop.permute.xlu0 %4946
    %4948 = vrot.lane.b32.xlu0 %v2589, 20
    %v4949 = vpop.permute.xlu0 %4948
    %4950 = vrot.lane.b32.xlu0 %v2590, 20
    %v4951 = vpop.permute.xlu0 %4950
    %4952 = vrot.lane.b32.xlu0 %v2591, 20
    %v4953 = vpop.permute.xlu0 %4952
    %4954 = vrot.lane.b32.xlu0 %v2592, 20
    %v4955 = vpop.permute.xlu0 %4954
    %4956 = vrot.lane.b32.xlu0 %v2593, 20
    %v4957 = vpop.permute.xlu0 %4956
    %4958 = vrot.lane.b32.xlu0 %v2594, 20
    %v4959 = vpop.permute.xlu0 %4958
    %4960 = vrot.lane.b32.xlu0 %v2595, 20
    %v4961 = vpop.permute.xlu0 %4960
    %4962 = vrot.lane.b32.xlu0 %v2596, 20
    %v4963 = vpop.permute.xlu0 %4962
    %4964 = vrot.lane.b32.xlu0 %v2597, 20
    %v4965 = vpop.permute.xlu0 %4964
    %5094 = vrot.lane.b32.xlu0 %v2918, 24
    %v5095 = vpop.permute.xlu0 %5094
    %5096 = vrot.lane.b32.xlu0 %v2919, 24
    %v5097 = vpop.permute.xlu0 %5096
    %5098 = vrot.lane.b32.xlu0 %v2920, 24
    %v5099 = vpop.permute.xlu0 %5098
    %5100 = vrot.lane.b32.xlu0 %v2921, 24
    %v5101 = vpop.permute.xlu0 %5100
    %5102 = vrot.lane.b32.xlu0 %v2922, 24
    %v5103 = vpop.permute.xlu0 %5102
    %5104 = vrot.lane.b32.xlu0 %v2923, 24
    %v5105 = vpop.permute.xlu0 %5104
    %5106 = vrot.lane.b32.xlu0 %v2924, 24
    %v5107 = vpop.permute.xlu0 %5106
    %5108 = vrot.lane.b32.xlu0 %v2925, 24
    %v5109 = vpop.permute.xlu0 %5108
    %5110 = vrot.lane.b32.xlu0 %v2926, 24
    %v5111 = vpop.permute.xlu0 %5110
    %5112 = vrot.lane.b32.xlu0 %v2927, 24
    %v5113 = vpop.permute.xlu0 %5112
    %5114 = vrot.lane.b32.xlu0 %v2928, 24
    %v5115 = vpop.permute.xlu0 %5114
    %5116 = vrot.lane.b32.xlu0 %v2929, 24
    %v5117 = vpop.permute.xlu0 %5116
    %5118 = vrot.lane.b32.xlu0 %v2930, 24
    %v5119 = vpop.permute.xlu0 %5118
    %5120 = vrot.lane.b32.xlu0 %v2931, 24
    %v5121 = vpop.permute.xlu0 %5120
    %5122 = vrot.lane.b32.xlu0 %v2932, 24
    %v5123 = vpop.permute.xlu0 %5122
    %5124 = vrot.lane.b32.xlu0 %v2933, 24
    %v5125 = vpop.permute.xlu0 %5124
    %5126 = vrot.lane.b32.xlu0 %v2934, 24
    %v5127 = vpop.permute.xlu0 %5126
    %5128 = vrot.lane.b32.xlu0 %v2935, 24
    %v5129 = vpop.permute.xlu0 %5128
    %5130 = vrot.lane.b32.xlu0 %v2936, 24
    %v5131 = vpop.permute.xlu0 %5130
    %5132 = vrot.lane.b32.xlu0 %v2937, 24
    %v5133 = vpop.permute.xlu0 %5132
    %5134 = vrot.lane.b32.xlu0 %v2938, 24
    %v5135 = vpop.permute.xlu0 %5134
    %5136 = vrot.lane.b32.xlu0 %v2939, 24
    %v5137 = vpop.permute.xlu0 %5136
    %5138 = vrot.lane.b32.xlu0 %v2940, 24
    %v5139 = vpop.permute.xlu0 %5138
    %5140 = vrot.lane.b32.xlu0 %v2941, 24
    %v5141 = vpop.permute.xlu0 %5140
    %5142 = vrot.lane.b32.xlu0 %v2942, 24
    %v5143 = vpop.permute.xlu0 %5142
    %5144 = vrot.lane.b32.xlu0 %v2943, 24
    %v5145 = vpop.permute.xlu0 %5144
    %5146 = vrot.lane.b32.xlu0 %v2944, 24
    %v5147 = vpop.permute.xlu0 %5146
    %5148 = vrot.lane.b32.xlu0 %v2945, 24
    %v5149 = vpop.permute.xlu0 %5148
    %5150 = vrot.lane.b32.xlu0 %v2946, 24
    %v5151 = vpop.permute.xlu0 %5150
    %5152 = vrot.lane.b32.xlu0 %v2947, 24
    %v5153 = vpop.permute.xlu0 %5152
    %5154 = vrot.lane.b32.xlu0 %v2948, 24
    %v5155 = vpop.permute.xlu0 %5154
    %5156 = vrot.lane.b32.xlu0 %v2949, 24
    %v5157 = vpop.permute.xlu0 %5156
    %5158 = vrot.lane.b32.xlu0 %v2950, 24
    %v5159 = vpop.permute.xlu0 %5158
    %5160 = vrot.lane.b32.xlu0 %v2951, 24
    %v5161 = vpop.permute.xlu0 %5160
    %5162 = vrot.lane.b32.xlu0 %v2952, 24
    %v5163 = vpop.permute.xlu0 %5162
    %5164 = vrot.lane.b32.xlu0 %v2953, 24
    %v5165 = vpop.permute.xlu0 %5164
    %5166 = vrot.lane.b32.xlu0 %v2954, 24
    %v5167 = vpop.permute.xlu0 %5166
    %5168 = vrot.lane.b32.xlu0 %v2955, 24
    %v5169 = vpop.permute.xlu0 %5168
    %5170 = vrot.lane.b32.xlu0 %v2956, 24
    %v5171 = vpop.permute.xlu0 %5170
    %5172 = vrot.lane.b32.xlu0 %v2957, 24
    %v5173 = vpop.permute.xlu0 %5172
    %5174 = vrot.lane.b32.xlu0 %v2958, 24
    %v5175 = vpop.permute.xlu0 %5174
    %5176 = vrot.lane.b32.xlu0 %v2959, 24
    %v5177 = vpop.permute.xlu0 %5176
    %5178 = vrot.lane.b32.xlu0 %v2960, 24
    %v5179 = vpop.permute.xlu0 %5178
    %5180 = vrot.lane.b32.xlu0 %v2961, 24
    %v5181 = vpop.permute.xlu0 %5180
    %5182 = vrot.lane.b32.xlu0 %v2962, 24
    %v5183 = vpop.permute.xlu0 %5182
    %5184 = vrot.lane.b32.xlu0 %v2963, 24
    %v5185 = vpop.permute.xlu0 %5184
    %5186 = vrot.lane.b32.xlu0 %v2964, 24
    %v5187 = vpop.permute.xlu0 %5186
    %5188 = vrot.lane.b32.xlu0 %v2965, 24
    %v5189 = vpop.permute.xlu0 %5188
    %5190 = vrot.lane.b32.xlu0 %v2966, 24
    %v5191 = vpop.permute.xlu0 %5190
    %5192 = vrot.lane.b32.xlu0 %v2967, 24
    %v5193 = vpop.permute.xlu0 %5192
    %5194 = vrot.lane.b32.xlu0 %v2968, 24
    %v5195 = vpop.permute.xlu0 %5194
    %5196 = vrot.lane.b32.xlu0 %v2969, 24
    %v5197 = vpop.permute.xlu0 %5196
    %5198 = vrot.lane.b32.xlu0 %v2970, 24
    %v5199 = vpop.permute.xlu0 %5198
    %5200 = vrot.lane.b32.xlu0 %v2971, 24
    %v5201 = vpop.permute.xlu0 %5200
    %5202 = vrot.lane.b32.xlu0 %v2972, 24
    %v5203 = vpop.permute.xlu0 %5202
    %5204 = vrot.lane.b32.xlu0 %v2973, 24
    %v5205 = vpop.permute.xlu0 %5204
    %5206 = vrot.lane.b32.xlu0 %v2974, 24
    %v5207 = vpop.permute.xlu0 %5206
    %5208 = vrot.lane.b32.xlu0 %v2975, 24
    %v5209 = vpop.permute.xlu0 %5208
    %5210 = vrot.lane.b32.xlu0 %v2976, 24
    %v5211 = vpop.permute.xlu0 %5210
    %5212 = vrot.lane.b32.xlu0 %v2977, 24
    %v5213 = vpop.permute.xlu0 %5212
    %5214 = vrot.lane.b32.xlu0 %v2978, 24
    %v5215 = vpop.permute.xlu0 %5214
    %5216 = vrot.lane.b32.xlu0 %v2979, 24
    %v5217 = vpop.permute.xlu0 %5216
    %5218 = vrot.lane.b32.xlu0 %v2980, 24
    %v5219 = vpop.permute.xlu0 %5218
    %5220 = vrot.lane.b32.xlu0 %v2981, 24
    %v5221 = vpop.permute.xlu0 %5220
    %5350 = vrot.lane.b32.xlu0 %v3302, 28
    %v5351 = vpop.permute.xlu0 %5350
    %5352 = vrot.lane.b32.xlu0 %v3303, 28
    %v5353 = vpop.permute.xlu0 %5352
    %5354 = vrot.lane.b32.xlu0 %v3304, 28
    %v5355 = vpop.permute.xlu0 %5354
    %5356 = vrot.lane.b32.xlu0 %v3305, 28
    %v5357 = vpop.permute.xlu0 %5356
    %5358 = vrot.lane.b32.xlu0 %v3306, 28
    %v5359 = vpop.permute.xlu0 %5358
    %5360 = vrot.lane.b32.xlu0 %v3307, 28
    %v5361 = vpop.permute.xlu0 %5360
    %5362 = vrot.lane.b32.xlu0 %v3308, 28
    %v5363 = vpop.permute.xlu0 %5362
    %5364 = vrot.lane.b32.xlu0 %v3309, 28
    %v5365 = vpop.permute.xlu0 %5364
    %5366 = vrot.lane.b32.xlu0 %v3310, 28
    %v5367 = vpop.permute.xlu0 %5366
    %5368 = vrot.lane.b32.xlu0 %v3311, 28
    %v5369 = vpop.permute.xlu0 %5368
    %5370 = vrot.lane.b32.xlu0 %v3312, 28
    %v5371 = vpop.permute.xlu0 %5370
    %5372 = vrot.lane.b32.xlu0 %v3313, 28
    %v5373 = vpop.permute.xlu0 %5372
    %5374 = vrot.lane.b32.xlu0 %v3314, 28
    %v5375 = vpop.permute.xlu0 %5374
    %5376 = vrot.lane.b32.xlu0 %v3315, 28
    %v5377 = vpop.permute.xlu0 %5376
    %5378 = vrot.lane.b32.xlu0 %v3316, 28
    %v5379 = vpop.permute.xlu0 %5378
    %5380 = vrot.lane.b32.xlu0 %v3317, 28
    %v5381 = vpop.permute.xlu0 %5380
    %5382 = vrot.lane.b32.xlu0 %v3318, 28
    %v5383 = vpop.permute.xlu0 %5382
    %5384 = vrot.lane.b32.xlu0 %v3319, 28
    %v5385 = vpop.permute.xlu0 %5384
    %5386 = vrot.lane.b32.xlu0 %v3320, 28
    %v5387 = vpop.permute.xlu0 %5386
    %5388 = vrot.lane.b32.xlu0 %v3321, 28
    %v5389 = vpop.permute.xlu0 %5388
    %5390 = vrot.lane.b32.xlu0 %v3322, 28
    %v5391 = vpop.permute.xlu0 %5390
    %5392 = vrot.lane.b32.xlu0 %v3323, 28
    %v5393 = vpop.permute.xlu0 %5392
    %5394 = vrot.lane.b32.xlu0 %v3324, 28
    %v5395 = vpop.permute.xlu0 %5394
    %5396 = vrot.lane.b32.xlu0 %v3325, 28
    %v5397 = vpop.permute.xlu0 %5396
    %5398 = vrot.lane.b32.xlu0 %v3326, 28
    %v5399 = vpop.permute.xlu0 %5398
    %5400 = vrot.lane.b32.xlu0 %v3327, 28
    %v5401 = vpop.permute.xlu0 %5400
    %5402 = vrot.lane.b32.xlu0 %v3328, 28
    %v5403 = vpop.permute.xlu0 %5402
    %5404 = vrot.lane.b32.xlu0 %v3329, 28
    %v5405 = vpop.permute.xlu0 %5404
    %5406 = vrot.lane.b32.xlu0 %v3330, 28
    %v5407 = vpop.permute.xlu0 %5406
    %5408 = vrot.lane.b32.xlu0 %v3331, 28
    %v5409 = vpop.permute.xlu0 %5408
    %5410 = vrot.lane.b32.xlu0 %v3332, 28
    %v5411 = vpop.permute.xlu0 %5410
    %5412 = vrot.lane.b32.xlu0 %v3333, 28
    %v5413 = vpop.permute.xlu0 %5412
    %5414 = vrot.lane.b32.xlu0 %v3334, 28
    %v5415 = vpop.permute.xlu0 %5414
    %5416 = vrot.lane.b32.xlu0 %v3335, 28
    %v5417 = vpop.permute.xlu0 %5416
    %5418 = vrot.lane.b32.xlu0 %v3336, 28
    %v5419 = vpop.permute.xlu0 %5418
    %5420 = vrot.lane.b32.xlu0 %v3337, 28
    %v5421 = vpop.permute.xlu0 %5420
    %5422 = vrot.lane.b32.xlu0 %v3338, 28
    %v5423 = vpop.permute.xlu0 %5422
    %5424 = vrot.lane.b32.xlu0 %v3339, 28
    %v5425 = vpop.permute.xlu0 %5424
    %5426 = vrot.lane.b32.xlu0 %v3340, 28
    %v5427 = vpop.permute.xlu0 %5426
    %5428 = vrot.lane.b32.xlu0 %v3341, 28
    %v5429 = vpop.permute.xlu0 %5428
    %5430 = vrot.lane.b32.xlu0 %v3342, 28
    %v5431 = vpop.permute.xlu0 %5430
    %5432 = vrot.lane.b32.xlu0 %v3343, 28
    %v5433 = vpop.permute.xlu0 %5432
    %5434 = vrot.lane.b32.xlu0 %v3344, 28
    %v5435 = vpop.permute.xlu0 %5434
    %5436 = vrot.lane.b32.xlu0 %v3345, 28
    %v5437 = vpop.permute.xlu0 %5436
    %5438 = vrot.lane.b32.xlu0 %v3346, 28
    %v5439 = vpop.permute.xlu0 %5438
    %5440 = vrot.lane.b32.xlu0 %v3347, 28
    %v5441 = vpop.permute.xlu0 %5440
    %5442 = vrot.lane.b32.xlu0 %v3348, 28
    %v5443 = vpop.permute.xlu0 %5442
    %5444 = vrot.lane.b32.xlu0 %v3349, 28
    %v5445 = vpop.permute.xlu0 %5444
    %5446 = vrot.lane.b32.xlu0 %v3350, 28
    %v5447 = vpop.permute.xlu0 %5446
    %5448 = vrot.lane.b32.xlu0 %v3351, 28
    %v5449 = vpop.permute.xlu0 %5448
    %5450 = vrot.lane.b32.xlu0 %v3352, 28
    %v5451 = vpop.permute.xlu0 %5450
    %5452 = vrot.lane.b32.xlu0 %v3353, 28
    %v5453 = vpop.permute.xlu0 %5452
    %5454 = vrot.lane.b32.xlu0 %v3354, 28
    %v5455 = vpop.permute.xlu0 %5454
    %5456 = vrot.lane.b32.xlu0 %v3355, 28
    %v5457 = vpop.permute.xlu0 %5456
    %5458 = vrot.lane.b32.xlu0 %v3356, 28
    %v5459 = vpop.permute.xlu0 %5458
    %5460 = vrot.lane.b32.xlu0 %v3357, 28
    %v5461 = vpop.permute.xlu0 %5460
    %5462 = vrot.lane.b32.xlu0 %v3358, 28
    %v5463 = vpop.permute.xlu0 %5462
    %5464 = vrot.lane.b32.xlu0 %v3359, 28
    %v5465 = vpop.permute.xlu0 %5464
    %5466 = vrot.lane.b32.xlu0 %v3360, 28
    %v5467 = vpop.permute.xlu0 %5466
    %5468 = vrot.lane.b32.xlu0 %v3361, 28
    %v5469 = vpop.permute.xlu0 %5468
    %5470 = vrot.lane.b32.xlu0 %v3362, 28
    %v5471 = vpop.permute.xlu0 %5470
    %5472 = vrot.lane.b32.xlu0 %v3363, 28
    %v5473 = vpop.permute.xlu0 %5472
    %5474 = vrot.lane.b32.xlu0 %v3364, 28
    %v5475 = vpop.permute.xlu0 %5474
    %5476 = vrot.lane.b32.xlu0 %v3365, 28
    %v5477 = vpop.permute.xlu0 %5476
    %5606 = vrot.lane.b32.xlu0 %v3686, 32
    %v5607 = vpop.permute.xlu0 %5606
    %5608 = vrot.lane.b32.xlu0 %v3687, 32
    %v5609 = vpop.permute.xlu0 %5608
    %5610 = vrot.lane.b32.xlu0 %v3688, 32
    %v5611 = vpop.permute.xlu0 %5610
    %5612 = vrot.lane.b32.xlu0 %v3689, 32
    %v5613 = vpop.permute.xlu0 %5612
    %5614 = vrot.lane.b32.xlu0 %v3690, 32
    %v5615 = vpop.permute.xlu0 %5614
    %5616 = vrot.lane.b32.xlu0 %v3691, 32
    %v5617 = vpop.permute.xlu0 %5616
    %5618 = vrot.lane.b32.xlu0 %v3692, 32
    %v5619 = vpop.permute.xlu0 %5618
    %5620 = vrot.lane.b32.xlu0 %v3693, 32
    %v5621 = vpop.permute.xlu0 %5620
    %5622 = vrot.lane.b32.xlu0 %v3694, 32
    %v5623 = vpop.permute.xlu0 %5622
    %5624 = vrot.lane.b32.xlu0 %v3695, 32
    %v5625 = vpop.permute.xlu0 %5624
    %5626 = vrot.lane.b32.xlu0 %v3696, 32
    %v5627 = vpop.permute.xlu0 %5626
    %5628 = vrot.lane.b32.xlu0 %v3697, 32
    %v5629 = vpop.permute.xlu0 %5628
    %5630 = vrot.lane.b32.xlu0 %v3698, 32
    %v5631 = vpop.permute.xlu0 %5630
    %5632 = vrot.lane.b32.xlu0 %v3699, 32
    %v5633 = vpop.permute.xlu0 %5632
    %5634 = vrot.lane.b32.xlu0 %v3700, 32
    %v5635 = vpop.permute.xlu0 %5634
    %5636 = vrot.lane.b32.xlu0 %v3701, 32
    %v5637 = vpop.permute.xlu0 %5636
    %5638 = vrot.lane.b32.xlu0 %v3702, 32
    %v5639 = vpop.permute.xlu0 %5638
    %5640 = vrot.lane.b32.xlu0 %v3703, 32
    %v5641 = vpop.permute.xlu0 %5640
    %5642 = vrot.lane.b32.xlu0 %v3704, 32
    %v5643 = vpop.permute.xlu0 %5642
    %5644 = vrot.lane.b32.xlu0 %v3705, 32
    %v5645 = vpop.permute.xlu0 %5644
    %5646 = vrot.lane.b32.xlu0 %v3706, 32
    %v5647 = vpop.permute.xlu0 %5646
    %5648 = vrot.lane.b32.xlu0 %v3707, 32
    %v5649 = vpop.permute.xlu0 %5648
    %5650 = vrot.lane.b32.xlu0 %v3708, 32
    %v5651 = vpop.permute.xlu0 %5650
    %5652 = vrot.lane.b32.xlu0 %v3709, 32
    %v5653 = vpop.permute.xlu0 %5652
    %5654 = vrot.lane.b32.xlu0 %v3710, 32
    %v5655 = vpop.permute.xlu0 %5654
    %5656 = vrot.lane.b32.xlu0 %v3711, 32
    %v5657 = vpop.permute.xlu0 %5656
    %5658 = vrot.lane.b32.xlu0 %v3712, 32
    %v5659 = vpop.permute.xlu0 %5658
    %5660 = vrot.lane.b32.xlu0 %v3713, 32
    %v5661 = vpop.permute.xlu0 %5660
    %5662 = vrot.lane.b32.xlu0 %v3714, 32
    %v5663 = vpop.permute.xlu0 %5662
    %5664 = vrot.lane.b32.xlu0 %v3715, 32
    %v5665 = vpop.permute.xlu0 %5664
    %5666 = vrot.lane.b32.xlu0 %v3716, 32
    %v5667 = vpop.permute.xlu0 %5666
    %5668 = vrot.lane.b32.xlu0 %v3717, 32
    %v5669 = vpop.permute.xlu0 %5668
    %5670 = vrot.lane.b32.xlu0 %v3718, 32
    %v5671 = vpop.permute.xlu0 %5670
    %5672 = vrot.lane.b32.xlu0 %v3719, 32
    %v5673 = vpop.permute.xlu0 %5672
    %5674 = vrot.lane.b32.xlu0 %v3720, 32
    %v5675 = vpop.permute.xlu0 %5674
    %5676 = vrot.lane.b32.xlu0 %v3721, 32
    %v5677 = vpop.permute.xlu0 %5676
    %5678 = vrot.lane.b32.xlu0 %v3722, 32
    %v5679 = vpop.permute.xlu0 %5678
    %5680 = vrot.lane.b32.xlu0 %v3723, 32
    %v5681 = vpop.permute.xlu0 %5680
    %5682 = vrot.lane.b32.xlu0 %v3724, 32
    %v5683 = vpop.permute.xlu0 %5682
    %5684 = vrot.lane.b32.xlu0 %v3725, 32
    %v5685 = vpop.permute.xlu0 %5684
    %5686 = vrot.lane.b32.xlu0 %v3726, 32
    %v5687 = vpop.permute.xlu0 %5686
    %5688 = vrot.lane.b32.xlu0 %v3727, 32
    %v5689 = vpop.permute.xlu0 %5688
    %5690 = vrot.lane.b32.xlu0 %v3728, 32
    %v5691 = vpop.permute.xlu0 %5690
    %5692 = vrot.lane.b32.xlu0 %v3729, 32
    %v5693 = vpop.permute.xlu0 %5692
    %5694 = vrot.lane.b32.xlu0 %v3730, 32
    %v5695 = vpop.permute.xlu0 %5694
    %5696 = vrot.lane.b32.xlu0 %v3731, 32
    %v5697 = vpop.permute.xlu0 %5696
    %5698 = vrot.lane.b32.xlu0 %v3732, 32
    %v5699 = vpop.permute.xlu0 %5698
    %5700 = vrot.lane.b32.xlu0 %v3733, 32
    %v5701 = vpop.permute.xlu0 %5700
    %5702 = vrot.lane.b32.xlu0 %v3734, 32
    %v5703 = vpop.permute.xlu0 %5702
    %5704 = vrot.lane.b32.xlu0 %v3735, 32
    %v5705 = vpop.permute.xlu0 %5704
    %5706 = vrot.lane.b32.xlu0 %v3736, 32
    %v5707 = vpop.permute.xlu0 %5706
    %5708 = vrot.lane.b32.xlu0 %v3737, 32
    %v5709 = vpop.permute.xlu0 %5708
    %5710 = vrot.lane.b32.xlu0 %v3738, 32
    %v5711 = vpop.permute.xlu0 %5710
    %5712 = vrot.lane.b32.xlu0 %v3739, 32
    %v5713 = vpop.permute.xlu0 %5712
    %5714 = vrot.lane.b32.xlu0 %v3740, 32
    %v5715 = vpop.permute.xlu0 %5714
    %5716 = vrot.lane.b32.xlu0 %v3741, 32
    %v5717 = vpop.permute.xlu0 %5716
    %5718 = vrot.lane.b32.xlu0 %v3742, 32
    %v5719 = vpop.permute.xlu0 %5718
    %5720 = vrot.lane.b32.xlu0 %v3743, 32
    %v5721 = vpop.permute.xlu0 %5720
    %5722 = vrot.lane.b32.xlu0 %v3744, 32
    %v5723 = vpop.permute.xlu0 %5722
    %5724 = vrot.lane.b32.xlu0 %v3745, 32
    %v5725 = vpop.permute.xlu0 %5724
    %5726 = vrot.lane.b32.xlu0 %v3746, 32
    %v5727 = vpop.permute.xlu0 %5726
    %5728 = vrot.lane.b32.xlu0 %v3747, 32
    %v5729 = vpop.permute.xlu0 %5728
    %5730 = vrot.lane.b32.xlu0 %v3748, 32
    %v5731 = vpop.permute.xlu0 %5730
    %5732 = vrot.lane.b32.xlu0 %v3749, 32
    %v5733 = vpop.permute.xlu0 %5732
    %v5798 = vsel %vm30, %v614, %v3815
    %v5799 = vsel %vm30, %v615, %v3817
    %v5800 = vsel %vm30, %v616, %v3819
    %v5801 = vsel %vm30, %v617, %v3821
    %v5802 = vsel %vm30, %v618, %v3823
    %v5803 = vsel %vm30, %v619, %v3825
    %v5804 = vsel %vm30, %v620, %v3827
    %v5805 = vsel %vm30, %v621, %v3829
    %v5806 = vsel %vm30, %v622, %v3831
    %v5807 = vsel %vm30, %v623, %v3833
    %v5808 = vsel %vm30, %v624, %v3835
    %v5809 = vsel %vm30, %v625, %v3837
    %v5810 = vsel %vm30, %v626, %v3839
    %v5811 = vsel %vm30, %v627, %v3841
    %v5812 = vsel %vm30, %v628, %v3843
    %v5813 = vsel %vm30, %v629, %v3845
    %v5814 = vsel %vm30, %v630, %v3847
    %v5815 = vsel %vm30, %v631, %v3849
    %v5816 = vsel %vm30, %v632, %v3851
    %v5817 = vsel %vm30, %v633, %v3853
    %v5818 = vsel %vm30, %v634, %v3855
    %v5819 = vsel %vm30, %v635, %v3857
    %v5820 = vsel %vm30, %v636, %v3859
    %v5821 = vsel %vm30, %v637, %v3861
    %v5822 = vsel %vm30, %v638, %v3863
    %v5823 = vsel %vm30, %v639, %v3865
    %v5824 = vsel %vm30, %v640, %v3867
    %v5825 = vsel %vm30, %v641, %v3869
    %v5826 = vsel %vm30, %v642, %v3871
    %v5827 = vsel %vm30, %v643, %v3873
    %v5828 = vsel %vm30, %v644, %v3875
    %v5829 = vsel %vm30, %v645, %v3877
    %v5830 = vsel %vm30, %v646, %v3879
    %v5831 = vsel %vm30, %v647, %v3881
    %v5832 = vsel %vm30, %v648, %v3883
    %v5833 = vsel %vm30, %v649, %v3885
    %v5834 = vsel %vm30, %v650, %v3887
    %v5835 = vsel %vm30, %v651, %v3889
    %v5836 = vsel %vm30, %v652, %v3891
    %v5837 = vsel %vm30, %v653, %v3893
    %v5838 = vsel %vm30, %v654, %v3895
    %v5839 = vsel %vm30, %v655, %v3897
    %v5840 = vsel %vm30, %v656, %v3899
    %v5841 = vsel %vm30, %v657, %v3901
    %v5842 = vsel %vm30, %v658, %v3903
    %v5843 = vsel %vm30, %v659, %v3905
    %v5844 = vsel %vm30, %v660, %v3907
    %v5845 = vsel %vm30, %v661, %v3909
    %v5846 = vsel %vm30, %v662, %v3911
    %v5847 = vsel %vm30, %v663, %v3913
    %v5848 = vsel %vm30, %v664, %v3915
    %v5849 = vsel %vm30, %v665, %v3917
    %v5850 = vsel %vm30, %v666, %v3919
    %v5851 = vsel %vm30, %v667, %v3921
    %v5852 = vsel %vm30, %v668, %v3923
    %v5853 = vsel %vm30, %v669, %v3925
    %v5854 = vsel %vm30, %v670, %v3927
    %v5855 = vsel %vm30, %v671, %v3929
    %v5856 = vsel %vm30, %v672, %v3931
    %v5857 = vsel %vm30, %v673, %v3933
    %v5858 = vsel %vm30, %v674, %v3935
    %v5859 = vsel %vm30, %v675, %v3937
    %v5860 = vsel %vm30, %v676, %v3939
    %v5861 = vsel %vm30, %v677, %v3941
    %vm5862 = vcmask 64512
    %v5863 = vsel %vm5862, %v5798, %v4071
    %v5864 = vsel %vm5862, %v5799, %v4073
    %v5865 = vsel %vm5862, %v5800, %v4075
    %v5866 = vsel %vm5862, %v5801, %v4077
    %v5867 = vsel %vm5862, %v5802, %v4079
    %v5868 = vsel %vm5862, %v5803, %v4081
    %v5869 = vsel %vm5862, %v5804, %v4083
    %v5870 = vsel %vm5862, %v5805, %v4085
    %v5871 = vsel %vm5862, %v5806, %v4087
    %v5872 = vsel %vm5862, %v5807, %v4089
    %v5873 = vsel %vm5862, %v5808, %v4091
    %v5874 = vsel %vm5862, %v5809, %v4093
    %v5875 = vsel %vm5862, %v5810, %v4095
    %v5876 = vsel %vm5862, %v5811, %v4097
    %v5877 = vsel %vm5862, %v5812, %v4099
    %v5878 = vsel %vm5862, %v5813, %v4101
    %v5879 = vsel %vm5862, %v5814, %v4103
    %v5880 = vsel %vm5862, %v5815, %v4105
    %v5881 = vsel %vm5862, %v5816, %v4107
    %v5882 = vsel %vm5862, %v5817, %v4109
    %v5883 = vsel %vm5862, %v5818, %v4111
    %v5884 = vsel %vm5862, %v5819, %v4113
    %v5885 = vsel %vm5862, %v5820, %v4115
    %v5886 = vsel %vm5862, %v5821, %v4117
    %v5887 = vsel %vm5862, %v5822, %v4119
    %v5888 = vsel %vm5862, %v5823, %v4121
    %v5889 = vsel %vm5862, %v5824, %v4123
    %v5890 = vsel %vm5862, %v5825, %v4125
    %v5891 = vsel %vm5862, %v5826, %v4127
    %v5892 = vsel %vm5862, %v5827, %v4129
    %v5893 = vsel %vm5862, %v5828, %v4131
    %v5894 = vsel %vm5862, %v5829, %v4133
    %v5895 = vsel %vm5862, %v5830, %v4135
    %v5896 = vsel %vm5862, %v5831, %v4137
    %v5897 = vsel %vm5862, %v5832, %v4139
    %v5898 = vsel %vm5862, %v5833, %v4141
    %v5899 = vsel %vm5862, %v5834, %v4143
    %v5900 = vsel %vm5862, %v5835, %v4145
    %v5901 = vsel %vm5862, %v5836, %v4147
    %v5902 = vsel %vm5862, %v5837, %v4149
    %v5903 = vsel %vm5862, %v5838, %v4151
    %v5904 = vsel %vm5862, %v5839, %v4153
    %v5905 = vsel %vm5862, %v5840, %v4155
    %v5906 = vsel %vm5862, %v5841, %v4157
    %v5907 = vsel %vm5862, %v5842, %v4159
    %v5908 = vsel %vm5862, %v5843, %v4161
    %v5909 = vsel %vm5862, %v5844, %v4163
    %v5910 = vsel %vm5862, %v5845, %v4165
    %v5911 = vsel %vm5862, %v5846, %v4167
    %v5912 = vsel %vm5862, %v5847, %v4169
    %v5913 = vsel %vm5862, %v5848, %v4171
    %v5914 = vsel %vm5862, %v5849, %v4173
    %v5915 = vsel %vm5862, %v5850, %v4175
    %v5916 = vsel %vm5862, %v5851, %v4177
    %v5917 = vsel %vm5862, %v5852, %v4179
    %v5918 = vsel %vm5862, %v5853, %v4181
    %v5919 = vsel %vm5862, %v5854, %v4183
    %v5920 = vsel %vm5862, %v5855, %v4185
    %v5921 = vsel %vm5862, %v5856, %v4187
    %v5922 = vsel %vm5862, %v5857, %v4189
    %v5923 = vsel %vm5862, %v5858, %v4191
    %v5924 = vsel %vm5862, %v5859, %v4193
    %v5925 = vsel %vm5862, %v5860, %v4195
    %v5926 = vsel %vm5862, %v5861, %v4197
    %vm5927 = vcmask 97280
    %v5928 = vsel %vm5927, %v5863, %v4327
    %v5929 = vsel %vm5927, %v5864, %v4329
    %v5930 = vsel %vm5927, %v5865, %v4331
    %v5931 = vsel %vm5927, %v5866, %v4333
    %v5932 = vsel %vm5927, %v5867, %v4335
    %v5933 = vsel %vm5927, %v5868, %v4337
    %v5934 = vsel %vm5927, %v5869, %v4339
    %v5935 = vsel %vm5927, %v5870, %v4341
    %v5936 = vsel %vm5927, %v5871, %v4343
    %v5937 = vsel %vm5927, %v5872, %v4345
    %v5938 = vsel %vm5927, %v5873, %v4347
    %v5939 = vsel %vm5927, %v5874, %v4349
    %v5940 = vsel %vm5927, %v5875, %v4351
    %v5941 = vsel %vm5927, %v5876, %v4353
    %v5942 = vsel %vm5927, %v5877, %v4355
    %v5943 = vsel %vm5927, %v5878, %v4357
    %v5944 = vsel %vm5927, %v5879, %v4359
    %v5945 = vsel %vm5927, %v5880, %v4361
    %v5946 = vsel %vm5927, %v5881, %v4363
    %v5947 = vsel %vm5927, %v5882, %v4365
    %v5948 = vsel %vm5927, %v5883, %v4367
    %v5949 = vsel %vm5927, %v5884, %v4369
    %v5950 = vsel %vm5927, %v5885, %v4371
    %v5951 = vsel %vm5927, %v5886, %v4373
    %v5952 = vsel %vm5927, %v5887, %v4375
    %v5953 = vsel %vm5927, %v5888, %v4377
    %v5954 = vsel %vm5927, %v5889, %v4379
    %v5955 = vsel %vm5927, %v5890, %v4381
    %v5956 = vsel %vm5927, %v5891, %v4383
    %v5957 = vsel %vm5927, %v5892, %v4385
    %v5958 = vsel %vm5927, %v5893, %v4387
    %v5959 = vsel %vm5927, %v5894, %v4389
    %v5960 = vsel %vm5927, %v5895, %v4391
    %v5961 = vsel %vm5927, %v5896, %v4393
    %v5962 = vsel %vm5927, %v5897, %v4395
    %v5963 = vsel %vm5927, %v5898, %v4397
    %v5964 = vsel %vm5927, %v5899, %v4399
    %v5965 = vsel %vm5927, %v5900, %v4401
    %v5966 = vsel %vm5927, %v5901, %v4403
    %v5967 = vsel %vm5927, %v5902, %v4405
    %v5968 = vsel %vm5927, %v5903, %v4407
    %v5969 = vsel %vm5927, %v5904, %v4409
    %v5970 = vsel %vm5927, %v5905, %v4411
    %v5971 = vsel %vm5927, %v5906, %v4413
    %v5972 = vsel %vm5927, %v5907, %v4415
    %v5973 = vsel %vm5927, %v5908, %v4417
    %v5974 = vsel %vm5927, %v5909, %v4419
    %v5975 = vsel %vm5927, %v5910, %v4421
    %v5976 = vsel %vm5927, %v5911, %v4423
    %v5977 = vsel %vm5927, %v5912, %v4425
    %v5978 = vsel %vm5927, %v5913, %v4427
    %v5979 = vsel %vm5927, %v5914, %v4429
    %v5980 = vsel %vm5927, %v5915, %v4431
    %v5981 = vsel %vm5927, %v5916, %v4433
    %v5982 = vsel %vm5927, %v5917, %v4435
    %v5983 = vsel %vm5927, %v5918, %v4437
    %v5984 = vsel %vm5927, %v5919, %v4439
    %v5985 = vsel %vm5927, %v5920, %v4441
    %v5986 = vsel %vm5927, %v5921, %v4443
    %v5987 = vsel %vm5927, %v5922, %v4445
    %v5988 = vsel %vm5927, %v5923, %v4447
    %v5989 = vsel %vm5927, %v5924, %v4449
    %v5990 = vsel %vm5927, %v5925, %v4451
    %v5991 = vsel %vm5927, %v5926, %v4453
    %vm5992 = vcmask 130048
    %v5993 = vsel %vm5992, %v5928, %v4583
    %v5994 = vsel %vm5992, %v5929, %v4585
    %v5995 = vsel %vm5992, %v5930, %v4587
    %v5996 = vsel %vm5992, %v5931, %v4589
    %v5997 = vsel %vm5992, %v5932, %v4591
    %v5998 = vsel %vm5992, %v5933, %v4593
    %v5999 = vsel %vm5992, %v5934, %v4595
    %v6000 = vsel %vm5992, %v5935, %v4597
    %v6001 = vsel %vm5992, %v5936, %v4599
    %v6002 = vsel %vm5992, %v5937, %v4601
    %v6003 = vsel %vm5992, %v5938, %v4603
    %v6004 = vsel %vm5992, %v5939, %v4605
    %v6005 = vsel %vm5992, %v5940, %v4607
    %v6006 = vsel %vm5992, %v5941, %v4609
    %v6007 = vsel %vm5992, %v5942, %v4611
    %v6008 = vsel %vm5992, %v5943, %v4613
    %v6009 = vsel %vm5992, %v5944, %v4615
    %v6010 = vsel %vm5992, %v5945, %v4617
    %v6011 = vsel %vm5992, %v5946, %v4619
    %v6012 = vsel %vm5992, %v5947, %v4621
    %v6013 = vsel %vm5992, %v5948, %v4623
    %v6014 = vsel %vm5992, %v5949, %v4625
    %v6015 = vsel %vm5992, %v5950, %v4627
    %v6016 = vsel %vm5992, %v5951, %v4629
    %v6017 = vsel %vm5992, %v5952, %v4631
    %v6018 = vsel %vm5992, %v5953, %v4633
    %v6019 = vsel %vm5992, %v5954, %v4635
    %v6020 = vsel %vm5992, %v5955, %v4637
    %v6021 = vsel %vm5992, %v5956, %v4639
    %v6022 = vsel %vm5992, %v5957, %v4641
    %v6023 = vsel %vm5992, %v5958, %v4643
    %v6024 = vsel %vm5992, %v5959, %v4645
    %v6025 = vsel %vm5992, %v5960, %v4647
    %v6026 = vsel %vm5992, %v5961, %v4649
    %v6027 = vsel %vm5992, %v5962, %v4651
    %v6028 = vsel %vm5992, %v5963, %v4653
    %v6029 = vsel %vm5992, %v5964, %v4655
    %v6030 = vsel %vm5992, %v5965, %v4657
    %v6031 = vsel %vm5992, %v5966, %v4659
    %v6032 = vsel %vm5992, %v5967, %v4661
    %v6033 = vsel %vm5992, %v5968, %v4663
    %v6034 = vsel %vm5992, %v5969, %v4665
    %v6035 = vsel %vm5992, %v5970, %v4667
    %v6036 = vsel %vm5992, %v5971, %v4669
    %v6037 = vsel %vm5992, %v5972, %v4671
    %v6038 = vsel %vm5992, %v5973, %v4673
    %v6039 = vsel %vm5992, %v5974, %v4675
    %v6040 = vsel %vm5992, %v5975, %v4677
    %v6041 = vsel %vm5992, %v5976, %v4679
    %v6042 = vsel %vm5992, %v5977, %v4681
    %v6043 = vsel %vm5992, %v5978, %v4683
    %v6044 = vsel %vm5992, %v5979, %v4685
    %v6045 = vsel %vm5992, %v5980, %v4687
    %v6046 = vsel %vm5992, %v5981, %v4689
    %v6047 = vsel %vm5992, %v5982, %v4691
    %v6048 = vsel %vm5992, %v5983, %v4693
    %v6049 = vsel %vm5992, %v5984, %v4695
    %v6050 = vsel %vm5992, %v5985, %v4697
    %v6051 = vsel %vm5992, %v5986, %v4699
    %v6052 = vsel %vm5992, %v5987, %v4701
    %v6053 = vsel %vm5992, %v5988, %v4703
    %v6054 = vsel %vm5992, %v5989, %v4705
    %v6055 = vsel %vm5992, %v5990, %v4707
    %v6056 = vsel %vm5992, %v5991, %v4709
    %vm6057 = vcmask 162816
    %v6058 = vsel %vm6057, %v5993, %v4839
    %v6059 = vsel %vm6057, %v5994, %v4841
    %v6060 = vsel %vm6057, %v5995, %v4843
    %v6061 = vsel %vm6057, %v5996, %v4845
    %v6062 = vsel %vm6057, %v5997, %v4847
    %v6063 = vsel %vm6057, %v5998, %v4849
    %v6064 = vsel %vm6057, %v5999, %v4851
    %v6065 = vsel %vm6057, %v6000, %v4853
    %v6066 = vsel %vm6057, %v6001, %v4855
    %v6067 = vsel %vm6057, %v6002, %v4857
    %v6068 = vsel %vm6057, %v6003, %v4859
    %v6069 = vsel %vm6057, %v6004, %v4861
    %v6070 = vsel %vm6057, %v6005, %v4863
    %v6071 = vsel %vm6057, %v6006, %v4865
    %v6072 = vsel %vm6057, %v6007, %v4867
    %v6073 = vsel %vm6057, %v6008, %v4869
    %v6074 = vsel %vm6057, %v6009, %v4871
    %v6075 = vsel %vm6057, %v6010, %v4873
    %v6076 = vsel %vm6057, %v6011, %v4875
    %v6077 = vsel %vm6057, %v6012, %v4877
    %v6078 = vsel %vm6057, %v6013, %v4879
    %v6079 = vsel %vm6057, %v6014, %v4881
    %v6080 = vsel %vm6057, %v6015, %v4883
    %v6081 = vsel %vm6057, %v6016, %v4885
    %v6082 = vsel %vm6057, %v6017, %v4887
    %v6083 = vsel %vm6057, %v6018, %v4889
    %v6084 = vsel %vm6057, %v6019, %v4891
    %v6085 = vsel %vm6057, %v6020, %v4893
    %v6086 = vsel %vm6057, %v6021, %v4895
    %v6087 = vsel %vm6057, %v6022, %v4897
    %v6088 = vsel %vm6057, %v6023, %v4899
    %v6089 = vsel %vm6057, %v6024, %v4901
    %v6090 = vsel %vm6057, %v6025, %v4903
    %v6091 = vsel %vm6057, %v6026, %v4905
    %v6092 = vsel %vm6057, %v6027, %v4907
    %v6093 = vsel %vm6057, %v6028, %v4909
    %v6094 = vsel %vm6057, %v6029, %v4911
    %v6095 = vsel %vm6057, %v6030, %v4913
    %v6096 = vsel %vm6057, %v6031, %v4915
    %v6097 = vsel %vm6057, %v6032, %v4917
    %v6098 = vsel %vm6057, %v6033, %v4919
    %v6099 = vsel %vm6057, %v6034, %v4921
    %v6100 = vsel %vm6057, %v6035, %v4923
    %v6101 = vsel %vm6057, %v6036, %v4925
    %v6102 = vsel %vm6057, %v6037, %v4927
    %v6103 = vsel %vm6057, %v6038, %v4929
    %v6104 = vsel %vm6057, %v6039, %v4931
    %v6105 = vsel %vm6057, %v6040, %v4933
    %v6106 = vsel %vm6057, %v6041, %v4935
    %v6107 = vsel %vm6057, %v6042, %v4937
    %v6108 = vsel %vm6057, %v6043, %v4939
    %v6109 = vsel %vm6057, %v6044, %v4941
    %v6110 = vsel %vm6057, %v6045, %v4943
    %v6111 = vsel %vm6057, %v6046, %v4945
    %v6112 = vsel %vm6057, %v6047, %v4947
    %v6113 = vsel %vm6057, %v6048, %v4949
    %v6114 = vsel %vm6057, %v6049, %v4951
    %v6115 = vsel %vm6057, %v6050, %v4953
    %v6116 = vsel %vm6057, %v6051, %v4955
    %v6117 = vsel %vm6057, %v6052, %v4957
    %v6118 = vsel %vm6057, %v6053, %v4959
    %v6119 = vsel %vm6057, %v6054, %v4961
    %v6120 = vsel %vm6057, %v6055, %v4963
    %v6121 = vsel %vm6057, %v6056, %v4965
    %vm6122 = vcmask 195584
    %v6123 = vsel %vm6122, %v6058, %v5095
    %v6124 = vsel %vm6122, %v6059, %v5097
    %v6125 = vsel %vm6122, %v6060, %v5099
    %v6126 = vsel %vm6122, %v6061, %v5101
    %v6127 = vsel %vm6122, %v6062, %v5103
    %v6128 = vsel %vm6122, %v6063, %v5105
    %v6129 = vsel %vm6122, %v6064, %v5107
    %v6130 = vsel %vm6122, %v6065, %v5109
    %v6131 = vsel %vm6122, %v6066, %v5111
    %v6132 = vsel %vm6122, %v6067, %v5113
    %v6133 = vsel %vm6122, %v6068, %v5115
    %v6134 = vsel %vm6122, %v6069, %v5117
    %v6135 = vsel %vm6122, %v6070, %v5119
    %v6136 = vsel %vm6122, %v6071, %v5121
    %v6137 = vsel %vm6122, %v6072, %v5123
    %v6138 = vsel %vm6122, %v6073, %v5125
    %v6139 = vsel %vm6122, %v6074, %v5127
    %v6140 = vsel %vm6122, %v6075, %v5129
    %v6141 = vsel %vm6122, %v6076, %v5131
    %v6142 = vsel %vm6122, %v6077, %v5133
    %v6143 = vsel %vm6122, %v6078, %v5135
    %v6144 = vsel %vm6122, %v6079, %v5137
    %v6145 = vsel %vm6122, %v6080, %v5139
    %v6146 = vsel %vm6122, %v6081, %v5141
    %v6147 = vsel %vm6122, %v6082, %v5143
    %v6148 = vsel %vm6122, %v6083, %v5145
    %v6149 = vsel %vm6122, %v6084, %v5147
    %v6150 = vsel %vm6122, %v6085, %v5149
    %v6151 = vsel %vm6122, %v6086, %v5151
    %v6152 = vsel %vm6122, %v6087, %v5153
    %v6153 = vsel %vm6122, %v6088, %v5155
    %v6154 = vsel %vm6122, %v6089, %v5157
    %v6155 = vsel %vm6122, %v6090, %v5159
    %v6156 = vsel %vm6122, %v6091, %v5161
    %v6157 = vsel %vm6122, %v6092, %v5163
    %v6158 = vsel %vm6122, %v6093, %v5165
    %v6159 = vsel %vm6122, %v6094, %v5167
    %v6160 = vsel %vm6122, %v6095, %v5169
    %v6161 = vsel %vm6122, %v6096, %v5171
    %v6162 = vsel %vm6122, %v6097, %v5173
    %v6163 = vsel %vm6122, %v6098, %v5175
    %v6164 = vsel %vm6122, %v6099, %v5177
    %v6165 = vsel %vm6122, %v6100, %v5179
    %v6166 = vsel %vm6122, %v6101, %v5181
    %v6167 = vsel %vm6122, %v6102, %v5183
    %v6168 = vsel %vm6122, %v6103, %v5185
    %v6169 = vsel %vm6122, %v6104, %v5187
    %v6170 = vsel %vm6122, %v6105, %v5189
    %v6171 = vsel %vm6122, %v6106, %v5191
    %v6172 = vsel %vm6122, %v6107, %v5193
    %v6173 = vsel %vm6122, %v6108, %v5195
    %v6174 = vsel %vm6122, %v6109, %v5197
    %v6175 = vsel %vm6122, %v6110, %v5199
    %v6176 = vsel %vm6122, %v6111, %v5201
    %v6177 = vsel %vm6122, %v6112, %v5203
    %v6178 = vsel %vm6122, %v6113, %v5205
    %v6179 = vsel %vm6122, %v6114, %v5207
    %v6180 = vsel %vm6122, %v6115, %v5209
    %v6181 = vsel %vm6122, %v6116, %v5211
    %v6182 = vsel %vm6122, %v6117, %v5213
    %v6183 = vsel %vm6122, %v6118, %v5215
    %v6184 = vsel %vm6122, %v6119, %v5217
    %v6185 = vsel %vm6122, %v6120, %v5219
    %v6186 = vsel %vm6122, %v6121, %v5221
    %vm6187 = vcmask 228352
    %v6188 = vsel %vm6187, %v6123, %v5351
    %v6189 = vsel %vm6187, %v6124, %v5353
    %v6190 = vsel %vm6187, %v6125, %v5355
    %v6191 = vsel %vm6187, %v6126, %v5357
    %v6192 = vsel %vm6187, %v6127, %v5359
    %v6193 = vsel %vm6187, %v6128, %v5361
    %v6194 = vsel %vm6187, %v6129, %v5363
    %v6195 = vsel %vm6187, %v6130, %v5365
    %v6196 = vsel %vm6187, %v6131, %v5367
    %v6197 = vsel %vm6187, %v6132, %v5369
    %v6198 = vsel %vm6187, %v6133, %v5371
    %v6199 = vsel %vm6187, %v6134, %v5373
    %v6200 = vsel %vm6187, %v6135, %v5375
    %v6201 = vsel %vm6187, %v6136, %v5377
    %v6202 = vsel %vm6187, %v6137, %v5379
    %v6203 = vsel %vm6187, %v6138, %v5381
    %v6204 = vsel %vm6187, %v6139, %v5383
    %v6205 = vsel %vm6187, %v6140, %v5385
    %v6206 = vsel %vm6187, %v6141, %v5387
    %v6207 = vsel %vm6187, %v6142, %v5389
    %v6208 = vsel %vm6187, %v6143, %v5391
    %v6209 = vsel %vm6187, %v6144, %v5393
    %v6210 = vsel %vm6187, %v6145, %v5395
    %v6211 = vsel %vm6187, %v6146, %v5397
    %v6212 = vsel %vm6187, %v6147, %v5399
    %v6213 = vsel %vm6187, %v6148, %v5401
    %v6214 = vsel %vm6187, %v6149, %v5403
    %v6215 = vsel %vm6187, %v6150, %v5405
    %v6216 = vsel %vm6187, %v6151, %v5407
    %v6217 = vsel %vm6187, %v6152, %v5409
    %v6218 = vsel %vm6187, %v6153, %v5411
    %v6219 = vsel %vm6187, %v6154, %v5413
    %v6220 = vsel %vm6187, %v6155, %v5415
    %v6221 = vsel %vm6187, %v6156, %v5417
    %v6222 = vsel %vm6187, %v6157, %v5419
    %v6223 = vsel %vm6187, %v6158, %v5421
    %v6224 = vsel %vm6187, %v6159, %v5423
    %v6225 = vsel %vm6187, %v6160, %v5425
    %v6226 = vsel %vm6187, %v6161, %v5427
    %v6227 = vsel %vm6187, %v6162, %v5429
    %v6228 = vsel %vm6187, %v6163, %v5431
    %v6229 = vsel %vm6187, %v6164, %v5433
    %v6230 = vsel %vm6187, %v6165, %v5435
    %v6231 = vsel %vm6187, %v6166, %v5437
    %v6232 = vsel %vm6187, %v6167, %v5439
    %v6233 = vsel %vm6187, %v6168, %v5441
    %v6234 = vsel %vm6187, %v6169, %v5443
    %v6235 = vsel %vm6187, %v6170, %v5445
    %v6236 = vsel %vm6187, %v6171, %v5447
    %v6237 = vsel %vm6187, %v6172, %v5449
    %v6238 = vsel %vm6187, %v6173, %v5451
    %v6239 = vsel %vm6187, %v6174, %v5453
    %v6240 = vsel %vm6187, %v6175, %v5455
    %v6241 = vsel %vm6187, %v6176, %v5457
    %v6242 = vsel %vm6187, %v6177, %v5459
    %v6243 = vsel %vm6187, %v6178, %v5461
    %v6244 = vsel %vm6187, %v6179, %v5463
    %v6245 = vsel %vm6187, %v6180, %v5465
    %v6246 = vsel %vm6187, %v6181, %v5467
    %v6247 = vsel %vm6187, %v6182, %v5469
    %v6248 = vsel %vm6187, %v6183, %v5471
    %v6249 = vsel %vm6187, %v6184, %v5473
    %v6250 = vsel %vm6187, %v6185, %v5475
    %v6251 = vsel %vm6187, %v6186, %v5477
    %vm6252 = vcmask 261120
    %v6253 = vsel %vm6252, %v6188, %v5607
    %v6254 = vsel %vm6252, %v6189, %v5609
    %v6255 = vsel %vm6252, %v6190, %v5611
    %v6256 = vsel %vm6252, %v6191, %v5613
    %v6257 = vsel %vm6252, %v6192, %v5615
    %v6258 = vsel %vm6252, %v6193, %v5617
    %v6259 = vsel %vm6252, %v6194, %v5619
    %v6260 = vsel %vm6252, %v6195, %v5621
    %v6261 = vsel %vm6252, %v6196, %v5623
    %v6262 = vsel %vm6252, %v6197, %v5625
    %v6263 = vsel %vm6252, %v6198, %v5627
    %v6264 = vsel %vm6252, %v6199, %v5629
    %v6265 = vsel %vm6252, %v6200, %v5631
    %v6266 = vsel %vm6252, %v6201, %v5633
    %v6267 = vsel %vm6252, %v6202, %v5635
    %v6268 = vsel %vm6252, %v6203, %v5637
    %v6269 = vsel %vm6252, %v6204, %v5639
    %v6270 = vsel %vm6252, %v6205, %v5641
    %v6271 = vsel %vm6252, %v6206, %v5643
    %v6272 = vsel %vm6252, %v6207, %v5645
    %v6273 = vsel %vm6252, %v6208, %v5647
    %v6274 = vsel %vm6252, %v6209, %v5649
    %v6275 = vsel %vm6252, %v6210, %v5651
    %v6276 = vsel %vm6252, %v6211, %v5653
    %v6277 = vsel %vm6252, %v6212, %v5655
    %v6278 = vsel %vm6252, %v6213, %v5657
    %v6279 = vsel %vm6252, %v6214, %v5659
    %v6280 = vsel %vm6252, %v6215, %v5661
    %v6281 = vsel %vm6252, %v6216, %v5663
    %v6282 = vsel %vm6252, %v6217, %v5665
    %v6283 = vsel %vm6252, %v6218, %v5667
    %v6284 = vsel %vm6252, %v6219, %v5669
    %v6285 = vsel %vm6252, %v6220, %v5671
    %v6286 = vsel %vm6252, %v6221, %v5673
    %v6287 = vsel %vm6252, %v6222, %v5675
    %v6288 = vsel %vm6252, %v6223, %v5677
    %v6289 = vsel %vm6252, %v6224, %v5679
    %v6290 = vsel %vm6252, %v6225, %v5681
    %v6291 = vsel %vm6252, %v6226, %v5683
    %v6292 = vsel %vm6252, %v6227, %v5685
    %v6293 = vsel %vm6252, %v6228, %v5687
    %v6294 = vsel %vm6252, %v6229, %v5689
    %v6295 = vsel %vm6252, %v6230, %v5691
    %v6296 = vsel %vm6252, %v6231, %v5693
    %v6297 = vsel %vm6252, %v6232, %v5695
    %v6298 = vsel %vm6252, %v6233, %v5697
    %v6299 = vsel %vm6252, %v6234, %v5699
    %v6300 = vsel %vm6252, %v6235, %v5701
    %v6301 = vsel %vm6252, %v6236, %v5703
    %v6302 = vsel %vm6252, %v6237, %v5705
    %v6303 = vsel %vm6252, %v6238, %v5707
    %v6304 = vsel %vm6252, %v6239, %v5709
    %v6305 = vsel %vm6252, %v6240, %v5711
    %v6306 = vsel %vm6252, %v6241, %v5713
    %v6307 = vsel %vm6252, %v6242, %v5715
    %v6308 = vsel %vm6252, %v6243, %v5717
    %v6309 = vsel %vm6252, %v6244, %v5719
    %v6310 = vsel %vm6252, %v6245, %v5721
    %v6311 = vsel %vm6252, %v6246, %v5723
    %v6312 = vsel %vm6252, %v6247, %v5725
    %v6313 = vsel %vm6252, %v6248, %v5727
    %v6314 = vsel %vm6252, %v6249, %v5729
    %v6315 = vsel %vm6252, %v6250, %v5731
    %v6316 = vsel %vm6252, %v6251, %v5733
    %vm6317 = vcmask 293888
    %v6318 = vsel %vm6317, %v6253, 0.0
    %v6319 = vsel %vm6317, %v6254, 0.0
    %v6320 = vsel %vm6317, %v6255, 0.0
    %v6321 = vsel %vm6317, %v6256, 0.0
    %v6322 = vsel %vm6317, %v6257, 0.0
    %v6323 = vsel %vm6317, %v6258, 0.0
    %v6324 = vsel %vm6317, %v6259, 0.0
    %v6325 = vsel %vm6317, %v6260, 0.0
    %v6326 = vsel %vm6317, %v6261, 0.0
    %v6327 = vsel %vm6317, %v6262, 0.0
    %v6328 = vsel %vm6317, %v6263, 0.0
    %v6329 = vsel %vm6317, %v6264, 0.0
    %v6330 = vsel %vm6317, %v6265, 0.0
    %v6331 = vsel %vm6317, %v6266, 0.0
    %v6332 = vsel %vm6317, %v6267, 0.0
    %v6333 = vsel %vm6317, %v6268, 0.0
    %v6334 = vsel %vm6317, %v6269, 0.0
    %v6335 = vsel %vm6317, %v6270, 0.0
    %v6336 = vsel %vm6317, %v6271, 0.0
    %v6337 = vsel %vm6317, %v6272, 0.0
    %v6338 = vsel %vm6317, %v6273, 0.0
    %v6339 = vsel %vm6317, %v6274, 0.0
    %v6340 = vsel %vm6317, %v6275, 0.0
    %v6341 = vsel %vm6317, %v6276, 0.0
    %v6342 = vsel %vm6317, %v6277, 0.0
    %v6343 = vsel %vm6317, %v6278, 0.0
    %v6344 = vsel %vm6317, %v6279, 0.0
    %v6345 = vsel %vm6317, %v6280, 0.0
    %v6346 = vsel %vm6317, %v6281, 0.0
    %v6347 = vsel %vm6317, %v6282, 0.0
    %v6348 = vsel %vm6317, %v6283, 0.0
    %v6349 = vsel %vm6317, %v6284, 0.0
    %v6350 = vsel %vm6317, %v6285, 0.0
    %v6351 = vsel %vm6317, %v6286, 0.0
    %v6352 = vsel %vm6317, %v6287, 0.0
    %v6353 = vsel %vm6317, %v6288, 0.0
    %v6354 = vsel %vm6317, %v6289, 0.0
    %v6355 = vsel %vm6317, %v6290, 0.0
    %v6356 = vsel %vm6317, %v6291, 0.0
    %v6357 = vsel %vm6317, %v6292, 0.0
    %v6358 = vsel %vm6317, %v6293, 0.0
    %v6359 = vsel %vm6317, %v6294, 0.0
    %v6360 = vsel %vm6317, %v6295, 0.0
    %v6361 = vsel %vm6317, %v6296, 0.0
    %v6362 = vsel %vm6317, %v6297, 0.0
    %v6363 = vsel %vm6317, %v6298, 0.0
    %v6364 = vsel %vm6317, %v6299, 0.0
    %v6365 = vsel %vm6317, %v6300, 0.0
    %v6366 = vsel %vm6317, %v6301, 0.0
    %v6367 = vsel %vm6317, %v6302, 0.0
    %v6368 = vsel %vm6317, %v6303, 0.0
    %v6369 = vsel %vm6317, %v6304, 0.0
    %v6370 = vsel %vm6317, %v6305, 0.0
    %v6371 = vsel %vm6317, %v6306, 0.0
    %v6372 = vsel %vm6317, %v6307, 0.0
    %v6373 = vsel %vm6317, %v6308, 0.0
    %v6374 = vsel %vm6317, %v6309, 0.0
    %v6375 = vsel %vm6317, %v6310, 0.0
    %v6376 = vsel %vm6317, %v6311, 0.0
    %v6377 = vsel %vm6317, %v6312, 0.0
    %v6378 = vsel %vm6317, %v6313, 0.0
    %v6379 = vsel %vm6317, %v6314, 0.0
    %v6380 = vsel %vm6317, %v6315, 0.0
    %v6381 = vsel %vm6317, %v6316, 0.0
    %v6382 = vld [vmem:[%s2] sm:$0xff]
    %v6383 = vld [vmem:[%s2 + $0x8] sm:$0xff]
    %v6384 = vld [vmem:[%s2 + $0x10] sm:$0xff]
    %v6385 = vld [vmem:[%s2 + $0x18] sm:$0xff]
    %v6386 = vld [vmem:[%s2 + $0x20] sm:$0xff]
    %v6387 = vld [vmem:[%s2 + $0x28] sm:$0xff]
    %v6388 = vld [vmem:[%s2 + $0x30] sm:$0xff]
    %v6389 = vld [vmem:[%s2 + $0x38] sm:$0xff]
    %v6390 = vld [vmem:[%s2 + $0x40] sm:$0xff]
    %v6391 = vld [vmem:[%s2 + $0x48] sm:$0xff]
    %v6392 = vld [vmem:[%s2 + $0x50] sm:$0xff]
    %v6393 = vld [vmem:[%s2 + $0x58] sm:$0xff]
    %v6394 = vld [vmem:[%s2 + $0x60] sm:$0xff]
    %v6395 = vld [vmem:[%s2 + $0x68] sm:$0xff]
    %v6396 = vld [vmem:[%s2 + $0x70] sm:$0xff]
    %v6397 = vld [vmem:[%s2 + $0x78] sm:$0xff]
    %6398 = vmatpush.msra.mxu0 %v6397
    %6399 = vmatpush.msra.mxu0 %v6396
    %6400 = vmatpush.msra.mxu0 %v6395
    %6401 = vmatpush.msra.mxu0 %v6394
    %6402 = vmatpush.msra.mxu0 %v6393
    %6403 = vmatpush.msra.mxu0 %v6392
    %6404 = vmatpush.msra.mxu0 %v6391
    %6405 = vmatpush.msra.mxu0 %v6390
    %6406 = vmatpush.msra.mxu0 %v6389
    %6407 = vmatpush.msra.mxu0 %v6388
    %6408 = vmatpush.msra.mxu0 %v6387
    %6409 = vmatpush.msra.mxu0 %v6386
    %6410 = vmatpush.msra.mxu0 %v6385
    %6411 = vmatpush.msra.mxu0 %v6384
    %6412 = vmatpush.msra.mxu0 %v6383
    %6413 = vmatpush.msra.mxu0 %v6382
    %6414 = vmatmul.f32.gmra.mxu0 %v6318
    %v6415 = vpop.f32.mrf.mxu0
    %v6416 = vadd.f32 0.0, %v6415
    %6417 = vmatmul.f32.gmra.mxu0 %v6319
    %v6418 = vpop.f32.mrf.mxu0
    %v6419 = vadd.f32 0.0, %v6418
    %6420 = vmatmul.f32.gmra.mxu0 %v6320
    %v6421 = vpop.f32.mrf.mxu0
    %v6422 = vadd.f32 0.0, %v6421
    %6423 = vmatmul.f32.gmra.mxu0 %v6321
    %v6424 = vpop.f32.mrf.mxu0
    %v6425 = vadd.f32 0.0, %v6424
    %6426 = vmatmul.f32.gmra.mxu0 %v6322
    %v6427 = vpop.f32.mrf.mxu0
    %v6428 = vadd.f32 0.0, %v6427
    %6429 = vmatmul.f32.gmra.mxu0 %v6323
    %v6430 = vpop.f32.mrf.mxu0
    %v6431 = vadd.f32 0.0, %v6430
    %6432 = vmatmul.f32.gmra.mxu0 %v6324
    %v6433 = vpop.f32.mrf.mxu0
    %v6434 = vadd.f32 0.0, %v6433
    %6435 = vmatmul.f32.gmra.mxu0 %v6325
    %v6436 = vpop.f32.mrf.mxu0
    %v6437 = vadd.f32 0.0, %v6436
    %6438 = vmatmul.f32.gmra.mxu0 %v6326
    %v6439 = vpop.f32.mrf.mxu0
    %v6440 = vadd.f32 0.0, %v6439
    %6441 = vmatmul.f32.gmra.mxu0 %v6327
    %v6442 = vpop.f32.mrf.mxu0
    %v6443 = vadd.f32 0.0, %v6442
    %6444 = vmatmul.f32.gmra.mxu0 %v6328
    %v6445 = vpop.f32.mrf.mxu0
    %v6446 = vadd.f32 0.0, %v6445
    %6447 = vmatmul.f32.gmra.mxu0 %v6329
    %v6448 = vpop.f32.mrf.mxu0
    %v6449 = vadd.f32 0.0, %v6448
    %6450 = vmatmul.f32.gmra.mxu0 %v6330
    %v6451 = vpop.f32.mrf.mxu0
    %v6452 = vadd.f32 0.0, %v6451
    %6453 = vmatmul.f32.gmra.mxu0 %v6331
    %v6454 = vpop.f32.mrf.mxu0
    %v6455 = vadd.f32 0.0, %v6454
    %6456 = vmatmul.f32.gmra.mxu0 %v6332
    %v6457 = vpop.f32.mrf.mxu0
    %v6458 = vadd.f32 0.0, %v6457
    %6459 = vmatmul.f32.gmra.mxu0 %v6333
    %v6460 = vpop.f32.mrf.mxu0
    %v6461 = vadd.f32 0.0, %v6460
    %6462 = vmatmul.f32.gmra.mxu0 %v6334
    %v6463 = vpop.f32.mrf.mxu0
    %v6464 = vadd.f32 0.0, %v6463
    %6465 = vmatmul.f32.gmra.mxu0 %v6335
    %v6466 = vpop.f32.mrf.mxu0
    %v6467 = vadd.f32 0.0, %v6466
    %6468 = vmatmul.f32.gmra.mxu0 %v6336
    %v6469 = vpop.f32.mrf.mxu0
    %v6470 = vadd.f32 0.0, %v6469
    %6471 = vmatmul.f32.gmra.mxu0 %v6337
    %v6472 = vpop.f32.mrf.mxu0
    %v6473 = vadd.f32 0.0, %v6472
    %6474 = vmatmul.f32.gmra.mxu0 %v6338
    %v6475 = vpop.f32.mrf.mxu0
    %v6476 = vadd.f32 0.0, %v6475
    %6477 = vmatmul.f32.gmra.mxu0 %v6339
    %v6478 = vpop.f32.mrf.mxu0
    %v6479 = vadd.f32 0.0, %v6478
    %6480 = vmatmul.f32.gmra.mxu0 %v6340
    %v6481 = vpop.f32.mrf.mxu0
    %v6482 = vadd.f32 0.0, %v6481
    %6483 = vmatmul.f32.gmra.mxu0 %v6341
    %v6484 = vpop.f32.mrf.mxu0
    %v6485 = vadd.f32 0.0, %v6484
    %6486 = vmatmul.f32.gmra.mxu0 %v6342
    %v6487 = vpop.f32.mrf.mxu0
    %v6488 = vadd.f32 0.0, %v6487
    %6489 = vmatmul.f32.gmra.mxu0 %v6343
    %v6490 = vpop.f32.mrf.mxu0
    %v6491 = vadd.f32 0.0, %v6490
    %6492 = vmatmul.f32.gmra.mxu0 %v6344
    %v6493 = vpop.f32.mrf.mxu0
    %v6494 = vadd.f32 0.0, %v6493
    %6495 = vmatmul.f32.gmra.mxu0 %v6345
    %v6496 = vpop.f32.mrf.mxu0
    %v6497 = vadd.f32 0.0, %v6496
    %6498 = vmatmul.f32.gmra.mxu0 %v6346
    %v6499 = vpop.f32.mrf.mxu0
    %v6500 = vadd.f32 0.0, %v6499
    %6501 = vmatmul.f32.gmra.mxu0 %v6347
    %v6502 = vpop.f32.mrf.mxu0
    %v6503 = vadd.f32 0.0, %v6502
    %6504 = vmatmul.f32.gmra.mxu0 %v6348
    %v6505 = vpop.f32.mrf.mxu0
    %v6506 = vadd.f32 0.0, %v6505
    %6507 = vmatmul.f32.gmra.mxu0 %v6349
    %v6508 = vpop.f32.mrf.mxu0
    %v6509 = vadd.f32 0.0, %v6508
    %6510 = vmatmul.f32.gmra.mxu0 %v6350
    %v6511 = vpop.f32.mrf.mxu0
    %v6512 = vadd.f32 0.0, %v6511
    %6513 = vmatmul.f32.gmra.mxu0 %v6351
    %v6514 = vpop.f32.mrf.mxu0
    %v6515 = vadd.f32 0.0, %v6514
    %6516 = vmatmul.f32.gmra.mxu0 %v6352
    %v6517 = vpop.f32.mrf.mxu0
    %v6518 = vadd.f32 0.0, %v6517
    %6519 = vmatmul.f32.gmra.mxu0 %v6353
    %v6520 = vpop.f32.mrf.mxu0
    %v6521 = vadd.f32 0.0, %v6520
    %6522 = vmatmul.f32.gmra.mxu0 %v6354
    %v6523 = vpop.f32.mrf.mxu0
    %v6524 = vadd.f32 0.0, %v6523
    %6525 = vmatmul.f32.gmra.mxu0 %v6355
    %v6526 = vpop.f32.mrf.mxu0
    %v6527 = vadd.f32 0.0, %v6526
    %6528 = vmatmul.f32.gmra.mxu0 %v6356
    %v6529 = vpop.f32.mrf.mxu0
    %v6530 = vadd.f32 0.0, %v6529
    %6531 = vmatmul.f32.gmra.mxu0 %v6357
    %v6532 = vpop.f32.mrf.mxu0
    %v6533 = vadd.f32 0.0, %v6532
    %6534 = vmatmul.f32.gmra.mxu0 %v6358
    %v6535 = vpop.f32.mrf.mxu0
    %v6536 = vadd.f32 0.0, %v6535
    %6537 = vmatmul.f32.gmra.mxu0 %v6359
    %v6538 = vpop.f32.mrf.mxu0
    %v6539 = vadd.f32 0.0, %v6538
    %6540 = vmatmul.f32.gmra.mxu0 %v6360
    %v6541 = vpop.f32.mrf.mxu0
    %v6542 = vadd.f32 0.0, %v6541
    %6543 = vmatmul.f32.gmra.mxu0 %v6361
    %v6544 = vpop.f32.mrf.mxu0
    %v6545 = vadd.f32 0.0, %v6544
    %6546 = vmatmul.f32.gmra.mxu0 %v6362
    %v6547 = vpop.f32.mrf.mxu0
    %v6548 = vadd.f32 0.0, %v6547
    %6549 = vmatmul.f32.gmra.mxu0 %v6363
    %v6550 = vpop.f32.mrf.mxu0
    %v6551 = vadd.f32 0.0, %v6550
    %6552 = vmatmul.f32.gmra.mxu0 %v6364
    %v6553 = vpop.f32.mrf.mxu0
    %v6554 = vadd.f32 0.0, %v6553
    %6555 = vmatmul.f32.gmra.mxu0 %v6365
    %v6556 = vpop.f32.mrf.mxu0
    %v6557 = vadd.f32 0.0, %v6556
    %6558 = vmatmul.f32.gmra.mxu0 %v6366
    %v6559 = vpop.f32.mrf.mxu0
    %v6560 = vadd.f32 0.0, %v6559
    %6561 = vmatmul.f32.gmra.mxu0 %v6367
    %v6562 = vpop.f32.mrf.mxu0
    %v6563 = vadd.f32 0.0, %v6562
    %6564 = vmatmul.f32.gmra.mxu0 %v6368
    %v6565 = vpop.f32.mrf.mxu0
    %v6566 = vadd.f32 0.0, %v6565
    %6567 = vmatmul.f32.gmra.mxu0 %v6369
    %v6568 = vpop.f32.mrf.mxu0
    %v6569 = vadd.f32 0.0, %v6568
    %6570 = vmatmul.f32.gmra.mxu0 %v6370
    %v6571 = vpop.f32.mrf.mxu0
    %v6572 = vadd.f32 0.0, %v6571
    %6573 = vmatmul.f32.gmra.mxu0 %v6371
    %v6574 = vpop.f32.mrf.mxu0
    %v6575 = vadd.f32 0.0, %v6574
    %6576 = vmatmul.f32.gmra.mxu0 %v6372
    %v6577 = vpop.f32.mrf.mxu0
    %v6578 = vadd.f32 0.0, %v6577
    %6579 = vmatmul.f32.gmra.mxu0 %v6373
    %v6580 = vpop.f32.mrf.mxu0
    %v6581 = vadd.f32 0.0, %v6580
    %6582 = vmatmul.f32.gmra.mxu0 %v6374
    %v6583 = vpop.f32.mrf.mxu0
    %v6584 = vadd.f32 0.0, %v6583
    %6585 = vmatmul.f32.gmra.mxu0 %v6375
    %v6586 = vpop.f32.mrf.mxu0
    %v6587 = vadd.f32 0.0, %v6586
    %6588 = vmatmul.f32.gmra.mxu0 %v6376
    %v6589 = vpop.f32.mrf.mxu0
    %v6590 = vadd.f32 0.0, %v6589
    %6591 = vmatmul.f32.gmra.mxu0 %v6377
    %v6592 = vpop.f32.mrf.mxu0
    %v6593 = vadd.f32 0.0, %v6592
    %6594 = vmatmul.f32.gmra.mxu0 %v6378
    %v6595 = vpop.f32.mrf.mxu0
    %v6596 = vadd.f32 0.0, %v6595
    %6597 = vmatmul.f32.gmra.mxu0 %v6379
    %v6598 = vpop.f32.mrf.mxu0
    %v6599 = vadd.f32 0.0, %v6598
    %6600 = vmatmul.f32.gmra.mxu0 %v6380
    %v6601 = vpop.f32.mrf.mxu0
    %v6602 = vadd.f32 0.0, %v6601
    %6603 = vmatmul.f32.gmra.mxu0 %v6381
    %v6604 = vpop.f32.mrf.mxu0
    %v6605 = vadd.f32 0.0, %v6604
    %6606 = vdwg.mxu0
    %v6607 = vadd.f32 %v6416, %v6419
    %v6608 = vadd.f32 %v6607, %v6422
    %v6609 = vadd.f32 %v6608, %v6425
    %v6610 = vadd.f32 %v6609, %v6428
    %v6611 = vadd.f32 %v6610, %v6431
    %v6612 = vadd.f32 %v6611, %v6434
    %v6613 = vadd.f32 %v6612, %v6437
    %v6614 = vadd.f32 %v6613, %v6440
    %v6615 = vadd.f32 %v6614, %v6443
    %v6616 = vadd.f32 %v6615, %v6446
    %v6617 = vadd.f32 %v6616, %v6449
    %v6618 = vadd.f32 %v6617, %v6452
    %v6619 = vadd.f32 %v6618, %v6455
    %v6620 = vadd.f32 %v6619, %v6458
    %v6621 = vadd.f32 %v6620, %v6461
    %v6622 = vadd.f32 %v6621, %v6464
    %v6623 = vadd.f32 %v6622, %v6467
    %v6624 = vadd.f32 %v6623, %v6470
    %v6625 = vadd.f32 %v6624, %v6473
    %v6626 = vadd.f32 %v6625, %v6476
    %v6627 = vadd.f32 %v6626, %v6479
    %v6628 = vadd.f32 %v6627, %v6482
    %v6629 = vadd.f32 %v6628, %v6485
    %v6630 = vadd.f32 %v6629, %v6488
    %v6631 = vadd.f32 %v6630, %v6491
    %v6632 = vadd.f32 %v6631, %v6494
    %v6633 = vadd.f32 %v6632, %v6497
    %v6634 = vadd.f32 %v6633, %v6500
    %v6635 = vadd.f32 %v6634, %v6503
    %v6636 = vadd.f32 %v6635, %v6506
    %v6637 = vadd.f32 %v6636, %v6509
    %v6638 = vadd.f32 %v6637, %v6512
    %v6639 = vadd.f32 %v6638, %v6515
    %v6640 = vadd.f32 %v6639, %v6518
    %v6641 = vadd.f32 %v6640, %v6521
    %v6642 = vadd.f32 %v6641, %v6524
    %v6643 = vadd.f32 %v6642, %v6527
    %v6644 = vadd.f32 %v6643, %v6530
    %v6645 = vadd.f32 %v6644, %v6533
    %v6646 = vadd.f32 %v6645, %v6536
    %v6647 = vadd.f32 %v6646, %v6539
    %v6648 = vadd.f32 %v6647, %v6542
    %v6649 = vadd.f32 %v6648, %v6545
    %v6650 = vadd.f32 %v6649, %v6548
    %v6651 = vadd.f32 %v6650, %v6551
    %v6652 = vadd.f32 %v6651, %v6554
    %v6653 = vadd.f32 %v6652, %v6557
    %v6654 = vadd.f32 %v6653, %v6560
    %v6655 = vadd.f32 %v6654, %v6563
    %v6656 = vadd.f32 %v6655, %v6566
    %v6657 = vadd.f32 %v6656, %v6569
    %v6658 = vadd.f32 %v6657, %v6572
    %v6659 = vadd.f32 %v6658, %v6575
    %v6660 = vadd.f32 %v6659, %v6578
    %v6661 = vadd.f32 %v6660, %v6581
    %v6662 = vadd.f32 %v6661, %v6584
    %v6663 = vadd.f32 %v6662, %v6587
    %v6664 = vadd.f32 %v6663, %v6590
    %v6665 = vadd.f32 %v6664, %v6593
    %v6666 = vadd.f32 %v6665, %v6596
    %v6667 = vadd.f32 %v6666, %v6599
    %v6668 = vadd.f32 %v6667, %v6602
    %v6669 = vadd.f32 %v6668, %v6605
    %v6670 = vrot.slane %v6669, 4
    %v6671 = vadd.f32 %v6669, %v6670
    %v6672 = vrot.slane %v6671, 2
    %v6673 = vadd.f32 %v6671, %v6672
    %v6674 = vrot.slane %v6673, 1
    %v6675 = vadd.f32 %v6673, %v6674
    %v6676 = vmul.f32 %v6675, 0.001953125
    %v6677 = vsub.f32 %v6416, %v6676
    %v6678 = vsub.f32 %v6419, %v6676
    %v6679 = vsub.f32 %v6422, %v6676
    %v6680 = vsub.f32 %v6425, %v6676
    %v6681 = vsub.f32 %v6428, %v6676
    %v6682 = vsub.f32 %v6431, %v6676
    %v6683 = vsub.f32 %v6434, %v6676
    %v6684 = vsub.f32 %v6437, %v6676
    %v6685 = vsub.f32 %v6440, %v6676
    %v6686 = vsub.f32 %v6443, %v6676
    %v6687 = vsub.f32 %v6446, %v6676
    %v6688 = vsub.f32 %v6449, %v6676
    %v6689 = vsub.f32 %v6452, %v6676
    %v6690 = vsub.f32 %v6455, %v6676
    %v6691 = vsub.f32 %v6458, %v6676
    %v6692 = vsub.f32 %v6461, %v6676
    %v6693 = vsub.f32 %v6464, %v6676
    %v6694 = vsub.f32 %v6467, %v6676
    %v6695 = vsub.f32 %v6470, %v6676
    %v6696 = vsub.f32 %v6473, %v6676
    %v6697 = vsub.f32 %v6476, %v6676
    %v6698 = vsub.f32 %v6479, %v6676
    %v6699 = vsub.f32 %v6482, %v6676
    %v6700 = vsub.f32 %v6485, %v6676
    %v6701 = vsub.f32 %v6488, %v6676
    %v6702 = vsub.f32 %v6491, %v6676
    %v6703 = vsub.f32 %v6494, %v6676
    %v6704 = vsub.f32 %v6497, %v6676
    %v6705 = vsub.f32 %v6500, %v6676
    %v6706 = vsub.f32 %v6503, %v6676
    %v6707 = vsub.f32 %v6506, %v6676
    %v6708 = vsub.f32 %v6509, %v6676
    %v6709 = vsub.f32 %v6512, %v6676
    %v6710 = vsub.f32 %v6515, %v6676
    %v6711 = vsub.f32 %v6518, %v6676
    %v6712 = vsub.f32 %v6521, %v6676
    %v6713 = vsub.f32 %v6524, %v6676
    %v6714 = vsub.f32 %v6527, %v6676
    %v6715 = vsub.f32 %v6530, %v6676
    %v6716 = vsub.f32 %v6533, %v6676
    %v6717 = vsub.f32 %v6536, %v6676
    %v6718 = vsub.f32 %v6539, %v6676
    %v6719 = vsub.f32 %v6542, %v6676
    %v6720 = vsub.f32 %v6545, %v6676
    %v6721 = vsub.f32 %v6548, %v6676
    %v6722 = vsub.f32 %v6551, %v6676
    %v6723 = vsub.f32 %v6554, %v6676
    %v6724 = vsub.f32 %v6557, %v6676
    %v6725 = vsub.f32 %v6560, %v6676
    %v6726 = vsub.f32 %v6563, %v6676
    %v6727 = vsub.f32 %v6566, %v6676
    %v6728 = vsub.f32 %v6569, %v6676
    %v6729 = vsub.f32 %v6572, %v6676
    %v6730 = vsub.f32 %v6575, %v6676
    %v6731 = vsub.f32 %v6578, %v6676
    %v6732 = vsub.f32 %v6581, %v6676
    %v6733 = vsub.f32 %v6584, %v6676
    %v6734 = vsub.f32 %v6587, %v6676
    %v6735 = vsub.f32 %v6590, %v6676
    %v6736 = vsub.f32 %v6593, %v6676
    %v6737 = vsub.f32 %v6596, %v6676
    %v6738 = vsub.f32 %v6599, %v6676
    %v6739 = vsub.f32 %v6602, %v6676
    %v6740 = vsub.f32 %v6605, %v6676
    %v6741 = vmul.f32 %v6677, %v6677
    %v6742 = vmul.f32 %v6678, %v6678
    %v6743 = vmul.f32 %v6679, %v6679
    %v6744 = vmul.f32 %v6680, %v6680
    %v6745 = vmul.f32 %v6681, %v6681
    %v6746 = vmul.f32 %v6682, %v6682
    %v6747 = vmul.f32 %v6683, %v6683
    %v6748 = vmul.f32 %v6684, %v6684
    %v6749 = vmul.f32 %v6685, %v6685
    %v6750 = vmul.f32 %v6686, %v6686
    %v6751 = vmul.f32 %v6687, %v6687
    %v6752 = vmul.f32 %v6688, %v6688
    %v6753 = vmul.f32 %v6689, %v6689
    %v6754 = vmul.f32 %v6690, %v6690
    %v6755 = vmul.f32 %v6691, %v6691
    %v6756 = vmul.f32 %v6692, %v6692
    %v6757 = vmul.f32 %v6693, %v6693
    %v6758 = vmul.f32 %v6694, %v6694
    %v6759 = vmul.f32 %v6695, %v6695
    %v6760 = vmul.f32 %v6696, %v6696
    %v6761 = vmul.f32 %v6697, %v6697
    %v6762 = vmul.f32 %v6698, %v6698
    %v6763 = vmul.f32 %v6699, %v6699
    %v6764 = vmul.f32 %v6700, %v6700
    %v6765 = vmul.f32 %v6701, %v6701
    %v6766 = vmul.f32 %v6702, %v6702
    %v6767 = vmul.f32 %v6703, %v6703
    %v6768 = vmul.f32 %v6704, %v6704
    %v6769 = vmul.f32 %v6705, %v6705
    %v6770 = vmul.f32 %v6706, %v6706
    %v6771 = vmul.f32 %v6707, %v6707
    %v6772 = vmul.f32 %v6708, %v6708
    %v6773 = vmul.f32 %v6709, %v6709
    %v6774 = vmul.f32 %v6710, %v6710
    %v6775 = vmul.f32 %v6711, %v6711
    %v6776 = vmul.f32 %v6712, %v6712
    %v6777 = vmul.f32 %v6713, %v6713
    %v6778 = vmul.f32 %v6714, %v6714
    %v6779 = vmul.f32 %v6715, %v6715
    %v6780 = vmul.f32 %v6716, %v6716
    %v6781 = vmul.f32 %v6717, %v6717
    %v6782 = vmul.f32 %v6718, %v6718
    %v6783 = vmul.f32 %v6719, %v6719
    %v6784 = vmul.f32 %v6720, %v6720
    %v6785 = vmul.f32 %v6721, %v6721
    %v6786 = vmul.f32 %v6722, %v6722
    %v6787 = vmul.f32 %v6723, %v6723
    %v6788 = vmul.f32 %v6724, %v6724
    %v6789 = vmul.f32 %v6725, %v6725
    %v6790 = vmul.f32 %v6726, %v6726
    %v6791 = vmul.f32 %v6727, %v6727
    %v6792 = vmul.f32 %v6728, %v6728
    %v6793 = vmul.f32 %v6729, %v6729
    %v6794 = vmul.f32 %v6730, %v6730
    %v6795 = vmul.f32 %v6731, %v6731
    %v6796 = vmul.f32 %v6732, %v6732
    %v6797 = vmul.f32 %v6733, %v6733
    %v6798 = vmul.f32 %v6734, %v6734
    %v6799 = vmul.f32 %v6735, %v6735
    %v6800 = vmul.f32 %v6736, %v6736
    %v6801 = vmul.f32 %v6737, %v6737
    %v6802 = vmul.f32 %v6738, %v6738
    %v6803 = vmul.f32 %v6739, %v6739
    %v6804 = vmul.f32 %v6740, %v6740
    %v6805 = vadd.f32 %v6741, %v6742
    %v6806 = vadd.f32 %v6805, %v6743
    %v6807 = vadd.f32 %v6806, %v6744
    %v6808 = vadd.f32 %v6807, %v6745
    %v6809 = vadd.f32 %v6808, %v6746
    %v6810 = vadd.f32 %v6809, %v6747
    %v6811 = vadd.f32 %v6810, %v6748
    %v6812 = vadd.f32 %v6811, %v6749
    %v6813 = vadd.f32 %v6812, %v6750
    %v6814 = vadd.f32 %v6813, %v6751
    %v6815 = vadd.f32 %v6814, %v6752
    %v6816 = vadd.f32 %v6815, %v6753
    %v6817 = vadd.f32 %v6816, %v6754
    %v6818 = vadd.f32 %v6817, %v6755
    %v6819 = vadd.f32 %v6818, %v6756
    %v6820 = vadd.f32 %v6819, %v6757
    %v6821 = vadd.f32 %v6820, %v6758
    %v6822 = vadd.f32 %v6821, %v6759
    %v6823 = vadd.f32 %v6822, %v6760
    %v6824 = vadd.f32 %v6823, %v6761
    %v6825 = vadd.f32 %v6824, %v6762
    %v6826 = vadd.f32 %v6825, %v6763
    %v6827 = vadd.f32 %v6826, %v6764
    %v6828 = vadd.f32 %v6827, %v6765
    %v6829 = vadd.f32 %v6828, %v6766
    %v6830 = vadd.f32 %v6829, %v6767
    %v6831 = vadd.f32 %v6830, %v6768
    %v6832 = vadd.f32 %v6831, %v6769
    %v6833 = vadd.f32 %v6832, %v6770
    %v6834 = vadd.f32 %v6833, %v6771
    %v6835 = vadd.f32 %v6834, %v6772
    %v6836 = vadd.f32 %v6835, %v6773
    %v6837 = vadd.f32 %v6836, %v6774
    %v6838 = vadd.f32 %v6837, %v6775
    %v6839 = vadd.f32 %v6838, %v6776
    %v6840 = vadd.f32 %v6839, %v6777
    %v6841 = vadd.f32 %v6840, %v6778
    %v6842 = vadd.f32 %v6841, %v6779
    %v6843 = vadd.f32 %v6842, %v6780
    %v6844 = vadd.f32 %v6843, %v6781
    %v6845 = vadd.f32 %v6844, %v6782
    %v6846 = vadd.f32 %v6845, %v6783
    %v6847 = vadd.f32 %v6846, %v6784
    %v6848 = vadd.f32 %v6847, %v6785
    %v6849 = vadd.f32 %v6848, %v6786
    %v6850 = vadd.f32 %v6849, %v6787
    %v6851 = vadd.f32 %v6850, %v6788
    %v6852 = vadd.f32 %v6851, %v6789
    %v6853 = vadd.f32 %v6852, %v6790
    %v6854 = vadd.f32 %v6853, %v6791
    %v6855 = vadd.f32 %v6854, %v6792
    %v6856 = vadd.f32 %v6855, %v6793
    %v6857 = vadd.f32 %v6856, %v6794
    %v6858 = vadd.f32 %v6857, %v6795
    %v6859 = vadd.f32 %v6858, %v6796
    %v6860 = vadd.f32 %v6859, %v6797
    %v6861 = vadd.f32 %v6860, %v6798
    %v6862 = vadd.f32 %v6861, %v6799
    %v6863 = vadd.f32 %v6862, %v6800
    %v6864 = vadd.f32 %v6863, %v6801
    %v6865 = vadd.f32 %v6864, %v6802
    %v6866 = vadd.f32 %v6865, %v6803
    %v6867 = vadd.f32 %v6866, %v6804
    %v6868 = vrot.slane %v6867, 4
    %v6869 = vadd.f32 %v6867, %v6868
    %v6870 = vrot.slane %v6869, 2
    %v6871 = vadd.f32 %v6869, %v6870
    %v6872 = vrot.slane %v6871, 1
    %v6873 = vadd.f32 %v6871, %v6872
    %v6874 = vmul.f32 %v6873, 0.001953125
    %v6875 = vadd.f32 %v6874, 1e-05
    %v6876 = vrsqrt.pop %v6875
    %v6877 = vmul.f32 %v6876, %v6875
    %v6878 = vmul.f32 %v6877, %v6876
    %v6879 = vmul.f32 0.5, %v6878
    %v6880 = vsub.f32 1.5, %v6879
    %v6881 = vmul.f32 %v6876, %v6880
    %vm6882 = vweird.f32 %v6875
    %vm6883 = vweird.f32 %v6876
    %vm6884 = vmor %vm6882, %vm6883
    %v6885 = vsel %vm6884, %v6876, %v6881
    %v6886 = vld [vmem:[%s3] sm:$0x1]
    %v6887 = vmul.f32 %v6885, %v6886
    %v6888 = vperm.slane %v6887, 0
    %v6889 = vmul.f32 %v6677, %v6888
    %v6890 = vmul.f32 %v6678, %v6888
    %v6891 = vmul.f32 %v6679, %v6888
    %v6892 = vmul.f32 %v6680, %v6888
    %v6893 = vmul.f32 %v6681, %v6888
    %v6894 = vmul.f32 %v6682, %v6888
    %v6895 = vmul.f32 %v6683, %v6888
    %v6896 = vmul.f32 %v6684, %v6888
    %v6897 = vmul.f32 %v6685, %v6888
    %v6898 = vmul.f32 %v6686, %v6888
    %v6899 = vmul.f32 %v6687, %v6888
    %v6900 = vmul.f32 %v6688, %v6888
    %v6901 = vmul.f32 %v6689, %v6888
    %v6902 = vmul.f32 %v6690, %v6888
    %v6903 = vmul.f32 %v6691, %v6888
    %v6904 = vmul.f32 %v6692, %v6888
    %v6905 = vmul.f32 %v6693, %v6888
    %v6906 = vmul.f32 %v6694, %v6888
    %v6907 = vmul.f32 %v6695, %v6888
    %v6908 = vmul.f32 %v6696, %v6888
    %v6909 = vmul.f32 %v6697, %v6888
    %v6910 = vmul.f32 %v6698, %v6888
    %v6911 = vmul.f32 %v6699, %v6888
    %v6912 = vmul.f32 %v6700, %v6888
    %v6913 = vmul.f32 %v6701, %v6888
    %v6914 = vmul.f32 %v6702, %v6888
    %v6915 = vmul.f32 %v6703, %v6888
    %v6916 = vmul.f32 %v6704, %v6888
    %v6917 = vmul.f32 %v6705, %v6888
    %v6918 = vmul.f32 %v6706, %v6888
    %v6919 = vmul.f32 %v6707, %v6888
    %v6920 = vmul.f32 %v6708, %v6888
    %v6921 = vmul.f32 %v6709, %v6888
    %v6922 = vmul.f32 %v6710, %v6888
    %v6923 = vmul.f32 %v6711, %v6888
    %v6924 = vmul.f32 %v6712, %v6888
    %v6925 = vmul.f32 %v6713, %v6888
    %v6926 = vmul.f32 %v6714, %v6888
    %v6927 = vmul.f32 %v6715, %v6888
    %v6928 = vmul.f32 %v6716, %v6888
    %v6929 = vmul.f32 %v6717, %v6888
    %v6930 = vmul.f32 %v6718, %v6888
    %v6931 = vmul.f32 %v6719, %v6888
    %v6932 = vmul.f32 %v6720, %v6888
    %v6933 = vmul.f32 %v6721, %v6888
    %v6934 = vmul.f32 %v6722, %v6888
    %v6935 = vmul.f32 %v6723, %v6888
    %v6936 = vmul.f32 %v6724, %v6888
    %v6937 = vmul.f32 %v6725, %v6888
    %v6938 = vmul.f32 %v6726, %v6888
    %v6939 = vmul.f32 %v6727, %v6888
    %v6940 = vmul.f32 %v6728, %v6888
    %v6941 = vmul.f32 %v6729, %v6888
    %v6942 = vmul.f32 %v6730, %v6888
    %v6943 = vmul.f32 %v6731, %v6888
    %v6944 = vmul.f32 %v6732, %v6888
    %v6945 = vmul.f32 %v6733, %v6888
    %v6946 = vmul.f32 %v6734, %v6888
    %v6947 = vmul.f32 %v6735, %v6888
    %v6948 = vmul.f32 %v6736, %v6888
    %v6949 = vmul.f32 %v6737, %v6888
    %v6950 = vmul.f32 %v6738, %v6888
    %v6951 = vmul.f32 %v6739, %v6888
    %v6952 = vmul.f32 %v6740, %v6888
    %v6953 = vld [vmem:[%s4] sm:$0x1]
    %v6955 = vperm.slane %v6953, 0
    %v6957 = vadd.f32 %v6889, %v6955
    %v6958 = vadd.f32 %v6890, %v6955
    %v6959 = vadd.f32 %v6891, %v6955
    %v6960 = vadd.f32 %v6892, %v6955
    %v6961 = vadd.f32 %v6893, %v6955
    %v6962 = vadd.f32 %v6894, %v6955
    %v6963 = vadd.f32 %v6895, %v6955
    %v6964 = vadd.f32 %v6896, %v6955
    %v6965 = vadd.f32 %v6897, %v6955
    %v6966 = vadd.f32 %v6898, %v6955
    %v6967 = vadd.f32 %v6899, %v6955
    %v6968 = vadd.f32 %v6900, %v6955
    %v6969 = vadd.f32 %v6901, %v6955
    %v6970 = vadd.f32 %v6902, %v6955
    %v6971 = vadd.f32 %v6903, %v6955
    %v6972 = vadd.f32 %v6904, %v6955
    %v6973 = vadd.f32 %v6905, %v6955
    %v6974 = vadd.f32 %v6906, %v6955
    %v6975 = vadd.f32 %v6907, %v6955
    %v6976 = vadd.f32 %v6908, %v6955
    %v6977 = vadd.f32 %v6909, %v6955
    %v6978 = vadd.f32 %v6910, %v6955
    %v6979 = vadd.f32 %v6911, %v6955
    %v6980 = vadd.f32 %v6912, %v6955
    %v6981 = vadd.f32 %v6913, %v6955
    %v6982 = vadd.f32 %v6914, %v6955
    %v6983 = vadd.f32 %v6915, %v6955
    %v6984 = vadd.f32 %v6916, %v6955
    %v6985 = vadd.f32 %v6917, %v6955
    %v6986 = vadd.f32 %v6918, %v6955
    %v6987 = vadd.f32 %v6919, %v6955
    %v6988 = vadd.f32 %v6920, %v6955
    %v6989 = vadd.f32 %v6921, %v6955
    %v6990 = vadd.f32 %v6922, %v6955
    %v6991 = vadd.f32 %v6923, %v6955
    %v6992 = vadd.f32 %v6924, %v6955
    %v6993 = vadd.f32 %v6925, %v6955
    %v6994 = vadd.f32 %v6926, %v6955
    %v6995 = vadd.f32 %v6927, %v6955
    %v6996 = vadd.f32 %v6928, %v6955
    %v6997 = vadd.f32 %v6929, %v6955
    %v6998 = vadd.f32 %v6930, %v6955
    %v6999 = vadd.f32 %v6931, %v6955
    %v7000 = vadd.f32 %v6932, %v6955
    %v7001 = vadd.f32 %v6933, %v6955
    %v7002 = vadd.f32 %v6934, %v6955
    %v7003 = vadd.f32 %v6935, %v6955
    %v7004 = vadd.f32 %v6936, %v6955
    %v7005 = vadd.f32 %v6937, %v6955
    %v7006 = vadd.f32 %v6938, %v6955
    %v7007 = vadd.f32 %v6939, %v6955
    %v7008 = vadd.f32 %v6940, %v6955
    %v7009 = vadd.f32 %v6941, %v6955
    %v7010 = vadd.f32 %v6942, %v6955
    %v7011 = vadd.f32 %v6943, %v6955
    %v7012 = vadd.f32 %v6944, %v6955
    %v7013 = vadd.f32 %v6945, %v6955
    %v7014 = vadd.f32 %v6946, %v6955
    %v7015 = vadd.f32 %v6947, %v6955
    %v7016 = vadd.f32 %v6948, %v6955
    %v7017 = vadd.f32 %v6949, %v6955
    %v7018 = vadd.f32 %v6950, %v6955
    %v7019 = vadd.f32 %v6951, %v6955
    %v7020 = vadd.f32 %v6952, %v6955
    %v7021 = vmax.f32 %v6957, 0.0
    %v7022 = vmax.f32 %v6958, 0.0
    %v7023 = vmax.f32 %v6959, 0.0
    %v7024 = vmax.f32 %v6960, 0.0
    %v7025 = vmax.f32 %v6961, 0.0
    %v7026 = vmax.f32 %v6962, 0.0
    %v7027 = vmax.f32 %v6963, 0.0
    %v7028 = vmax.f32 %v6964, 0.0
    %v7029 = vmax.f32 %v6965, 0.0
    %v7030 = vmax.f32 %v6966, 0.0
    %v7031 = vmax.f32 %v6967, 0.0
    %v7032 = vmax.f32 %v6968, 0.0
    %v7033 = vmax.f32 %v6969, 0.0
    %v7034 = vmax.f32 %v6970, 0.0
    %v7035 = vmax.f32 %v6971, 0.0
    %v7036 = vmax.f32 %v6972, 0.0
    %v7037 = vmax.f32 %v6973, 0.0
    %v7038 = vmax.f32 %v6974, 0.0
    %v7039 = vmax.f32 %v6975, 0.0
    %v7040 = vmax.f32 %v6976, 0.0
    %v7041 = vmax.f32 %v6977, 0.0
    %v7042 = vmax.f32 %v6978, 0.0
    %v7043 = vmax.f32 %v6979, 0.0
    %v7044 = vmax.f32 %v6980, 0.0
    %v7045 = vmax.f32 %v6981, 0.0
    %v7046 = vmax.f32 %v6982, 0.0
    %v7047 = vmax.f32 %v6983, 0.0
    %v7048 = vmax.f32 %v6984, 0.0
    %v7049 = vmax.f32 %v6985, 0.0
    %v7050 = vmax.f32 %v6986, 0.0
    %v7051 = vmax.f32 %v6987, 0.0
    %v7052 = vmax.f32 %v6988, 0.0
    %v7053 = vmax.f32 %v6989, 0.0
    %v7054 = vmax.f32 %v6990, 0.0
    %v7055 = vmax.f32 %v6991, 0.0
    %v7056 = vmax.f32 %v6992, 0.0
    %v7057 = vmax.f32 %v6993, 0.0
    %v7058 = vmax.f32 %v6994, 0.0
    %v7059 = vmax.f32 %v6995, 0.0
    %v7060 = vmax.f32 %v6996, 0.0
    %v7061 = vmax.f32 %v6997, 0.0
    %v7062 = vmax.f32 %v6998, 0.0
    %v7063 = vmax.f32 %v6999, 0.0
    %v7064 = vmax.f32 %v7000, 0.0
    %v7065 = vmax.f32 %v7001, 0.0
    %v7066 = vmax.f32 %v7002, 0.0
    %v7067 = vmax.f32 %v7003, 0.0
    %v7068 = vmax.f32 %v7004, 0.0
    %v7069 = vmax.f32 %v7005, 0.0
    %v7070 = vmax.f32 %v7006, 0.0
    %v7071 = vmax.f32 %v7007, 0.0
    %v7072 = vmax.f32 %v7008, 0.0
    %v7073 = vmax.f32 %v7009, 0.0
    %v7074 = vmax.f32 %v7010, 0.0
    %v7075 = vmax.f32 %v7011, 0.0
    %v7076 = vmax.f32 %v7012, 0.0
    %v7077 = vmax.f32 %v7013, 0.0
    %v7078 = vmax.f32 %v7014, 0.0
    %v7079 = vmax.f32 %v7015, 0.0
    %v7080 = vmax.f32 %v7016, 0.0
    %v7081 = vmax.f32 %v7017, 0.0
    %v7082 = vmax.f32 %v7018, 0.0
    %v7083 = vmax.f32 %v7019, 0.0
    %v7084 = vmax.f32 %v7020, 0.0
    %7085 = vst.msk [vmem:[#allocation2 + $0x11] sm:$0xff] %vm30, %v7021
    %7086 = vst.msk [vmem:[#allocation2 + $0x19] sm:$0xff] %vm30, %v7022
    %7087 = vst.msk [vmem:[#allocation2 + $0x21] sm:$0xff] %vm30, %v7023
    %7088 = vst.msk [vmem:[#allocation2 + $0x29] sm:$0xff] %vm30, %v7024
    %7089 = vst.msk [vmem:[#allocation2 + $0x31] sm:$0xff] %vm30, %v7025
    %7090 = vst.msk [vmem:[#allocation2 + $0x39] sm:$0xff] %vm30, %v7026
    %7091 = vst.msk [vmem:[#allocation2 + $0x41] sm:$0xff] %vm30, %v7027
    %7092 = vst.msk [vmem:[#allocation2 + $0x49] sm:$0xff] %vm30, %v7028
    %7093 = vst.msk [vmem:[#allocation2 + $0x51] sm:$0xff] %vm30, %v7029
    %7094 = vst.msk [vmem:[#allocation2 + $0x59] sm:$0xff] %vm30, %v7030
    %7095 = vst.msk [vmem:[#allocation2 + $0x61] sm:$0xff] %vm30, %v7031
    %7096 = vst.msk [vmem:[#allocation2 + $0x69] sm:$0xff] %vm30, %v7032
    %7097 = vst.msk [vmem:[#allocation2 + $0x71] sm:$0xff] %vm30, %v7033
    %7098 = vst.msk [vmem:[#allocation2 + $0x79] sm:$0xff] %vm30, %v7034
    %7099 = vst.msk [vmem:[#allocation2 + $0x81] sm:$0xff] %vm30, %v7035
    %7100 = vst.msk [vmem:[#allocation2 + $0x89] sm:$0xff] %vm30, %v7036
    %7101 = vst.msk [vmem:[#allocation2 + $0x91] sm:$0xff] %vm30, %v7037
    %7102 = vst.msk [vmem:[#allocation2 + $0x99] sm:$0xff] %vm30, %v7038
    %7103 = vst.msk [vmem:[#allocation2 + $0xa1] sm:$0xff] %vm30, %v7039
    %7104 = vst.msk [vmem:[#allocation2 + $0xa9] sm:$0xff] %vm30, %v7040
    %7105 = vst.msk [vmem:[#allocation2 + $0xb1] sm:$0xff] %vm30, %v7041
    %7106 = vst.msk [vmem:[#allocation2 + $0xb9] sm:$0xff] %vm30, %v7042
    %7107 = vst.msk [vmem:[#allocation2 + $0xc1] sm:$0xff] %vm30, %v7043
    %7108 = vst.msk [vmem:[#allocation2 + $0xc9] sm:$0xff] %vm30, %v7044
    %7109 = vst.msk [vmem:[#allocation2 + $0xd1] sm:$0xff] %vm30, %v7045
    %7110 = vst.msk [vmem:[#allocation2 + $0xd9] sm:$0xff] %vm30, %v7046
    %7111 = vst.msk [vmem:[#allocation2 + $0xe1] sm:$0xff] %vm30, %v7047
    %7112 = vst.msk [vmem:[#allocation2 + $0xe9] sm:$0xff] %vm30, %v7048
    %7113 = vst.msk [vmem:[#allocation2 + $0xf1] sm:$0xff] %vm30, %v7049
    %7114 = vst.msk [vmem:[#allocation2 + $0xf9] sm:$0xff] %vm30, %v7050
    %7115 = vst.msk [vmem:[#allocation2 + $0x101] sm:$0xff] %vm30, %v7051
    %7116 = vst.msk [vmem:[#allocation2 + $0x109] sm:$0xff] %vm30, %v7052
    %7117 = vst.msk [vmem:[#allocation2 + $0x111] sm:$0xff] %vm30, %v7053
    %7118 = vst.msk [vmem:[#allocation2 + $0x119] sm:$0xff] %vm30, %v7054
    %7119 = vst.msk [vmem:[#allocation2 + $0x121] sm:$0xff] %vm30, %v7055
    %7120 = vst.msk [vmem:[#allocation2 + $0x129] sm:$0xff] %vm30, %v7056
    %7121 = vst.msk [vmem:[#allocation2 + $0x131] sm:$0xff] %vm30, %v7057
    %7122 = vst.msk [vmem:[#allocation2 + $0x139] sm:$0xff] %vm30, %v7058
    %7123 = vst.msk [vmem:[#allocation2 + $0x141] sm:$0xff] %vm30, %v7059
    %7124 = vst.msk [vmem:[#allocation2 + $0x149] sm:$0xff] %vm30, %v7060
    %7125 = vst.msk [vmem:[#allocation2 + $0x151] sm:$0xff] %vm30, %v7061
    %7126 = vst.msk [vmem:[#allocation2 + $0x159] sm:$0xff] %vm30, %v7062
    %7127 = vst.msk [vmem:[#allocation2 + $0x161] sm:$0xff] %vm30, %v7063
    %7128 = vst.msk [vmem:[#allocation2 + $0x169] sm:$0xff] %vm30, %v7064
    %7129 = vst.msk [vmem:[#allocation2 + $0x171] sm:$0xff] %vm30, %v7065
    %7130 = vst.msk [vmem:[#allocation2 + $0x179] sm:$0xff] %vm30, %v7066
    %7131 = vst.msk [vmem:[#allocation2 + $0x181] sm:$0xff] %vm30, %v7067
    %7132 = vst.msk [vmem:[#allocation2 + $0x189] sm:$0xff] %vm30, %v7068
    %7133 = vst.msk [vmem:[#allocation2 + $0x191] sm:$0xff] %vm30, %v7069
    %7134 = vst.msk [vmem:[#allocation2 + $0x199] sm:$0xff] %vm30, %v7070
    %7135 = vst.msk [vmem:[#allocation2 + $0x1a1] sm:$0xff] %vm30, %v7071
    %7136 = vst.msk [vmem:[#allocation2 + $0x1a9] sm:$0xff] %vm30, %v7072
    %7137 = vst.msk [vmem:[#allocation2 + $0x1b1] sm:$0xff] %vm30, %v7073
    %7138 = vst.msk [vmem:[#allocation2 + $0x1b9] sm:$0xff] %vm30, %v7074
    %7139 = vst.msk [vmem:[#allocation2 + $0x1c1] sm:$0xff] %vm30, %v7075
    %7140 = vst.msk [vmem:[#allocation2 + $0x1c9] sm:$0xff] %vm30, %v7076
    %7141 = vst.msk [vmem:[#allocation2 + $0x1d1] sm:$0xff] %vm30, %v7077
    %7142 = vst.msk [vmem:[#allocation2 + $0x1d9] sm:$0xff] %vm30, %v7078
    %7143 = vst.msk [vmem:[#allocation2 + $0x1e1] sm:$0xff] %vm30, %v7079
    %7144 = vst.msk [vmem:[#allocation2 + $0x1e9] sm:$0xff] %vm30, %v7080
    %7145 = vst.msk [vmem:[#allocation2 + $0x1f1] sm:$0xff] %vm30, %v7081
    %7146 = vst.msk [vmem:[#allocation2 + $0x1f9] sm:$0xff] %vm30, %v7082
    %7147 = vst.msk [vmem:[#allocation2 + $0x201] sm:$0xff] %vm30, %v7083
    %7148 = vst.msk [vmem:[#allocation2 + $0x209] sm:$0xff] %vm30, %v7084
    %v7149 = vld [vmem:[#allocation2] sm:$0xff]
    %v7150 = vld [vmem:[#allocation2 + $0x8] sm:$0xff]
    %v7151 = vld [vmem:[#allocation2 + $0x10] sm:$0xff]
    %v7152 = vld [vmem:[#allocation2 + $0x18] sm:$0xff]
    %v7153 = vld [vmem:[#allocation2 + $0x20] sm:$0xff]
    %v7154 = vld [vmem:[#allocation2 + $0x28] sm:$0xff]
    %v7155 = vld [vmem:[#allocation2 + $0x30] sm:$0xff]
    %v7156 = vld [vmem:[#allocation2 + $0x38] sm:$0xff]
    %v7157 = vld [vmem:[#allocation2 + $0x40] sm:$0xff]
    %v7158 = vld [vmem:[#allocation2 + $0x48] sm:$0xff]
    %v7159 = vld [vmem:[#allocation2 + $0x50] sm:$0xff]
    %v7160 = vld [vmem:[#allocation2 + $0x58] sm:$0xff]
    %v7161 = vld [vmem:[#allocation2 + $0x60] sm:$0xff]
    %v7162 = vld [vmem:[#allocation2 + $0x68] sm:$0xff]
    %v7163 = vld [vmem:[#allocation2 + $0x70] sm:$0xff]
    %v7164 = vld [vmem:[#allocation2 + $0x78] sm:$0xff]
    %v7165 = vld [vmem:[#allocation2 + $0x80] sm:$0xff]
    %v7166 = vld [vmem:[#allocation2 + $0x88] sm:$0xff]
    %v7167 = vld [vmem:[#allocation2 + $0x90] sm:$0xff]
    %v7168 = vld [vmem:[#allocation2 + $0x98] sm:$0xff]
    %v7169 = vld [vmem:[#allocation2 + $0xa0] sm:$0xff]
    %v7170 = vld [vmem:[#allocation2 + $0xa8] sm:$0xff]
    %v7171 = vld [vmem:[#allocation2 + $0xb0] sm:$0xff]
    %v7172 = vld [vmem:[#allocation2 + $0xb8] sm:$0xff]
    %v7173 = vld [vmem:[#allocation2 + $0xc0] sm:$0xff]
    %v7174 = vld [vmem:[#allocation2 + $0xc8] sm:$0xff]
    %v7175 = vld [vmem:[#allocation2 + $0xd0] sm:$0xff]
    %v7176 = vld [vmem:[#allocation2 + $0xd8] sm:$0xff]
    %v7177 = vld [vmem:[#allocation2 + $0xe0] sm:$0xff]
    %v7178 = vld [vmem:[#allocation2 + $0xe8] sm:$0xff]
    %v7179 = vld [vmem:[#allocation2 + $0xf0] sm:$0xff]
    %v7180 = vld [vmem:[#allocation2 + $0xf8] sm:$0xff]
    %v7181 = vld [vmem:[#allocation2 + $0x100] sm:$0xff]
    %v7182 = vld [vmem:[#allocation2 + $0x108] sm:$0xff]
    %v7183 = vld [vmem:[#allocation2 + $0x110] sm:$0xff]
    %v7184 = vld [vmem:[#allocation2 + $0x118] sm:$0xff]
    %v7185 = vld [vmem:[#allocation2 + $0x120] sm:$0xff]
    %v7186 = vld [vmem:[#allocation2 + $0x128] sm:$0xff]
    %v7187 = vld [vmem:[#allocation2 + $0x130] sm:$0xff]
    %v7188 = vld [vmem:[#allocation2 + $0x138] sm:$0xff]
    %v7189 = vld [vmem:[#allocation2 + $0x140] sm:$0xff]
    %v7190 = vld [vmem:[#allocation2 + $0x148] sm:$0xff]
    %v7191 = vld [vmem:[#allocation2 + $0x150] sm:$0xff]
    %v7192 = vld [vmem:[#allocation2 + $0x158] sm:$0xff]
    %v7193 = vld [vmem:[#allocation2 + $0x160] sm:$0xff]
    %v7194 = vld [vmem:[#allocation2 + $0x168] sm:$0xff]
    %v7195 = vld [vmem:[#allocation2 + $0x170] sm:$0xff]
    %v7196 = vld [vmem:[#allocation2 + $0x178] sm:$0xff]
    %v7197 = vld [vmem:[#allocation2 + $0x180] sm:$0xff]
    %v7198 = vld [vmem:[#allocation2 + $0x188] sm:$0xff]
    %v7199 = vld [vmem:[#allocation2 + $0x190] sm:$0xff]
    %v7200 = vld [vmem:[#allocation2 + $0x198] sm:$0xff]
    %v7201 = vld [vmem:[#allocation2 + $0x1a0] sm:$0xff]
    %v7202 = vld [vmem:[#allocation2 + $0x1a8] sm:$0xff]
    %v7203 = vld [vmem:[#allocation2 + $0x1b0] sm:$0xff]
    %v7204 = vld [vmem:[#allocation2 + $0x1b8] sm:$0xff]
    %v7205 = vld [vmem:[#allocation2 + $0x1c0] sm:$0xff]
    %v7206 = vld [vmem:[#allocation2 + $0x1c8] sm:$0xff]
    %v7207 = vld [vmem:[#allocation2 + $0x1d0] sm:$0xff]
    %v7208 = vld [vmem:[#allocation2 + $0x1d8] sm:$0xff]
    %v7209 = vld [vmem:[#allocation2 + $0x1e0] sm:$0xff]
    %v7210 = vld [vmem:[#allocation2 + $0x1e8] sm:$0xff]
    %v7211 = vld [vmem:[#allocation2 + $0x1f0] sm:$0xff]
    %v7212 = vld [vmem:[#allocation2 + $0x1f8] sm:$0xff]
    %v7213 = vld [vmem:[%s1] sm:$0xff]
    %v7214 = vld [vmem:[%s1 + $0x8] sm:$0xff]
    %v7215 = vld [vmem:[%s1 + $0x10] sm:$0xff]
    %v7216 = vld [vmem:[%s1 + $0x18] sm:$0xff]
    %v7217 = vld [vmem:[%s1 + $0x20] sm:$0xff]
    %v7218 = vld [vmem:[%s1 + $0x28] sm:$0xff]
    %v7219 = vld [vmem:[%s1 + $0x30] sm:$0xff]
    %v7220 = vld [vmem:[%s1 + $0x38] sm:$0xff]
    %v7221 = vld [vmem:[%s1 + $0x40] sm:$0xff]
    %v7222 = vld [vmem:[%s1 + $0x48] sm:$0xff]
    %v7223 = vld [vmem:[%s1 + $0x50] sm:$0xff]
    %v7224 = vld [vmem:[%s1 + $0x58] sm:$0xff]
    %v7225 = vld [vmem:[%s1 + $0x60] sm:$0xff]
    %v7226 = vld [vmem:[%s1 + $0x68] sm:$0xff]
    %v7227 = vld [vmem:[%s1 + $0x70] sm:$0xff]
    %v7228 = vld [vmem:[%s1 + $0x78] sm:$0xff]
    %v7229 = vld [vmem:[%s1 + $0x80] sm:$0xff]
    %v7230 = vld [vmem:[%s1 + $0x88] sm:$0xff]
    %v7231 = vld [vmem:[%s1 + $0x90] sm:$0xff]
    %v7232 = vld [vmem:[%s1 + $0x98] sm:$0xff]
    %v7233 = vld [vmem:[%s1 + $0xa0] sm:$0xff]
    %v7234 = vld [vmem:[%s1 + $0xa8] sm:$0xff]
    %v7235 = vld [vmem:[%s1 + $0xb0] sm:$0xff]
    %v7236 = vld [vmem:[%s1 + $0xb8] sm:$0xff]
    %v7237 = vld [vmem:[%s1 + $0xc0] sm:$0xff]
    %v7238 = vld [vmem:[%s1 + $0xc8] sm:$0xff]
    %v7239 = vld [vmem:[%s1 + $0xd0] sm:$0xff]
    %v7240 = vld [vmem:[%s1 + $0xd8] sm:$0xff]
    %v7241 = vld [vmem:[%s1 + $0xe0] sm:$0xff]
    %v7242 = vld [vmem:[%s1 + $0xe8] sm:$0xff]
    %v7243 = vld [vmem:[%s1 + $0xf0] sm:$0xff]
    %v7244 = vld [vmem:[%s1 + $0xf8] sm:$0xff]
    %v7245 = vld [vmem:[%s1 + $0x100] sm:$0xff]
    %v7246 = vld [vmem:[%s1 + $0x108] sm:$0xff]
    %v7247 = vld [vmem:[%s1 + $0x110] sm:$0xff]
    %v7248 = vld [vmem:[%s1 + $0x118] sm:$0xff]
    %v7249 = vld [vmem:[%s1 + $0x120] sm:$0xff]
    %v7250 = vld [vmem:[%s1 + $0x128] sm:$0xff]
    %v7251 = vld [vmem:[%s1 + $0x130] sm:$0xff]
    %v7252 = vld [vmem:[%s1 + $0x138] sm:$0xff]
    %v7253 = vld [vmem:[%s1 + $0x140] sm:$0xff]
    %v7254 = vld [vmem:[%s1 + $0x148] sm:$0xff]
    %v7255 = vld [vmem:[%s1 + $0x150] sm:$0xff]
    %v7256 = vld [vmem:[%s1 + $0x158] sm:$0xff]
    %v7257 = vld [vmem:[%s1 + $0x160] sm:$0xff]
    %v7258 = vld [vmem:[%s1 + $0x168] sm:$0xff]
    %v7259 = vld [vmem:[%s1 + $0x170] sm:$0xff]
    %v7260 = vld [vmem:[%s1 + $0x178] sm:$0xff]
    %v7261 = vld [vmem:[%s1 + $0x180] sm:$0xff]
    %v7262 = vld [vmem:[%s1 + $0x188] sm:$0xff]
    %v7263 = vld [vmem:[%s1 + $0x190] sm:$0xff]
    %v7264 = vld [vmem:[%s1 + $0x198] sm:$0xff]
    %v7265 = vld [vmem:[%s1 + $0x1a0] sm:$0xff]
    %v7266 = vld [vmem:[%s1 + $0x1a8] sm:$0xff]
    %v7267 = vld [vmem:[%s1 + $0x1b0] sm:$0xff]
    %v7268 = vld [vmem:[%s1 + $0x1b8] sm:$0xff]
    %v7269 = vld [vmem:[%s1 + $0x1c0] sm:$0xff]
    %v7270 = vld [vmem:[%s1 + $0x1c8] sm:$0xff]
    %v7271 = vld [vmem:[%s1 + $0x1d0] sm:$0xff]
    %v7272 = vld [vmem:[%s1 + $0x1d8] sm:$0xff]
    %v7273 = vld [vmem:[%s1 + $0x1e0] sm:$0xff]
    %v7274 = vld [vmem:[%s1 + $0x1e8] sm:$0xff]
    %v7275 = vld [vmem:[%s1 + $0x1f0] sm:$0xff]
    %v7276 = vld [vmem:[%s1 + $0x1f8] sm:$0xff]
    %7278 = vset.pattern.permute.xlu0 0
    %7279 = vperm.xlu0 %7278, %v7213
    %v7280 = vpop.permute.xlu0 %7279
    %7283 = vset.pattern.permute.xlu0 0
    %7284 = vperm.xlu0 %7283, %v7214
    %v7285 = vpop.permute.xlu0 %7284
    %7288 = vset.pattern.permute.xlu0 0
    %7289 = vperm.xlu0 %7288, %v7215
    %v7290 = vpop.permute.xlu0 %7289
    %7293 = vset.pattern.permute.xlu0 0
    %7294 = vperm.xlu0 %7293, %v7216
    %v7295 = vpop.permute.xlu0 %7294
    %7298 = vset.pattern.permute.xlu0 0
    %7299 = vperm.xlu0 %7298, %v7217
    %v7300 = vpop.permute.xlu0 %7299
    %7303 = vset.pattern.permute.xlu0 0
    %7304 = vperm.xlu0 %7303, %v7218
    %v7305 = vpop.permute.xlu0 %7304
    %7308 = vset.pattern.permute.xlu0 0
    %7309 = vperm.xlu0 %7308, %v7219
    %v7310 = vpop.permute.xlu0 %7309
    %7313 = vset.pattern.permute.xlu0 0
    %7314 = vperm.xlu0 %7313, %v7220
    %v7315 = vpop.permute.xlu0 %7314
    %7318 = vset.pattern.permute.xlu0 0
    %7319 = vperm.xlu0 %7318, %v7221
    %v7320 = vpop.permute.xlu0 %7319
    %7323 = vset.pattern.permute.xlu0 0
    %7324 = vperm.xlu0 %7323, %v7222
    %v7325 = vpop.permute.xlu0 %7324
    %7328 = vset.pattern.permute.xlu0 0
    %7329 = vperm.xlu0 %7328, %v7223
    %v7330 = vpop.permute.xlu0 %7329
    %7333 = vset.pattern.permute.xlu0 0
    %7334 = vperm.xlu0 %7333, %v7224
    %v7335 = vpop.permute.xlu0 %7334
    %7338 = vset.pattern.permute.xlu0 0
    %7339 = vperm.xlu0 %7338, %v7225
    %v7340 = vpop.permute.xlu0 %7339
    %7343 = vset.pattern.permute.xlu0 0
    %7344 = vperm.xlu0 %7343, %v7226
    %v7345 = vpop.permute.xlu0 %7344
    %7348 = vset.pattern.permute.xlu0 0
    %7349 = vperm.xlu0 %7348, %v7227
    %v7350 = vpop.permute.xlu0 %7349
    %7353 = vset.pattern.permute.xlu0 0
    %7354 = vperm.xlu0 %7353, %v7228
    %v7355 = vpop.permute.xlu0 %7354
    %7358 = vset.pattern.permute.xlu0 0
    %7359 = vperm.xlu0 %7358, %v7229
    %v7360 = vpop.permute.xlu0 %7359
    %7363 = vset.pattern.permute.xlu0 0
    %7364 = vperm.xlu0 %7363, %v7230
    %v7365 = vpop.permute.xlu0 %7364
    %7368 = vset.pattern.permute.xlu0 0
    %7369 = vperm.xlu0 %7368, %v7231
    %v7370 = vpop.permute.xlu0 %7369
    %7373 = vset.pattern.permute.xlu0 0
    %7374 = vperm.xlu0 %7373, %v7232
    %v7375 = vpop.permute.xlu0 %7374
    %7378 = vset.pattern.permute.xlu0 0
    %7379 = vperm.xlu0 %7378, %v7233
    %v7380 = vpop.permute.xlu0 %7379
    %7383 = vset.pattern.permute.xlu0 0
    %7384 = vperm.xlu0 %7383, %v7234
    %v7385 = vpop.permute.xlu0 %7384
    %7388 = vset.pattern.permute.xlu0 0
    %7389 = vperm.xlu0 %7388, %v7235
    %v7390 = vpop.permute.xlu0 %7389
    %7393 = vset.pattern.permute.xlu0 0
    %7394 = vperm.xlu0 %7393, %v7236
    %v7395 = vpop.permute.xlu0 %7394
    %7398 = vset.pattern.permute.xlu0 0
    %7399 = vperm.xlu0 %7398, %v7237
    %v7400 = vpop.permute.xlu0 %7399
    %7403 = vset.pattern.permute.xlu0 0
    %7404 = vperm.xlu0 %7403, %v7238
    %v7405 = vpop.permute.xlu0 %7404
    %7408 = vset.pattern.permute.xlu0 0
    %7409 = vperm.xlu0 %7408, %v7239
    %v7410 = vpop.permute.xlu0 %7409
    %7413 = vset.pattern.permute.xlu0 0
    %7414 = vperm.xlu0 %7413, %v7240
    %v7415 = vpop.permute.xlu0 %7414
    %7418 = vset.pattern.permute.xlu0 0
    %7419 = vperm.xlu0 %7418, %v7241
    %v7420 = vpop.permute.xlu0 %7419
    %7423 = vset.pattern.permute.xlu0 0
    %7424 = vperm.xlu0 %7423, %v7242
    %v7425 = vpop.permute.xlu0 %7424
    %7428 = vset.pattern.permute.xlu0 0
    %7429 = vperm.xlu0 %7428, %v7243
    %v7430 = vpop.permute.xlu0 %7429
    %7433 = vset.pattern.permute.xlu0 0
    %7434 = vperm.xlu0 %7433, %v7244
    %v7435 = vpop.permute.xlu0 %7434
    %7438 = vset.pattern.permute.xlu0 0
    %7439 = vperm.xlu0 %7438, %v7245
    %v7440 = vpop.permute.xlu0 %7439
    %7443 = vset.pattern.permute.xlu0 0
    %7444 = vperm.xlu0 %7443, %v7246
    %v7445 = vpop.permute.xlu0 %7444
    %7448 = vset.pattern.permute.xlu0 0
    %7449 = vperm.xlu0 %7448, %v7247
    %v7450 = vpop.permute.xlu0 %7449
    %7453 = vset.pattern.permute.xlu0 0
    %7454 = vperm.xlu0 %7453, %v7248
    %v7455 = vpop.permute.xlu0 %7454
    %7458 = vset.pattern.permute.xlu0 0
    %7459 = vperm.xlu0 %7458, %v7249
    %v7460 = vpop.permute.xlu0 %7459
    %7463 = vset.pattern.permute.xlu0 0
    %7464 = vperm.xlu0 %7463, %v7250
    %v7465 = vpop.permute.xlu0 %7464
    %7468 = vset.pattern.permute.xlu0 0
    %7469 = vperm.xlu0 %7468, %v7251
    %v7470 = vpop.permute.xlu0 %7469
    %7473 = vset.pattern.permute.xlu0 0
    %7474 = vperm.xlu0 %7473, %v7252
    %v7475 = vpop.permute.xlu0 %7474
    %7478 = vset.pattern.permute.xlu0 0
    %7479 = vperm.xlu0 %7478, %v7253
    %v7480 = vpop.permute.xlu0 %7479
    %7483 = vset.pattern.permute.xlu0 0
    %7484 = vperm.xlu0 %7483, %v7254
    %v7485 = vpop.permute.xlu0 %7484
    %7488 = vset.pattern.permute.xlu0 0
    %7489 = vperm.xlu0 %7488, %v7255
    %v7490 = vpop.permute.xlu0 %7489
    %7493 = vset.pattern.permute.xlu0 0
    %7494 = vperm.xlu0 %7493, %v7256
    %v7495 = vpop.permute.xlu0 %7494
    %7498 = vset.pattern.permute.xlu0 0
    %7499 = vperm.xlu0 %7498, %v7257
    %v7500 = vpop.permute.xlu0 %7499
    %7503 = vset.pattern.permute.xlu0 0
    %7504 = vperm.xlu0 %7503, %v7258
    %v7505 = vpop.permute.xlu0 %7504
    %7508 = vset.pattern.permute.xlu0 0
    %7509 = vperm.xlu0 %7508, %v7259
    %v7510 = vpop.permute.xlu0 %7509
    %7513 = vset.pattern.permute.xlu0 0
    %7514 = vperm.xlu0 %7513, %v7260
    %v7515 = vpop.permute.xlu0 %7514
    %7518 = vset.pattern.permute.xlu0 0
    %7519 = vperm.xlu0 %7518, %v7261
    %v7520 = vpop.permute.xlu0 %7519
    %7523 = vset.pattern.permute.xlu0 0
    %7524 = vperm.xlu0 %7523, %v7262
    %v7525 = vpop.permute.xlu0 %7524
    %7528 = vset.pattern.permute.xlu0 0
    %7529 = vperm.xlu0 %7528, %v7263
    %v7530 = vpop.permute.xlu0 %7529
    %7533 = vset.pattern.permute.xlu0 0
    %7534 = vperm.xlu0 %7533, %v7264
    %v7535 = vpop.permute.xlu0 %7534
    %7538 = vset.pattern.permute.xlu0 0
    %7539 = vperm.xlu0 %7538, %v7265
    %v7540 = vpop.permute.xlu0 %7539
    %7543 = vset.pattern.permute.xlu0 0
    %7544 = vperm.xlu0 %7543, %v7266
    %v7545 = vpop.permute.xlu0 %7544
    %7548 = vset.pattern.permute.xlu0 0
    %7549 = vperm.xlu0 %7548, %v7267
    %v7550 = vpop.permute.xlu0 %7549
    %7553 = vset.pattern.permute.xlu0 0
    %7554 = vperm.xlu0 %7553, %v7268
    %v7555 = vpop.permute.xlu0 %7554
    %7558 = vset.pattern.permute.xlu0 0
    %7559 = vperm.xlu0 %7558, %v7269
    %v7560 = vpop.permute.xlu0 %7559
    %7563 = vset.pattern.permute.xlu0 0
    %7564 = vperm.xlu0 %7563, %v7270
    %v7565 = vpop.permute.xlu0 %7564
    %7568 = vset.pattern.permute.xlu0 0
    %7569 = vperm.xlu0 %7568, %v7271
    %v7570 = vpop.permute.xlu0 %7569
    %7573 = vset.pattern.permute.xlu0 0
    %7574 = vperm.xlu0 %7573, %v7272
    %v7575 = vpop.permute.xlu0 %7574
    %7578 = vset.pattern.permute.xlu0 0
    %7579 = vperm.xlu0 %7578, %v7273
    %v7580 = vpop.permute.xlu0 %7579
    %7583 = vset.pattern.permute.xlu0 0
    %7584 = vperm.xlu0 %7583, %v7274
    %v7585 = vpop.permute.xlu0 %7584
    %7588 = vset.pattern.permute.xlu0 0
    %7589 = vperm.xlu0 %7588, %v7275
    %v7590 = vpop.permute.xlu0 %7589
    %7593 = vset.pattern.permute.xlu0 0
    %7594 = vperm.xlu0 %7593, %v7276
    %v7595 = vpop.permute.xlu0 %7594
    %v7597 = vmul.f32 %v7149, %v7280
    %v7598 = vmul.f32 %v7150, %v7285
    %v7599 = vmul.f32 %v7151, %v7290
    %v7600 = vmul.f32 %v7152, %v7295
    %v7601 = vmul.f32 %v7153, %v7300
    %v7602 = vmul.f32 %v7154, %v7305
    %v7603 = vmul.f32 %v7155, %v7310
    %v7604 = vmul.f32 %v7156, %v7315
    %v7605 = vmul.f32 %v7157, %v7320
    %v7606 = vmul.f32 %v7158, %v7325
    %v7607 = vmul.f32 %v7159, %v7330
    %v7608 = vmul.f32 %v7160, %v7335
    %v7609 = vmul.f32 %v7161, %v7340
    %v7610 = vmul.f32 %v7162, %v7345
    %v7611 = vmul.f32 %v7163, %v7350
    %v7612 = vmul.f32 %v7164, %v7355
    %v7613 = vmul.f32 %v7165, %v7360
    %v7614 = vmul.f32 %v7166, %v7365
    %v7615 = vmul.f32 %v7167, %v7370
    %v7616 = vmul.f32 %v7168, %v7375
    %v7617 = vmul.f32 %v7169, %v7380
    %v7618 = vmul.f32 %v7170, %v7385
    %v7619 = vmul.f32 %v7171, %v7390
    %v7620 = vmul.f32 %v7172, %v7395
    %v7621 = vmul.f32 %v7173, %v7400
    %v7622 = vmul.f32 %v7174, %v7405
    %v7623 = vmul.f32 %v7175, %v7410
    %v7624 = vmul.f32 %v7176, %v7415
    %v7625 = vmul.f32 %v7177, %v7420
    %v7626 = vmul.f32 %v7178, %v7425
    %v7627 = vmul.f32 %v7179, %v7430
    %v7628 = vmul.f32 %v7180, %v7435
    %v7629 = vmul.f32 %v7181, %v7440
    %v7630 = vmul.f32 %v7182, %v7445
    %v7631 = vmul.f32 %v7183, %v7450
    %v7632 = vmul.f32 %v7184, %v7455
    %v7633 = vmul.f32 %v7185, %v7460
    %v7634 = vmul.f32 %v7186, %v7465
    %v7635 = vmul.f32 %v7187, %v7470
    %v7636 = vmul.f32 %v7188, %v7475
    %v7637 = vmul.f32 %v7189, %v7480
    %v7638 = vmul.f32 %v7190, %v7485
    %v7639 = vmul.f32 %v7191, %v7490
    %v7640 = vmul.f32 %v7192, %v7495
    %v7641 = vmul.f32 %v7193, %v7500
    %v7642 = vmul.f32 %v7194, %v7505
    %v7643 = vmul.f32 %v7195, %v7510
    %v7644 = vmul.f32 %v7196, %v7515
    %v7645 = vmul.f32 %v7197, %v7520
    %v7646 = vmul.f32 %v7198, %v7525
    %v7647 = vmul.f32 %v7199, %v7530
    %v7648 = vmul.f32 %v7200, %v7535
    %v7649 = vmul.f32 %v7201, %v7540
    %v7650 = vmul.f32 %v7202, %v7545
    %v7651 = vmul.f32 %v7203, %v7550
    %v7652 = vmul.f32 %v7204, %v7555
    %v7653 = vmul.f32 %v7205, %v7560
    %v7654 = vmul.f32 %v7206, %v7565
    %v7655 = vmul.f32 %v7207, %v7570
    %v7656 = vmul.f32 %v7208, %v7575
    %v7657 = vmul.f32 %v7209, %v7580
    %v7658 = vmul.f32 %v7210, %v7585
    %v7659 = vmul.f32 %v7211, %v7590
    %v7660 = vmul.f32 %v7212, %v7595
    %v7661 = vld [vmem:[#allocation2 + $0x1] sm:$0xff]
    %v7662 = vld [vmem:[#allocation2 + $0x9] sm:$0xff]
    %v7663 = vld [vmem:[#allocation2 + $0x11] sm:$0xff]
    %v7664 = vld [vmem:[#allocation2 + $0x19] sm:$0xff]
    %v7665 = vld [vmem:[#allocation2 + $0x21] sm:$0xff]
    %v7666 = vld [vmem:[#allocation2 + $0x29] sm:$0xff]
    %v7667 = vld [vmem:[#allocation2 + $0x31] sm:$0xff]
    %v7668 = vld [vmem:[#allocation2 + $0x39] sm:$0xff]
    %v7669 = vld [vmem:[#allocation2 + $0x41] sm:$0xff]
    %v7670 = vld [vmem:[#allocation2 + $0x49] sm:$0xff]
    %v7671 = vld [vmem:[#allocation2 + $0x51] sm:$0xff]
    %v7672 = vld [vmem:[#allocation2 + $0x59] sm:$0xff]
    %v7673 = vld [vmem:[#allocation2 + $0x61] sm:$0xff]
    %v7674 = vld [vmem:[#allocation2 + $0x69] sm:$0xff]
    %v7675 = vld [vmem:[#allocation2 + $0x71] sm:$0xff]
    %v7676 = vld [vmem:[#allocation2 + $0x79] sm:$0xff]
    %v7677 = vld [vmem:[#allocation2 + $0x81] sm:$0xff]
    %v7678 = vld [vmem:[#allocation2 + $0x89] sm:$0xff]
    %v7679 = vld [vmem:[#allocation2 + $0x91] sm:$0xff]
    %v7680 = vld [vmem:[#allocation2 + $0x99] sm:$0xff]
    %v7681 = vld [vmem:[#allocation2 + $0xa1] sm:$0xff]
    %v7682 = vld [vmem:[#allocation2 + $0xa9] sm:$0xff]
    %v7683 = vld [vmem:[#allocation2 + $0xb1] sm:$0xff]
    %v7684 = vld [vmem:[#allocation2 + $0xb9] sm:$0xff]
    %v7685 = vld [vmem:[#allocation2 + $0xc1] sm:$0xff]
    %v7686 = vld [vmem:[#allocation2 + $0xc9] sm:$0xff]
    %v7687 = vld [vmem:[#allocation2 + $0xd1] sm:$0xff]
    %v7688 = vld [vmem:[#allocation2 + $0xd9] sm:$0xff]
    %v7689 = vld [vmem:[#allocation2 + $0xe1] sm:$0xff]
    %v7690 = vld [vmem:[#allocation2 + $0xe9] sm:$0xff]
    %v7691 = vld [vmem:[#allocation2 + $0xf1] sm:$0xff]
    %v7692 = vld [vmem:[#allocation2 + $0xf9] sm:$0xff]
    %v7693 = vld [vmem:[#allocation2 + $0x101] sm:$0xff]
    %v7694 = vld [vmem:[#allocation2 + $0x109] sm:$0xff]
    %v7695 = vld [vmem:[#allocation2 + $0x111] sm:$0xff]
    %v7696 = vld [vmem:[#allocation2 + $0x119] sm:$0xff]
    %v7697 = vld [vmem:[#allocation2 + $0x121] sm:$0xff]
    %v7698 = vld [vmem:[#allocation2 + $0x129] sm:$0xff]
    %v7699 = vld [vmem:[#allocation2 + $0x131] sm:$0xff]
    %v7700 = vld [vmem:[#allocation2 + $0x139] sm:$0xff]
    %v7701 = vld [vmem:[#allocation2 + $0x141] sm:$0xff]
    %v7702 = vld [vmem:[#allocation2 + $0x149] sm:$0xff]
    %v7703 = vld [vmem:[#allocation2 + $0x151] sm:$0xff]
    %v7704 = vld [vmem:[#allocation2 + $0x159] sm:$0xff]
    %v7705 = vld [vmem:[#allocation2 + $0x161] sm:$0xff]
    %v7706 = vld [vmem:[#allocation2 + $0x169] sm:$0xff]
    %v7707 = vld [vmem:[#allocation2 + $0x171] sm:$0xff]
    %v7708 = vld [vmem:[#allocation2 + $0x179] sm:$0xff]
    %v7709 = vld [vmem:[#allocation2 + $0x181] sm:$0xff]
    %v7710 = vld [vmem:[#allocation2 + $0x189] sm:$0xff]
    %v7711 = vld [vmem:[#allocation2 + $0x191] sm:$0xff]
    %v7712 = vld [vmem:[#allocation2 + $0x199] sm:$0xff]
    %v7713 = vld [vmem:[#allocation2 + $0x1a1] sm:$0xff]
    %v7714 = vld [vmem:[#allocation2 + $0x1a9] sm:$0xff]
    %v7715 = vld [vmem:[#allocation2 + $0x1b1] sm:$0xff]
    %v7716 = vld [vmem:[#allocation2 + $0x1b9] sm:$0xff]
    %v7717 = vld [vmem:[#allocation2 + $0x1c1] sm:$0xff]
    %v7718 = vld [vmem:[#allocation2 + $0x1c9] sm:$0xff]
    %v7719 = vld [vmem:[#allocation2 + $0x1d1] sm:$0xff]
    %v7720 = vld [vmem:[#allocation2 + $0x1d9] sm:$0xff]
    %v7721 = vld [vmem:[#allocation2 + $0x1e1] sm:$0xff]
    %v7722 = vld [vmem:[#allocation2 + $0x1e9] sm:$0xff]
    %v7723 = vld [vmem:[#allocation2 + $0x1f1] sm:$0xff]
    %v7724 = vld [vmem:[#allocation2 + $0x1f9] sm:$0xff]
    %7725 = vset.pattern.permute.xlu0 1
    %7726 = vperm.xlu0 %7725, %v7213
    %v7727 = vpop.permute.xlu0 %7726
    %7729 = vset.pattern.permute.xlu0 1
    %7730 = vperm.xlu0 %7729, %v7214
    %v7731 = vpop.permute.xlu0 %7730
    %7733 = vset.pattern.permute.xlu0 1
    %7734 = vperm.xlu0 %7733, %v7215
    %v7735 = vpop.permute.xlu0 %7734
    %7737 = vset.pattern.permute.xlu0 1
    %7738 = vperm.xlu0 %7737, %v7216
    %v7739 = vpop.permute.xlu0 %7738
    %7741 = vset.pattern.permute.xlu0 1
    %7742 = vperm.xlu0 %7741, %v7217
    %v7743 = vpop.permute.xlu0 %7742
    %7745 = vset.pattern.permute.xlu0 1
    %7746 = vperm.xlu0 %7745, %v7218
    %v7747 = vpop.permute.xlu0 %7746
    %7749 = vset.pattern.permute.xlu0 1
    %7750 = vperm.xlu0 %7749, %v7219
    %v7751 = vpop.permute.xlu0 %7750
    %7753 = vset.pattern.permute.xlu0 1
    %7754 = vperm.xlu0 %7753, %v7220
    %v7755 = vpop.permute.xlu0 %7754
    %7757 = vset.pattern.permute.xlu0 1
    %7758 = vperm.xlu0 %7757, %v7221
    %v7759 = vpop.permute.xlu0 %7758
    %7761 = vset.pattern.permute.xlu0 1
    %7762 = vperm.xlu0 %7761, %v7222
    %v7763 = vpop.permute.xlu0 %7762
    %7765 = vset.pattern.permute.xlu0 1
    %7766 = vperm.xlu0 %7765, %v7223
    %v7767 = vpop.permute.xlu0 %7766
    %7769 = vset.pattern.permute.xlu0 1
    %7770 = vperm.xlu0 %7769, %v7224
    %v7771 = vpop.permute.xlu0 %7770
    %7773 = vset.pattern.permute.xlu0 1
    %7774 = vperm.xlu0 %7773, %v7225
    %v7775 = vpop.permute.xlu0 %7774
    %7777 = vset.pattern.permute.xlu0 1
    %7778 = vperm.xlu0 %7777, %v7226
    %v7779 = vpop.permute.xlu0 %7778
    %7781 = vset.pattern.permute.xlu0 1
    %7782 = vperm.xlu0 %7781, %v7227
    %v7783 = vpop.permute.xlu0 %7782
    %7785 = vset.pattern.permute.xlu0 1
    %7786 = vperm.xlu0 %7785, %v7228
    %v7787 = vpop.permute.xlu0 %7786
    %7789 = vset.pattern.permute.xlu0 1
    %7790 = vperm.xlu0 %7789, %v7229
    %v7791 = vpop.permute.xlu0 %7790
    %7793 = vset.pattern.permute.xlu0 1
    %7794 = vperm.xlu0 %7793, %v7230
    %v7795 = vpop.permute.xlu0 %7794
    %7797 = vset.pattern.permute.xlu0 1
    %7798 = vperm.xlu0 %7797, %v7231
    %v7799 = vpop.permute.xlu0 %7798
    %7801 = vset.pattern.permute.xlu0 1
    %7802 = vperm.xlu0 %7801, %v7232
    %v7803 = vpop.permute.xlu0 %7802
    %7805 = vset.pattern.permute.xlu0 1
    %7806 = vperm.xlu0 %7805, %v7233
    %v7807 = vpop.permute.xlu0 %7806
    %7809 = vset.pattern.permute.xlu0 1
    %7810 = vperm.xlu0 %7809, %v7234
    %v7811 = vpop.permute.xlu0 %7810
    %7813 = vset.pattern.permute.xlu0 1
    %7814 = vperm.xlu0 %7813, %v7235
    %v7815 = vpop.permute.xlu0 %7814
    %7817 = vset.pattern.permute.xlu0 1
    %7818 = vperm.xlu0 %7817, %v7236
    %v7819 = vpop.permute.xlu0 %7818
    %7821 = vset.pattern.permute.xlu0 1
    %7822 = vperm.xlu0 %7821, %v7237
    %v7823 = vpop.permute.xlu0 %7822
    %7825 = vset.pattern.permute.xlu0 1
    %7826 = vperm.xlu0 %7825, %v7238
    %v7827 = vpop.permute.xlu0 %7826
    %7829 = vset.pattern.permute.xlu0 1
    %7830 = vperm.xlu0 %7829, %v7239
    %v7831 = vpop.permute.xlu0 %7830
    %7833 = vset.pattern.permute.xlu0 1
    %7834 = vperm.xlu0 %7833, %v7240
    %v7835 = vpop.permute.xlu0 %7834
    %7837 = vset.pattern.permute.xlu0 1
    %7838 = vperm.xlu0 %7837, %v7241
    %v7839 = vpop.permute.xlu0 %7838
    %7841 = vset.pattern.permute.xlu0 1
    %7842 = vperm.xlu0 %7841, %v7242
    %v7843 = vpop.permute.xlu0 %7842
    %7845 = vset.pattern.permute.xlu0 1
    %7846 = vperm.xlu0 %7845, %v7243
    %v7847 = vpop.permute.xlu0 %7846
    %7849 = vset.pattern.permute.xlu0 1
    %7850 = vperm.xlu0 %7849, %v7244
    %v7851 = vpop.permute.xlu0 %7850
    %7853 = vset.pattern.permute.xlu0 1
    %7854 = vperm.xlu0 %7853, %v7245
    %v7855 = vpop.permute.xlu0 %7854
    %7857 = vset.pattern.permute.xlu0 1
    %7858 = vperm.xlu0 %7857, %v7246
    %v7859 = vpop.permute.xlu0 %7858
    %7861 = vset.pattern.permute.xlu0 1
    %7862 = vperm.xlu0 %7861, %v7247
    %v7863 = vpop.permute.xlu0 %7862
    %7865 = vset.pattern.permute.xlu0 1
    %7866 = vperm.xlu0 %7865, %v7248
    %v7867 = vpop.permute.xlu0 %7866
    %7869 = vset.pattern.permute.xlu0 1
    %7870 = vperm.xlu0 %7869, %v7249
    %v7871 = vpop.permute.xlu0 %7870
    %7873 = vset.pattern.permute.xlu0 1
    %7874 = vperm.xlu0 %7873, %v7250
    %v7875 = vpop.permute.xlu0 %7874
    %7877 = vset.pattern.permute.xlu0 1
    %7878 = vperm.xlu0 %7877, %v7251
    %v7879 = vpop.permute.xlu0 %7878
    %7881 = vset.pattern.permute.xlu0 1
    %7882 = vperm.xlu0 %7881, %v7252
    %v7883 = vpop.permute.xlu0 %7882
    %7885 = vset.pattern.permute.xlu0 1
    %7886 = vperm.xlu0 %7885, %v7253
    %v7887 = vpop.permute.xlu0 %7886
    %7889 = vset.pattern.permute.xlu0 1
    %7890 = vperm.xlu0 %7889, %v7254
    %v7891 = vpop.permute.xlu0 %7890
    %7893 = vset.pattern.permute.xlu0 1
    %7894 = vperm.xlu0 %7893, %v7255
    %v7895 = vpop.permute.xlu0 %7894
    %7897 = vset.pattern.permute.xlu0 1
    %7898 = vperm.xlu0 %7897, %v7256
    %v7899 = vpop.permute.xlu0 %7898
    %7901 = vset.pattern.permute.xlu0 1
    %7902 = vperm.xlu0 %7901, %v7257
    %v7903 = vpop.permute.xlu0 %7902
    %7905 = vset.pattern.permute.xlu0 1
    %7906 = vperm.xlu0 %7905, %v7258
    %v7907 = vpop.permute.xlu0 %7906
    %7909 = vset.pattern.permute.xlu0 1
    %7910 = vperm.xlu0 %7909, %v7259
    %v7911 = vpop.permute.xlu0 %7910
    %7913 = vset.pattern.permute.xlu0 1
    %7914 = vperm.xlu0 %7913, %v7260
    %v7915 = vpop.permute.xlu0 %7914
    %7917 = vset.pattern.permute.xlu0 1
    %7918 = vperm.xlu0 %7917, %v7261
    %v7919 = vpop.permute.xlu0 %7918
    %7921 = vset.pattern.permute.xlu0 1
    %7922 = vperm.xlu0 %7921, %v7262
    %v7923 = vpop.permute.xlu0 %7922
    %7925 = vset.pattern.permute.xlu0 1
    %7926 = vperm.xlu0 %7925, %v7263
    %v7927 = vpop.permute.xlu0 %7926
    %7929 = vset.pattern.permute.xlu0 1
    %7930 = vperm.xlu0 %7929, %v7264
    %v7931 = vpop.permute.xlu0 %7930
    %7933 = vset.pattern.permute.xlu0 1
    %7934 = vperm.xlu0 %7933, %v7265
    %v7935 = vpop.permute.xlu0 %7934
    %7937 = vset.pattern.permute.xlu0 1
    %7938 = vperm.xlu0 %7937, %v7266
    %v7939 = vpop.permute.xlu0 %7938
    %7941 = vset.pattern.permute.xlu0 1
    %7942 = vperm.xlu0 %7941, %v7267
    %v7943 = vpop.permute.xlu0 %7942
    %7945 = vset.pattern.permute.xlu0 1
    %7946 = vperm.xlu0 %7945, %v7268
    %v7947 = vpop.permute.xlu0 %7946
    %7949 = vset.pattern.permute.xlu0 1
    %7950 = vperm.xlu0 %7949, %v7269
    %v7951 = vpop.permute.xlu0 %7950
    %7953 = vset.pattern.permute.xlu0 1
    %7954 = vperm.xlu0 %7953, %v7270
    %v7955 = vpop.permute.xlu0 %7954
    %7957 = vset.pattern.permute.xlu0 1
    %7958 = vperm.xlu0 %7957, %v7271
    %v7959 = vpop.permute.xlu0 %7958
    %7961 = vset.pattern.permute.xlu0 1
    %7962 = vperm.xlu0 %7961, %v7272
    %v7963 = vpop.permute.xlu0 %7962
    %7965 = vset.pattern.permute.xlu0 1
    %7966 = vperm.xlu0 %7965, %v7273
    %v7967 = vpop.permute.xlu0 %7966
    %7969 = vset.pattern.permute.xlu0 1
    %7970 = vperm.xlu0 %7969, %v7274
    %v7971 = vpop.permute.xlu0 %7970
    %7973 = vset.pattern.permute.xlu0 1
    %7974 = vperm.xlu0 %7973, %v7275
    %v7975 = vpop.permute.xlu0 %7974
    %7977 = vset.pattern.permute.xlu0 1
    %7978 = vperm.xlu0 %7977, %v7276
    %v7979 = vpop.permute.xlu0 %7978
    %v7981 = vmul.f32 %v7661, %v7727
    %v7982 = vmul.f32 %v7662, %v7731
    %v7983 = vmul.f32 %v7663, %v7735
    %v7984 = vmul.f32 %v7664, %v7739
    %v7985 = vmul.f32 %v7665, %v7743
    %v7986 = vmul.f32 %v7666, %v7747
    %v7987 = vmul.f32 %v7667, %v7751
    %v7988 = vmul.f32 %v7668, %v7755
    %v7989 = vmul.f32 %v7669, %v7759
    %v7990 = vmul.f32 %v7670, %v7763
    %v7991 = vmul.f32 %v7671, %v7767
    %v7992 = vmul.f32 %v7672, %v7771
    %v7993 = vmul.f32 %v7673, %v7775
    %v7994 = vmul.f32 %v7674, %v7779
    %v7995 = vmul.f32 %v7675, %v7783
    %v7996 = vmul.f32 %v7676, %v7787
    %v7997 = vmul.f32 %v7677, %v7791
    %v7998 = vmul.f32 %v7678, %v7795
    %v7999 = vmul.f32 %v7679, %v7799
    %v8000 = vmul.f32 %v7680, %v7803
    %v8001 = vmul.f32 %v7681, %v7807
    %v8002 = vmul.f32 %v7682, %v7811
    %v8003 = vmul.f32 %v7683, %v7815
    %v8004 = vmul.f32 %v7684, %v7819
    %v8005 = vmul.f32 %v7685, %v7823
    %v8006 = vmul.f32 %v7686, %v7827
    %v8007 = vmul.f32 %v7687, %v7831
    %v8008 = vmul.f32 %v7688, %v7835
    %v8009 = vmul.f32 %v7689, %v7839
    %v8010 = vmul.f32 %v7690, %v7843
    %v8011 = vmul.f32 %v7691, %v7847
    %v8012 = vmul.f32 %v7692, %v7851
    %v8013 = vmul.f32 %v7693, %v7855
    %v8014 = vmul.f32 %v7694, %v7859
    %v8015 = vmul.f32 %v7695, %v7863
    %v8016 = vmul.f32 %v7696, %v7867
    %v8017 = vmul.f32 %v7697, %v7871
    %v8018 = vmul.f32 %v7698, %v7875
    %v8019 = vmul.f32 %v7699, %v7879
    %v8020 = vmul.f32 %v7700, %v7883
    %v8021 = vmul.f32 %v7701, %v7887
    %v8022 = vmul.f32 %v7702, %v7891
    %v8023 = vmul.f32 %v7703, %v7895
    %v8024 = vmul.f32 %v7704, %v7899
    %v8025 = vmul.f32 %v7705, %v7903
    %v8026 = vmul.f32 %v7706, %v7907
    %v8027 = vmul.f32 %v7707, %v7911
    %v8028 = vmul.f32 %v7708, %v7915
    %v8029 = vmul.f32 %v7709, %v7919
    %v8030 = vmul.f32 %v7710, %v7923
    %v8031 = vmul.f32 %v7711, %v7927
    %v8032 = vmul.f32 %v7712, %v7931
    %v8033 = vmul.f32 %v7713, %v7935
    %v8034 = vmul.f32 %v7714, %v7939
    %v8035 = vmul.f32 %v7715, %v7943
    %v8036 = vmul.f32 %v7716, %v7947
    %v8037 = vmul.f32 %v7717, %v7951
    %v8038 = vmul.f32 %v7718, %v7955
    %v8039 = vmul.f32 %v7719, %v7959
    %v8040 = vmul.f32 %v7720, %v7963
    %v8041 = vmul.f32 %v7721, %v7967
    %v8042 = vmul.f32 %v7722, %v7971
    %v8043 = vmul.f32 %v7723, %v7975
    %v8044 = vmul.f32 %v7724, %v7979
    %v8045 = vld [vmem:[#allocation2 + $0x2] sm:$0xff]
    %v8046 = vld [vmem:[#allocation2 + $0xa] sm:$0xff]
    %v8047 = vld [vmem:[#allocation2 + $0x12] sm:$0xff]
    %v8048 = vld [vmem:[#allocation2 + $0x1a] sm:$0xff]
    %v8049 = vld [vmem:[#allocation2 + $0x22] sm:$0xff]
    %v8050 = vld [vmem:[#allocation2 + $0x2a] sm:$0xff]
    %v8051 = vld [vmem:[#allocation2 + $0x32] sm:$0xff]
    %v8052 = vld [vmem:[#allocation2 + $0x3a] sm:$0xff]
    %v8053 = vld [vmem:[#allocation2 + $0x42] sm:$0xff]
    %v8054 = vld [vmem:[#allocation2 + $0x4a] sm:$0xff]
    %v8055 = vld [vmem:[#allocation2 + $0x52] sm:$0xff]
    %v8056 = vld [vmem:[#allocation2 + $0x5a] sm:$0xff]
    %v8057 = vld [vmem:[#allocation2 + $0x62] sm:$0xff]
    %v8058 = vld [vmem:[#allocation2 + $0x6a] sm:$0xff]
    %v8059 = vld [vmem:[#allocation2 + $0x72] sm:$0xff]
    %v8060 = vld [vmem:[#allocation2 + $0x7a] sm:$0xff]
    %v8061 = vld [vmem:[#allocation2 + $0x82] sm:$0xff]
    %v8062 = vld [vmem:[#allocation2 + $0x8a] sm:$0xff]
    %v8063 = vld [vmem:[#allocation2 + $0x92] sm:$0xff]
    %v8064 = vld [vmem:[#allocation2 + $0x9a] sm:$0xff]
    %v8065 = vld [vmem:[#allocation2 + $0xa2] sm:$0xff]
    %v8066 = vld [vmem:[#allocation2 + $0xaa] sm:$0xff]
    %v8067 = vld [vmem:[#allocation2 + $0xb2] sm:$0xff]
    %v8068 = vld [vmem:[#allocation2 + $0xba] sm:$0xff]
    %v8069 = vld [vmem:[#allocation2 + $0xc2] sm:$0xff]
    %v8070 = vld [vmem:[#allocation2 + $0xca] sm:$0xff]
    %v8071 = vld [vmem:[#allocation2 + $0xd2] sm:$0xff]
    %v8072 = vld [vmem:[#allocation2 + $0xda] sm:$0xff]
    %v8073 = vld [vmem:[#allocation2 + $0xe2] sm:$0xff]
    %v8074 = vld [vmem:[#allocation2 + $0xea] sm:$0xff]
    %v8075 = vld [vmem:[#allocation2 + $0xf2] sm:$0xff]
    %v8076 = vld [vmem:[#allocation2 + $0xfa] sm:$0xff]
    %v8077 = vld [vmem:[#allocation2 + $0x102] sm:$0xff]
    %v8078 = vld [vmem:[#allocation2 + $0x10a] sm:$0xff]
    %v8079 = vld [vmem:[#allocation2 + $0x112] sm:$0xff]
    %v8080 = vld [vmem:[#allocation2 + $0x11a] sm:$0xff]
    %v8081 = vld [vmem:[#allocation2 + $0x122] sm:$0xff]
    %v8082 = vld [vmem:[#allocation2 + $0x12a] sm:$0xff]
    %v8083 = vld [vmem:[#allocation2 + $0x132] sm:$0xff]
    %v8084 = vld [vmem:[#allocation2 + $0x13a] sm:$0xff]
    %v8085 = vld [vmem:[#allocation2 + $0x142] sm:$0xff]
    %v8086 = vld [vmem:[#allocation2 + $0x14a] sm:$0xff]
    %v8087 = vld [vmem:[#allocation2 + $0x152] sm:$0xff]
    %v8088 = vld [vmem:[#allocation2 + $0x15a] sm:$0xff]
    %v8089 = vld [vmem:[#allocation2 + $0x162] sm:$0xff]
    %v8090 = vld [vmem:[#allocation2 + $0x16a] sm:$0xff]
    %v8091 = vld [vmem:[#allocation2 + $0x172] sm:$0xff]
    %v8092 = vld [vmem:[#allocation2 + $0x17a] sm:$0xff]
    %v8093 = vld [vmem:[#allocation2 + $0x182] sm:$0xff]
    %v8094 = vld [vmem:[#allocation2 + $0x18a] sm:$0xff]
    %v8095 = vld [vmem:[#allocation2 + $0x192] sm:$0xff]
    %v8096 = vld [vmem:[#allocation2 + $0x19a] sm:$0xff]
    %v8097 = vld [vmem:[#allocation2 + $0x1a2] sm:$0xff]
    %v8098 = vld [vmem:[#allocation2 + $0x1aa] sm:$0xff]
    %v8099 = vld [vmem:[#allocation2 + $0x1b2] sm:$0xff]
    %v8100 = vld [vmem:[#allocation2 + $0x1ba] sm:$0xff]
    %v8101 = vld [vmem:[#allocation2 + $0x1c2] sm:$0xff]
    %v8102 = vld [vmem:[#allocation2 + $0x1ca] sm:$0xff]
    %v8103 = vld [vmem:[#allocation2 + $0x1d2] sm:$0xff]
    %v8104 = vld [vmem:[#allocation2 + $0x1da] sm:$0xff]
    %v8105 = vld [vmem:[#allocation2 + $0x1e2] sm:$0xff]
    %v8106 = vld [vmem:[#allocation2 + $0x1ea] sm:$0xff]
    %v8107 = vld [vmem:[#allocation2 + $0x1f2] sm:$0xff]
    %v8108 = vld [vmem:[#allocation2 + $0x1fa] sm:$0xff]
    %8109 = vset.pattern.permute.xlu0 2
    %8110 = vperm.xlu0 %8109, %v7213
    %v8111 = vpop.permute.xlu0 %8110
    %8113 = vset.pattern.permute.xlu0 2
    %8114 = vperm.xlu0 %8113, %v7214
    %v8115 = vpop.permute.xlu0 %8114
    %8117 = vset.pattern.permute.xlu0 2
    %8118 = vperm.xlu0 %8117, %v7215
    %v8119 = vpop.permute.xlu0 %8118
    %8121 = vset.pattern.permute.xlu0 2
    %8122 = vperm.xlu0 %8121, %v7216
    %v8123 = vpop.permute.xlu0 %8122
    %8125 = vset.pattern.permute.xlu0 2
    %8126 = vperm.xlu0 %8125, %v7217
    %v8127 = vpop.permute.xlu0 %8126
    %8129 = vset.pattern.permute.xlu0 2
    %8130 = vperm.xlu0 %8129, %v7218
    %v8131 = vpop.permute.xlu0 %8130
    %8133 = vset.pattern.permute.xlu0 2
    %8134 = vperm.xlu0 %8133, %v7219
    %v8135 = vpop.permute.xlu0 %8134
    %8137 = vset.pattern.permute.xlu0 2
    %8138 = vperm.xlu0 %8137, %v7220
    %v8139 = vpop.permute.xlu0 %8138
    %8141 = vset.pattern.permute.xlu0 2
    %8142 = vperm.xlu0 %8141, %v7221
    %v8143 = vpop.permute.xlu0 %8142
    %8145 = vset.pattern.permute.xlu0 2
    %8146 = vperm.xlu0 %8145, %v7222
    %v8147 = vpop.permute.xlu0 %8146
    %8149 = vset.pattern.permute.xlu0 2
    %8150 = vperm.xlu0 %8149, %v7223
    %v8151 = vpop.permute.xlu0 %8150
    %8153 = vset.pattern.permute.xlu0 2
    %8154 = vperm.xlu0 %8153, %v7224
    %v8155 = vpop.permute.xlu0 %8154
    %8157 = vset.pattern.permute.xlu0 2
    %8158 = vperm.xlu0 %8157, %v7225
    %v8159 = vpop.permute.xlu0 %8158
    %8161 = vset.pattern.permute.xlu0 2
    %8162 = vperm.xlu0 %8161, %v7226
    %v8163 = vpop.permute.xlu0 %8162
    %8165 = vset.pattern.permute.xlu0 2
    %8166 = vperm.xlu0 %8165, %v7227
    %v8167 = vpop.permute.xlu0 %8166
    %8169 = vset.pattern.permute.xlu0 2
    %8170 = vperm.xlu0 %8169, %v7228
    %v8171 = vpop.permute.xlu0 %8170
    %8173 = vset.pattern.permute.xlu0 2
    %8174 = vperm.xlu0 %8173, %v7229
    %v8175 = vpop.permute.xlu0 %8174
    %8177 = vset.pattern.permute.xlu0 2
    %8178 = vperm.xlu0 %8177, %v7230
    %v8179 = vpop.permute.xlu0 %8178
    %8181 = vset.pattern.permute.xlu0 2
    %8182 = vperm.xlu0 %8181, %v7231
    %v8183 = vpop.permute.xlu0 %8182
    %8185 = vset.pattern.permute.xlu0 2
    %8186 = vperm.xlu0 %8185, %v7232
    %v8187 = vpop.permute.xlu0 %8186
    %8189 = vset.pattern.permute.xlu0 2
    %8190 = vperm.xlu0 %8189, %v7233
    %v8191 = vpop.permute.xlu0 %8190
    %8193 = vset.pattern.permute.xlu0 2
    %8194 = vperm.xlu0 %8193, %v7234
    %v8195 = vpop.permute.xlu0 %8194
    %8197 = vset.pattern.permute.xlu0 2
    %8198 = vperm.xlu0 %8197, %v7235
    %v8199 = vpop.permute.xlu0 %8198
    %8201 = vset.pattern.permute.xlu0 2
    %8202 = vperm.xlu0 %8201, %v7236
    %v8203 = vpop.permute.xlu0 %8202
    %8205 = vset.pattern.permute.xlu0 2
    %8206 = vperm.xlu0 %8205, %v7237
    %v8207 = vpop.permute.xlu0 %8206
    %8209 = vset.pattern.permute.xlu0 2
    %8210 = vperm.xlu0 %8209, %v7238
    %v8211 = vpop.permute.xlu0 %8210
    %8213 = vset.pattern.permute.xlu0 2
    %8214 = vperm.xlu0 %8213, %v7239
    %v8215 = vpop.permute.xlu0 %8214
    %8217 = vset.pattern.permute.xlu0 2
    %8218 = vperm.xlu0 %8217, %v7240
    %v8219 = vpop.permute.xlu0 %8218
    %8221 = vset.pattern.permute.xlu0 2
    %8222 = vperm.xlu0 %8221, %v7241
    %v8223 = vpop.permute.xlu0 %8222
    %8225 = vset.pattern.permute.xlu0 2
    %8226 = vperm.xlu0 %8225, %v7242
    %v8227 = vpop.permute.xlu0 %8226
    %8229 = vset.pattern.permute.xlu0 2
    %8230 = vperm.xlu0 %8229, %v7243
    %v8231 = vpop.permute.xlu0 %8230
    %8233 = vset.pattern.permute.xlu0 2
    %8234 = vperm.xlu0 %8233, %v7244
    %v8235 = vpop.permute.xlu0 %8234
    %8237 = vset.pattern.permute.xlu0 2
    %8238 = vperm.xlu0 %8237, %v7245
    %v8239 = vpop.permute.xlu0 %8238
    %8241 = vset.pattern.permute.xlu0 2
    %8242 = vperm.xlu0 %8241, %v7246
    %v8243 = vpop.permute.xlu0 %8242
    %8245 = vset.pattern.permute.xlu0 2
    %8246 = vperm.xlu0 %8245, %v7247
    %v8247 = vpop.permute.xlu0 %8246
    %8249 = vset.pattern.permute.xlu0 2
    %8250 = vperm.xlu0 %8249, %v7248
    %v8251 = vpop.permute.xlu0 %8250
    %8253 = vset.pattern.permute.xlu0 2
    %8254 = vperm.xlu0 %8253, %v7249
    %v8255 = vpop.permute.xlu0 %8254
    %8257 = vset.pattern.permute.xlu0 2
    %8258 = vperm.xlu0 %8257, %v7250
    %v8259 = vpop.permute.xlu0 %8258
    %8261 = vset.pattern.permute.xlu0 2
    %8262 = vperm.xlu0 %8261, %v7251
    %v8263 = vpop.permute.xlu0 %8262
    %8265 = vset.pattern.permute.xlu0 2
    %8266 = vperm.xlu0 %8265, %v7252
    %v8267 = vpop.permute.xlu0 %8266
    %8269 = vset.pattern.permute.xlu0 2
    %8270 = vperm.xlu0 %8269, %v7253
    %v8271 = vpop.permute.xlu0 %8270
    %8273 = vset.pattern.permute.xlu0 2
    %8274 = vperm.xlu0 %8273, %v7254
    %v8275 = vpop.permute.xlu0 %8274
    %8277 = vset.pattern.permute.xlu0 2
    %8278 = vperm.xlu0 %8277, %v7255
    %v8279 = vpop.permute.xlu0 %8278
    %8281 = vset.pattern.permute.xlu0 2
    %8282 = vperm.xlu0 %8281, %v7256
    %v8283 = vpop.permute.xlu0 %8282
    %8285 = vset.pattern.permute.xlu0 2
    %8286 = vperm.xlu0 %8285, %v7257
    %v8287 = vpop.permute.xlu0 %8286
    %8289 = vset.pattern.permute.xlu0 2
    %8290 = vperm.xlu0 %8289, %v7258
    %v8291 = vpop.permute.xlu0 %8290
    %8293 = vset.pattern.permute.xlu0 2
    %8294 = vperm.xlu0 %8293, %v7259
    %v8295 = vpop.permute.xlu0 %8294
    %8297 = vset.pattern.permute.xlu0 2
    %8298 = vperm.xlu0 %8297, %v7260
    %v8299 = vpop.permute.xlu0 %8298
    %8301 = vset.pattern.permute.xlu0 2
    %8302 = vperm.xlu0 %8301, %v7261
    %v8303 = vpop.permute.xlu0 %8302
    %8305 = vset.pattern.permute.xlu0 2
    %8306 = vperm.xlu0 %8305, %v7262
    %v8307 = vpop.permute.xlu0 %8306
    %8309 = vset.pattern.permute.xlu0 2
    %8310 = vperm.xlu0 %8309, %v7263
    %v8311 = vpop.permute.xlu0 %8310
    %8313 = vset.pattern.permute.xlu0 2
    %8314 = vperm.xlu0 %8313, %v7264
    %v8315 = vpop.permute.xlu0 %8314
    %8317 = vset.pattern.permute.xlu0 2
    %8318 = vperm.xlu0 %8317, %v7265
    %v8319 = vpop.permute.xlu0 %8318
    %8321 = vset.pattern.permute.xlu0 2
    %8322 = vperm.xlu0 %8321, %v7266
    %v8323 = vpop.permute.xlu0 %8322
    %8325 = vset.pattern.permute.xlu0 2
    %8326 = vperm.xlu0 %8325, %v7267
    %v8327 = vpop.permute.xlu0 %8326
    %8329 = vset.pattern.permute.xlu0 2
    %8330 = vperm.xlu0 %8329, %v7268
    %v8331 = vpop.permute.xlu0 %8330
    %8333 = vset.pattern.permute.xlu0 2
    %8334 = vperm.xlu0 %8333, %v7269
    %v8335 = vpop.permute.xlu0 %8334
    %8337 = vset.pattern.permute.xlu0 2
    %8338 = vperm.xlu0 %8337, %v7270
    %v8339 = vpop.permute.xlu0 %8338
    %8341 = vset.pattern.permute.xlu0 2
    %8342 = vperm.xlu0 %8341, %v7271
    %v8343 = vpop.permute.xlu0 %8342
    %8345 = vset.pattern.permute.xlu0 2
    %8346 = vperm.xlu0 %8345, %v7272
    %v8347 = vpop.permute.xlu0 %8346
    %8349 = vset.pattern.permute.xlu0 2
    %8350 = vperm.xlu0 %8349, %v7273
    %v8351 = vpop.permute.xlu0 %8350
    %8353 = vset.pattern.permute.xlu0 2
    %8354 = vperm.xlu0 %8353, %v7274
    %v8355 = vpop.permute.xlu0 %8354
    %8357 = vset.pattern.permute.xlu0 2
    %8358 = vperm.xlu0 %8357, %v7275
    %v8359 = vpop.permute.xlu0 %8358
    %8361 = vset.pattern.permute.xlu0 2
    %8362 = vperm.xlu0 %8361, %v7276
    %v8363 = vpop.permute.xlu0 %8362
    %v8365 = vmul.f32 %v8045, %v8111
    %v8366 = vmul.f32 %v8046, %v8115
    %v8367 = vmul.f32 %v8047, %v8119
    %v8368 = vmul.f32 %v8048, %v8123
    %v8369 = vmul.f32 %v8049, %v8127
    %v8370 = vmul.f32 %v8050, %v8131
    %v8371 = vmul.f32 %v8051, %v8135
    %v8372 = vmul.f32 %v8052, %v8139
    %v8373 = vmul.f32 %v8053, %v8143
    %v8374 = vmul.f32 %v8054, %v8147
    %v8375 = vmul.f32 %v8055, %v8151
    %v8376 = vmul.f32 %v8056, %v8155
    %v8377 = vmul.f32 %v8057, %v8159
    %v8378 = vmul.f32 %v8058, %v8163
    %v8379 = vmul.f32 %v8059, %v8167
    %v8380 = vmul.f32 %v8060, %v8171
    %v8381 = vmul.f32 %v8061, %v8175
    %v8382 = vmul.f32 %v8062, %v8179
    %v8383 = vmul.f32 %v8063, %v8183
    %v8384 = vmul.f32 %v8064, %v8187
    %v8385 = vmul.f32 %v8065, %v8191
    %v8386 = vmul.f32 %v8066, %v8195
    %v8387 = vmul.f32 %v8067, %v8199
    %v8388 = vmul.f32 %v8068, %v8203
    %v8389 = vmul.f32 %v8069, %v8207
    %v8390 = vmul.f32 %v8070, %v8211
    %v8391 = vmul.f32 %v8071, %v8215
    %v8392 = vmul.f32 %v8072, %v8219
    %v8393 = vmul.f32 %v8073, %v8223
    %v8394 = vmul.f32 %v8074, %v8227
    %v8395 = vmul.f32 %v8075, %v8231
    %v8396 = vmul.f32 %v8076, %v8235
    %v8397 = vmul.f32 %v8077, %v8239
    %v8398 = vmul.f32 %v8078, %v8243
    %v8399 = vmul.f32 %v8079, %v8247
    %v8400 = vmul.f32 %v8080, %v8251
    %v8401 = vmul.f32 %v8081, %v8255
    %v8402 = vmul.f32 %v8082, %v8259
    %v8403 = vmul.f32 %v8083, %v8263
    %v8404 = vmul.f32 %v8084, %v8267
    %v8405 = vmul.f32 %v8085, %v8271
    %v8406 = vmul.f32 %v8086, %v8275
    %v8407 = vmul.f32 %v8087, %v8279
    %v8408 = vmul.f32 %v8088, %v8283
    %v8409 = vmul.f32 %v8089, %v8287
    %v8410 = vmul.f32 %v8090, %v8291
    %v8411 = vmul.f32 %v8091, %v8295
    %v8412 = vmul.f32 %v8092, %v8299
    %v8413 = vmul.f32 %v8093, %v8303
    %v8414 = vmul.f32 %v8094, %v8307
    %v8415 = vmul.f32 %v8095, %v8311
    %v8416 = vmul.f32 %v8096, %v8315
    %v8417 = vmul.f32 %v8097, %v8319
    %v8418 = vmul.f32 %v8098, %v8323
    %v8419 = vmul.f32 %v8099, %v8327
    %v8420 = vmul.f32 %v8100, %v8331
    %v8421 = vmul.f32 %v8101, %v8335
    %v8422 = vmul.f32 %v8102, %v8339
    %v8423 = vmul.f32 %v8103, %v8343
    %v8424 = vmul.f32 %v8104, %v8347
    %v8425 = vmul.f32 %v8105, %v8351
    %v8426 = vmul.f32 %v8106, %v8355
    %v8427 = vmul.f32 %v8107, %v8359
    %v8428 = vmul.f32 %v8108, %v8363
    %v8429 = vld [vmem:[#allocation2 + $0x10] sm:$0xff]
    %v8430 = vld [vmem:[#allocation2 + $0x18] sm:$0xff]
    %v8431 = vld [vmem:[#allocation2 + $0x20] sm:$0xff]
    %v8432 = vld [vmem:[#allocation2 + $0x28] sm:$0xff]
    %v8433 = vld [vmem:[#allocation2 + $0x30] sm:$0xff]
    %v8434 = vld [vmem:[#allocation2 + $0x38] sm:$0xff]
    %v8435 = vld [vmem:[#allocation2 + $0x40] sm:$0xff]
    %v8436 = vld [vmem:[#allocation2 + $0x48] sm:$0xff]
    %v8437 = vld [vmem:[#allocation2 + $0x50] sm:$0xff]
    %v8438 = vld [vmem:[#allocation2 + $0x58] sm:$0xff]
    %v8439 = vld [vmem:[#allocation2 + $0x60] sm:$0xff]
    %v8440 = vld [vmem:[#allocation2 + $0x68] sm:$0xff]
    %v8441 = vld [vmem:[#allocation2 + $0x70] sm:$0xff]
    %v8442 = vld [vmem:[#allocation2 + $0x78] sm:$0xff]
    %v8443 = vld [vmem:[#allocation2 + $0x80] sm:$0xff]
    %v8444 = vld [vmem:[#allocation2 + $0x88] sm:$0xff]
    %v8445 = vld [vmem:[#allocation2 + $0x90] sm:$0xff]
    %v8446 = vld [vmem:[#allocation2 + $0x98] sm:$0xff]
    %v8447 = vld [vmem:[#allocation2 + $0xa0] sm:$0xff]
    %v8448 = vld [vmem:[#allocation2 + $0xa8] sm:$0xff]
    %v8449 = vld [vmem:[#allocation2 + $0xb0] sm:$0xff]
    %v8450 = vld [vmem:[#allocation2 + $0xb8] sm:$0xff]
    %v8451 = vld [vmem:[#allocation2 + $0xc0] sm:$0xff]
    %v8452 = vld [vmem:[#allocation2 + $0xc8] sm:$0xff]
    %v8453 = vld [vmem:[#allocation2 + $0xd0] sm:$0xff]
    %v8454 = vld [vmem:[#allocation2 + $0xd8] sm:$0xff]
    %v8455 = vld [vmem:[#allocation2 + $0xe0] sm:$0xff]
    %v8456 = vld [vmem:[#allocation2 + $0xe8] sm:$0xff]
    %v8457 = vld [vmem:[#allocation2 + $0xf0] sm:$0xff]
    %v8458 = vld [vmem:[#allocation2 + $0xf8] sm:$0xff]
    %v8459 = vld [vmem:[#allocation2 + $0x100] sm:$0xff]
    %v8460 = vld [vmem:[#allocation2 + $0x108] sm:$0xff]
    %v8461 = vld [vmem:[#allocation2 + $0x110] sm:$0xff]
    %v8462 = vld [vmem:[#allocation2 + $0x118] sm:$0xff]
    %v8463 = vld [vmem:[#allocation2 + $0x120] sm:$0xff]
    %v8464 = vld [vmem:[#allocation2 + $0x128] sm:$0xff]
    %v8465 = vld [vmem:[#allocation2 + $0x130] sm:$0xff]
    %v8466 = vld [vmem:[#allocation2 + $0x138] sm:$0xff]
    %v8467 = vld [vmem:[#allocation2 + $0x140] sm:$0xff]
    %v8468 = vld [vmem:[#allocation2 + $0x148] sm:$0xff]
    %v8469 = vld [vmem:[#allocation2 + $0x150] sm:$0xff]
    %v8470 = vld [vmem:[#allocation2 + $0x158] sm:$0xff]
    %v8471 = vld [vmem:[#allocation2 + $0x160] sm:$0xff]
    %v8472 = vld [vmem:[#allocation2 + $0x168] sm:$0xff]
    %v8473 = vld [vmem:[#allocation2 + $0x170] sm:$0xff]
    %v8474 = vld [vmem:[#allocation2 + $0x178] sm:$0xff]
    %v8475 = vld [vmem:[#allocation2 + $0x180] sm:$0xff]
    %v8476 = vld [vmem:[#allocation2 + $0x188] sm:$0xff]
    %v8477 = vld [vmem:[#allocation2 + $0x190] sm:$0xff]
    %v8478 = vld [vmem:[#allocation2 + $0x198] sm:$0xff]
    %v8479 = vld [vmem:[#allocation2 + $0x1a0] sm:$0xff]
    %v8480 = vld [vmem:[#allocation2 + $0x1a8] sm:$0xff]
    %v8481 = vld [vmem:[#allocation2 + $0x1b0] sm:$0xff]
    %v8482 = vld [vmem:[#allocation2 + $0x1b8] sm:$0xff]
    %v8483 = vld [vmem:[#allocation2 + $0x1c0] sm:$0xff]
    %v8484 = vld [vmem:[#allocation2 + $0x1c8] sm:$0xff]
    %v8485 = vld [vmem:[#allocation2 + $0x1d0] sm:$0xff]
    %v8486 = vld [vmem:[#allocation2 + $0x1d8] sm:$0xff]
    %v8487 = vld [vmem:[#allocation2 + $0x1e0] sm:$0xff]
    %v8488 = vld [vmem:[#allocation2 + $0x1e8] sm:$0xff]
    %v8489 = vld [vmem:[#allocation2 + $0x1f0] sm:$0xff]
    %v8490 = vld [vmem:[#allocation2 + $0x1f8] sm:$0xff]
    %v8491 = vld [vmem:[#allocation2 + $0x200] sm:$0xff]
    %v8492 = vld [vmem:[#allocation2 + $0x208] sm:$0xff]
    %8493 = vset.pattern.permute.xlu0 3
    %8494 = vperm.xlu0 %8493, %v7213
    %v8495 = vpop.permute.xlu0 %8494
    %8497 = vset.pattern.permute.xlu0 3
    %8498 = vperm.xlu0 %8497, %v7214
    %v8499 = vpop.permute.xlu0 %8498
    %8501 = vset.pattern.permute.xlu0 3
    %8502 = vperm.xlu0 %8501, %v7215
    %v8503 = vpop.permute.xlu0 %8502
    %8505 = vset.pattern.permute.xlu0 3
    %8506 = vperm.xlu0 %8505, %v7216
    %v8507 = vpop.permute.xlu0 %8506
    %8509 = vset.pattern.permute.xlu0 3
    %8510 = vperm.xlu0 %8509, %v7217
    %v8511 = vpop.permute.xlu0 %8510
    %8513 = vset.pattern.permute.xlu0 3
    %8514 = vperm.xlu0 %8513, %v7218
    %v8515 = vpop.permute.xlu0 %8514
    %8517 = vset.pattern.permute.xlu0 3
    %8518 = vperm.xlu0 %8517, %v7219
    %v8519 = vpop.permute.xlu0 %8518
    %8521 = vset.pattern.permute.xlu0 3
    %8522 = vperm.xlu0 %8521, %v7220
    %v8523 = vpop.permute.xlu0 %8522
    %8525 = vset.pattern.permute.xlu0 3
    %8526 = vperm.xlu0 %8525, %v7221
    %v8527 = vpop.permute.xlu0 %8526
    %8529 = vset.pattern.permute.xlu0 3
    %8530 = vperm.xlu0 %8529, %v7222
    %v8531 = vpop.permute.xlu0 %8530
    %8533 = vset.pattern.permute.xlu0 3
    %8534 = vperm.xlu0 %8533, %v7223
    %v8535 = vpop.permute.xlu0 %8534
    %8537 = vset.pattern.permute.xlu0 3
    %8538 = vperm.xlu0 %8537, %v7224
    %v8539 = vpop.permute.xlu0 %8538
    %8541 = vset.pattern.permute.xlu0 3
    %8542 = vperm.xlu0 %8541, %v7225
    %v8543 = vpop.permute.xlu0 %8542
    %8545 = vset.pattern.permute.xlu0 3
    %8546 = vperm.xlu0 %8545, %v7226
    %v8547 = vpop.permute.xlu0 %8546
    %8549 = vset.pattern.permute.xlu0 3
    %8550 = vperm.xlu0 %8549, %v7227
    %v8551 = vpop.permute.xlu0 %8550
    %8553 = vset.pattern.permute.xlu0 3
    %8554 = vperm.xlu0 %8553, %v7228
    %v8555 = vpop.permute.xlu0 %8554
    %8557 = vset.pattern.permute.xlu0 3
    %8558 = vperm.xlu0 %8557, %v7229
    %v8559 = vpop.permute.xlu0 %8558
    %8561 = vset.pattern.permute.xlu0 3
    %8562 = vperm.xlu0 %8561, %v7230
    %v8563 = vpop.permute.xlu0 %8562
    %8565 = vset.pattern.permute.xlu0 3
    %8566 = vperm.xlu0 %8565, %v7231
    %v8567 = vpop.permute.xlu0 %8566
    %8569 = vset.pattern.permute.xlu0 3
    %8570 = vperm.xlu0 %8569, %v7232
    %v8571 = vpop.permute.xlu0 %8570
    %8573 = vset.pattern.permute.xlu0 3
    %8574 = vperm.xlu0 %8573, %v7233
    %v8575 = vpop.permute.xlu0 %8574
    %8577 = vset.pattern.permute.xlu0 3
    %8578 = vperm.xlu0 %8577, %v7234
    %v8579 = vpop.permute.xlu0 %8578
    %8581 = vset.pattern.permute.xlu0 3
    %8582 = vperm.xlu0 %8581, %v7235
    %v8583 = vpop.permute.xlu0 %8582
    %8585 = vset.pattern.permute.xlu0 3
    %8586 = vperm.xlu0 %8585, %v7236
    %v8587 = vpop.permute.xlu0 %8586
    %8589 = vset.pattern.permute.xlu0 3
    %8590 = vperm.xlu0 %8589, %v7237
    %v8591 = vpop.permute.xlu0 %8590
    %8593 = vset.pattern.permute.xlu0 3
    %8594 = vperm.xlu0 %8593, %v7238
    %v8595 = vpop.permute.xlu0 %8594
    %8597 = vset.pattern.permute.xlu0 3
    %8598 = vperm.xlu0 %8597, %v7239
    %v8599 = vpop.permute.xlu0 %8598
    %8601 = vset.pattern.permute.xlu0 3
    %8602 = vperm.xlu0 %8601, %v7240
    %v8603 = vpop.permute.xlu0 %8602
    %8605 = vset.pattern.permute.xlu0 3
    %8606 = vperm.xlu0 %8605, %v7241
    %v8607 = vpop.permute.xlu0 %8606
    %8609 = vset.pattern.permute.xlu0 3
    %8610 = vperm.xlu0 %8609, %v7242
    %v8611 = vpop.permute.xlu0 %8610
    %8613 = vset.pattern.permute.xlu0 3
    %8614 = vperm.xlu0 %8613, %v7243
    %v8615 = vpop.permute.xlu0 %8614
    %8617 = vset.pattern.permute.xlu0 3
    %8618 = vperm.xlu0 %8617, %v7244
    %v8619 = vpop.permute.xlu0 %8618
    %8621 = vset.pattern.permute.xlu0 3
    %8622 = vperm.xlu0 %8621, %v7245
    %v8623 = vpop.permute.xlu0 %8622
    %8625 = vset.pattern.permute.xlu0 3
    %8626 = vperm.xlu0 %8625, %v7246
    %v8627 = vpop.permute.xlu0 %8626
    %8629 = vset.pattern.permute.xlu0 3
    %8630 = vperm.xlu0 %8629, %v7247
    %v8631 = vpop.permute.xlu0 %8630
    %8633 = vset.pattern.permute.xlu0 3
    %8634 = vperm.xlu0 %8633, %v7248
    %v8635 = vpop.permute.xlu0 %8634
    %8637 = vset.pattern.permute.xlu0 3
    %8638 = vperm.xlu0 %8637, %v7249
    %v8639 = vpop.permute.xlu0 %8638
    %8641 = vset.pattern.permute.xlu0 3
    %8642 = vperm.xlu0 %8641, %v7250
    %v8643 = vpop.permute.xlu0 %8642
    %8645 = vset.pattern.permute.xlu0 3
    %8646 = vperm.xlu0 %8645, %v7251
    %v8647 = vpop.permute.xlu0 %8646
    %8649 = vset.pattern.permute.xlu0 3
    %8650 = vperm.xlu0 %8649, %v7252
    %v8651 = vpop.permute.xlu0 %8650
    %8653 = vset.pattern.permute.xlu0 3
    %8654 = vperm.xlu0 %8653, %v7253
    %v8655 = vpop.permute.xlu0 %8654
    %8657 = vset.pattern.permute.xlu0 3
    %8658 = vperm.xlu0 %8657, %v7254
    %v8659 = vpop.permute.xlu0 %8658
    %8661 = vset.pattern.permute.xlu0 3
    %8662 = vperm.xlu0 %8661, %v7255
    %v8663 = vpop.permute.xlu0 %8662
    %8665 = vset.pattern.permute.xlu0 3
    %8666 = vperm.xlu0 %8665, %v7256
    %v8667 = vpop.permute.xlu0 %8666
    %8669 = vset.pattern.permute.xlu0 3
    %8670 = vperm.xlu0 %8669, %v7257
    %v8671 = vpop.permute.xlu0 %8670
    %8673 = vset.pattern.permute.xlu0 3
    %8674 = vperm.xlu0 %8673, %v7258
    %v8675 = vpop.permute.xlu0 %8674
    %8677 = vset.pattern.permute.xlu0 3
    %8678 = vperm.xlu0 %8677, %v7259
    %v8679 = vpop.permute.xlu0 %8678
    %8681 = vset.pattern.permute.xlu0 3
    %8682 = vperm.xlu0 %8681, %v7260
    %v8683 = vpop.permute.xlu0 %8682
    %8685 = vset.pattern.permute.xlu0 3
    %8686 = vperm.xlu0 %8685, %v7261
    %v8687 = vpop.permute.xlu0 %8686
    %8689 = vset.pattern.permute.xlu0 3
    %8690 = vperm.xlu0 %8689, %v7262
    %v8691 = vpop.permute.xlu0 %8690
    %8693 = vset.pattern.permute.xlu0 3
    %8694 = vperm.xlu0 %8693, %v7263
    %v8695 = vpop.permute.xlu0 %8694
    %8697 = vset.pattern.permute.xlu0 3
    %8698 = vperm.xlu0 %8697, %v7264
    %v8699 = vpop.permute.xlu0 %8698
    %8701 = vset.pattern.permute.xlu0 3
    %8702 = vperm.xlu0 %8701, %v7265
    %v8703 = vpop.permute.xlu0 %8702
    %8705 = vset.pattern.permute.xlu0 3
    %8706 = vperm.xlu0 %8705, %v7266
    %v8707 = vpop.permute.xlu0 %8706
    %8709 = vset.pattern.permute.xlu0 3
    %8710 = vperm.xlu0 %8709, %v7267
    %v8711 = vpop.permute.xlu0 %8710
    %8713 = vset.pattern.permute.xlu0 3
    %8714 = vperm.xlu0 %8713, %v7268
    %v8715 = vpop.permute.xlu0 %8714
    %8717 = vset.pattern.permute.xlu0 3
    %8718 = vperm.xlu0 %8717, %v7269
    %v8719 = vpop.permute.xlu0 %8718
    %8721 = vset.pattern.permute.xlu0 3
    %8722 = vperm.xlu0 %8721, %v7270
    %v8723 = vpop.permute.xlu0 %8722
    %8725 = vset.pattern.permute.xlu0 3
    %8726 = vperm.xlu0 %8725, %v7271
    %v8727 = vpop.permute.xlu0 %8726
    %8729 = vset.pattern.permute.xlu0 3
    %8730 = vperm.xlu0 %8729, %v7272
    %v8731 = vpop.permute.xlu0 %8730
    %8733 = vset.pattern.permute.xlu0 3
    %8734 = vperm.xlu0 %8733, %v7273
    %v8735 = vpop.permute.xlu0 %8734
    %8737 = vset.pattern.permute.xlu0 3
    %8738 = vperm.xlu0 %8737, %v7274
    %v8739 = vpop.permute.xlu0 %8738
    %8741 = vset.pattern.permute.xlu0 3
    %8742 = vperm.xlu0 %8741, %v7275
    %v8743 = vpop.permute.xlu0 %8742
    %8745 = vset.pattern.permute.xlu0 3
    %8746 = vperm.xlu0 %8745, %v7276
    %v8747 = vpop.permute.xlu0 %8746
    %v8749 = vmul.f32 %v8429, %v8495
    %v8750 = vmul.f32 %v8430, %v8499
    %v8751 = vmul.f32 %v8431, %v8503
    %v8752 = vmul.f32 %v8432, %v8507
    %v8753 = vmul.f32 %v8433, %v8511
    %v8754 = vmul.f32 %v8434, %v8515
    %v8755 = vmul.f32 %v8435, %v8519
    %v8756 = vmul.f32 %v8436, %v8523
    %v8757 = vmul.f32 %v8437, %v8527
    %v8758 = vmul.f32 %v8438, %v8531
    %v8759 = vmul.f32 %v8439, %v8535
    %v8760 = vmul.f32 %v8440, %v8539
    %v8761 = vmul.f32 %v8441, %v8543
    %v8762 = vmul.f32 %v8442, %v8547
    %v8763 = vmul.f32 %v8443, %v8551
    %v8764 = vmul.f32 %v8444, %v8555
    %v8765 = vmul.f32 %v8445, %v8559
    %v8766 = vmul.f32 %v8446, %v8563
    %v8767 = vmul.f32 %v8447, %v8567
    %v8768 = vmul.f32 %v8448, %v8571
    %v8769 = vmul.f32 %v8449, %v8575
    %v8770 = vmul.f32 %v8450, %v8579
    %v8771 = vmul.f32 %v8451, %v8583
    %v8772 = vmul.f32 %v8452, %v8587
    %v8773 = vmul.f32 %v8453, %v8591
    %v8774 = vmul.f32 %v8454, %v8595
    %v8775 = vmul.f32 %v8455, %v8599
    %v8776 = vmul.f32 %v8456, %v8603
    %v8777 = vmul.f32 %v8457, %v8607
    %v8778 = vmul.f32 %v8458, %v8611
    %v8779 = vmul.f32 %v8459, %v8615
    %v8780 = vmul.f32 %v8460, %v8619
    %v8781 = vmul.f32 %v8461, %v8623
    %v8782 = vmul.f32 %v8462, %v8627
    %v8783 = vmul.f32 %v8463, %v8631
    %v8784 = vmul.f32 %v8464, %v8635
    %v8785 = vmul.f32 %v8465, %v8639
    %v8786 = vmul.f32 %v8466, %v8643
    %v8787 = vmul.f32 %v8467, %v8647
    %v8788 = vmul.f32 %v8468, %v8651
    %v8789 = vmul.f32 %v8469, %v8655
    %v8790 = vmul.f32 %v8470, %v8659
    %v8791 = vmul.f32 %v8471, %v8663
    %v8792 = vmul.f32 %v8472, %v8667
    %v8793 = vmul.f32 %v8473, %v8671
    %v8794 = vmul.f32 %v8474, %v8675
    %v8795 = vmul.f32 %v8475, %v8679
    %v8796 = vmul.f32 %v8476, %v8683
    %v8797 = vmul.f32 %v8477, %v8687
    %v8798 = vmul.f32 %v8478, %v8691
    %v8799 = vmul.f32 %v8479, %v8695
    %v8800 = vmul.f32 %v8480, %v8699
    %v8801 = vmul.f32 %v8481, %v8703
    %v8802 = vmul.f32 %v8482, %v8707
    %v8803 = vmul.f32 %v8483, %v8711
    %v8804 = vmul.f32 %v8484, %v8715
    %v8805 = vmul.f32 %v8485, %v8719
    %v8806 = vmul.f32 %v8486, %v8723
    %v8807 = vmul.f32 %v8487, %v8727
    %v8808 = vmul.f32 %v8488, %v8731
    %v8809 = vmul.f32 %v8489, %v8735
    %v8810 = vmul.f32 %v8490, %v8739
    %v8811 = vmul.f32 %v8491, %v8743
    %v8812 = vmul.f32 %v8492, %v8747
    %v8813 = vld [vmem:[#allocation2 + $0x11] sm:$0xff]
    %v8814 = vld [vmem:[#allocation2 + $0x19] sm:$0xff]
    %v8815 = vld [vmem:[#allocation2 + $0x21] sm:$0xff]
    %v8816 = vld [vmem:[#allocation2 + $0x29] sm:$0xff]
    %v8817 = vld [vmem:[#allocation2 + $0x31] sm:$0xff]
    %v8818 = vld [vmem:[#allocation2 + $0x39] sm:$0xff]
    %v8819 = vld [vmem:[#allocation2 + $0x41] sm:$0xff]
    %v8820 = vld [vmem:[#allocation2 + $0x49] sm:$0xff]
    %v8821 = vld [vmem:[#allocation2 + $0x51] sm:$0xff]
    %v8822 = vld [vmem:[#allocation2 + $0x59] sm:$0xff]
    %v8823 = vld [vmem:[#allocation2 + $0x61] sm:$0xff]
    %v8824 = vld [vmem:[#allocation2 + $0x69] sm:$0xff]
    %v8825 = vld [vmem:[#allocation2 + $0x71] sm:$0xff]
    %v8826 = vld [vmem:[#allocation2 + $0x79] sm:$0xff]
    %v8827 = vld [vmem:[#allocation2 + $0x81] sm:$0xff]
    %v8828 = vld [vmem:[#allocation2 + $0x89] sm:$0xff]
    %v8829 = vld [vmem:[#allocation2 + $0x91] sm:$0xff]
    %v8830 = vld [vmem:[#allocation2 + $0x99] sm:$0xff]
    %v8831 = vld [vmem:[#allocation2 + $0xa1] sm:$0xff]
    %v8832 = vld [vmem:[#allocation2 + $0xa9] sm:$0xff]
    %v8833 = vld [vmem:[#allocation2 + $0xb1] sm:$0xff]
    %v8834 = vld [vmem:[#allocation2 + $0xb9] sm:$0xff]
    %v8835 = vld [vmem:[#allocation2 + $0xc1] sm:$0xff]
    %v8836 = vld [vmem:[#allocation2 + $0xc9] sm:$0xff]
    %v8837 = vld [vmem:[#allocation2 + $0xd1] sm:$0xff]
    %v8838 = vld [vmem:[#allocation2 + $0xd9] sm:$0xff]
    %v8839 = vld [vmem:[#allocation2 + $0xe1] sm:$0xff]
    %v8840 = vld [vmem:[#allocation2 + $0xe9] sm:$0xff]
    %v8841 = vld [vmem:[#allocation2 + $0xf1] sm:$0xff]
    %v8842 = vld [vmem:[#allocation2 + $0xf9] sm:$0xff]
    %v8843 = vld [vmem:[#allocation2 + $0x101] sm:$0xff]
    %v8844 = vld [vmem:[#allocation2 + $0x109] sm:$0xff]
    %v8845 = vld [vmem:[#allocation2 + $0x111] sm:$0xff]
    %v8846 = vld [vmem:[#allocation2 + $0x119] sm:$0xff]
    %v8847 = vld [vmem:[#allocation2 + $0x121] sm:$0xff]
    %v8848 = vld [vmem:[#allocation2 + $0x129] sm:$0xff]
    %v8849 = vld [vmem:[#allocation2 + $0x131] sm:$0xff]
    %v8850 = vld [vmem:[#allocation2 + $0x139] sm:$0xff]
    %v8851 = vld [vmem:[#allocation2 + $0x141] sm:$0xff]
    %v8852 = vld [vmem:[#allocation2 + $0x149] sm:$0xff]
    %v8853 = vld [vmem:[#allocation2 + $0x151] sm:$0xff]
    %v8854 = vld [vmem:[#allocation2 + $0x159] sm:$0xff]
    %v8855 = vld [vmem:[#allocation2 + $0x161] sm:$0xff]
    %v8856 = vld [vmem:[#allocation2 + $0x169] sm:$0xff]
    %v8857 = vld [vmem:[#allocation2 + $0x171] sm:$0xff]
    %v8858 = vld [vmem:[#allocation2 + $0x179] sm:$0xff]
    %v8859 = vld [vmem:[#allocation2 + $0x181] sm:$0xff]
    %v8860 = vld [vmem:[#allocation2 + $0x189] sm:$0xff]
    %v8861 = vld [vmem:[#allocation2 + $0x191] sm:$0xff]
    %v8862 = vld [vmem:[#allocation2 + $0x199] sm:$0xff]
    %v8863 = vld [vmem:[#allocation2 + $0x1a1] sm:$0xff]
    %v8864 = vld [vmem:[#allocation2 + $0x1a9] sm:$0xff]
    %v8865 = vld [vmem:[#allocation2 + $0x1b1] sm:$0xff]
    %v8866 = vld [vmem:[#allocation2 + $0x1b9] sm:$0xff]
    %v8867 = vld [vmem:[#allocation2 + $0x1c1] sm:$0xff]
    %v8868 = vld [vmem:[#allocation2 + $0x1c9] sm:$0xff]
    %v8869 = vld [vmem:[#allocation2 + $0x1d1] sm:$0xff]
    %v8870 = vld [vmem:[#allocation2 + $0x1d9] sm:$0xff]
    %v8871 = vld [vmem:[#allocation2 + $0x1e1] sm:$0xff]
    %v8872 = vld [vmem:[#allocation2 + $0x1e9] sm:$0xff]
    %v8873 = vld [vmem:[#allocation2 + $0x1f1] sm:$0xff]
    %v8874 = vld [vmem:[#allocation2 + $0x1f9] sm:$0xff]
    %v8875 = vld [vmem:[#allocation2 + $0x201] sm:$0xff]
    %v8876 = vld [vmem:[#allocation2 + $0x209] sm:$0xff]
    %8877 = vset.pattern.permute.xlu0 4
    %8878 = vperm.xlu0 %8877, %v7213
    %v8879 = vpop.permute.xlu0 %8878
    %8881 = vset.pattern.permute.xlu0 4
    %8882 = vperm.xlu0 %8881, %v7214
    %v8883 = vpop.permute.xlu0 %8882
    %8885 = vset.pattern.permute.xlu0 4
    %8886 = vperm.xlu0 %8885, %v7215
    %v8887 = vpop.permute.xlu0 %8886
    %8889 = vset.pattern.permute.xlu0 4
    %8890 = vperm.xlu0 %8889, %v7216
    %v8891 = vpop.permute.xlu0 %8890
    %8893 = vset.pattern.permute.xlu0 4
    %8894 = vperm.xlu0 %8893, %v7217
    %v8895 = vpop.permute.xlu0 %8894
    %8897 = vset.pattern.permute.xlu0 4
    %8898 = vperm.xlu0 %8897, %v7218
    %v8899 = vpop.permute.xlu0 %8898
    %8901 = vset.pattern.permute.xlu0 4
    %8902 = vperm.xlu0 %8901, %v7219
    %v8903 = vpop.permute.xlu0 %8902
    %8905 = vset.pattern.permute.xlu0 4
    %8906 = vperm.xlu0 %8905, %v7220
    %v8907 = vpop.permute.xlu0 %8906
    %8909 = vset.pattern.permute.xlu0 4
    %8910 = vperm.xlu0 %8909, %v7221
    %v8911 = vpop.permute.xlu0 %8910
    %8913 = vset.pattern.permute.xlu0 4
    %8914 = vperm.xlu0 %8913, %v7222
    %v8915 = vpop.permute.xlu0 %8914
    %8917 = vset.pattern.permute.xlu0 4
    %8918 = vperm.xlu0 %8917, %v7223
    %v8919 = vpop.permute.xlu0 %8918
    %8921 = vset.pattern.permute.xlu0 4
    %8922 = vperm.xlu0 %8921, %v7224
    %v8923 = vpop.permute.xlu0 %8922
    %8925 = vset.pattern.permute.xlu0 4
    %8926 = vperm.xlu0 %8925, %v7225
    %v8927 = vpop.permute.xlu0 %8926
    %8929 = vset.pattern.permute.xlu0 4
    %8930 = vperm.xlu0 %8929, %v7226
    %v8931 = vpop.permute.xlu0 %8930
    %8933 = vset.pattern.permute.xlu0 4
    %8934 = vperm.xlu0 %8933, %v7227
    %v8935 = vpop.permute.xlu0 %8934
    %8937 = vset.pattern.permute.xlu0 4
    %8938 = vperm.xlu0 %8937, %v7228
    %v8939 = vpop.permute.xlu0 %8938
    %8941 = vset.pattern.permute.xlu0 4
    %8942 = vperm.xlu0 %8941, %v7229
    %v8943 = vpop.permute.xlu0 %8942
    %8945 = vset.pattern.permute.xlu0 4
    %8946 = vperm.xlu0 %8945, %v7230
    %v8947 = vpop.permute.xlu0 %8946
    %8949 = vset.pattern.permute.xlu0 4
    %8950 = vperm.xlu0 %8949, %v7231
    %v8951 = vpop.permute.xlu0 %8950
    %8953 = vset.pattern.permute.xlu0 4
    %8954 = vperm.xlu0 %8953, %v7232
    %v8955 = vpop.permute.xlu0 %8954
    %8957 = vset.pattern.permute.xlu0 4
    %8958 = vperm.xlu0 %8957, %v7233
    %v8959 = vpop.permute.xlu0 %8958
    %8961 = vset.pattern.permute.xlu0 4
    %8962 = vperm.xlu0 %8961, %v7234
    %v8963 = vpop.permute.xlu0 %8962
    %8965 = vset.pattern.permute.xlu0 4
    %8966 = vperm.xlu0 %8965, %v7235
    %v8967 = vpop.permute.xlu0 %8966
    %8969 = vset.pattern.permute.xlu0 4
    %8970 = vperm.xlu0 %8969, %v7236
    %v8971 = vpop.permute.xlu0 %8970
    %8973 = vset.pattern.permute.xlu0 4
    %8974 = vperm.xlu0 %8973, %v7237
    %v8975 = vpop.permute.xlu0 %8974
    %8977 = vset.pattern.permute.xlu0 4
    %8978 = vperm.xlu0 %8977, %v7238
    %v8979 = vpop.permute.xlu0 %8978
    %8981 = vset.pattern.permute.xlu0 4
    %8982 = vperm.xlu0 %8981, %v7239
    %v8983 = vpop.permute.xlu0 %8982
    %8985 = vset.pattern.permute.xlu0 4
    %8986 = vperm.xlu0 %8985, %v7240
    %v8987 = vpop.permute.xlu0 %8986
    %8989 = vset.pattern.permute.xlu0 4
    %8990 = vperm.xlu0 %8989, %v7241
    %v8991 = vpop.permute.xlu0 %8990
    %8993 = vset.pattern.permute.xlu0 4
    %8994 = vperm.xlu0 %8993, %v7242
    %v8995 = vpop.permute.xlu0 %8994
    %8997 = vset.pattern.permute.xlu0 4
    %8998 = vperm.xlu0 %8997, %v7243
    %v8999 = vpop.permute.xlu0 %8998
    %9001 = vset.pattern.permute.xlu0 4
    %9002 = vperm.xlu0 %9001, %v7244
    %v9003 = vpop.permute.xlu0 %9002
    %9005 = vset.pattern.permute.xlu0 4
    %9006 = vperm.xlu0 %9005, %v7245
    %v9007 = vpop.permute.xlu0 %9006
    %9009 = vset.pattern.permute.xlu0 4
    %9010 = vperm.xlu0 %9009, %v7246
    %v9011 = vpop.permute.xlu0 %9010
    %9013 = vset.pattern.permute.xlu0 4
    %9014 = vperm.xlu0 %9013, %v7247
    %v9015 = vpop.permute.xlu0 %9014
    %9017 = vset.pattern.permute.xlu0 4
    %9018 = vperm.xlu0 %9017, %v7248
    %v9019 = vpop.permute.xlu0 %9018
    %9021 = vset.pattern.permute.xlu0 4
    %9022 = vperm.xlu0 %9021, %v7249
    %v9023 = vpop.permute.xlu0 %9022
    %9025 = vset.pattern.permute.xlu0 4
    %9026 = vperm.xlu0 %9025, %v7250
    %v9027 = vpop.permute.xlu0 %9026
    %9029 = vset.pattern.permute.xlu0 4
    %9030 = vperm.xlu0 %9029, %v7251
    %v9031 = vpop.permute.xlu0 %9030
    %9033 = vset.pattern.permute.xlu0 4
    %9034 = vperm.xlu0 %9033, %v7252
    %v9035 = vpop.permute.xlu0 %9034
    %9037 = vset.pattern.permute.xlu0 4
    %9038 = vperm.xlu0 %9037, %v7253
    %v9039 = vpop.permute.xlu0 %9038
    %9041 = vset.pattern.permute.xlu0 4
    %9042 = vperm.xlu0 %9041, %v7254
    %v9043 = vpop.permute.xlu0 %9042
    %9045 = vset.pattern.permute.xlu0 4
    %9046 = vperm.xlu0 %9045, %v7255
    %v9047 = vpop.permute.xlu0 %9046
    %9049 = vset.pattern.permute.xlu0 4
    %9050 = vperm.xlu0 %9049, %v7256
    %v9051 = vpop.permute.xlu0 %9050
    %9053 = vset.pattern.permute.xlu0 4
    %9054 = vperm.xlu0 %9053, %v7257
    %v9055 = vpop.permute.xlu0 %9054
    %9057 = vset.pattern.permute.xlu0 4
    %9058 = vperm.xlu0 %9057, %v7258
    %v9059 = vpop.permute.xlu0 %9058
    %9061 = vset.pattern.permute.xlu0 4
    %9062 = vperm.xlu0 %9061, %v7259
    %v9063 = vpop.permute.xlu0 %9062
    %9065 = vset.pattern.permute.xlu0 4
    %9066 = vperm.xlu0 %9065, %v7260
    %v9067 = vpop.permute.xlu0 %9066
    %9069 = vset.pattern.permute.xlu0 4
    %9070 = vperm.xlu0 %9069, %v7261
    %v9071 = vpop.permute.xlu0 %9070
    %9073 = vset.pattern.permute.xlu0 4
    %9074 = vperm.xlu0 %9073, %v7262
    %v9075 = vpop.permute.xlu0 %9074
    %9077 = vset.pattern.permute.xlu0 4
    %9078 = vperm.xlu0 %9077, %v7263
    %v9079 = vpop.permute.xlu0 %9078
    %9081 = vset.pattern.permute.xlu0 4
    %9082 = vperm.xlu0 %9081, %v7264
    %v9083 = vpop.permute.xlu0 %9082
    %9085 = vset.pattern.permute.xlu0 4
    %9086 = vperm.xlu0 %9085, %v7265
    %v9087 = vpop.permute.xlu0 %9086
    %9089 = vset.pattern.permute.xlu0 4
    %9090 = vperm.xlu0 %9089, %v7266
    %v9091 = vpop.permute.xlu0 %9090
    %9093 = vset.pattern.permute.xlu0 4
    %9094 = vperm.xlu0 %9093, %v7267
    %v9095 = vpop.permute.xlu0 %9094
    %9097 = vset.pattern.permute.xlu0 4
    %9098 = vperm.xlu0 %9097, %v7268
    %v9099 = vpop.permute.xlu0 %9098
    %9101 = vset.pattern.permute.xlu0 4
    %9102 = vperm.xlu0 %9101, %v7269
    %v9103 = vpop.permute.xlu0 %9102
    %9105 = vset.pattern.permute.xlu0 4
    %9106 = vperm.xlu0 %9105, %v7270
    %v9107 = vpop.permute.xlu0 %9106
    %9109 = vset.pattern.permute.xlu0 4
    %9110 = vperm.xlu0 %9109, %v7271
    %v9111 = vpop.permute.xlu0 %9110
    %9113 = vset.pattern.permute.xlu0 4
    %9114 = vperm.xlu0 %9113, %v7272
    %v9115 = vpop.permute.xlu0 %9114
    %9117 = vset.pattern.permute.xlu0 4
    %9118 = vperm.xlu0 %9117, %v7273
    %v9119 = vpop.permute.xlu0 %9118
    %9121 = vset.pattern.permute.xlu0 4
    %9122 = vperm.xlu0 %9121, %v7274
    %v9123 = vpop.permute.xlu0 %9122
    %9125 = vset.pattern.permute.xlu0 4
    %9126 = vperm.xlu0 %9125, %v7275
    %v9127 = vpop.permute.xlu0 %9126
    %9129 = vset.pattern.permute.xlu0 4
    %9130 = vperm.xlu0 %9129, %v7276
    %v9131 = vpop.permute.xlu0 %9130
    %v9133 = vmul.f32 %v8813, %v8879
    %v9134 = vmul.f32 %v8814, %v8883
    %v9135 = vmul.f32 %v8815, %v8887
    %v9136 = vmul.f32 %v8816, %v8891
    %v9137 = vmul.f32 %v8817, %v8895
    %v9138 = vmul.f32 %v8818, %v8899
    %v9139 = vmul.f32 %v8819, %v8903
    %v9140 = vmul.f32 %v8820, %v8907
    %v9141 = vmul.f32 %v8821, %v8911
    %v9142 = vmul.f32 %v8822, %v8915
    %v9143 = vmul.f32 %v8823, %v8919
    %v9144 = vmul.f32 %v8824, %v8923
    %v9145 = vmul.f32 %v8825, %v8927
    %v9146 = vmul.f32 %v8826, %v8931
    %v9147 = vmul.f32 %v8827, %v8935
    %v9148 = vmul.f32 %v8828, %v8939
    %v9149 = vmul.f32 %v8829, %v8943
    %v9150 = vmul.f32 %v8830, %v8947
    %v9151 = vmul.f32 %v8831, %v8951
    %v9152 = vmul.f32 %v8832, %v8955
    %v9153 = vmul.f32 %v8833, %v8959
    %v9154 = vmul.f32 %v8834, %v8963
    %v9155 = vmul.f32 %v8835, %v8967
    %v9156 = vmul.f32 %v8836, %v8971
    %v9157 = vmul.f32 %v8837, %v8975
    %v9158 = vmul.f32 %v8838, %v8979
    %v9159 = vmul.f32 %v8839, %v8983
    %v9160 = vmul.f32 %v8840, %v8987
    %v9161 = vmul.f32 %v8841, %v8991
    %v9162 = vmul.f32 %v8842, %v8995
    %v9163 = vmul.f32 %v8843, %v8999
    %v9164 = vmul.f32 %v8844, %v9003
    %v9165 = vmul.f32 %v8845, %v9007
    %v9166 = vmul.f32 %v8846, %v9011
    %v9167 = vmul.f32 %v8847, %v9015
    %v9168 = vmul.f32 %v8848, %v9019
    %v9169 = vmul.f32 %v8849, %v9023
    %v9170 = vmul.f32 %v8850, %v9027
    %v9171 = vmul.f32 %v8851, %v9031
    %v9172 = vmul.f32 %v8852, %v9035
    %v9173 = vmul.f32 %v8853, %v9039
    %v9174 = vmul.f32 %v8854, %v9043
    %v9175 = vmul.f32 %v8855, %v9047
    %v9176 = vmul.f32 %v8856, %v9051
    %v9177 = vmul.f32 %v8857, %v9055
    %v9178 = vmul.f32 %v8858, %v9059
    %v9179 = vmul.f32 %v8859, %v9063
    %v9180 = vmul.f32 %v8860, %v9067
    %v9181 = vmul.f32 %v8861, %v9071
    %v9182 = vmul.f32 %v8862, %v9075
    %v9183 = vmul.f32 %v8863, %v9079
    %v9184 = vmul.f32 %v8864, %v9083
    %v9185 = vmul.f32 %v8865, %v9087
    %v9186 = vmul.f32 %v8866, %v9091
    %v9187 = vmul.f32 %v8867, %v9095
    %v9188 = vmul.f32 %v8868, %v9099
    %v9189 = vmul.f32 %v8869, %v9103
    %v9190 = vmul.f32 %v8870, %v9107
    %v9191 = vmul.f32 %v8871, %v9111
    %v9192 = vmul.f32 %v8872, %v9115
    %v9193 = vmul.f32 %v8873, %v9119
    %v9194 = vmul.f32 %v8874, %v9123
    %v9195 = vmul.f32 %v8875, %v9127
    %v9196 = vmul.f32 %v8876, %v9131
    %v9197 = vld [vmem:[#allocation2 + $0x12] sm:$0xff]
    %v9198 = vld [vmem:[#allocation2 + $0x1a] sm:$0xff]
    %v9199 = vld [vmem:[#allocation2 + $0x22] sm:$0xff]
    %v9200 = vld [vmem:[#allocation2 + $0x2a] sm:$0xff]
    %v9201 = vld [vmem:[#allocation2 + $0x32] sm:$0xff]
    %v9202 = vld [vmem:[#allocation2 + $0x3a] sm:$0xff]
    %v9203 = vld [vmem:[#allocation2 + $0x42] sm:$0xff]
    %v9204 = vld [vmem:[#allocation2 + $0x4a] sm:$0xff]
    %v9205 = vld [vmem:[#allocation2 + $0x52] sm:$0xff]
    %v9206 = vld [vmem:[#allocation2 + $0x5a] sm:$0xff]
    %v9207 = vld [vmem:[#allocation2 + $0x62] sm:$0xff]
    %v9208 = vld [vmem:[#allocation2 + $0x6a] sm:$0xff]
    %v9209 = vld [vmem:[#allocation2 + $0x72] sm:$0xff]
    %v9210 = vld [vmem:[#allocation2 + $0x7a] sm:$0xff]
    %v9211 = vld [vmem:[#allocation2 + $0x82] sm:$0xff]
    %v9212 = vld [vmem:[#allocation2 + $0x8a] sm:$0xff]
    %v9213 = vld [vmem:[#allocation2 + $0x92] sm:$0xff]
    %v9214 = vld [vmem:[#allocation2 + $0x9a] sm:$0xff]
    %v9215 = vld [vmem:[#allocation2 + $0xa2] sm:$0xff]
    %v9216 = vld [vmem:[#allocation2 + $0xaa] sm:$0xff]
    %v9217 = vld [vmem:[#allocation2 + $0xb2] sm:$0xff]
    %v9218 = vld [vmem:[#allocation2 + $0xba] sm:$0xff]
    %v9219 = vld [vmem:[#allocation2 + $0xc2] sm:$0xff]
    %v9220 = vld [vmem:[#allocation2 + $0xca] sm:$0xff]
    %v9221 = vld [vmem:[#allocation2 + $0xd2] sm:$0xff]
    %v9222 = vld [vmem:[#allocation2 + $0xda] sm:$0xff]
    %v9223 = vld [vmem:[#allocation2 + $0xe2] sm:$0xff]
    %v9224 = vld [vmem:[#allocation2 + $0xea] sm:$0xff]
    %v9225 = vld [vmem:[#allocation2 + $0xf2] sm:$0xff]
    %v9226 = vld [vmem:[#allocation2 + $0xfa] sm:$0xff]
    %v9227 = vld [vmem:[#allocation2 + $0x102] sm:$0xff]
    %v9228 = vld [vmem:[#allocation2 + $0x10a] sm:$0xff]
    %v9229 = vld [vmem:[#allocation2 + $0x112] sm:$0xff]
    %v9230 = vld [vmem:[#allocation2 + $0x11a] sm:$0xff]
    %v9231 = vld [vmem:[#allocation2 + $0x122] sm:$0xff]
    %v9232 = vld [vmem:[#allocation2 + $0x12a] sm:$0xff]
    %v9233 = vld [vmem:[#allocation2 + $0x132] sm:$0xff]
    %v9234 = vld [vmem:[#allocation2 + $0x13a] sm:$0xff]
    %v9235 = vld [vmem:[#allocation2 + $0x142] sm:$0xff]
    %v9236 = vld [vmem:[#allocation2 + $0x14a] sm:$0xff]
    %v9237 = vld [vmem:[#allocation2 + $0x152] sm:$0xff]
    %v9238 = vld [vmem:[#allocation2 + $0x15a] sm:$0xff]
    %v9239 = vld [vmem:[#allocation2 + $0x162] sm:$0xff]
    %v9240 = vld [vmem:[#allocation2 + $0x16a] sm:$0xff]
    %v9241 = vld [vmem:[#allocation2 + $0x172] sm:$0xff]
    %v9242 = vld [vmem:[#allocation2 + $0x17a] sm:$0xff]
    %v9243 = vld [vmem:[#allocation2 + $0x182] sm:$0xff]
    %v9244 = vld [vmem:[#allocation2 + $0x18a] sm:$0xff]
    %v9245 = vld [vmem:[#allocation2 + $0x192] sm:$0xff]
    %v9246 = vld [vmem:[#allocation2 + $0x19a] sm:$0xff]
    %v9247 = vld [vmem:[#allocation2 + $0x1a2] sm:$0xff]
    %v9248 = vld [vmem:[#allocation2 + $0x1aa] sm:$0xff]
    %v9249 = vld [vmem:[#allocation2 + $0x1b2] sm:$0xff]
    %v9250 = vld [vmem:[#allocation2 + $0x1ba] sm:$0xff]
    %v9251 = vld [vmem:[#allocation2 + $0x1c2] sm:$0xff]
    %v9252 = vld [vmem:[#allocation2 + $0x1ca] sm:$0xff]
    %v9253 = vld [vmem:[#allocation2 + $0x1d2] sm:$0xff]
    %v9254 = vld [vmem:[#allocation2 + $0x1da] sm:$0xff]
    %v9255 = vld [vmem:[#allocation2 + $0x1e2] sm:$0xff]
    %v9256 = vld [vmem:[#allocation2 + $0x1ea] sm:$0xff]
    %v9257 = vld [vmem:[#allocation2 + $0x1f2] sm:$0xff]
    %v9258 = vld [vmem:[#allocation2 + $0x1fa] sm:$0xff]
    %v9259 = vld [vmem:[#allocation2 + $0x202] sm:$0xff]
    %v9260 = vld [vmem:[#allocation2 + $0x20a] sm:$0xff]
    %9261 = vset.pattern.permute.xlu0 5
    %9262 = vperm.xlu0 %9261, %v7213
    %v9263 = vpop.permute.xlu0 %9262
    %9265 = vset.pattern.permute.xlu0 5
    %9266 = vperm.xlu0 %9265, %v7214
    %v9267 = vpop.permute.xlu0 %9266
    %9269 = vset.pattern.permute.xlu0 5
    %9270 = vperm.xlu0 %9269, %v7215
    %v9271 = vpop.permute.xlu0 %9270
    %9273 = vset.pattern.permute.xlu0 5
    %9274 = vperm.xlu0 %9273, %v7216
    %v9275 = vpop.permute.xlu0 %9274
    %9277 = vset.pattern.permute.xlu0 5
    %9278 = vperm.xlu0 %9277, %v7217
    %v9279 = vpop.permute.xlu0 %9278
    %9281 = vset.pattern.permute.xlu0 5
    %9282 = vperm.xlu0 %9281, %v7218
    %v9283 = vpop.permute.xlu0 %9282
    %9285 = vset.pattern.permute.xlu0 5
    %9286 = vperm.xlu0 %9285, %v7219
    %v9287 = vpop.permute.xlu0 %9286
    %9289 = vset.pattern.permute.xlu0 5
    %9290 = vperm.xlu0 %9289, %v7220
    %v9291 = vpop.permute.xlu0 %9290
    %9293 = vset.pattern.permute.xlu0 5
    %9294 = vperm.xlu0 %9293, %v7221
    %v9295 = vpop.permute.xlu0 %9294
    %9297 = vset.pattern.permute.xlu0 5
    %9298 = vperm.xlu0 %9297, %v7222
    %v9299 = vpop.permute.xlu0 %9298
    %9301 = vset.pattern.permute.xlu0 5
    %9302 = vperm.xlu0 %9301, %v7223
    %v9303 = vpop.permute.xlu0 %9302
    %9305 = vset.pattern.permute.xlu0 5
    %9306 = vperm.xlu0 %9305, %v7224
    %v9307 = vpop.permute.xlu0 %9306
    %9309 = vset.pattern.permute.xlu0 5
    %9310 = vperm.xlu0 %9309, %v7225
    %v9311 = vpop.permute.xlu0 %9310
    %9313 = vset.pattern.permute.xlu0 5
    %9314 = vperm.xlu0 %9313, %v7226
    %v9315 = vpop.permute.xlu0 %9314
    %9317 = vset.pattern.permute.xlu0 5
    %9318 = vperm.xlu0 %9317, %v7227
    %v9319 = vpop.permute.xlu0 %9318
    %9321 = vset.pattern.permute.xlu0 5
    %9322 = vperm.xlu0 %9321, %v7228
    %v9323 = vpop.permute.xlu0 %9322
    %9325 = vset.pattern.permute.xlu0 5
    %9326 = vperm.xlu0 %9325, %v7229
    %v9327 = vpop.permute.xlu0 %9326
    %9329 = vset.pattern.permute.xlu0 5
    %9330 = vperm.xlu0 %9329, %v7230
    %v9331 = vpop.permute.xlu0 %9330
    %9333 = vset.pattern.permute.xlu0 5
    %9334 = vperm.xlu0 %9333, %v7231
    %v9335 = vpop.permute.xlu0 %9334
    %9337 = vset.pattern.permute.xlu0 5
    %9338 = vperm.xlu0 %9337, %v7232
    %v9339 = vpop.permute.xlu0 %9338
    %9341 = vset.pattern.permute.xlu0 5
    %9342 = vperm.xlu0 %9341, %v7233
    %v9343 = vpop.permute.xlu0 %9342
    %9345 = vset.pattern.permute.xlu0 5
    %9346 = vperm.xlu0 %9345, %v7234
    %v9347 = vpop.permute.xlu0 %9346
    %9349 = vset.pattern.permute.xlu0 5
    %9350 = vperm.xlu0 %9349, %v7235
    %v9351 = vpop.permute.xlu0 %9350
    %9353 = vset.pattern.permute.xlu0 5
    %9354 = vperm.xlu0 %9353, %v7236
    %v9355 = vpop.permute.xlu0 %9354
    %9357 = vset.pattern.permute.xlu0 5
    %9358 = vperm.xlu0 %9357, %v7237
    %v9359 = vpop.permute.xlu0 %9358
    %9361 = vset.pattern.permute.xlu0 5
    %9362 = vperm.xlu0 %9361, %v7238
    %v9363 = vpop.permute.xlu0 %9362
    %9365 = vset.pattern.permute.xlu0 5
    %9366 = vperm.xlu0 %9365, %v7239
    %v9367 = vpop.permute.xlu0 %9366
    %9369 = vset.pattern.permute.xlu0 5
    %9370 = vperm.xlu0 %9369, %v7240
    %v9371 = vpop.permute.xlu0 %9370
    %9373 = vset.pattern.permute.xlu0 5
    %9374 = vperm.xlu0 %9373, %v7241
    %v9375 = vpop.permute.xlu0 %9374
    %9377 = vset.pattern.permute.xlu0 5
    %9378 = vperm.xlu0 %9377, %v7242
    %v9379 = vpop.permute.xlu0 %9378
    %9381 = vset.pattern.permute.xlu0 5
    %9382 = vperm.xlu0 %9381, %v7243
    %v9383 = vpop.permute.xlu0 %9382
    %9385 = vset.pattern.permute.xlu0 5
    %9386 = vperm.xlu0 %9385, %v7244
    %v9387 = vpop.permute.xlu0 %9386
    %9389 = vset.pattern.permute.xlu0 5
    %9390 = vperm.xlu0 %9389, %v7245
    %v9391 = vpop.permute.xlu0 %9390
    %9393 = vset.pattern.permute.xlu0 5
    %9394 = vperm.xlu0 %9393, %v7246
    %v9395 = vpop.permute.xlu0 %9394
    %9397 = vset.pattern.permute.xlu0 5
    %9398 = vperm.xlu0 %9397, %v7247
    %v9399 = vpop.permute.xlu0 %9398
    %9401 = vset.pattern.permute.xlu0 5
    %9402 = vperm.xlu0 %9401, %v7248
    %v9403 = vpop.permute.xlu0 %9402
    %9405 = vset.pattern.permute.xlu0 5
    %9406 = vperm.xlu0 %9405, %v7249
    %v9407 = vpop.permute.xlu0 %9406
    %9409 = vset.pattern.permute.xlu0 5
    %9410 = vperm.xlu0 %9409, %v7250
    %v9411 = vpop.permute.xlu0 %9410
    %9413 = vset.pattern.permute.xlu0 5
    %9414 = vperm.xlu0 %9413, %v7251
    %v9415 = vpop.permute.xlu0 %9414
    %9417 = vset.pattern.permute.xlu0 5
    %9418 = vperm.xlu0 %9417, %v7252
    %v9419 = vpop.permute.xlu0 %9418
    %9421 = vset.pattern.permute.xlu0 5
    %9422 = vperm.xlu0 %9421, %v7253
    %v9423 = vpop.permute.xlu0 %9422
    %9425 = vset.pattern.permute.xlu0 5
    %9426 = vperm.xlu0 %9425, %v7254
    %v9427 = vpop.permute.xlu0 %9426
    %9429 = vset.pattern.permute.xlu0 5
    %9430 = vperm.xlu0 %9429, %v7255
    %v9431 = vpop.permute.xlu0 %9430
    %9433 = vset.pattern.permute.xlu0 5
    %9434 = vperm.xlu0 %9433, %v7256
    %v9435 = vpop.permute.xlu0 %9434
    %9437 = vset.pattern.permute.xlu0 5
    %9438 = vperm.xlu0 %9437, %v7257
    %v9439 = vpop.permute.xlu0 %9438
    %9441 = vset.pattern.permute.xlu0 5
    %9442 = vperm.xlu0 %9441, %v7258
    %v9443 = vpop.permute.xlu0 %9442
    %9445 = vset.pattern.permute.xlu0 5
    %9446 = vperm.xlu0 %9445, %v7259
    %v9447 = vpop.permute.xlu0 %9446
    %9449 = vset.pattern.permute.xlu0 5
    %9450 = vperm.xlu0 %9449, %v7260
    %v9451 = vpop.permute.xlu0 %9450
    %9453 = vset.pattern.permute.xlu0 5
    %9454 = vperm.xlu0 %9453, %v7261
    %v9455 = vpop.permute.xlu0 %9454
    %9457 = vset.pattern.permute.xlu0 5
    %9458 = vperm.xlu0 %9457, %v7262
    %v9459 = vpop.permute.xlu0 %9458
    %9461 = vset.pattern.permute.xlu0 5
    %9462 = vperm.xlu0 %9461, %v7263
    %v9463 = vpop.permute.xlu0 %9462
    %9465 = vset.pattern.permute.xlu0 5
    %9466 = vperm.xlu0 %9465, %v7264
    %v9467 = vpop.permute.xlu0 %9466
    %9469 = vset.pattern.permute.xlu0 5
    %9470 = vperm.xlu0 %9469, %v7265
    %v9471 = vpop.permute.xlu0 %9470
    %9473 = vset.pattern.permute.xlu0 5
    %9474 = vperm.xlu0 %9473, %v7266
    %v9475 = vpop.permute.xlu0 %9474
    %9477 = vset.pattern.permute.xlu0 5
    %9478 = vperm.xlu0 %9477, %v7267
    %v9479 = vpop.permute.xlu0 %9478
    %9481 = vset.pattern.permute.xlu0 5
    %9482 = vperm.xlu0 %9481, %v7268
    %v9483 = vpop.permute.xlu0 %9482
    %9485 = vset.pattern.permute.xlu0 5
    %9486 = vperm.xlu0 %9485, %v7269
    %v9487 = vpop.permute.xlu0 %9486
    %9489 = vset.pattern.permute.xlu0 5
    %9490 = vperm.xlu0 %9489, %v7270
    %v9491 = vpop.permute.xlu0 %9490
    %9493 = vset.pattern.permute.xlu0 5
    %9494 = vperm.xlu0 %9493, %v7271
    %v9495 = vpop.permute.xlu0 %9494
    %9497 = vset.pattern.permute.xlu0 5
    %9498 = vperm.xlu0 %9497, %v7272
    %v9499 = vpop.permute.xlu0 %9498
    %9501 = vset.pattern.permute.xlu0 5
    %9502 = vperm.xlu0 %9501, %v7273
    %v9503 = vpop.permute.xlu0 %9502
    %9505 = vset.pattern.permute.xlu0 5
    %9506 = vperm.xlu0 %9505, %v7274
    %v9507 = vpop.permute.xlu0 %9506
    %9509 = vset.pattern.permute.xlu0 5
    %9510 = vperm.xlu0 %9509, %v7275
    %v9511 = vpop.permute.xlu0 %9510
    %9513 = vset.pattern.permute.xlu0 5
    %9514 = vperm.xlu0 %9513, %v7276
    %v9515 = vpop.permute.xlu0 %9514
    %v9517 = vmul.f32 %v9197, %v9263
    %v9518 = vmul.f32 %v9198, %v9267
    %v9519 = vmul.f32 %v9199, %v9271
    %v9520 = vmul.f32 %v9200, %v9275
    %v9521 = vmul.f32 %v9201, %v9279
    %v9522 = vmul.f32 %v9202, %v9283
    %v9523 = vmul.f32 %v9203, %v9287
    %v9524 = vmul.f32 %v9204, %v9291
    %v9525 = vmul.f32 %v9205, %v9295
    %v9526 = vmul.f32 %v9206, %v9299
    %v9527 = vmul.f32 %v9207, %v9303
    %v9528 = vmul.f32 %v9208, %v9307
    %v9529 = vmul.f32 %v9209, %v9311
    %v9530 = vmul.f32 %v9210, %v9315
    %v9531 = vmul.f32 %v9211, %v9319
    %v9532 = vmul.f32 %v9212, %v9323
    %v9533 = vmul.f32 %v9213, %v9327
    %v9534 = vmul.f32 %v9214, %v9331
    %v9535 = vmul.f32 %v9215, %v9335
    %v9536 = vmul.f32 %v9216, %v9339
    %v9537 = vmul.f32 %v9217, %v9343
    %v9538 = vmul.f32 %v9218, %v9347
    %v9539 = vmul.f32 %v9219, %v9351
    %v9540 = vmul.f32 %v9220, %v9355
    %v9541 = vmul.f32 %v9221, %v9359
    %v9542 = vmul.f32 %v9222, %v9363
    %v9543 = vmul.f32 %v9223, %v9367
    %v9544 = vmul.f32 %v9224, %v9371
    %v9545 = vmul.f32 %v9225, %v9375
    %v9546 = vmul.f32 %v9226, %v9379
    %v9547 = vmul.f32 %v9227, %v9383
    %v9548 = vmul.f32 %v9228, %v9387
    %v9549 = vmul.f32 %v9229, %v9391
    %v9550 = vmul.f32 %v9230, %v9395
    %v9551 = vmul.f32 %v9231, %v9399
    %v9552 = vmul.f32 %v9232, %v9403
    %v9553 = vmul.f32 %v9233, %v9407
    %v9554 = vmul.f32 %v9234, %v9411
    %v9555 = vmul.f32 %v9235, %v9415
    %v9556 = vmul.f32 %v9236, %v9419
    %v9557 = vmul.f32 %v9237, %v9423
    %v9558 = vmul.f32 %v9238, %v9427
    %v9559 = vmul.f32 %v9239, %v9431
    %v9560 = vmul.f32 %v9240, %v9435
    %v9561 = vmul.f32 %v9241, %v9439
    %v9562 = vmul.f32 %v9242, %v9443
    %v9563 = vmul.f32 %v9243, %v9447
    %v9564 = vmul.f32 %v9244, %v9451
    %v9565 = vmul.f32 %v9245, %v9455
    %v9566 = vmul.f32 %v9246, %v9459
    %v9567 = vmul.f32 %v9247, %v9463
    %v9568 = vmul.f32 %v9248, %v9467
    %v9569 = vmul.f32 %v9249, %v9471
    %v9570 = vmul.f32 %v9250, %v9475
    %v9571 = vmul.f32 %v9251, %v9479
    %v9572 = vmul.f32 %v9252, %v9483
    %v9573 = vmul.f32 %v9253, %v9487
    %v9574 = vmul.f32 %v9254, %v9491
    %v9575 = vmul.f32 %v9255, %v9495
    %v9576 = vmul.f32 %v9256, %v9499
    %v9577 = vmul.f32 %v9257, %v9503
    %v9578 = vmul.f32 %v9258, %v9507
    %v9579 = vmul.f32 %v9259, %v9511
    %v9580 = vmul.f32 %v9260, %v9515
    %v9581 = vld [vmem:[#allocation2 + $0x20] sm:$0xff]
    %v9582 = vld [vmem:[#allocation2 + $0x28] sm:$0xff]
    %v9583 = vld [vmem:[#allocation2 + $0x30] sm:$0xff]
    %v9584 = vld [vmem:[#allocation2 + $0x38] sm:$0xff]
    %v9585 = vld [vmem:[#allocation2 + $0x40] sm:$0xff]
    %v9586 = vld [vmem:[#allocation2 + $0x48] sm:$0xff]
    %v9587 = vld [vmem:[#allocation2 + $0x50] sm:$0xff]
    %v9588 = vld [vmem:[#allocation2 + $0x58] sm:$0xff]
    %v9589 = vld [vmem:[#allocation2 + $0x60] sm:$0xff]
    %v9590 = vld [vmem:[#allocation2 + $0x68] sm:$0xff]
    %v9591 = vld [vmem:[#allocation2 + $0x70] sm:$0xff]
    %v9592 = vld [vmem:[#allocation2 + $0x78] sm:$0xff]
    %v9593 = vld [vmem:[#allocation2 + $0x80] sm:$0xff]
    %v9594 = vld [vmem:[#allocation2 + $0x88] sm:$0xff]
    %v9595 = vld [vmem:[#allocation2 + $0x90] sm:$0xff]
    %v9596 = vld [vmem:[#allocation2 + $0x98] sm:$0xff]
    %v9597 = vld [vmem:[#allocation2 + $0xa0] sm:$0xff]
    %v9598 = vld [vmem:[#allocation2 + $0xa8] sm:$0xff]
    %v9599 = vld [vmem:[#allocation2 + $0xb0] sm:$0xff]
    %v9600 = vld [vmem:[#allocation2 + $0xb8] sm:$0xff]
    %v9601 = vld [vmem:[#allocation2 + $0xc0] sm:$0xff]
    %v9602 = vld [vmem:[#allocation2 + $0xc8] sm:$0xff]
    %v9603 = vld [vmem:[#allocation2 + $0xd0] sm:$0xff]
    %v9604 = vld [vmem:[#allocation2 + $0xd8] sm:$0xff]
    %v9605 = vld [vmem:[#allocation2 + $0xe0] sm:$0xff]
    %v9606 = vld [vmem:[#allocation2 + $0xe8] sm:$0xff]
    %v9607 = vld [vmem:[#allocation2 + $0xf0] sm:$0xff]
    %v9608 = vld [vmem:[#allocation2 + $0xf8] sm:$0xff]
    %v9609 = vld [vmem:[#allocation2 + $0x100] sm:$0xff]
    %v9610 = vld [vmem:[#allocation2 + $0x108] sm:$0xff]
    %v9611 = vld [vmem:[#allocation2 + $0x110] sm:$0xff]
    %v9612 = vld [vmem:[#allocation2 + $0x118] sm:$0xff]
    %v9613 = vld [vmem:[#allocation2 + $0x120] sm:$0xff]
    %v9614 = vld [vmem:[#allocation2 + $0x128] sm:$0xff]
    %v9615 = vld [vmem:[#allocation2 + $0x130] sm:$0xff]
    %v9616 = vld [vmem:[#allocation2 + $0x138] sm:$0xff]
    %v9617 = vld [vmem:[#allocation2 + $0x140] sm:$0xff]
    %v9618 = vld [vmem:[#allocation2 + $0x148] sm:$0xff]
    %v9619 = vld [vmem:[#allocation2 + $0x150] sm:$0xff]
    %v9620 = vld [vmem:[#allocation2 + $0x158] sm:$0xff]
    %v9621 = vld [vmem:[#allocation2 + $0x160] sm:$0xff]
    %v9622 = vld [vmem:[#allocation2 + $0x168] sm:$0xff]
    %v9623 = vld [vmem:[#allocation2 + $0x170] sm:$0xff]
    %v9624 = vld [vmem:[#allocation2 + $0x178] sm:$0xff]
    %v9625 = vld [vmem:[#allocation2 + $0x180] sm:$0xff]
    %v9626 = vld [vmem:[#allocation2 + $0x188] sm:$0xff]
    %v9627 = vld [vmem:[#allocation2 + $0x190] sm:$0xff]
    %v9628 = vld [vmem:[#allocation2 + $0x198] sm:$0xff]
    %v9629 = vld [vmem:[#allocation2 + $0x1a0] sm:$0xff]
    %v9630 = vld [vmem:[#allocation2 + $0x1a8] sm:$0xff]
    %v9631 = vld [vmem:[#allocation2 + $0x1b0] sm:$0xff]
    %v9632 = vld [vmem:[#allocation2 + $0x1b8] sm:$0xff]
    %v9633 = vld [vmem:[#allocation2 + $0x1c0] sm:$0xff]
    %v9634 = vld [vmem:[#allocation2 + $0x1c8] sm:$0xff]
    %v9635 = vld [vmem:[#allocation2 + $0x1d0] sm:$0xff]
    %v9636 = vld [vmem:[#allocation2 + $0x1d8] sm:$0xff]
    %v9637 = vld [vmem:[#allocation2 + $0x1e0] sm:$0xff]
    %v9638 = vld [vmem:[#allocation2 + $0x1e8] sm:$0xff]
    %v9639 = vld [vmem:[#allocation2 + $0x1f0] sm:$0xff]
    %v9640 = vld [vmem:[#allocation2 + $0x1f8] sm:$0xff]
    %v9641 = vld [vmem:[#allocation2 + $0x200] sm:$0xff]
    %v9642 = vld [vmem:[#allocation2 + $0x208] sm:$0xff]
    %v9643 = vld [vmem:[#allocation2 + $0x210] sm:$0xff]
    %v9644 = vld [vmem:[#allocation2 + $0x218] sm:$0xff]
    %9645 = vset.pattern.permute.xlu0 6
    %9646 = vperm.xlu0 %9645, %v7213
    %v9647 = vpop.permute.xlu0 %9646
    %9649 = vset.pattern.permute.xlu0 6
    %9650 = vperm.xlu0 %9649, %v7214
    %v9651 = vpop.permute.xlu0 %9650
    %9653 = vset.pattern.permute.xlu0 6
    %9654 = vperm.xlu0 %9653, %v7215
    %v9655 = vpop.permute.xlu0 %9654
    %9657 = vset.pattern.permute.xlu0 6
    %9658 = vperm.xlu0 %9657, %v7216
    %v9659 = vpop.permute.xlu0 %9658
    %9661 = vset.pattern.permute.xlu0 6
    %9662 = vperm.xlu0 %9661, %v7217
    %v9663 = vpop.permute.xlu0 %9662
    %9665 = vset.pattern.permute.xlu0 6
    %9666 = vperm.xlu0 %9665, %v7218
    %v9667 = vpop.permute.xlu0 %9666
    %9669 = vset.pattern.permute.xlu0 6
    %9670 = vperm.xlu0 %9669, %v7219
    %v9671 = vpop.permute.xlu0 %9670
    %9673 = vset.pattern.permute.xlu0 6
    %9674 = vperm.xlu0 %9673, %v7220
    %v9675 = vpop.permute.xlu0 %9674
    %9677 = vset.pattern.permute.xlu0 6
    %9678 = vperm.xlu0 %9677, %v7221
    %v9679 = vpop.permute.xlu0 %9678
    %9681 = vset.pattern.permute.xlu0 6
    %9682 = vperm.xlu0 %9681, %v7222
    %v9683 = vpop.permute.xlu0 %9682
    %9685 = vset.pattern.permute.xlu0 6
    %9686 = vperm.xlu0 %9685, %v7223
    %v9687 = vpop.permute.xlu0 %9686
    %9689 = vset.pattern.permute.xlu0 6
    %9690 = vperm.xlu0 %9689, %v7224
    %v9691 = vpop.permute.xlu0 %9690
    %9693 = vset.pattern.permute.xlu0 6
    %9694 = vperm.xlu0 %9693, %v7225
    %v9695 = vpop.permute.xlu0 %9694
    %9697 = vset.pattern.permute.xlu0 6
    %9698 = vperm.xlu0 %9697, %v7226
    %v9699 = vpop.permute.xlu0 %9698
    %9701 = vset.pattern.permute.xlu0 6
    %9702 = vperm.xlu0 %9701, %v7227
    %v9703 = vpop.permute.xlu0 %9702
    %9705 = vset.pattern.permute.xlu0 6
    %9706 = vperm.xlu0 %9705, %v7228
    %v9707 = vpop.permute.xlu0 %9706
    %9709 = vset.pattern.permute.xlu0 6
    %9710 = vperm.xlu0 %9709, %v7229
    %v9711 = vpop.permute.xlu0 %9710
    %9713 = vset.pattern.permute.xlu0 6
    %9714 = vperm.xlu0 %9713, %v7230
    %v9715 = vpop.permute.xlu0 %9714
    %9717 = vset.pattern.permute.xlu0 6
    %9718 = vperm.xlu0 %9717, %v7231
    %v9719 = vpop.permute.xlu0 %9718
    %9721 = vset.pattern.permute.xlu0 6
    %9722 = vperm.xlu0 %9721, %v7232
    %v9723 = vpop.permute.xlu0 %9722
    %9725 = vset.pattern.permute.xlu0 6
    %9726 = vperm.xlu0 %9725, %v7233
    %v9727 = vpop.permute.xlu0 %9726
    %9729 = vset.pattern.permute.xlu0 6
    %9730 = vperm.xlu0 %9729, %v7234
    %v9731 = vpop.permute.xlu0 %9730
    %9733 = vset.pattern.permute.xlu0 6
    %9734 = vperm.xlu0 %9733, %v7235
    %v9735 = vpop.permute.xlu0 %9734
    %9737 = vset.pattern.permute.xlu0 6
    %9738 = vperm.xlu0 %9737, %v7236
    %v9739 = vpop.permute.xlu0 %9738
    %9741 = vset.pattern.permute.xlu0 6
    %9742 = vperm.xlu0 %9741, %v7237
    %v9743 = vpop.permute.xlu0 %9742
    %9745 = vset.pattern.permute.xlu0 6
    %9746 = vperm.xlu0 %9745, %v7238
    %v9747 = vpop.permute.xlu0 %9746
    %9749 = vset.pattern.permute.xlu0 6
    %9750 = vperm.xlu0 %9749, %v7239
    %v9751 = vpop.permute.xlu0 %9750
    %9753 = vset.pattern.permute.xlu0 6
    %9754 = vperm.xlu0 %9753, %v7240
    %v9755 = vpop.permute.xlu0 %9754
    %9757 = vset.pattern.permute.xlu0 6
    %9758 = vperm.xlu0 %9757, %v7241
    %v9759 = vpop.permute.xlu0 %9758
    %9761 = vset.pattern.permute.xlu0 6
    %9762 = vperm.xlu0 %9761, %v7242
    %v9763 = vpop.permute.xlu0 %9762
    %9765 = vset.pattern.permute.xlu0 6
    %9766 = vperm.xlu0 %9765, %v7243
    %v9767 = vpop.permute.xlu0 %9766
    %9769 = vset.pattern.permute.xlu0 6
    %9770 = vperm.xlu0 %9769, %v7244
    %v9771 = vpop.permute.xlu0 %9770
    %9773 = vset.pattern.permute.xlu0 6
    %9774 = vperm.xlu0 %9773, %v7245
    %v9775 = vpop.permute.xlu0 %9774
    %9777 = vset.pattern.permute.xlu0 6
    %9778 = vperm.xlu0 %9777, %v7246
    %v9779 = vpop.permute.xlu0 %9778
    %9781 = vset.pattern.permute.xlu0 6
    %9782 = vperm.xlu0 %9781, %v7247
    %v9783 = vpop.permute.xlu0 %9782
    %9785 = vset.pattern.permute.xlu0 6
    %9786 = vperm.xlu0 %9785, %v7248
    %v9787 = vpop.permute.xlu0 %9786
    %9789 = vset.pattern.permute.xlu0 6
    %9790 = vperm.xlu0 %9789, %v7249
    %v9791 = vpop.permute.xlu0 %9790
    %9793 = vset.pattern.permute.xlu0 6
    %9794 = vperm.xlu0 %9793, %v7250
    %v9795 = vpop.permute.xlu0 %9794
    %9797 = vset.pattern.permute.xlu0 6
    %9798 = vperm.xlu0 %9797, %v7251
    %v9799 = vpop.permute.xlu0 %9798
    %9801 = vset.pattern.permute.xlu0 6
    %9802 = vperm.xlu0 %9801, %v7252
    %v9803 = vpop.permute.xlu0 %9802
    %9805 = vset.pattern.permute.xlu0 6
    %9806 = vperm.xlu0 %9805, %v7253
    %v9807 = vpop.permute.xlu0 %9806
    %9809 = vset.pattern.permute.xlu0 6
    %9810 = vperm.xlu0 %9809, %v7254
    %v9811 = vpop.permute.xlu0 %9810
    %9813 = vset.pattern.permute.xlu0 6
    %9814 = vperm.xlu0 %9813, %v7255
    %v9815 = vpop.permute.xlu0 %9814
    %9817 = vset.pattern.permute.xlu0 6
    %9818 = vperm.xlu0 %9817, %v7256
    %v9819 = vpop.permute.xlu0 %9818
    %9821 = vset.pattern.permute.xlu0 6
    %9822 = vperm.xlu0 %9821, %v7257
    %v9823 = vpop.permute.xlu0 %9822
    %9825 = vset.pattern.permute.xlu0 6
    %9826 = vperm.xlu0 %9825, %v7258
    %v9827 = vpop.permute.xlu0 %9826
    %9829 = vset.pattern.permute.xlu0 6
    %9830 = vperm.xlu0 %9829, %v7259
    %v9831 = vpop.permute.xlu0 %9830
    %9833 = vset.pattern.permute.xlu0 6
    %9834 = vperm.xlu0 %9833, %v7260
    %v9835 = vpop.permute.xlu0 %9834
    %9837 = vset.pattern.permute.xlu0 6
    %9838 = vperm.xlu0 %9837, %v7261
    %v9839 = vpop.permute.xlu0 %9838
    %9841 = vset.pattern.permute.xlu0 6
    %9842 = vperm.xlu0 %9841, %v7262
    %v9843 = vpop.permute.xlu0 %9842
    %9845 = vset.pattern.permute.xlu0 6
    %9846 = vperm.xlu0 %9845, %v7263
    %v9847 = vpop.permute.xlu0 %9846
    %9849 = vset.pattern.permute.xlu0 6
    %9850 = vperm.xlu0 %9849, %v7264
    %v9851 = vpop.permute.xlu0 %9850
    %9853 = vset.pattern.permute.xlu0 6
    %9854 = vperm.xlu0 %9853, %v7265
    %v9855 = vpop.permute.xlu0 %9854
    %9857 = vset.pattern.permute.xlu0 6
    %9858 = vperm.xlu0 %9857, %v7266
    %v9859 = vpop.permute.xlu0 %9858
    %9861 = vset.pattern.permute.xlu0 6
    %9862 = vperm.xlu0 %9861, %v7267
    %v9863 = vpop.permute.xlu0 %9862
    %9865 = vset.pattern.permute.xlu0 6
    %9866 = vperm.xlu0 %9865, %v7268
    %v9867 = vpop.permute.xlu0 %9866
    %9869 = vset.pattern.permute.xlu0 6
    %9870 = vperm.xlu0 %9869, %v7269
    %v9871 = vpop.permute.xlu0 %9870
    %9873 = vset.pattern.permute.xlu0 6
    %9874 = vperm.xlu0 %9873, %v7270
    %v9875 = vpop.permute.xlu0 %9874
    %9877 = vset.pattern.permute.xlu0 6
    %9878 = vperm.xlu0 %9877, %v7271
    %v9879 = vpop.permute.xlu0 %9878
    %9881 = vset.pattern.permute.xlu0 6
    %9882 = vperm.xlu0 %9881, %v7272
    %v9883 = vpop.permute.xlu0 %9882
    %9885 = vset.pattern.permute.xlu0 6
    %9886 = vperm.xlu0 %9885, %v7273
    %v9887 = vpop.permute.xlu0 %9886
    %9889 = vset.pattern.permute.xlu0 6
    %9890 = vperm.xlu0 %9889, %v7274
    %v9891 = vpop.permute.xlu0 %9890
    %9893 = vset.pattern.permute.xlu0 6
    %9894 = vperm.xlu0 %9893, %v7275
    %v9895 = vpop.permute.xlu0 %9894
    %9897 = vset.pattern.permute.xlu0 6
    %9898 = vperm.xlu0 %9897, %v7276
    %v9899 = vpop.permute.xlu0 %9898
    %v9901 = vmul.f32 %v9581, %v9647
    %v9902 = vmul.f32 %v9582, %v9651
    %v9903 = vmul.f32 %v9583, %v9655
    %v9904 = vmul.f32 %v9584, %v9659
    %v9905 = vmul.f32 %v9585, %v9663
    %v9906 = vmul.f32 %v9586, %v9667
    %v9907 = vmul.f32 %v9587, %v9671
    %v9908 = vmul.f32 %v9588, %v9675
    %v9909 = vmul.f32 %v9589, %v9679
    %v9910 = vmul.f32 %v9590, %v9683
    %v9911 = vmul.f32 %v9591, %v9687
    %v9912 = vmul.f32 %v9592, %v9691
    %v9913 = vmul.f32 %v9593, %v9695
    %v9914 = vmul.f32 %v9594, %v9699
    %v9915 = vmul.f32 %v9595, %v9703
    %v9916 = vmul.f32 %v9596, %v9707
    %v9917 = vmul.f32 %v9597, %v9711
    %v9918 = vmul.f32 %v9598, %v9715
    %v9919 = vmul.f32 %v9599, %v9719
    %v9920 = vmul.f32 %v9600, %v9723
    %v9921 = vmul.f32 %v9601, %v9727
    %v9922 = vmul.f32 %v9602, %v9731
    %v9923 = vmul.f32 %v9603, %v9735
    %v9924 = vmul.f32 %v9604, %v9739
    %v9925 = vmul.f32 %v9605, %v9743
    %v9926 = vmul.f32 %v9606, %v9747
    %v9927 = vmul.f32 %v9607, %v9751
    %v9928 = vmul.f32 %v9608, %v9755
    %v9929 = vmul.f32 %v9609, %v9759
    %v9930 = vmul.f32 %v9610, %v9763
    %v9931 = vmul.f32 %v9611, %v9767
    %v9932 = vmul.f32 %v9612, %v9771
    %v9933 = vmul.f32 %v9613, %v9775
    %v9934 = vmul.f32 %v9614, %v9779
    %v9935 = vmul.f32 %v9615, %v9783
    %v9936 = vmul.f32 %v9616, %v9787
    %v9937 = vmul.f32 %v9617, %v9791
    %v9938 = vmul.f32 %v9618, %v9795
    %v9939 = vmul.f32 %v9619, %v9799
    %v9940 = vmul.f32 %v9620, %v9803
    %v9941 = vmul.f32 %v9621, %v9807
    %v9942 = vmul.f32 %v9622, %v9811
    %v9943 = vmul.f32 %v9623, %v9815
    %v9944 = vmul.f32 %v9624, %v9819
    %v9945 = vmul.f32 %v9625, %v9823
    %v9946 = vmul.f32 %v9626, %v9827
    %v9947 = vmul.f32 %v9627, %v9831
    %v9948 = vmul.f32 %v9628, %v9835
    %v9949 = vmul.f32 %v9629, %v9839
    %v9950 = vmul.f32 %v9630, %v9843
    %v9951 = vmul.f32 %v9631, %v9847
    %v9952 = vmul.f32 %v9632, %v9851
    %v9953 = vmul.f32 %v9633, %v9855
    %v9954 = vmul.f32 %v9634, %v9859
    %v9955 = vmul.f32 %v9635, %v9863
    %v9956 = vmul.f32 %v9636, %v9867
    %v9957 = vmul.f32 %v9637, %v9871
    %v9958 = vmul.f32 %v9638, %v9875
    %v9959 = vmul.f32 %v9639, %v9879
    %v9960 = vmul.f32 %v9640, %v9883
    %v9961 = vmul.f32 %v9641, %v9887
    %v9962 = vmul.f32 %v9642, %v9891
    %v9963 = vmul.f32 %v9643, %v9895
    %v9964 = vmul.f32 %v9644, %v9899
    %v9965 = vld [vmem:[#allocation2 + $0x21] sm:$0xff]
    %v9966 = vld [vmem:[#allocation2 + $0x29] sm:$0xff]
    %v9967 = vld [vmem:[#allocation2 + $0x31] sm:$0xff]
    %v9968 = vld [vmem:[#allocation2 + $0x39] sm:$0xff]
    %v9969 = vld [vmem:[#allocation2 + $0x41] sm:$0xff]
    %v9970 = vld [vmem:[#allocation2 + $0x49] sm:$0xff]
    %v9971 = vld [vmem:[#allocation2 + $0x51] sm:$0xff]
    %v9972 = vld [vmem:[#allocation2 + $0x59] sm:$0xff]
    %v9973 = vld [vmem:[#allocation2 + $0x61] sm:$0xff]
    %v9974 = vld [vmem:[#allocation2 + $0x69] sm:$0xff]
    %v9975 = vld [vmem:[#allocation2 + $0x71] sm:$0xff]
    %v9976 = vld [vmem:[#allocation2 + $0x79] sm:$0xff]
    %v9977 = vld [vmem:[#allocation2 + $0x81] sm:$0xff]
    %v9978 = vld [vmem:[#allocation2 + $0x89] sm:$0xff]
    %v9979 = vld [vmem:[#allocation2 + $0x91] sm:$0xff]
    %v9980 = vld [vmem:[#allocation2 + $0x99] sm:$0xff]
    %v9981 = vld [vmem:[#allocation2 + $0xa1] sm:$0xff]
    %v9982 = vld [vmem:[#allocation2 + $0xa9] sm:$0xff]
    %v9983 = vld [vmem:[#allocation2 + $0xb1] sm:$0xff]
    %v9984 = vld [vmem:[#allocation2 + $0xb9] sm:$0xff]
    %v9985 = vld [vmem:[#allocation2 + $0xc1] sm:$0xff]
    %v9986 = vld [vmem:[#allocation2 + $0xc9] sm:$0xff]
    %v9987 = vld [vmem:[#allocation2 + $0xd1] sm:$0xff]
    %v9988 = vld [vmem:[#allocation2 + $0xd9] sm:$0xff]
    %v9989 = vld [vmem:[#allocation2 + $0xe1] sm:$0xff]
    %v9990 = vld [vmem:[#allocation2 + $0xe9] sm:$0xff]
    %v9991 = vld [vmem:[#allocation2 + $0xf1] sm:$0xff]
    %v9992 = vld [vmem:[#allocation2 + $0xf9] sm:$0xff]
    %v9993 = vld [vmem:[#allocation2 + $0x101] sm:$0xff]
    %v9994 = vld [vmem:[#allocation2 + $0x109] sm:$0xff]
    %v9995 = vld [vmem:[#allocation2 + $0x111] sm:$0xff]
    %v9996 = vld [vmem:[#allocation2 + $0x119] sm:$0xff]
    %v9997 = vld [vmem:[#allocation2 + $0x121] sm:$0xff]
    %v9998 = vld [vmem:[#allocation2 + $0x129] sm:$0xff]
    %v9999 = vld [vmem:[#allocation2 + $0x131] sm:$0xff]
    %v10000 = vld [vmem:[#allocation2 + $0x139] sm:$0xff]
    %v10001 = vld [vmem:[#allocation2 + $0x141] sm:$0xff]
    %v10002 = vld [vmem:[#allocation2 + $0x149] sm:$0xff]
    %v10003 = vld [vmem:[#allocation2 + $0x151] sm:$0xff]
    %v10004 = vld [vmem:[#allocation2 + $0x159] sm:$0xff]
    %v10005 = vld [vmem:[#allocation2 + $0x161] sm:$0xff]
    %v10006 = vld [vmem:[#allocation2 + $0x169] sm:$0xff]
    %v10007 = vld [vmem:[#allocation2 + $0x171] sm:$0xff]
    %v10008 = vld [vmem:[#allocation2 + $0x179] sm:$0xff]
    %v10009 = vld [vmem:[#allocation2 + $0x181] sm:$0xff]
    %v10010 = vld [vmem:[#allocation2 + $0x189] sm:$0xff]
    %v10011 = vld [vmem:[#allocation2 + $0x191] sm:$0xff]
    %v10012 = vld [vmem:[#allocation2 + $0x199] sm:$0xff]
    %v10013 = vld [vmem:[#allocation2 + $0x1a1] sm:$0xff]
    %v10014 = vld [vmem:[#allocation2 + $0x1a9] sm:$0xff]
    %v10015 = vld [vmem:[#allocation2 + $0x1b1] sm:$0xff]
    %v10016 = vld [vmem:[#allocation2 + $0x1b9] sm:$0xff]
    %v10017 = vld [vmem:[#allocation2 + $0x1c1] sm:$0xff]
    %v10018 = vld [vmem:[#allocation2 + $0x1c9] sm:$0xff]
    %v10019 = vld [vmem:[#allocation2 + $0x1d1] sm:$0xff]
    %v10020 = vld [vmem:[#allocation2 + $0x1d9] sm:$0xff]
    %v10021 = vld [vmem:[#allocation2 + $0x1e1] sm:$0xff]
    %v10022 = vld [vmem:[#allocation2 + $0x1e9] sm:$0xff]
    %v10023 = vld [vmem:[#allocation2 + $0x1f1] sm:$0xff]
    %v10024 = vld [vmem:[#allocation2 + $0x1f9] sm:$0xff]
    %v10025 = vld [vmem:[#allocation2 + $0x201] sm:$0xff]
    %v10026 = vld [vmem:[#allocation2 + $0x209] sm:$0xff]
    %v10027 = vld [vmem:[#allocation2 + $0x211] sm:$0xff]
    %v10028 = vld [vmem:[#allocation2 + $0x219] sm:$0xff]
    %10029 = vset.pattern.permute.xlu0 7
    %10030 = vperm.xlu0 %10029, %v7213
    %v10031 = vpop.permute.xlu0 %10030
    %10033 = vset.pattern.permute.xlu0 7
    %10034 = vperm.xlu0 %10033, %v7214
    %v10035 = vpop.permute.xlu0 %10034
    %10037 = vset.pattern.permute.xlu0 7
    %10038 = vperm.xlu0 %10037, %v7215
    %v10039 = vpop.permute.xlu0 %10038
    %10041 = vset.pattern.permute.xlu0 7
    %10042 = vperm.xlu0 %10041, %v7216
    %v10043 = vpop.permute.xlu0 %10042
    %10045 = vset.pattern.permute.xlu0 7
    %10046 = vperm.xlu0 %10045, %v7217
    %v10047 = vpop.permute.xlu0 %10046
    %10049 = vset.pattern.permute.xlu0 7
    %10050 = vperm.xlu0 %10049, %v7218
    %v10051 = vpop.permute.xlu0 %10050
    %10053 = vset.pattern.permute.xlu0 7
    %10054 = vperm.xlu0 %10053, %v7219
    %v10055 = vpop.permute.xlu0 %10054
    %10057 = vset.pattern.permute.xlu0 7
    %10058 = vperm.xlu0 %10057, %v7220
    %v10059 = vpop.permute.xlu0 %10058
    %10061 = vset.pattern.permute.xlu0 7
    %10062 = vperm.xlu0 %10061, %v7221
    %v10063 = vpop.permute.xlu0 %10062
    %10065 = vset.pattern.permute.xlu0 7
    %10066 = vperm.xlu0 %10065, %v7222
    %v10067 = vpop.permute.xlu0 %10066
    %10069 = vset.pattern.permute.xlu0 7
    %10070 = vperm.xlu0 %10069, %v7223
    %v10071 = vpop.permute.xlu0 %10070
    %10073 = vset.pattern.permute.xlu0 7
    %10074 = vperm.xlu0 %10073, %v7224
    %v10075 = vpop.permute.xlu0 %10074
    %10077 = vset.pattern.permute.xlu0 7
    %10078 = vperm.xlu0 %10077, %v7225
    %v10079 = vpop.permute.xlu0 %10078
    %10081 = vset.pattern.permute.xlu0 7
    %10082 = vperm.xlu0 %10081, %v7226
    %v10083 = vpop.permute.xlu0 %10082
    %10085 = vset.pattern.permute.xlu0 7
    %10086 = vperm.xlu0 %10085, %v7227
    %v10087 = vpop.permute.xlu0 %10086
    %10089 = vset.pattern.permute.xlu0 7
    %10090 = vperm.xlu0 %10089, %v7228
    %v10091 = vpop.permute.xlu0 %10090
    %10093 = vset.pattern.permute.xlu0 7
    %10094 = vperm.xlu0 %10093, %v7229
    %v10095 = vpop.permute.xlu0 %10094
    %10097 = vset.pattern.permute.xlu0 7
    %10098 = vperm.xlu0 %10097, %v7230
    %v10099 = vpop.permute.xlu0 %10098
    %10101 = vset.pattern.permute.xlu0 7
    %10102 = vperm.xlu0 %10101, %v7231
    %v10103 = vpop.permute.xlu0 %10102
    %10105 = vset.pattern.permute.xlu0 7
    %10106 = vperm.xlu0 %10105, %v7232
    %v10107 = vpop.permute.xlu0 %10106
    %10109 = vset.pattern.permute.xlu0 7
    %10110 = vperm.xlu0 %10109, %v7233
    %v10111 = vpop.permute.xlu0 %10110
    %10113 = vset.pattern.permute.xlu0 7
    %10114 = vperm.xlu0 %10113, %v7234
    %v10115 = vpop.permute.xlu0 %10114
    %10117 = vset.pattern.permute.xlu0 7
    %10118 = vperm.xlu0 %10117, %v7235
    %v10119 = vpop.permute.xlu0 %10118
    %10121 = vset.pattern.permute.xlu0 7
    %10122 = vperm.xlu0 %10121, %v7236
    %v10123 = vpop.permute.xlu0 %10122
    %10125 = vset.pattern.permute.xlu0 7
    %10126 = vperm.xlu0 %10125, %v7237
    %v10127 = vpop.permute.xlu0 %10126
    %10129 = vset.pattern.permute.xlu0 7
    %10130 = vperm.xlu0 %10129, %v7238
    %v10131 = vpop.permute.xlu0 %10130
    %10133 = vset.pattern.permute.xlu0 7
    %10134 = vperm.xlu0 %10133, %v7239
    %v10135 = vpop.permute.xlu0 %10134
    %10137 = vset.pattern.permute.xlu0 7
    %10138 = vperm.xlu0 %10137, %v7240
    %v10139 = vpop.permute.xlu0 %10138
    %10141 = vset.pattern.permute.xlu0 7
    %10142 = vperm.xlu0 %10141, %v7241
    %v10143 = vpop.permute.xlu0 %10142
    %10145 = vset.pattern.permute.xlu0 7
    %10146 = vperm.xlu0 %10145, %v7242
    %v10147 = vpop.permute.xlu0 %10146
    %10149 = vset.pattern.permute.xlu0 7
    %10150 = vperm.xlu0 %10149, %v7243
    %v10151 = vpop.permute.xlu0 %10150
    %10153 = vset.pattern.permute.xlu0 7
    %10154 = vperm.xlu0 %10153, %v7244
    %v10155 = vpop.permute.xlu0 %10154
    %10157 = vset.pattern.permute.xlu0 7
    %10158 = vperm.xlu0 %10157, %v7245
    %v10159 = vpop.permute.xlu0 %10158
    %10161 = vset.pattern.permute.xlu0 7
    %10162 = vperm.xlu0 %10161, %v7246
    %v10163 = vpop.permute.xlu0 %10162
    %10165 = vset.pattern.permute.xlu0 7
    %10166 = vperm.xlu0 %10165, %v7247
    %v10167 = vpop.permute.xlu0 %10166
    %10169 = vset.pattern.permute.xlu0 7
    %10170 = vperm.xlu0 %10169, %v7248
    %v10171 = vpop.permute.xlu0 %10170
    %10173 = vset.pattern.permute.xlu0 7
    %10174 = vperm.xlu0 %10173, %v7249
    %v10175 = vpop.permute.xlu0 %10174
    %10177 = vset.pattern.permute.xlu0 7
    %10178 = vperm.xlu0 %10177, %v7250
    %v10179 = vpop.permute.xlu0 %10178
    %10181 = vset.pattern.permute.xlu0 7
    %10182 = vperm.xlu0 %10181, %v7251
    %v10183 = vpop.permute.xlu0 %10182
    %10185 = vset.pattern.permute.xlu0 7
    %10186 = vperm.xlu0 %10185, %v7252
    %v10187 = vpop.permute.xlu0 %10186
    %10189 = vset.pattern.permute.xlu0 7
    %10190 = vperm.xlu0 %10189, %v7253
    %v10191 = vpop.permute.xlu0 %10190
    %10193 = vset.pattern.permute.xlu0 7
    %10194 = vperm.xlu0 %10193, %v7254
    %v10195 = vpop.permute.xlu0 %10194
    %10197 = vset.pattern.permute.xlu0 7
    %10198 = vperm.xlu0 %10197, %v7255
    %v10199 = vpop.permute.xlu0 %10198
    %10201 = vset.pattern.permute.xlu0 7
    %10202 = vperm.xlu0 %10201, %v7256
    %v10203 = vpop.permute.xlu0 %10202
    %10205 = vset.pattern.permute.xlu0 7
    %10206 = vperm.xlu0 %10205, %v7257
    %v10207 = vpop.permute.xlu0 %10206
    %10209 = vset.pattern.permute.xlu0 7
    %10210 = vperm.xlu0 %10209, %v7258
    %v10211 = vpop.permute.xlu0 %10210
    %10213 = vset.pattern.permute.xlu0 7
    %10214 = vperm.xlu0 %10213, %v7259
    %v10215 = vpop.permute.xlu0 %10214
    %10217 = vset.pattern.permute.xlu0 7
    %10218 = vperm.xlu0 %10217, %v7260
    %v10219 = vpop.permute.xlu0 %10218
    %10221 = vset.pattern.permute.xlu0 7
    %10222 = vperm.xlu0 %10221, %v7261
    %v10223 = vpop.permute.xlu0 %10222
    %10225 = vset.pattern.permute.xlu0 7
    %10226 = vperm.xlu0 %10225, %v7262
    %v10227 = vpop.permute.xlu0 %10226
    %10229 = vset.pattern.permute.xlu0 7
    %10230 = vperm.xlu0 %10229, %v7263
    %v10231 = vpop.permute.xlu0 %10230
    %10233 = vset.pattern.permute.xlu0 7
    %10234 = vperm.xlu0 %10233, %v7264
    %v10235 = vpop.permute.xlu0 %10234
    %10237 = vset.pattern.permute.xlu0 7
    %10238 = vperm.xlu0 %10237, %v7265
    %v10239 = vpop.permute.xlu0 %10238
    %10241 = vset.pattern.permute.xlu0 7
    %10242 = vperm.xlu0 %10241, %v7266
    %v10243 = vpop.permute.xlu0 %10242
    %10245 = vset.pattern.permute.xlu0 7
    %10246 = vperm.xlu0 %10245, %v7267
    %v10247 = vpop.permute.xlu0 %10246
    %10249 = vset.pattern.permute.xlu0 7
    %10250 = vperm.xlu0 %10249, %v7268
    %v10251 = vpop.permute.xlu0 %10250
    %10253 = vset.pattern.permute.xlu0 7
    %10254 = vperm.xlu0 %10253, %v7269
    %v10255 = vpop.permute.xlu0 %10254
    %10257 = vset.pattern.permute.xlu0 7
    %10258 = vperm.xlu0 %10257, %v7270
    %v10259 = vpop.permute.xlu0 %10258
    %10261 = vset.pattern.permute.xlu0 7
    %10262 = vperm.xlu0 %10261, %v7271
    %v10263 = vpop.permute.xlu0 %10262
    %10265 = vset.pattern.permute.xlu0 7
    %10266 = vperm.xlu0 %10265, %v7272
    %v10267 = vpop.permute.xlu0 %10266
    %10269 = vset.pattern.permute.xlu0 7
    %10270 = vperm.xlu0 %10269, %v7273
    %v10271 = vpop.permute.xlu0 %10270
    %10273 = vset.pattern.permute.xlu0 7
    %10274 = vperm.xlu0 %10273, %v7274
    %v10275 = vpop.permute.xlu0 %10274
    %10277 = vset.pattern.permute.xlu0 7
    %10278 = vperm.xlu0 %10277, %v7275
    %v10279 = vpop.permute.xlu0 %10278
    %10281 = vset.pattern.permute.xlu0 7
    %10282 = vperm.xlu0 %10281, %v7276
    %v10283 = vpop.permute.xlu0 %10282
    %v10285 = vmul.f32 %v9965, %v10031
    %v10286 = vmul.f32 %v9966, %v10035
    %v10287 = vmul.f32 %v9967, %v10039
    %v10288 = vmul.f32 %v9968, %v10043
    %v10289 = vmul.f32 %v9969, %v10047
    %v10290 = vmul.f32 %v9970, %v10051
    %v10291 = vmul.f32 %v9971, %v10055
    %v10292 = vmul.f32 %v9972, %v10059
    %v10293 = vmul.f32 %v9973, %v10063
    %v10294 = vmul.f32 %v9974, %v10067
    %v10295 = vmul.f32 %v9975, %v10071
    %v10296 = vmul.f32 %v9976, %v10075
    %v10297 = vmul.f32 %v9977, %v10079
    %v10298 = vmul.f32 %v9978, %v10083
    %v10299 = vmul.f32 %v9979, %v10087
    %v10300 = vmul.f32 %v9980, %v10091
    %v10301 = vmul.f32 %v9981, %v10095
    %v10302 = vmul.f32 %v9982, %v10099
    %v10303 = vmul.f32 %v9983, %v10103
    %v10304 = vmul.f32 %v9984, %v10107
    %v10305 = vmul.f32 %v9985, %v10111
    %v10306 = vmul.f32 %v9986, %v10115
    %v10307 = vmul.f32 %v9987, %v10119
    %v10308 = vmul.f32 %v9988, %v10123
    %v10309 = vmul.f32 %v9989, %v10127
    %v10310 = vmul.f32 %v9990, %v10131
    %v10311 = vmul.f32 %v9991, %v10135
    %v10312 = vmul.f32 %v9992, %v10139
    %v10313 = vmul.f32 %v9993, %v10143
    %v10314 = vmul.f32 %v9994, %v10147
    %v10315 = vmul.f32 %v9995, %v10151
    %v10316 = vmul.f32 %v9996, %v10155
    %v10317 = vmul.f32 %v9997, %v10159
    %v10318 = vmul.f32 %v9998, %v10163
    %v10319 = vmul.f32 %v9999, %v10167
    %v10320 = vmul.f32 %v10000, %v10171
    %v10321 = vmul.f32 %v10001, %v10175
    %v10322 = vmul.f32 %v10002, %v10179
    %v10323 = vmul.f32 %v10003, %v10183
    %v10324 = vmul.f32 %v10004, %v10187
    %v10325 = vmul.f32 %v10005, %v10191
    %v10326 = vmul.f32 %v10006, %v10195
    %v10327 = vmul.f32 %v10007, %v10199
    %v10328 = vmul.f32 %v10008, %v10203
    %v10329 = vmul.f32 %v10009, %v10207
    %v10330 = vmul.f32 %v10010, %v10211
    %v10331 = vmul.f32 %v10011, %v10215
    %v10332 = vmul.f32 %v10012, %v10219
    %v10333 = vmul.f32 %v10013, %v10223
    %v10334 = vmul.f32 %v10014, %v10227
    %v10335 = vmul.f32 %v10015, %v10231
    %v10336 = vmul.f32 %v10016, %v10235
    %v10337 = vmul.f32 %v10017, %v10239
    %v10338 = vmul.f32 %v10018, %v10243
    %v10339 = vmul.f32 %v10019, %v10247
    %v10340 = vmul.f32 %v10020, %v10251
    %v10341 = vmul.f32 %v10021, %v10255
    %v10342 = vmul.f32 %v10022, %v10259
    %v10343 = vmul.f32 %v10023, %v10263
    %v10344 = vmul.f32 %v10024, %v10267
    %v10345 = vmul.f32 %v10025, %v10271
    %v10346 = vmul.f32 %v10026, %v10275
    %v10347 = vmul.f32 %v10027, %v10279
    %v10348 = vmul.f32 %v10028, %v10283
    %v10349 = vld [vmem:[#allocation2 + $0x22] sm:$0xff]
    %v10350 = vld [vmem:[#allocation2 + $0x2a] sm:$0xff]
    %v10351 = vld [vmem:[#allocation2 + $0x32] sm:$0xff]
    %v10352 = vld [vmem:[#allocation2 + $0x3a] sm:$0xff]
    %v10353 = vld [vmem:[#allocation2 + $0x42] sm:$0xff]
    %v10354 = vld [vmem:[#allocation2 + $0x4a] sm:$0xff]
    %v10355 = vld [vmem:[#allocation2 + $0x52] sm:$0xff]
    %v10356 = vld [vmem:[#allocation2 + $0x5a] sm:$0xff]
    %v10357 = vld [vmem:[#allocation2 + $0x62] sm:$0xff]
    %v10358 = vld [vmem:[#allocation2 + $0x6a] sm:$0xff]
    %v10359 = vld [vmem:[#allocation2 + $0x72] sm:$0xff]
    %v10360 = vld [vmem:[#allocation2 + $0x7a] sm:$0xff]
    %v10361 = vld [vmem:[#allocation2 + $0x82] sm:$0xff]
    %v10362 = vld [vmem:[#allocation2 + $0x8a] sm:$0xff]
    %v10363 = vld [vmem:[#allocation2 + $0x92] sm:$0xff]
    %v10364 = vld [vmem:[#allocation2 + $0x9a] sm:$0xff]
    %v10365 = vld [vmem:[#allocation2 + $0xa2] sm:$0xff]
    %v10366 = vld [vmem:[#allocation2 + $0xaa] sm:$0xff]
    %v10367 = vld [vmem:[#allocation2 + $0xb2] sm:$0xff]
    %v10368 = vld [vmem:[#allocation2 + $0xba] sm:$0xff]
    %v10369 = vld [vmem:[#allocation2 + $0xc2] sm:$0xff]
    %v10370 = vld [vmem:[#allocation2 + $0xca] sm:$0xff]
    %v10371 = vld [vmem:[#allocation2 + $0xd2] sm:$0xff]
    %v10372 = vld [vmem:[#allocation2 + $0xda] sm:$0xff]
    %v10373 = vld [vmem:[#allocation2 + $0xe2] sm:$0xff]
    %v10374 = vld [vmem:[#allocation2 + $0xea] sm:$0xff]
    %v10375 = vld [vmem:[#allocation2 + $0xf2] sm:$0xff]
    %v10376 = vld [vmem:[#allocation2 + $0xfa] sm:$0xff]
    %v10377 = vld [vmem:[#allocation2 + $0x102] sm:$0xff]
    %v10378 = vld [vmem:[#allocation2 + $0x10a] sm:$0xff]
    %v10379 = vld [vmem:[#allocation2 + $0x112] sm:$0xff]
    %v10380 = vld [vmem:[#allocation2 + $0x11a] sm:$0xff]
    %v10381 = vld [vmem:[#allocation2 + $0x122] sm:$0xff]
    %v10382 = vld [vmem:[#allocation2 + $0x12a] sm:$0xff]
    %v10383 = vld [vmem:[#allocation2 + $0x132] sm:$0xff]
    %v10384 = vld [vmem:[#allocation2 + $0x13a] sm:$0xff]
    %v10385 = vld [vmem:[#allocation2 + $0x142] sm:$0xff]
    %v10386 = vld [vmem:[#allocation2 + $0x14a] sm:$0xff]
    %v10387 = vld [vmem:[#allocation2 + $0x152] sm:$0xff]
    %v10388 = vld [vmem:[#allocation2 + $0x15a] sm:$0xff]
    %v10389 = vld [vmem:[#allocation2 + $0x162] sm:$0xff]
    %v10390 = vld [vmem:[#allocation2 + $0x16a] sm:$0xff]
    %v10391 = vld [vmem:[#allocation2 + $0x172] sm:$0xff]
    %v10392 = vld [vmem:[#allocation2 + $0x17a] sm:$0xff]
    %v10393 = vld [vmem:[#allocation2 + $0x182] sm:$0xff]
    %v10394 = vld [vmem:[#allocation2 + $0x18a] sm:$0xff]
    %v10395 = vld [vmem:[#allocation2 + $0x192] sm:$0xff]
    %v10396 = vld [vmem:[#allocation2 + $0x19a] sm:$0xff]
    %v10397 = vld [vmem:[#allocation2 + $0x1a2] sm:$0xff]
    %v10398 = vld [vmem:[#allocation2 + $0x1aa] sm:$0xff]
    %v10399 = vld [vmem:[#allocation2 + $0x1b2] sm:$0xff]
    %v10400 = vld [vmem:[#allocation2 + $0x1ba] sm:$0xff]
    %v10401 = vld [vmem:[#allocation2 + $0x1c2] sm:$0xff]
    %v10402 = vld [vmem:[#allocation2 + $0x1ca] sm:$0xff]
    %v10403 = vld [vmem:[#allocation2 + $0x1d2] sm:$0xff]
    %v10404 = vld [vmem:[#allocation2 + $0x1da] sm:$0xff]
    %v10405 = vld [vmem:[#allocation2 + $0x1e2] sm:$0xff]
    %v10406 = vld [vmem:[#allocation2 + $0x1ea] sm:$0xff]
    %v10407 = vld [vmem:[#allocation2 + $0x1f2] sm:$0xff]
    %v10408 = vld [vmem:[#allocation2 + $0x1fa] sm:$0xff]
    %v10409 = vld [vmem:[#allocation2 + $0x202] sm:$0xff]
    %v10410 = vld [vmem:[#allocation2 + $0x20a] sm:$0xff]
    %v10411 = vld [vmem:[#allocation2 + $0x212] sm:$0xff]
    %v10412 = vld [vmem:[#allocation2 + $0x21a] sm:$0xff]
    %10413 = vset.pattern.permute.xlu0 8
    %10414 = vperm.xlu0 %10413, %v7213
    %v10415 = vpop.permute.xlu0 %10414
    %10417 = vset.pattern.permute.xlu0 8
    %10418 = vperm.xlu0 %10417, %v7214
    %v10419 = vpop.permute.xlu0 %10418
    %10421 = vset.pattern.permute.xlu0 8
    %10422 = vperm.xlu0 %10421, %v7215
    %v10423 = vpop.permute.xlu0 %10422
    %10425 = vset.pattern.permute.xlu0 8
    %10426 = vperm.xlu0 %10425, %v7216
    %v10427 = vpop.permute.xlu0 %10426
    %10429 = vset.pattern.permute.xlu0 8
    %10430 = vperm.xlu0 %10429, %v7217
    %v10431 = vpop.permute.xlu0 %10430
    %10433 = vset.pattern.permute.xlu0 8
    %10434 = vperm.xlu0 %10433, %v7218
    %v10435 = vpop.permute.xlu0 %10434
    %10437 = vset.pattern.permute.xlu0 8
    %10438 = vperm.xlu0 %10437, %v7219
    %v10439 = vpop.permute.xlu0 %10438
    %10441 = vset.pattern.permute.xlu0 8
    %10442 = vperm.xlu0 %10441, %v7220
    %v10443 = vpop.permute.xlu0 %10442
    %10445 = vset.pattern.permute.xlu0 8
    %10446 = vperm.xlu0 %10445, %v7221
    %v10447 = vpop.permute.xlu0 %10446
    %10449 = vset.pattern.permute.xlu0 8
    %10450 = vperm.xlu0 %10449, %v7222
    %v10451 = vpop.permute.xlu0 %10450
    %10453 = vset.pattern.permute.xlu0 8
    %10454 = vperm.xlu0 %10453, %v7223
    %v10455 = vpop.permute.xlu0 %10454
    %10457 = vset.pattern.permute.xlu0 8
    %10458 = vperm.xlu0 %10457, %v7224
    %v10459 = vpop.permute.xlu0 %10458
    %10461 = vset.pattern.permute.xlu0 8
    %10462 = vperm.xlu0 %10461, %v7225
    %v10463 = vpop.permute.xlu0 %10462
    %10465 = vset.pattern.permute.xlu0 8
    %10466 = vperm.xlu0 %10465, %v7226
    %v10467 = vpop.permute.xlu0 %10466
    %10469 = vset.pattern.permute.xlu0 8
    %10470 = vperm.xlu0 %10469, %v7227
    %v10471 = vpop.permute.xlu0 %10470
    %10473 = vset.pattern.permute.xlu0 8
    %10474 = vperm.xlu0 %10473, %v7228
    %v10475 = vpop.permute.xlu0 %10474
    %10477 = vset.pattern.permute.xlu0 8
    %10478 = vperm.xlu0 %10477, %v7229
    %v10479 = vpop.permute.xlu0 %10478
    %10481 = vset.pattern.permute.xlu0 8
    %10482 = vperm.xlu0 %10481, %v7230
    %v10483 = vpop.permute.xlu0 %10482
    %10485 = vset.pattern.permute.xlu0 8
    %10486 = vperm.xlu0 %10485, %v7231
    %v10487 = vpop.permute.xlu0 %10486
    %10489 = vset.pattern.permute.xlu0 8
    %10490 = vperm.xlu0 %10489, %v7232
    %v10491 = vpop.permute.xlu0 %10490
    %10493 = vset.pattern.permute.xlu0 8
    %10494 = vperm.xlu0 %10493, %v7233
    %v10495 = vpop.permute.xlu0 %10494
    %10497 = vset.pattern.permute.xlu0 8
    %10498 = vperm.xlu0 %10497, %v7234
    %v10499 = vpop.permute.xlu0 %10498
    %10501 = vset.pattern.permute.xlu0 8
    %10502 = vperm.xlu0 %10501, %v7235
    %v10503 = vpop.permute.xlu0 %10502
    %10505 = vset.pattern.permute.xlu0 8
    %10506 = vperm.xlu0 %10505, %v7236
    %v10507 = vpop.permute.xlu0 %10506
    %10509 = vset.pattern.permute.xlu0 8
    %10510 = vperm.xlu0 %10509, %v7237
    %v10511 = vpop.permute.xlu0 %10510
    %10513 = vset.pattern.permute.xlu0 8
    %10514 = vperm.xlu0 %10513, %v7238
    %v10515 = vpop.permute.xlu0 %10514
    %10517 = vset.pattern.permute.xlu0 8
    %10518 = vperm.xlu0 %10517, %v7239
    %v10519 = vpop.permute.xlu0 %10518
    %10521 = vset.pattern.permute.xlu0 8
    %10522 = vperm.xlu0 %10521, %v7240
    %v10523 = vpop.permute.xlu0 %10522
    %10525 = vset.pattern.permute.xlu0 8
    %10526 = vperm.xlu0 %10525, %v7241
    %v10527 = vpop.permute.xlu0 %10526
    %10529 = vset.pattern.permute.xlu0 8
    %10530 = vperm.xlu0 %10529, %v7242
    %v10531 = vpop.permute.xlu0 %10530
    %10533 = vset.pattern.permute.xlu0 8
    %10534 = vperm.xlu0 %10533, %v7243
    %v10535 = vpop.permute.xlu0 %10534
    %10537 = vset.pattern.permute.xlu0 8
    %10538 = vperm.xlu0 %10537, %v7244
    %v10539 = vpop.permute.xlu0 %10538
    %10541 = vset.pattern.permute.xlu0 8
    %10542 = vperm.xlu0 %10541, %v7245
    %v10543 = vpop.permute.xlu0 %10542
    %10545 = vset.pattern.permute.xlu0 8
    %10546 = vperm.xlu0 %10545, %v7246
    %v10547 = vpop.permute.xlu0 %10546
    %10549 = vset.pattern.permute.xlu0 8
    %10550 = vperm.xlu0 %10549, %v7247
    %v10551 = vpop.permute.xlu0 %10550
    %10553 = vset.pattern.permute.xlu0 8
    %10554 = vperm.xlu0 %10553, %v7248
    %v10555 = vpop.permute.xlu0 %10554
    %10557 = vset.pattern.permute.xlu0 8
    %10558 = vperm.xlu0 %10557, %v7249
    %v10559 = vpop.permute.xlu0 %10558
    %10561 = vset.pattern.permute.xlu0 8
    %10562 = vperm.xlu0 %10561, %v7250
    %v10563 = vpop.permute.xlu0 %10562
    %10565 = vset.pattern.permute.xlu0 8
    %10566 = vperm.xlu0 %10565, %v7251
    %v10567 = vpop.permute.xlu0 %10566
    %10569 = vset.pattern.permute.xlu0 8
    %10570 = vperm.xlu0 %10569, %v7252
    %v10571 = vpop.permute.xlu0 %10570
    %10573 = vset.pattern.permute.xlu0 8
    %10574 = vperm.xlu0 %10573, %v7253
    %v10575 = vpop.permute.xlu0 %10574
    %10577 = vset.pattern.permute.xlu0 8
    %10578 = vperm.xlu0 %10577, %v7254
    %v10579 = vpop.permute.xlu0 %10578
    %10581 = vset.pattern.permute.xlu0 8
    %10582 = vperm.xlu0 %10581, %v7255
    %v10583 = vpop.permute.xlu0 %10582
    %10585 = vset.pattern.permute.xlu0 8
    %10586 = vperm.xlu0 %10585, %v7256
    %v10587 = vpop.permute.xlu0 %10586
    %10589 = vset.pattern.permute.xlu0 8
    %10590 = vperm.xlu0 %10589, %v7257
    %v10591 = vpop.permute.xlu0 %10590
    %10593 = vset.pattern.permute.xlu0 8
    %10594 = vperm.xlu0 %10593, %v7258
    %v10595 = vpop.permute.xlu0 %10594
    %10597 = vset.pattern.permute.xlu0 8
    %10598 = vperm.xlu0 %10597, %v7259
    %v10599 = vpop.permute.xlu0 %10598
    %10601 = vset.pattern.permute.xlu0 8
    %10602 = vperm.xlu0 %10601, %v7260
    %v10603 = vpop.permute.xlu0 %10602
    %10605 = vset.pattern.permute.xlu0 8
    %10606 = vperm.xlu0 %10605, %v7261
    %v10607 = vpop.permute.xlu0 %10606
    %10609 = vset.pattern.permute.xlu0 8
    %10610 = vperm.xlu0 %10609, %v7262
    %v10611 = vpop.permute.xlu0 %10610
    %10613 = vset.pattern.permute.xlu0 8
    %10614 = vperm.xlu0 %10613, %v7263
    %v10615 = vpop.permute.xlu0 %10614
    %10617 = vset.pattern.permute.xlu0 8
    %10618 = vperm.xlu0 %10617, %v7264
    %v10619 = vpop.permute.xlu0 %10618
    %10621 = vset.pattern.permute.xlu0 8
    %10622 = vperm.xlu0 %10621, %v7265
    %v10623 = vpop.permute.xlu0 %10622
    %10625 = vset.pattern.permute.xlu0 8
    %10626 = vperm.xlu0 %10625, %v7266
    %v10627 = vpop.permute.xlu0 %10626
    %10629 = vset.pattern.permute.xlu0 8
    %10630 = vperm.xlu0 %10629, %v7267
    %v10631 = vpop.permute.xlu0 %10630
    %10633 = vset.pattern.permute.xlu0 8
    %10634 = vperm.xlu0 %10633, %v7268
    %v10635 = vpop.permute.xlu0 %10634
    %10637 = vset.pattern.permute.xlu0 8
    %10638 = vperm.xlu0 %10637, %v7269
    %v10639 = vpop.permute.xlu0 %10638
    %10641 = vset.pattern.permute.xlu0 8
    %10642 = vperm.xlu0 %10641, %v7270
    %v10643 = vpop.permute.xlu0 %10642
    %10645 = vset.pattern.permute.xlu0 8
    %10646 = vperm.xlu0 %10645, %v7271
    %v10647 = vpop.permute.xlu0 %10646
    %10649 = vset.pattern.permute.xlu0 8
    %10650 = vperm.xlu0 %10649, %v7272
    %v10651 = vpop.permute.xlu0 %10650
    %10653 = vset.pattern.permute.xlu0 8
    %10654 = vperm.xlu0 %10653, %v7273
    %v10655 = vpop.permute.xlu0 %10654
    %10657 = vset.pattern.permute.xlu0 8
    %10658 = vperm.xlu0 %10657, %v7274
    %v10659 = vpop.permute.xlu0 %10658
    %10661 = vset.pattern.permute.xlu0 8
    %10662 = vperm.xlu0 %10661, %v7275
    %v10663 = vpop.permute.xlu0 %10662
    %10665 = vset.pattern.permute.xlu0 8
    %10666 = vperm.xlu0 %10665, %v7276
    %v10667 = vpop.permute.xlu0 %10666
    %v10669 = vmul.f32 %v10349, %v10415
    %v10670 = vmul.f32 %v10350, %v10419
    %v10671 = vmul.f32 %v10351, %v10423
    %v10672 = vmul.f32 %v10352, %v10427
    %v10673 = vmul.f32 %v10353, %v10431
    %v10674 = vmul.f32 %v10354, %v10435
    %v10675 = vmul.f32 %v10355, %v10439
    %v10676 = vmul.f32 %v10356, %v10443
    %v10677 = vmul.f32 %v10357, %v10447
    %v10678 = vmul.f32 %v10358, %v10451
    %v10679 = vmul.f32 %v10359, %v10455
    %v10680 = vmul.f32 %v10360, %v10459
    %v10681 = vmul.f32 %v10361, %v10463
    %v10682 = vmul.f32 %v10362, %v10467
    %v10683 = vmul.f32 %v10363, %v10471
    %v10684 = vmul.f32 %v10364, %v10475
    %v10685 = vmul.f32 %v10365, %v10479
    %v10686 = vmul.f32 %v10366, %v10483
    %v10687 = vmul.f32 %v10367, %v10487
    %v10688 = vmul.f32 %v10368, %v10491
    %v10689 = vmul.f32 %v10369, %v10495
    %v10690 = vmul.f32 %v10370, %v10499
    %v10691 = vmul.f32 %v10371, %v10503
    %v10692 = vmul.f32 %v10372, %v10507
    %v10693 = vmul.f32 %v10373, %v10511
    %v10694 = vmul.f32 %v10374, %v10515
    %v10695 = vmul.f32 %v10375, %v10519
    %v10696 = vmul.f32 %v10376, %v10523
    %v10697 = vmul.f32 %v10377, %v10527
    %v10698 = vmul.f32 %v10378, %v10531
    %v10699 = vmul.f32 %v10379, %v10535
    %v10700 = vmul.f32 %v10380, %v10539
    %v10701 = vmul.f32 %v10381, %v10543
    %v10702 = vmul.f32 %v10382, %v10547
    %v10703 = vmul.f32 %v10383, %v10551
    %v10704 = vmul.f32 %v10384, %v10555
    %v10705 = vmul.f32 %v10385, %v10559
    %v10706 = vmul.f32 %v10386, %v10563
    %v10707 = vmul.f32 %v10387, %v10567
    %v10708 = vmul.f32 %v10388, %v10571
    %v10709 = vmul.f32 %v10389, %v10575
    %v10710 = vmul.f32 %v10390, %v10579
    %v10711 = vmul.f32 %v10391, %v10583
    %v10712 = vmul.f32 %v10392, %v10587
    %v10713 = vmul.f32 %v10393, %v10591
    %v10714 = vmul.f32 %v10394, %v10595
    %v10715 = vmul.f32 %v10395, %v10599
    %v10716 = vmul.f32 %v10396, %v10603
    %v10717 = vmul.f32 %v10397, %v10607
    %v10718 = vmul.f32 %v10398, %v10611
    %v10719 = vmul.f32 %v10399, %v10615
    %v10720 = vmul.f32 %v10400, %v10619
    %v10721 = vmul.f32 %v10401, %v10623
    %v10722 = vmul.f32 %v10402, %v10627
    %v10723 = vmul.f32 %v10403, %v10631
    %v10724 = vmul.f32 %v10404, %v10635
    %v10725 = vmul.f32 %v10405, %v10639
    %v10726 = vmul.f32 %v10406, %v10643
    %v10727 = vmul.f32 %v10407, %v10647
    %v10728 = vmul.f32 %v10408, %v10651
    %v10729 = vmul.f32 %v10409, %v10655
    %v10730 = vmul.f32 %v10410, %v10659
    %v10731 = vmul.f32 %v10411, %v10663
    %v10732 = vmul.f32 %v10412, %v10667
    %10797 = vrot.lane.b32.xlu0 %v7981, 4
    %v10798 = vpop.permute.xlu0 %10797
    %10799 = vrot.lane.b32.xlu0 %v7982, 4
    %v10800 = vpop.permute.xlu0 %10799
    %10801 = vrot.lane.b32.xlu0 %v7983, 4
    %v10802 = vpop.permute.xlu0 %10801
    %10803 = vrot.lane.b32.xlu0 %v7984, 4
    %v10804 = vpop.permute.xlu0 %10803
    %10805 = vrot.lane.b32.xlu0 %v7985, 4
    %v10806 = vpop.permute.xlu0 %10805
    %10807 = vrot.lane.b32.xlu0 %v7986, 4
    %v10808 = vpop.permute.xlu0 %10807
    %10809 = vrot.lane.b32.xlu0 %v7987, 4
    %v10810 = vpop.permute.xlu0 %10809
    %10811 = vrot.lane.b32.xlu0 %v7988, 4
    %v10812 = vpop.permute.xlu0 %10811
    %10813 = vrot.lane.b32.xlu0 %v7989, 4
    %v10814 = vpop.permute.xlu0 %10813
    %10815 = vrot.lane.b32.xlu0 %v7990, 4
    %v10816 = vpop.permute.xlu0 %10815
    %10817 = vrot.lane.b32.xlu0 %v7991, 4
    %v10818 = vpop.permute.xlu0 %10817
    %10819 = vrot.lane.b32.xlu0 %v7992, 4
    %v10820 = vpop.permute.xlu0 %10819
    %10821 = vrot.lane.b32.xlu0 %v7993, 4
    %v10822 = vpop.permute.xlu0 %10821
    %10823 = vrot.lane.b32.xlu0 %v7994, 4
    %v10824 = vpop.permute.xlu0 %10823
    %10825 = vrot.lane.b32.xlu0 %v7995, 4
    %v10826 = vpop.permute.xlu0 %10825
    %10827 = vrot.lane.b32.xlu0 %v7996, 4
    %v10828 = vpop.permute.xlu0 %10827
    %10829 = vrot.lane.b32.xlu0 %v7997, 4
    %v10830 = vpop.permute.xlu0 %10829
    %10831 = vrot.lane.b32.xlu0 %v7998, 4
    %v10832 = vpop.permute.xlu0 %10831
    %10833 = vrot.lane.b32.xlu0 %v7999, 4
    %v10834 = vpop.permute.xlu0 %10833
    %10835 = vrot.lane.b32.xlu0 %v8000, 4
    %v10836 = vpop.permute.xlu0 %10835
    %10837 = vrot.lane.b32.xlu0 %v8001, 4
    %v10838 = vpop.permute.xlu0 %10837
    %10839 = vrot.lane.b32.xlu0 %v8002, 4
    %v10840 = vpop.permute.xlu0 %10839
    %10841 = vrot.lane.b32.xlu0 %v8003, 4
    %v10842 = vpop.permute.xlu0 %10841
    %10843 = vrot.lane.b32.xlu0 %v8004, 4
    %v10844 = vpop.permute.xlu0 %10843
    %10845 = vrot.lane.b32.xlu0 %v8005, 4
    %v10846 = vpop.permute.xlu0 %10845
    %10847 = vrot.lane.b32.xlu0 %v8006, 4
    %v10848 = vpop.permute.xlu0 %10847
    %10849 = vrot.lane.b32.xlu0 %v8007, 4
    %v10850 = vpop.permute.xlu0 %10849
    %10851 = vrot.lane.b32.xlu0 %v8008, 4
    %v10852 = vpop.permute.xlu0 %10851
    %10853 = vrot.lane.b32.xlu0 %v8009, 4
    %v10854 = vpop.permute.xlu0 %10853
    %10855 = vrot.lane.b32.xlu0 %v8010, 4
    %v10856 = vpop.permute.xlu0 %10855
    %10857 = vrot.lane.b32.xlu0 %v8011, 4
    %v10858 = vpop.permute.xlu0 %10857
    %10859 = vrot.lane.b32.xlu0 %v8012, 4
    %v10860 = vpop.permute.xlu0 %10859
    %10861 = vrot.lane.b32.xlu0 %v8013, 4
    %v10862 = vpop.permute.xlu0 %10861
    %10863 = vrot.lane.b32.xlu0 %v8014, 4
    %v10864 = vpop.permute.xlu0 %10863
    %10865 = vrot.lane.b32.xlu0 %v8015, 4
    %v10866 = vpop.permute.xlu0 %10865
    %10867 = vrot.lane.b32.xlu0 %v8016, 4
    %v10868 = vpop.permute.xlu0 %10867
    %10869 = vrot.lane.b32.xlu0 %v8017, 4
    %v10870 = vpop.permute.xlu0 %10869
    %10871 = vrot.lane.b32.xlu0 %v8018, 4
    %v10872 = vpop.permute.xlu0 %10871
    %10873 = vrot.lane.b32.xlu0 %v8019, 4
    %v10874 = vpop.permute.xlu0 %10873
    %10875 = vrot.lane.b32.xlu0 %v8020, 4
    %v10876 = vpop.permute.xlu0 %10875
    %10877 = vrot.lane.b32.xlu0 %v8021, 4
    %v10878 = vpop.permute.xlu0 %10877
    %10879 = vrot.lane.b32.xlu0 %v8022, 4
    %v10880 = vpop.permute.xlu0 %10879
    %10881 = vrot.lane.b32.xlu0 %v8023, 4
    %v10882 = vpop.permute.xlu0 %10881
    %10883 = vrot.lane.b32.xlu0 %v8024, 4
    %v10884 = vpop.permute.xlu0 %10883
    %10885 = vrot.lane.b32.xlu0 %v8025, 4
    %v10886 = vpop.permute.xlu0 %10885
    %10887 = vrot.lane.b32.xlu0 %v8026, 4
    %v10888 = vpop.permute.xlu0 %10887
    %10889 = vrot.lane.b32.xlu0 %v8027, 4
    %v10890 = vpop.permute.xlu0 %10889
    %10891 = vrot.lane.b32.xlu0 %v8028, 4
    %v10892 = vpop.permute.xlu0 %10891
    %10893 = vrot.lane.b32.xlu0 %v8029, 4
    %v10894 = vpop.permute.xlu0 %10893
    %10895 = vrot.lane.b32.xlu0 %v8030, 4
    %v10896 = vpop.permute.xlu0 %10895
    %10897 = vrot.lane.b32.xlu0 %v8031, 4
    %v10898 = vpop.permute.xlu0 %10897
    %10899 = vrot.lane.b32.xlu0 %v8032, 4
    %v10900 = vpop.permute.xlu0 %10899
    %10901 = vrot.lane.b32.xlu0 %v8033, 4
    %v10902 = vpop.permute.xlu0 %10901
    %10903 = vrot.lane.b32.xlu0 %v8034, 4
    %v10904 = vpop.permute.xlu0 %10903
    %10905 = vrot.lane.b32.xlu0 %v8035, 4
    %v10906 = vpop.permute.xlu0 %10905
    %10907 = vrot.lane.b32.xlu0 %v8036, 4
    %v10908 = vpop.permute.xlu0 %10907
    %10909 = vrot.lane.b32.xlu0 %v8037, 4
    %v10910 = vpop.permute.xlu0 %10909
    %10911 = vrot.lane.b32.xlu0 %v8038, 4
    %v10912 = vpop.permute.xlu0 %10911
    %10913 = vrot.lane.b32.xlu0 %v8039, 4
    %v10914 = vpop.permute.xlu0 %10913
    %10915 = vrot.lane.b32.xlu0 %v8040, 4
    %v10916 = vpop.permute.xlu0 %10915
    %10917 = vrot.lane.b32.xlu0 %v8041, 4
    %v10918 = vpop.permute.xlu0 %10917
    %10919 = vrot.lane.b32.xlu0 %v8042, 4
    %v10920 = vpop.permute.xlu0 %10919
    %10921 = vrot.lane.b32.xlu0 %v8043, 4
    %v10922 = vpop.permute.xlu0 %10921
    %10923 = vrot.lane.b32.xlu0 %v8044, 4
    %v10924 = vpop.permute.xlu0 %10923
    %11053 = vrot.lane.b32.xlu0 %v8365, 8
    %v11054 = vpop.permute.xlu0 %11053
    %11055 = vrot.lane.b32.xlu0 %v8366, 8
    %v11056 = vpop.permute.xlu0 %11055
    %11057 = vrot.lane.b32.xlu0 %v8367, 8
    %v11058 = vpop.permute.xlu0 %11057
    %11059 = vrot.lane.b32.xlu0 %v8368, 8
    %v11060 = vpop.permute.xlu0 %11059
    %11061 = vrot.lane.b32.xlu0 %v8369, 8
    %v11062 = vpop.permute.xlu0 %11061
    %11063 = vrot.lane.b32.xlu0 %v8370, 8
    %v11064 = vpop.permute.xlu0 %11063
    %11065 = vrot.lane.b32.xlu0 %v8371, 8
    %v11066 = vpop.permute.xlu0 %11065
    %11067 = vrot.lane.b32.xlu0 %v8372, 8
    %v11068 = vpop.permute.xlu0 %11067
    %11069 = vrot.lane.b32.xlu0 %v8373, 8
    %v11070 = vpop.permute.xlu0 %11069
    %11071 = vrot.lane.b32.xlu0 %v8374, 8
    %v11072 = vpop.permute.xlu0 %11071
    %11073 = vrot.lane.b32.xlu0 %v8375, 8
    %v11074 = vpop.permute.xlu0 %11073
    %11075 = vrot.lane.b32.xlu0 %v8376, 8
    %v11076 = vpop.permute.xlu0 %11075
    %11077 = vrot.lane.b32.xlu0 %v8377, 8
    %v11078 = vpop.permute.xlu0 %11077
    %11079 = vrot.lane.b32.xlu0 %v8378, 8
    %v11080 = vpop.permute.xlu0 %11079
    %11081 = vrot.lane.b32.xlu0 %v8379, 8
    %v11082 = vpop.permute.xlu0 %11081
    %11083 = vrot.lane.b32.xlu0 %v8380, 8
    %v11084 = vpop.permute.xlu0 %11083
    %11085 = vrot.lane.b32.xlu0 %v8381, 8
    %v11086 = vpop.permute.xlu0 %11085
    %11087 = vrot.lane.b32.xlu0 %v8382, 8
    %v11088 = vpop.permute.xlu0 %11087
    %11089 = vrot.lane.b32.xlu0 %v8383, 8
    %v11090 = vpop.permute.xlu0 %11089
    %11091 = vrot.lane.b32.xlu0 %v8384, 8
    %v11092 = vpop.permute.xlu0 %11091
    %11093 = vrot.lane.b32.xlu0 %v8385, 8
    %v11094 = vpop.permute.xlu0 %11093
    %11095 = vrot.lane.b32.xlu0 %v8386, 8
    %v11096 = vpop.permute.xlu0 %11095
    %11097 = vrot.lane.b32.xlu0 %v8387, 8
    %v11098 = vpop.permute.xlu0 %11097
    %11099 = vrot.lane.b32.xlu0 %v8388, 8
    %v11100 = vpop.permute.xlu0 %11099
    %11101 = vrot.lane.b32.xlu0 %v8389, 8
    %v11102 = vpop.permute.xlu0 %11101
    %11103 = vrot.lane.b32.xlu0 %v8390, 8
    %v11104 = vpop.permute.xlu0 %11103
    %11105 = vrot.lane.b32.xlu0 %v8391, 8
    %v11106 = vpop.permute.xlu0 %11105
    %11107 = vrot.lane.b32.xlu0 %v8392, 8
    %v11108 = vpop.permute.xlu0 %11107
    %11109 = vrot.lane.b32.xlu0 %v8393, 8
    %v11110 = vpop.permute.xlu0 %11109
    %11111 = vrot.lane.b32.xlu0 %v8394, 8
    %v11112 = vpop.permute.xlu0 %11111
    %11113 = vrot.lane.b32.xlu0 %v8395, 8
    %v11114 = vpop.permute.xlu0 %11113
    %11115 = vrot.lane.b32.xlu0 %v8396, 8
    %v11116 = vpop.permute.xlu0 %11115
    %11117 = vrot.lane.b32.xlu0 %v8397, 8
    %v11118 = vpop.permute.xlu0 %11117
    %11119 = vrot.lane.b32.xlu0 %v8398, 8
    %v11120 = vpop.permute.xlu0 %11119
    %11121 = vrot.lane.b32.xlu0 %v8399, 8
    %v11122 = vpop.permute.xlu0 %11121
    %11123 = vrot.lane.b32.xlu0 %v8400, 8
    %v11124 = vpop.permute.xlu0 %11123
    %11125 = vrot.lane.b32.xlu0 %v8401, 8
    %v11126 = vpop.permute.xlu0 %11125
    %11127 = vrot.lane.b32.xlu0 %v8402, 8
    %v11128 = vpop.permute.xlu0 %11127
    %11129 = vrot.lane.b32.xlu0 %v8403, 8
    %v11130 = vpop.permute.xlu0 %11129
    %11131 = vrot.lane.b32.xlu0 %v8404, 8
    %v11132 = vpop.permute.xlu0 %11131
    %11133 = vrot.lane.b32.xlu0 %v8405, 8
    %v11134 = vpop.permute.xlu0 %11133
    %11135 = vrot.lane.b32.xlu0 %v8406, 8
    %v11136 = vpop.permute.xlu0 %11135
    %11137 = vrot.lane.b32.xlu0 %v8407, 8
    %v11138 = vpop.permute.xlu0 %11137
    %11139 = vrot.lane.b32.xlu0 %v8408, 8
    %v11140 = vpop.permute.xlu0 %11139
    %11141 = vrot.lane.b32.xlu0 %v8409, 8
    %v11142 = vpop.permute.xlu0 %11141
    %11143 = vrot.lane.b32.xlu0 %v8410, 8
    %v11144 = vpop.permute.xlu0 %11143
    %11145 = vrot.lane.b32.xlu0 %v8411, 8
    %v11146 = vpop.permute.xlu0 %11145
    %11147 = vrot.lane.b32.xlu0 %v8412, 8
    %v11148 = vpop.permute.xlu0 %11147
    %11149 = vrot.lane.b32.xlu0 %v8413, 8
    %v11150 = vpop.permute.xlu0 %11149
    %11151 = vrot.lane.b32.xlu0 %v8414, 8
    %v11152 = vpop.permute.xlu0 %11151
    %11153 = vrot.lane.b32.xlu0 %v8415, 8
    %v11154 = vpop.permute.xlu0 %11153
    %11155 = vrot.lane.b32.xlu0 %v8416, 8
    %v11156 = vpop.permute.xlu0 %11155
    %11157 = vrot.lane.b32.xlu0 %v8417, 8
    %v11158 = vpop.permute.xlu0 %11157
    %11159 = vrot.lane.b32.xlu0 %v8418, 8
    %v11160 = vpop.permute.xlu0 %11159
    %11161 = vrot.lane.b32.xlu0 %v8419, 8
    %v11162 = vpop.permute.xlu0 %11161
    %11163 = vrot.lane.b32.xlu0 %v8420, 8
    %v11164 = vpop.permute.xlu0 %11163
    %11165 = vrot.lane.b32.xlu0 %v8421, 8
    %v11166 = vpop.permute.xlu0 %11165
    %11167 = vrot.lane.b32.xlu0 %v8422, 8
    %v11168 = vpop.permute.xlu0 %11167
    %11169 = vrot.lane.b32.xlu0 %v8423, 8
    %v11170 = vpop.permute.xlu0 %11169
    %11171 = vrot.lane.b32.xlu0 %v8424, 8
    %v11172 = vpop.permute.xlu0 %11171
    %11173 = vrot.lane.b32.xlu0 %v8425, 8
    %v11174 = vpop.permute.xlu0 %11173
    %11175 = vrot.lane.b32.xlu0 %v8426, 8
    %v11176 = vpop.permute.xlu0 %11175
    %11177 = vrot.lane.b32.xlu0 %v8427, 8
    %v11178 = vpop.permute.xlu0 %11177
    %11179 = vrot.lane.b32.xlu0 %v8428, 8
    %v11180 = vpop.permute.xlu0 %11179
    %11309 = vrot.lane.b32.xlu0 %v8749, 12
    %v11310 = vpop.permute.xlu0 %11309
    %11311 = vrot.lane.b32.xlu0 %v8750, 12
    %v11312 = vpop.permute.xlu0 %11311
    %11313 = vrot.lane.b32.xlu0 %v8751, 12
    %v11314 = vpop.permute.xlu0 %11313
    %11315 = vrot.lane.b32.xlu0 %v8752, 12
    %v11316 = vpop.permute.xlu0 %11315
    %11317 = vrot.lane.b32.xlu0 %v8753, 12
    %v11318 = vpop.permute.xlu0 %11317
    %11319 = vrot.lane.b32.xlu0 %v8754, 12
    %v11320 = vpop.permute.xlu0 %11319
    %11321 = vrot.lane.b32.xlu0 %v8755, 12
    %v11322 = vpop.permute.xlu0 %11321
    %11323 = vrot.lane.b32.xlu0 %v8756, 12
    %v11324 = vpop.permute.xlu0 %11323
    %11325 = vrot.lane.b32.xlu0 %v8757, 12
    %v11326 = vpop.permute.xlu0 %11325
    %11327 = vrot.lane.b32.xlu0 %v8758, 12
    %v11328 = vpop.permute.xlu0 %11327
    %11329 = vrot.lane.b32.xlu0 %v8759, 12
    %v11330 = vpop.permute.xlu0 %11329
    %11331 = vrot.lane.b32.xlu0 %v8760, 12
    %v11332 = vpop.permute.xlu0 %11331
    %11333 = vrot.lane.b32.xlu0 %v8761, 12
    %v11334 = vpop.permute.xlu0 %11333
    %11335 = vrot.lane.b32.xlu0 %v8762, 12
    %v11336 = vpop.permute.xlu0 %11335
    %11337 = vrot.lane.b32.xlu0 %v8763, 12
    %v11338 = vpop.permute.xlu0 %11337
    %11339 = vrot.lane.b32.xlu0 %v8764, 12
    %v11340 = vpop.permute.xlu0 %11339
    %11341 = vrot.lane.b32.xlu0 %v8765, 12
    %v11342 = vpop.permute.xlu0 %11341
    %11343 = vrot.lane.b32.xlu0 %v8766, 12
    %v11344 = vpop.permute.xlu0 %11343
    %11345 = vrot.lane.b32.xlu0 %v8767, 12
    %v11346 = vpop.permute.xlu0 %11345
    %11347 = vrot.lane.b32.xlu0 %v8768, 12
    %v11348 = vpop.permute.xlu0 %11347
    %11349 = vrot.lane.b32.xlu0 %v8769, 12
    %v11350 = vpop.permute.xlu0 %11349
    %11351 = vrot.lane.b32.xlu0 %v8770, 12
    %v11352 = vpop.permute.xlu0 %11351
    %11353 = vrot.lane.b32.xlu0 %v8771, 12
    %v11354 = vpop.permute.xlu0 %11353
    %11355 = vrot.lane.b32.xlu0 %v8772, 12
    %v11356 = vpop.permute.xlu0 %11355
    %11357 = vrot.lane.b32.xlu0 %v8773, 12
    %v11358 = vpop.permute.xlu0 %11357
    %11359 = vrot.lane.b32.xlu0 %v8774, 12
    %v11360 = vpop.permute.xlu0 %11359
    %11361 = vrot.lane.b32.xlu0 %v8775, 12
    %v11362 = vpop.permute.xlu0 %11361
    %11363 = vrot.lane.b32.xlu0 %v8776, 12
    %v11364 = vpop.permute.xlu0 %11363
    %11365 = vrot.lane.b32.xlu0 %v8777, 12
    %v11366 = vpop.permute.xlu0 %11365
    %11367 = vrot.lane.b32.xlu0 %v8778, 12
    %v11368 = vpop.permute.xlu0 %11367
    %11369 = vrot.lane.b32.xlu0 %v8779, 12
    %v11370 = vpop.permute.xlu0 %11369
    %11371 = vrot.lane.b32.xlu0 %v8780, 12
    %v11372 = vpop.permute.xlu0 %11371
    %11373 = vrot.lane.b32.xlu0 %v8781, 12
    %v11374 = vpop.permute.xlu0 %11373
    %11375 = vrot.lane.b32.xlu0 %v8782, 12
    %v11376 = vpop.permute.xlu0 %11375
    %11377 = vrot.lane.b32.xlu0 %v8783, 12
    %v11378 = vpop.permute.xlu0 %11377
    %11379 = vrot.lane.b32.xlu0 %v8784, 12
    %v11380 = vpop.permute.xlu0 %11379
    %11381 = vrot.lane.b32.xlu0 %v8785, 12
    %v11382 = vpop.permute.xlu0 %11381
    %11383 = vrot.lane.b32.xlu0 %v8786, 12
    %v11384 = vpop.permute.xlu0 %11383
    %11385 = vrot.lane.b32.xlu0 %v8787, 12
    %v11386 = vpop.permute.xlu0 %11385
    %11387 = vrot.lane.b32.xlu0 %v8788, 12
    %v11388 = vpop.permute.xlu0 %11387
    %11389 = vrot.lane.b32.xlu0 %v8789, 12
    %v11390 = vpop.permute.xlu0 %11389
    %11391 = vrot.lane.b32.xlu0 %v8790, 12
    %v11392 = vpop.permute.xlu0 %11391
    %11393 = vrot.lane.b32.xlu0 %v8791, 12
    %v11394 = vpop.permute.xlu0 %11393
    %11395 = vrot.lane.b32.xlu0 %v8792, 12
    %v11396 = vpop.permute.xlu0 %11395
    %11397 = vrot.lane.b32.xlu0 %v8793, 12
    %v11398 = vpop.permute.xlu0 %11397
    %11399 = vrot.lane.b32.xlu0 %v8794, 12
    %v11400 = vpop.permute.xlu0 %11399
    %11401 = vrot.lane.b32.xlu0 %v8795, 12
    %v11402 = vpop.permute.xlu0 %11401
    %11403 = vrot.lane.b32.xlu0 %v8796, 12
    %v11404 = vpop.permute.xlu0 %11403
    %11405 = vrot.lane.b32.xlu0 %v8797, 12
    %v11406 = vpop.permute.xlu0 %11405
    %11407 = vrot.lane.b32.xlu0 %v8798, 12
    %v11408 = vpop.permute.xlu0 %11407
    %11409 = vrot.lane.b32.xlu0 %v8799, 12
    %v11410 = vpop.permute.xlu0 %11409
    %11411 = vrot.lane.b32.xlu0 %v8800, 12
    %v11412 = vpop.permute.xlu0 %11411
    %11413 = vrot.lane.b32.xlu0 %v8801, 12
    %v11414 = vpop.permute.xlu0 %11413
    %11415 = vrot.lane.b32.xlu0 %v8802, 12
    %v11416 = vpop.permute.xlu0 %11415
    %11417 = vrot.lane.b32.xlu0 %v8803, 12
    %v11418 = vpop.permute.xlu0 %11417
    %11419 = vrot.lane.b32.xlu0 %v8804, 12
    %v11420 = vpop.permute.xlu0 %11419
    %11421 = vrot.lane.b32.xlu0 %v8805, 12
    %v11422 = vpop.permute.xlu0 %11421
    %11423 = vrot.lane.b32.xlu0 %v8806, 12
    %v11424 = vpop.permute.xlu0 %11423
    %11425 = vrot.lane.b32.xlu0 %v8807, 12
    %v11426 = vpop.permute.xlu0 %11425
    %11427 = vrot.lane.b32.xlu0 %v8808, 12
    %v11428 = vpop.permute.xlu0 %11427
    %11429 = vrot.lane.b32.xlu0 %v8809, 12
    %v11430 = vpop.permute.xlu0 %11429
    %11431 = vrot.lane.b32.xlu0 %v8810, 12
    %v11432 = vpop.permute.xlu0 %11431
    %11433 = vrot.lane.b32.xlu0 %v8811, 12
    %v11434 = vpop.permute.xlu0 %11433
    %11435 = vrot.lane.b32.xlu0 %v8812, 12
    %v11436 = vpop.permute.xlu0 %11435
    %11565 = vrot.lane.b32.xlu0 %v9133, 16
    %v11566 = vpop.permute.xlu0 %11565
    %11567 = vrot.lane.b32.xlu0 %v9134, 16
    %v11568 = vpop.permute.xlu0 %11567
    %11569 = vrot.lane.b32.xlu0 %v9135, 16
    %v11570 = vpop.permute.xlu0 %11569
    %11571 = vrot.lane.b32.xlu0 %v9136, 16
    %v11572 = vpop.permute.xlu0 %11571
    %11573 = vrot.lane.b32.xlu0 %v9137, 16
    %v11574 = vpop.permute.xlu0 %11573
    %11575 = vrot.lane.b32.xlu0 %v9138, 16
    %v11576 = vpop.permute.xlu0 %11575
    %11577 = vrot.lane.b32.xlu0 %v9139, 16
    %v11578 = vpop.permute.xlu0 %11577
    %11579 = vrot.lane.b32.xlu0 %v9140, 16
    %v11580 = vpop.permute.xlu0 %11579
    %11581 = vrot.lane.b32.xlu0 %v9141, 16
    %v11582 = vpop.permute.xlu0 %11581
    %11583 = vrot.lane.b32.xlu0 %v9142, 16
    %v11584 = vpop.permute.xlu0 %11583
    %11585 = vrot.lane.b32.xlu0 %v9143, 16
    %v11586 = vpop.permute.xlu0 %11585
    %11587 = vrot.lane.b32.xlu0 %v9144, 16
    %v11588 = vpop.permute.xlu0 %11587
    %11589 = vrot.lane.b32.xlu0 %v9145, 16
    %v11590 = vpop.permute.xlu0 %11589
    %11591 = vrot.lane.b32.xlu0 %v9146, 16
    %v11592 = vpop.permute.xlu0 %11591
    %11593 = vrot.lane.b32.xlu0 %v9147, 16
    %v11594 = vpop.permute.xlu0 %11593
    %11595 = vrot.lane.b32.xlu0 %v9148, 16
    %v11596 = vpop.permute.xlu0 %11595
    %11597 = vrot.lane.b32.xlu0 %v9149, 16
    %v11598 = vpop.permute.xlu0 %11597
    %11599 = vrot.lane.b32.xlu0 %v9150, 16
    %v11600 = vpop.permute.xlu0 %11599
    %11601 = vrot.lane.b32.xlu0 %v9151, 16
    %v11602 = vpop.permute.xlu0 %11601
    %11603 = vrot.lane.b32.xlu0 %v9152, 16
    %v11604 = vpop.permute.xlu0 %11603
    %11605 = vrot.lane.b32.xlu0 %v9153, 16
    %v11606 = vpop.permute.xlu0 %11605
    %11607 = vrot.lane.b32.xlu0 %v9154, 16
    %v11608 = vpop.permute.xlu0 %11607
    %11609 = vrot.lane.b32.xlu0 %v9155, 16
    %v11610 = vpop.permute.xlu0 %11609
    %11611 = vrot.lane.b32.xlu0 %v9156, 16
    %v11612 = vpop.permute.xlu0 %11611
    %11613 = vrot.lane.b32.xlu0 %v9157, 16
    %v11614 = vpop.permute.xlu0 %11613
    %11615 = vrot.lane.b32.xlu0 %v9158, 16
    %v11616 = vpop.permute.xlu0 %11615
    %11617 = vrot.lane.b32.xlu0 %v9159, 16
    %v11618 = vpop.permute.xlu0 %11617
    %11619 = vrot.lane.b32.xlu0 %v9160, 16
    %v11620 = vpop.permute.xlu0 %11619
    %11621 = vrot.lane.b32.xlu0 %v9161, 16
    %v11622 = vpop.permute.xlu0 %11621
    %11623 = vrot.lane.b32.xlu0 %v9162, 16
    %v11624 = vpop.permute.xlu0 %11623
    %11625 = vrot.lane.b32.xlu0 %v9163, 16
    %v11626 = vpop.permute.xlu0 %11625
    %11627 = vrot.lane.b32.xlu0 %v9164, 16
    %v11628 = vpop.permute.xlu0 %11627
    %11629 = vrot.lane.b32.xlu0 %v9165, 16
    %v11630 = vpop.permute.xlu0 %11629
    %11631 = vrot.lane.b32.xlu0 %v9166, 16
    %v11632 = vpop.permute.xlu0 %11631
    %11633 = vrot.lane.b32.xlu0 %v9167, 16
    %v11634 = vpop.permute.xlu0 %11633
    %11635 = vrot.lane.b32.xlu0 %v9168, 16
    %v11636 = vpop.permute.xlu0 %11635
    %11637 = vrot.lane.b32.xlu0 %v9169, 16
    %v11638 = vpop.permute.xlu0 %11637
    %11639 = vrot.lane.b32.xlu0 %v9170, 16
    %v11640 = vpop.permute.xlu0 %11639
    %11641 = vrot.lane.b32.xlu0 %v9171, 16
    %v11642 = vpop.permute.xlu0 %11641
    %11643 = vrot.lane.b32.xlu0 %v9172, 16
    %v11644 = vpop.permute.xlu0 %11643
    %11645 = vrot.lane.b32.xlu0 %v9173, 16
    %v11646 = vpop.permute.xlu0 %11645
    %11647 = vrot.lane.b32.xlu0 %v9174, 16
    %v11648 = vpop.permute.xlu0 %11647
    %11649 = vrot.lane.b32.xlu0 %v9175, 16
    %v11650 = vpop.permute.xlu0 %11649
    %11651 = vrot.lane.b32.xlu0 %v9176, 16
    %v11652 = vpop.permute.xlu0 %11651
    %11653 = vrot.lane.b32.xlu0 %v9177, 16
    %v11654 = vpop.permute.xlu0 %11653
    %11655 = vrot.lane.b32.xlu0 %v9178, 16
    %v11656 = vpop.permute.xlu0 %11655
    %11657 = vrot.lane.b32.xlu0 %v9179, 16
    %v11658 = vpop.permute.xlu0 %11657
    %11659 = vrot.lane.b32.xlu0 %v9180, 16
    %v11660 = vpop.permute.xlu0 %11659
    %11661 = vrot.lane.b32.xlu0 %v9181, 16
    %v11662 = vpop.permute.xlu0 %11661
    %11663 = vrot.lane.b32.xlu0 %v9182, 16
    %v11664 = vpop.permute.xlu0 %11663
    %11665 = vrot.lane.b32.xlu0 %v9183, 16
    %v11666 = vpop.permute.xlu0 %11665
    %11667 = vrot.lane.b32.xlu0 %v9184, 16
    %v11668 = vpop.permute.xlu0 %11667
    %11669 = vrot.lane.b32.xlu0 %v9185, 16
    %v11670 = vpop.permute.xlu0 %11669
    %11671 = vrot.lane.b32.xlu0 %v9186, 16
    %v11672 = vpop.permute.xlu0 %11671
    %11673 = vrot.lane.b32.xlu0 %v9187, 16
    %v11674 = vpop.permute.xlu0 %11673
    %11675 = vrot.lane.b32.xlu0 %v9188, 16
    %v11676 = vpop.permute.xlu0 %11675
    %11677 = vrot.lane.b32.xlu0 %v9189, 16
    %v11678 = vpop.permute.xlu0 %11677
    %11679 = vrot.lane.b32.xlu0 %v9190, 16
    %v11680 = vpop.permute.xlu0 %11679
    %11681 = vrot.lane.b32.xlu0 %v9191, 16
    %v11682 = vpop.permute.xlu0 %11681
    %11683 = vrot.lane.b32.xlu0 %v9192, 16
    %v11684 = vpop.permute.xlu0 %11683
    %11685 = vrot.lane.b32.xlu0 %v9193, 16
    %v11686 = vpop.permute.xlu0 %11685
    %11687 = vrot.lane.b32.xlu0 %v9194, 16
    %v11688 = vpop.permute.xlu0 %11687
    %11689 = vrot.lane.b32.xlu0 %v9195, 16
    %v11690 = vpop.permute.xlu0 %11689
    %11691 = vrot.lane.b32.xlu0 %v9196, 16
    %v11692 = vpop.permute.xlu0 %11691
    %11821 = vrot.lane.b32.xlu0 %v9517, 20
    %v11822 = vpop.permute.xlu0 %11821
    %11823 = vrot.lane.b32.xlu0 %v9518, 20
    %v11824 = vpop.permute.xlu0 %11823
    %11825 = vrot.lane.b32.xlu0 %v9519, 20
    %v11826 = vpop.permute.xlu0 %11825
    %11827 = vrot.lane.b32.xlu0 %v9520, 20
    %v11828 = vpop.permute.xlu0 %11827
    %11829 = vrot.lane.b32.xlu0 %v9521, 20
    %v11830 = vpop.permute.xlu0 %11829
    %11831 = vrot.lane.b32.xlu0 %v9522, 20
    %v11832 = vpop.permute.xlu0 %11831
    %11833 = vrot.lane.b32.xlu0 %v9523, 20
    %v11834 = vpop.permute.xlu0 %11833
    %11835 = vrot.lane.b32.xlu0 %v9524, 20
    %v11836 = vpop.permute.xlu0 %11835
    %11837 = vrot.lane.b32.xlu0 %v9525, 20
    %v11838 = vpop.permute.xlu0 %11837
    %11839 = vrot.lane.b32.xlu0 %v9526, 20
    %v11840 = vpop.permute.xlu0 %11839
    %11841 = vrot.lane.b32.xlu0 %v9527, 20
    %v11842 = vpop.permute.xlu0 %11841
    %11843 = vrot.lane.b32.xlu0 %v9528, 20
    %v11844 = vpop.permute.xlu0 %11843
    %11845 = vrot.lane.b32.xlu0 %v9529, 20
    %v11846 = vpop.permute.xlu0 %11845
    %11847 = vrot.lane.b32.xlu0 %v9530, 20
    %v11848 = vpop.permute.xlu0 %11847
    %11849 = vrot.lane.b32.xlu0 %v9531, 20
    %v11850 = vpop.permute.xlu0 %11849
    %11851 = vrot.lane.b32.xlu0 %v9532, 20
    %v11852 = vpop.permute.xlu0 %11851
    %11853 = vrot.lane.b32.xlu0 %v9533, 20
    %v11854 = vpop.permute.xlu0 %11853
    %11855 = vrot.lane.b32.xlu0 %v9534, 20
    %v11856 = vpop.permute.xlu0 %11855
    %11857 = vrot.lane.b32.xlu0 %v9535, 20
    %v11858 = vpop.permute.xlu0 %11857
    %11859 = vrot.lane.b32.xlu0 %v9536, 20
    %v11860 = vpop.permute.xlu0 %11859
    %11861 = vrot.lane.b32.xlu0 %v9537, 20
    %v11862 = vpop.permute.xlu0 %11861
    %11863 = vrot.lane.b32.xlu0 %v9538, 20
    %v11864 = vpop.permute.xlu0 %11863
    %11865 = vrot.lane.b32.xlu0 %v9539, 20
    %v11866 = vpop.permute.xlu0 %11865
    %11867 = vrot.lane.b32.xlu0 %v9540, 20
    %v11868 = vpop.permute.xlu0 %11867
    %11869 = vrot.lane.b32.xlu0 %v9541, 20
    %v11870 = vpop.permute.xlu0 %11869
    %11871 = vrot.lane.b32.xlu0 %v9542, 20
    %v11872 = vpop.permute.xlu0 %11871
    %11873 = vrot.lane.b32.xlu0 %v9543, 20
    %v11874 = vpop.permute.xlu0 %11873
    %11875 = vrot.lane.b32.xlu0 %v9544, 20
    %v11876 = vpop.permute.xlu0 %11875
    %11877 = vrot.lane.b32.xlu0 %v9545, 20
    %v11878 = vpop.permute.xlu0 %11877
    %11879 = vrot.lane.b32.xlu0 %v9546, 20
    %v11880 = vpop.permute.xlu0 %11879
    %11881 = vrot.lane.b32.xlu0 %v9547, 20
    %v11882 = vpop.permute.xlu0 %11881
    %11883 = vrot.lane.b32.xlu0 %v9548, 20
    %v11884 = vpop.permute.xlu0 %11883
    %11885 = vrot.lane.b32.xlu0 %v9549, 20
    %v11886 = vpop.permute.xlu0 %11885
    %11887 = vrot.lane.b32.xlu0 %v9550, 20
    %v11888 = vpop.permute.xlu0 %11887
    %11889 = vrot.lane.b32.xlu0 %v9551, 20
    %v11890 = vpop.permute.xlu0 %11889
    %11891 = vrot.lane.b32.xlu0 %v9552, 20
    %v11892 = vpop.permute.xlu0 %11891
    %11893 = vrot.lane.b32.xlu0 %v9553, 20
    %v11894 = vpop.permute.xlu0 %11893
    %11895 = vrot.lane.b32.xlu0 %v9554, 20
    %v11896 = vpop.permute.xlu0 %11895
    %11897 = vrot.lane.b32.xlu0 %v9555, 20
    %v11898 = vpop.permute.xlu0 %11897
    %11899 = vrot.lane.b32.xlu0 %v9556, 20
    %v11900 = vpop.permute.xlu0 %11899
    %11901 = vrot.lane.b32.xlu0 %v9557, 20
    %v11902 = vpop.permute.xlu0 %11901
    %11903 = vrot.lane.b32.xlu0 %v9558, 20
    %v11904 = vpop.permute.xlu0 %11903
    %11905 = vrot.lane.b32.xlu0 %v9559, 20
    %v11906 = vpop.permute.xlu0 %11905
    %11907 = vrot.lane.b32.xlu0 %v9560, 20
    %v11908 = vpop.permute.xlu0 %11907
    %11909 = vrot.lane.b32.xlu0 %v9561, 20
    %v11910 = vpop.permute.xlu0 %11909
    %11911 = vrot.lane.b32.xlu0 %v9562, 20
    %v11912 = vpop.permute.xlu0 %11911
    %11913 = vrot.lane.b32.xlu0 %v9563, 20
    %v11914 = vpop.permute.xlu0 %11913
    %11915 = vrot.lane.b32.xlu0 %v9564, 20
    %v11916 = vpop.permute.xlu0 %11915
    %11917 = vrot.lane.b32.xlu0 %v9565, 20
    %v11918 = vpop.permute.xlu0 %11917
    %11919 = vrot.lane.b32.xlu0 %v9566, 20
    %v11920 = vpop.permute.xlu0 %11919
    %11921 = vrot.lane.b32.xlu0 %v9567, 20
    %v11922 = vpop.permute.xlu0 %11921
    %11923 = vrot.lane.b32.xlu0 %v9568, 20
    %v11924 = vpop.permute.xlu0 %11923
    %11925 = vrot.lane.b32.xlu0 %v9569, 20
    %v11926 = vpop.permute.xlu0 %11925
    %11927 = vrot.lane.b32.xlu0 %v9570, 20
    %v11928 = vpop.permute.xlu0 %11927
    %11929 = vrot.lane.b32.xlu0 %v9571, 20
    %v11930 = vpop.permute.xlu0 %11929
    %11931 = vrot.lane.b32.xlu0 %v9572, 20
    %v11932 = vpop.permute.xlu0 %11931
    %11933 = vrot.lane.b32.xlu0 %v9573, 20
    %v11934 = vpop.permute.xlu0 %11933
    %11935 = vrot.lane.b32.xlu0 %v9574, 20
    %v11936 = vpop.permute.xlu0 %11935
    %11937 = vrot.lane.b32.xlu0 %v9575, 20
    %v11938 = vpop.permute.xlu0 %11937
    %11939 = vrot.lane.b32.xlu0 %v9576, 20
    %v11940 = vpop.permute.xlu0 %11939
    %11941 = vrot.lane.b32.xlu0 %v9577, 20
    %v11942 = vpop.permute.xlu0 %11941
    %11943 = vrot.lane.b32.xlu0 %v9578, 20
    %v11944 = vpop.permute.xlu0 %11943
    %11945 = vrot.lane.b32.xlu0 %v9579, 20
    %v11946 = vpop.permute.xlu0 %11945
    %11947 = vrot.lane.b32.xlu0 %v9580, 20
    %v11948 = vpop.permute.xlu0 %11947
    %12077 = vrot.lane.b32.xlu0 %v9901, 24
    %v12078 = vpop.permute.xlu0 %12077
    %12079 = vrot.lane.b32.xlu0 %v9902, 24
    %v12080 = vpop.permute.xlu0 %12079
    %12081 = vrot.lane.b32.xlu0 %v9903, 24
    %v12082 = vpop.permute.xlu0 %12081
    %12083 = vrot.lane.b32.xlu0 %v9904, 24
    %v12084 = vpop.permute.xlu0 %12083
    %12085 = vrot.lane.b32.xlu0 %v9905, 24
    %v12086 = vpop.permute.xlu0 %12085
    %12087 = vrot.lane.b32.xlu0 %v9906, 24
    %v12088 = vpop.permute.xlu0 %12087
    %12089 = vrot.lane.b32.xlu0 %v9907, 24
    %v12090 = vpop.permute.xlu0 %12089
    %12091 = vrot.lane.b32.xlu0 %v9908, 24
    %v12092 = vpop.permute.xlu0 %12091
    %12093 = vrot.lane.b32.xlu0 %v9909, 24
    %v12094 = vpop.permute.xlu0 %12093
    %12095 = vrot.lane.b32.xlu0 %v9910, 24
    %v12096 = vpop.permute.xlu0 %12095
    %12097 = vrot.lane.b32.xlu0 %v9911, 24
    %v12098 = vpop.permute.xlu0 %12097
    %12099 = vrot.lane.b32.xlu0 %v9912, 24
    %v12100 = vpop.permute.xlu0 %12099
    %12101 = vrot.lane.b32.xlu0 %v9913, 24
    %v12102 = vpop.permute.xlu0 %12101
    %12103 = vrot.lane.b32.xlu0 %v9914, 24
    %v12104 = vpop.permute.xlu0 %12103
    %12105 = vrot.lane.b32.xlu0 %v9915, 24
    %v12106 = vpop.permute.xlu0 %12105
    %12107 = vrot.lane.b32.xlu0 %v9916, 24
    %v12108 = vpop.permute.xlu0 %12107
    %12109 = vrot.lane.b32.xlu0 %v9917, 24
    %v12110 = vpop.permute.xlu0 %12109
    %12111 = vrot.lane.b32.xlu0 %v9918, 24
    %v12112 = vpop.permute.xlu0 %12111
    %12113 = vrot.lane.b32.xlu0 %v9919, 24
    %v12114 = vpop.permute.xlu0 %12113
    %12115 = vrot.lane.b32.xlu0 %v9920, 24
    %v12116 = vpop.permute.xlu0 %12115
    %12117 = vrot.lane.b32.xlu0 %v9921, 24
    %v12118 = vpop.permute.xlu0 %12117
    %12119 = vrot.lane.b32.xlu0 %v9922, 24
    %v12120 = vpop.permute.xlu0 %12119
    %12121 = vrot.lane.b32.xlu0 %v9923, 24
    %v12122 = vpop.permute.xlu0 %12121
    %12123 = vrot.lane.b32.xlu0 %v9924, 24
    %v12124 = vpop.permute.xlu0 %12123
    %12125 = vrot.lane.b32.xlu0 %v9925, 24
    %v12126 = vpop.permute.xlu0 %12125
    %12127 = vrot.lane.b32.xlu0 %v9926, 24
    %v12128 = vpop.permute.xlu0 %12127
    %12129 = vrot.lane.b32.xlu0 %v9927, 24
    %v12130 = vpop.permute.xlu0 %12129
    %12131 = vrot.lane.b32.xlu0 %v9928, 24
    %v12132 = vpop.permute.xlu0 %12131
    %12133 = vrot.lane.b32.xlu0 %v9929, 24
    %v12134 = vpop.permute.xlu0 %12133
    %12135 = vrot.lane.b32.xlu0 %v9930, 24
    %v12136 = vpop.permute.xlu0 %12135
    %12137 = vrot.lane.b32.xlu0 %v9931, 24
    %v12138 = vpop.permute.xlu0 %12137
    %12139 = vrot.lane.b32.xlu0 %v9932, 24
    %v12140 = vpop.permute.xlu0 %12139
    %12141 = vrot.lane.b32.xlu0 %v9933, 24
    %v12142 = vpop.permute.xlu0 %12141
    %12143 = vrot.lane.b32.xlu0 %v9934, 24
    %v12144 = vpop.permute.xlu0 %12143
    %12145 = vrot.lane.b32.xlu0 %v9935, 24
    %v12146 = vpop.permute.xlu0 %12145
    %12147 = vrot.lane.b32.xlu0 %v9936, 24
    %v12148 = vpop.permute.xlu0 %12147
    %12149 = vrot.lane.b32.xlu0 %v9937, 24
    %v12150 = vpop.permute.xlu0 %12149
    %12151 = vrot.lane.b32.xlu0 %v9938, 24
    %v12152 = vpop.permute.xlu0 %12151
    %12153 = vrot.lane.b32.xlu0 %v9939, 24
    %v12154 = vpop.permute.xlu0 %12153
    %12155 = vrot.lane.b32.xlu0 %v9940, 24
    %v12156 = vpop.permute.xlu0 %12155
    %12157 = vrot.lane.b32.xlu0 %v9941, 24
    %v12158 = vpop.permute.xlu0 %12157
    %12159 = vrot.lane.b32.xlu0 %v9942, 24
    %v12160 = vpop.permute.xlu0 %12159
    %12161 = vrot.lane.b32.xlu0 %v9943, 24
    %v12162 = vpop.permute.xlu0 %12161
    %12163 = vrot.lane.b32.xlu0 %v9944, 24
    %v12164 = vpop.permute.xlu0 %12163
    %12165 = vrot.lane.b32.xlu0 %v9945, 24
    %v12166 = vpop.permute.xlu0 %12165
    %12167 = vrot.lane.b32.xlu0 %v9946, 24
    %v12168 = vpop.permute.xlu0 %12167
    %12169 = vrot.lane.b32.xlu0 %v9947, 24
    %v12170 = vpop.permute.xlu0 %12169
    %12171 = vrot.lane.b32.xlu0 %v9948, 24
    %v12172 = vpop.permute.xlu0 %12171
    %12173 = vrot.lane.b32.xlu0 %v9949, 24
    %v12174 = vpop.permute.xlu0 %12173
    %12175 = vrot.lane.b32.xlu0 %v9950, 24
    %v12176 = vpop.permute.xlu0 %12175
    %12177 = vrot.lane.b32.xlu0 %v9951, 24
    %v12178 = vpop.permute.xlu0 %12177
    %12179 = vrot.lane.b32.xlu0 %v9952, 24
    %v12180 = vpop.permute.xlu0 %12179
    %12181 = vrot.lane.b32.xlu0 %v9953, 24
    %v12182 = vpop.permute.xlu0 %12181
    %12183 = vrot.lane.b32.xlu0 %v9954, 24
    %v12184 = vpop.permute.xlu0 %12183
    %12185 = vrot.lane.b32.xlu0 %v9955, 24
    %v12186 = vpop.permute.xlu0 %12185
    %12187 = vrot.lane.b32.xlu0 %v9956, 24
    %v12188 = vpop.permute.xlu0 %12187
    %12189 = vrot.lane.b32.xlu0 %v9957, 24
    %v12190 = vpop.permute.xlu0 %12189
    %12191 = vrot.lane.b32.xlu0 %v9958, 24
    %v12192 = vpop.permute.xlu0 %12191
    %12193 = vrot.lane.b32.xlu0 %v9959, 24
    %v12194 = vpop.permute.xlu0 %12193
    %12195 = vrot.lane.b32.xlu0 %v9960, 24
    %v12196 = vpop.permute.xlu0 %12195
    %12197 = vrot.lane.b32.xlu0 %v9961, 24
    %v12198 = vpop.permute.xlu0 %12197
    %12199 = vrot.lane.b32.xlu0 %v9962, 24
    %v12200 = vpop.permute.xlu0 %12199
    %12201 = vrot.lane.b32.xlu0 %v9963, 24
    %v12202 = vpop.permute.xlu0 %12201
    %12203 = vrot.lane.b32.xlu0 %v9964, 24
    %v12204 = vpop.permute.xlu0 %12203
    %12333 = vrot.lane.b32.xlu0 %v10285, 28
    %v12334 = vpop.permute.xlu0 %12333
    %12335 = vrot.lane.b32.xlu0 %v10286, 28
    %v12336 = vpop.permute.xlu0 %12335
    %12337 = vrot.lane.b32.xlu0 %v10287, 28
    %v12338 = vpop.permute.xlu0 %12337
    %12339 = vrot.lane.b32.xlu0 %v10288, 28
    %v12340 = vpop.permute.xlu0 %12339
    %12341 = vrot.lane.b32.xlu0 %v10289, 28
    %v12342 = vpop.permute.xlu0 %12341
    %12343 = vrot.lane.b32.xlu0 %v10290, 28
    %v12344 = vpop.permute.xlu0 %12343
    %12345 = vrot.lane.b32.xlu0 %v10291, 28
    %v12346 = vpop.permute.xlu0 %12345
    %12347 = vrot.lane.b32.xlu0 %v10292, 28
    %v12348 = vpop.permute.xlu0 %12347
    %12349 = vrot.lane.b32.xlu0 %v10293, 28
    %v12350 = vpop.permute.xlu0 %12349
    %12351 = vrot.lane.b32.xlu0 %v10294, 28
    %v12352 = vpop.permute.xlu0 %12351
    %12353 = vrot.lane.b32.xlu0 %v10295, 28
    %v12354 = vpop.permute.xlu0 %12353
    %12355 = vrot.lane.b32.xlu0 %v10296, 28
    %v12356 = vpop.permute.xlu0 %12355
    %12357 = vrot.lane.b32.xlu0 %v10297, 28
    %v12358 = vpop.permute.xlu0 %12357
    %12359 = vrot.lane.b32.xlu0 %v10298, 28
    %v12360 = vpop.permute.xlu0 %12359
    %12361 = vrot.lane.b32.xlu0 %v10299, 28
    %v12362 = vpop.permute.xlu0 %12361
    %12363 = vrot.lane.b32.xlu0 %v10300, 28
    %v12364 = vpop.permute.xlu0 %12363
    %12365 = vrot.lane.b32.xlu0 %v10301, 28
    %v12366 = vpop.permute.xlu0 %12365
    %12367 = vrot.lane.b32.xlu0 %v10302, 28
    %v12368 = vpop.permute.xlu0 %12367
    %12369 = vrot.lane.b32.xlu0 %v10303, 28
    %v12370 = vpop.permute.xlu0 %12369
    %12371 = vrot.lane.b32.xlu0 %v10304, 28
    %v12372 = vpop.permute.xlu0 %12371
    %12373 = vrot.lane.b32.xlu0 %v10305, 28
    %v12374 = vpop.permute.xlu0 %12373
    %12375 = vrot.lane.b32.xlu0 %v10306, 28
    %v12376 = vpop.permute.xlu0 %12375
    %12377 = vrot.lane.b32.xlu0 %v10307, 28
    %v12378 = vpop.permute.xlu0 %12377
    %12379 = vrot.lane.b32.xlu0 %v10308, 28
    %v12380 = vpop.permute.xlu0 %12379
    %12381 = vrot.lane.b32.xlu0 %v10309, 28
    %v12382 = vpop.permute.xlu0 %12381
    %12383 = vrot.lane.b32.xlu0 %v10310, 28
    %v12384 = vpop.permute.xlu0 %12383
    %12385 = vrot.lane.b32.xlu0 %v10311, 28
    %v12386 = vpop.permute.xlu0 %12385
    %12387 = vrot.lane.b32.xlu0 %v10312, 28
    %v12388 = vpop.permute.xlu0 %12387
    %12389 = vrot.lane.b32.xlu0 %v10313, 28
    %v12390 = vpop.permute.xlu0 %12389
    %12391 = vrot.lane.b32.xlu0 %v10314, 28
    %v12392 = vpop.permute.xlu0 %12391
    %12393 = vrot.lane.b32.xlu0 %v10315, 28
    %v12394 = vpop.permute.xlu0 %12393
    %12395 = vrot.lane.b32.xlu0 %v10316, 28
    %v12396 = vpop.permute.xlu0 %12395
    %12397 = vrot.lane.b32.xlu0 %v10317, 28
    %v12398 = vpop.permute.xlu0 %12397
    %12399 = vrot.lane.b32.xlu0 %v10318, 28
    %v12400 = vpop.permute.xlu0 %12399
    %12401 = vrot.lane.b32.xlu0 %v10319, 28
    %v12402 = vpop.permute.xlu0 %12401
    %12403 = vrot.lane.b32.xlu0 %v10320, 28
    %v12404 = vpop.permute.xlu0 %12403
    %12405 = vrot.lane.b32.xlu0 %v10321, 28
    %v12406 = vpop.permute.xlu0 %12405
    %12407 = vrot.lane.b32.xlu0 %v10322, 28
    %v12408 = vpop.permute.xlu0 %12407
    %12409 = vrot.lane.b32.xlu0 %v10323, 28
    %v12410 = vpop.permute.xlu0 %12409
    %12411 = vrot.lane.b32.xlu0 %v10324, 28
    %v12412 = vpop.permute.xlu0 %12411
    %12413 = vrot.lane.b32.xlu0 %v10325, 28
    %v12414 = vpop.permute.xlu0 %12413
    %12415 = vrot.lane.b32.xlu0 %v10326, 28
    %v12416 = vpop.permute.xlu0 %12415
    %12417 = vrot.lane.b32.xlu0 %v10327, 28
    %v12418 = vpop.permute.xlu0 %12417
    %12419 = vrot.lane.b32.xlu0 %v10328, 28
    %v12420 = vpop.permute.xlu0 %12419
    %12421 = vrot.lane.b32.xlu0 %v10329, 28
    %v12422 = vpop.permute.xlu0 %12421
    %12423 = vrot.lane.b32.xlu0 %v10330, 28
    %v12424 = vpop.permute.xlu0 %12423
    %12425 = vrot.lane.b32.xlu0 %v10331, 28
    %v12426 = vpop.permute.xlu0 %12425
    %12427 = vrot.lane.b32.xlu0 %v10332, 28
    %v12428 = vpop.permute.xlu0 %12427
    %12429 = vrot.lane.b32.xlu0 %v10333, 28
    %v12430 = vpop.permute.xlu0 %12429
    %12431 = vrot.lane.b32.xlu0 %v10334, 28
    %v12432 = vpop.permute.xlu0 %12431
    %12433 = vrot.lane.b32.xlu0 %v10335, 28
    %v12434 = vpop.permute.xlu0 %12433
    %12435 = vrot.lane.b32.xlu0 %v10336, 28
    %v12436 = vpop.permute.xlu0 %12435
    %12437 = vrot.lane.b32.xlu0 %v10337, 28
    %v12438 = vpop.permute.xlu0 %12437
    %12439 = vrot.lane.b32.xlu0 %v10338, 28
    %v12440 = vpop.permute.xlu0 %12439
    %12441 = vrot.lane.b32.xlu0 %v10339, 28
    %v12442 = vpop.permute.xlu0 %12441
    %12443 = vrot.lane.b32.xlu0 %v10340, 28
    %v12444 = vpop.permute.xlu0 %12443
    %12445 = vrot.lane.b32.xlu0 %v10341, 28
    %v12446 = vpop.permute.xlu0 %12445
    %12447 = vrot.lane.b32.xlu0 %v10342, 28
    %v12448 = vpop.permute.xlu0 %12447
    %12449 = vrot.lane.b32.xlu0 %v10343, 28
    %v12450 = vpop.permute.xlu0 %12449
    %12451 = vrot.lane.b32.xlu0 %v10344, 28
    %v12452 = vpop.permute.xlu0 %12451
    %12453 = vrot.lane.b32.xlu0 %v10345, 28
    %v12454 = vpop.permute.xlu0 %12453
    %12455 = vrot.lane.b32.xlu0 %v10346, 28
    %v12456 = vpop.permute.xlu0 %12455
    %12457 = vrot.lane.b32.xlu0 %v10347, 28
    %v12458 = vpop.permute.xlu0 %12457
    %12459 = vrot.lane.b32.xlu0 %v10348, 28
    %v12460 = vpop.permute.xlu0 %12459
    %12589 = vrot.lane.b32.xlu0 %v10669, 32
    %v12590 = vpop.permute.xlu0 %12589
    %12591 = vrot.lane.b32.xlu0 %v10670, 32
    %v12592 = vpop.permute.xlu0 %12591
    %12593 = vrot.lane.b32.xlu0 %v10671, 32
    %v12594 = vpop.permute.xlu0 %12593
    %12595 = vrot.lane.b32.xlu0 %v10672, 32
    %v12596 = vpop.permute.xlu0 %12595
    %12597 = vrot.lane.b32.xlu0 %v10673, 32
    %v12598 = vpop.permute.xlu0 %12597
    %12599 = vrot.lane.b32.xlu0 %v10674, 32
    %v12600 = vpop.permute.xlu0 %12599
    %12601 = vrot.lane.b32.xlu0 %v10675, 32
    %v12602 = vpop.permute.xlu0 %12601
    %12603 = vrot.lane.b32.xlu0 %v10676, 32
    %v12604 = vpop.permute.xlu0 %12603
    %12605 = vrot.lane.b32.xlu0 %v10677, 32
    %v12606 = vpop.permute.xlu0 %12605
    %12607 = vrot.lane.b32.xlu0 %v10678, 32
    %v12608 = vpop.permute.xlu0 %12607
    %12609 = vrot.lane.b32.xlu0 %v10679, 32
    %v12610 = vpop.permute.xlu0 %12609
    %12611 = vrot.lane.b32.xlu0 %v10680, 32
    %v12612 = vpop.permute.xlu0 %12611
    %12613 = vrot.lane.b32.xlu0 %v10681, 32
    %v12614 = vpop.permute.xlu0 %12613
    %12615 = vrot.lane.b32.xlu0 %v10682, 32
    %v12616 = vpop.permute.xlu0 %12615
    %12617 = vrot.lane.b32.xlu0 %v10683, 32
    %v12618 = vpop.permute.xlu0 %12617
    %12619 = vrot.lane.b32.xlu0 %v10684, 32
    %v12620 = vpop.permute.xlu0 %12619
    %12621 = vrot.lane.b32.xlu0 %v10685, 32
    %v12622 = vpop.permute.xlu0 %12621
    %12623 = vrot.lane.b32.xlu0 %v10686, 32
    %v12624 = vpop.permute.xlu0 %12623
    %12625 = vrot.lane.b32.xlu0 %v10687, 32
    %v12626 = vpop.permute.xlu0 %12625
    %12627 = vrot.lane.b32.xlu0 %v10688, 32
    %v12628 = vpop.permute.xlu0 %12627
    %12629 = vrot.lane.b32.xlu0 %v10689, 32
    %v12630 = vpop.permute.xlu0 %12629
    %12631 = vrot.lane.b32.xlu0 %v10690, 32
    %v12632 = vpop.permute.xlu0 %12631
    %12633 = vrot.lane.b32.xlu0 %v10691, 32
    %v12634 = vpop.permute.xlu0 %12633
    %12635 = vrot.lane.b32.xlu0 %v10692, 32
    %v12636 = vpop.permute.xlu0 %12635
    %12637 = vrot.lane.b32.xlu0 %v10693, 32
    %v12638 = vpop.permute.xlu0 %12637
    %12639 = vrot.lane.b32.xlu0 %v10694, 32
    %v12640 = vpop.permute.xlu0 %12639
    %12641 = vrot.lane.b32.xlu0 %v10695, 32
    %v12642 = vpop.permute.xlu0 %12641
    %12643 = vrot.lane.b32.xlu0 %v10696, 32
    %v12644 = vpop.permute.xlu0 %12643
    %12645 = vrot.lane.b32.xlu0 %v10697, 32
    %v12646 = vpop.permute.xlu0 %12645
    %12647 = vrot.lane.b32.xlu0 %v10698, 32
    %v12648 = vpop.permute.xlu0 %12647
    %12649 = vrot.lane.b32.xlu0 %v10699, 32
    %v12650 = vpop.permute.xlu0 %12649
    %12651 = vrot.lane.b32.xlu0 %v10700, 32
    %v12652 = vpop.permute.xlu0 %12651
    %12653 = vrot.lane.b32.xlu0 %v10701, 32
    %v12654 = vpop.permute.xlu0 %12653
    %12655 = vrot.lane.b32.xlu0 %v10702, 32
    %v12656 = vpop.permute.xlu0 %12655
    %12657 = vrot.lane.b32.xlu0 %v10703, 32
    %v12658 = vpop.permute.xlu0 %12657
    %12659 = vrot.lane.b32.xlu0 %v10704, 32
    %v12660 = vpop.permute.xlu0 %12659
    %12661 = vrot.lane.b32.xlu0 %v10705, 32
    %v12662 = vpop.permute.xlu0 %12661
    %12663 = vrot.lane.b32.xlu0 %v10706, 32
    %v12664 = vpop.permute.xlu0 %12663
    %12665 = vrot.lane.b32.xlu0 %v10707, 32
    %v12666 = vpop.permute.xlu0 %12665
    %12667 = vrot.lane.b32.xlu0 %v10708, 32
    %v12668 = vpop.permute.xlu0 %12667
    %12669 = vrot.lane.b32.xlu0 %v10709, 32
    %v12670 = vpop.permute.xlu0 %12669
    %12671 = vrot.lane.b32.xlu0 %v10710, 32
    %v12672 = vpop.permute.xlu0 %12671
    %12673 = vrot.lane.b32.xlu0 %v10711, 32
    %v12674 = vpop.permute.xlu0 %12673
    %12675 = vrot.lane.b32.xlu0 %v10712, 32
    %v12676 = vpop.permute.xlu0 %12675
    %12677 = vrot.lane.b32.xlu0 %v10713, 32
    %v12678 = vpop.permute.xlu0 %12677
    %12679 = vrot.lane.b32.xlu0 %v10714, 32
    %v12680 = vpop.permute.xlu0 %12679
    %12681 = vrot.lane.b32.xlu0 %v10715, 32
    %v12682 = vpop.permute.xlu0 %12681
    %12683 = vrot.lane.b32.xlu0 %v10716, 32
    %v12684 = vpop.permute.xlu0 %12683
    %12685 = vrot.lane.b32.xlu0 %v10717, 32
    %v12686 = vpop.permute.xlu0 %12685
    %12687 = vrot.lane.b32.xlu0 %v10718, 32
    %v12688 = vpop.permute.xlu0 %12687
    %12689 = vrot.lane.b32.xlu0 %v10719, 32
    %v12690 = vpop.permute.xlu0 %12689
    %12691 = vrot.lane.b32.xlu0 %v10720, 32
    %v12692 = vpop.permute.xlu0 %12691
    %12693 = vrot.lane.b32.xlu0 %v10721, 32
    %v12694 = vpop.permute.xlu0 %12693
    %12695 = vrot.lane.b32.xlu0 %v10722, 32
    %v12696 = vpop.permute.xlu0 %12695
    %12697 = vrot.lane.b32.xlu0 %v10723, 32
    %v12698 = vpop.permute.xlu0 %12697
    %12699 = vrot.lane.b32.xlu0 %v10724, 32
    %v12700 = vpop.permute.xlu0 %12699
    %12701 = vrot.lane.b32.xlu0 %v10725, 32
    %v12702 = vpop.permute.xlu0 %12701
    %12703 = vrot.lane.b32.xlu0 %v10726, 32
    %v12704 = vpop.permute.xlu0 %12703
    %12705 = vrot.lane.b32.xlu0 %v10727, 32
    %v12706 = vpop.permute.xlu0 %12705
    %12707 = vrot.lane.b32.xlu0 %v10728, 32
    %v12708 = vpop.permute.xlu0 %12707
    %12709 = vrot.lane.b32.xlu0 %v10729, 32
    %v12710 = vpop.permute.xlu0 %12709
    %12711 = vrot.lane.b32.xlu0 %v10730, 32
    %v12712 = vpop.permute.xlu0 %12711
    %12713 = vrot.lane.b32.xlu0 %v10731, 32
    %v12714 = vpop.permute.xlu0 %12713
    %12715 = vrot.lane.b32.xlu0 %v10732, 32
    %v12716 = vpop.permute.xlu0 %12715
    %v12781 = vsel %vm30, %v7597, %v10798
    %v12782 = vsel %vm30, %v7598, %v10800
    %v12783 = vsel %vm30, %v7599, %v10802
    %v12784 = vsel %vm30, %v7600, %v10804
    %v12785 = vsel %vm30, %v7601, %v10806
    %v12786 = vsel %vm30, %v7602, %v10808
    %v12787 = vsel %vm30, %v7603, %v10810
    %v12788 = vsel %vm30, %v7604, %v10812
    %v12789 = vsel %vm30, %v7605, %v10814
    %v12790 = vsel %vm30, %v7606, %v10816
    %v12791 = vsel %vm30, %v7607, %v10818
    %v12792 = vsel %vm30, %v7608, %v10820
    %v12793 = vsel %vm30, %v7609, %v10822
    %v12794 = vsel %vm30, %v7610, %v10824
    %v12795 = vsel %vm30, %v7611, %v10826
    %v12796 = vsel %vm30, %v7612, %v10828
    %v12797 = vsel %vm30, %v7613, %v10830
    %v12798 = vsel %vm30, %v7614, %v10832
    %v12799 = vsel %vm30, %v7615, %v10834
    %v12800 = vsel %vm30, %v7616, %v10836
    %v12801 = vsel %vm30, %v7617, %v10838
    %v12802 = vsel %vm30, %v7618, %v10840
    %v12803 = vsel %vm30, %v7619, %v10842
    %v12804 = vsel %vm30, %v7620, %v10844
    %v12805 = vsel %vm30, %v7621, %v10846
    %v12806 = vsel %vm30, %v7622, %v10848
    %v12807 = vsel %vm30, %v7623, %v10850
    %v12808 = vsel %vm30, %v7624, %v10852
    %v12809 = vsel %vm30, %v7625, %v10854
    %v12810 = vsel %vm30, %v7626, %v10856
    %v12811 = vsel %vm30, %v7627, %v10858
    %v12812 = vsel %vm30, %v7628, %v10860
    %v12813 = vsel %vm30, %v7629, %v10862
    %v12814 = vsel %vm30, %v7630, %v10864
    %v12815 = vsel %vm30, %v7631, %v10866
    %v12816 = vsel %vm30, %v7632, %v10868
    %v12817 = vsel %vm30, %v7633, %v10870
    %v12818 = vsel %vm30, %v7634, %v10872
    %v12819 = vsel %vm30, %v7635, %v10874
    %v12820 = vsel %vm30, %v7636, %v10876
    %v12821 = vsel %vm30, %v7637, %v10878
    %v12822 = vsel %vm30, %v7638, %v10880
    %v12823 = vsel %vm30, %v7639, %v10882
    %v12824 = vsel %vm30, %v7640, %v10884
    %v12825 = vsel %vm30, %v7641, %v10886
    %v12826 = vsel %vm30, %v7642, %v10888
    %v12827 = vsel %vm30, %v7643, %v10890
    %v12828 = vsel %vm30, %v7644, %v10892
    %v12829 = vsel %vm30, %v7645, %v10894
    %v12830 = vsel %vm30, %v7646, %v10896
    %v12831 = vsel %vm30, %v7647, %v10898
    %v12832 = vsel %vm30, %v7648, %v10900
    %v12833 = vsel %vm30, %v7649, %v10902
    %v12834 = vsel %vm30, %v7650, %v10904
    %v12835 = vsel %vm30, %v7651, %v10906
    %v12836 = vsel %vm30, %v7652, %v10908
    %v12837 = vsel %vm30, %v7653, %v10910
    %v12838 = vsel %vm30, %v7654, %v10912
    %v12839 = vsel %vm30, %v7655, %v10914
    %v12840 = vsel %vm30, %v7656, %v10916
    %v12841 = vsel %vm30, %v7657, %v10918
    %v12842 = vsel %vm30, %v7658, %v10920
    %v12843 = vsel %vm30, %v7659, %v10922
    %v12844 = vsel %vm30, %v7660, %v10924
    %v12845 = vsel %vm5862, %v12781, %v11054
    %v12846 = vsel %vm5862, %v12782, %v11056
    %v12847 = vsel %vm5862, %v12783, %v11058
    %v12848 = vsel %vm5862, %v12784, %v11060
    %v12849 = vsel %vm5862, %v12785, %v11062
    %v12850 = vsel %vm5862, %v12786, %v11064
    %v12851 = vsel %vm5862, %v12787, %v11066
    %v12852 = vsel %vm5862, %v12788, %v11068
    %v12853 = vsel %vm5862, %v12789, %v11070
    %v12854 = vsel %vm5862, %v12790, %v11072
    %v12855 = vsel %vm5862, %v12791, %v11074
    %v12856 = vsel %vm5862, %v12792, %v11076
    %v12857 = vsel %vm5862, %v12793, %v11078
    %v12858 = vsel %vm5862, %v12794, %v11080
    %v12859 = vsel %vm5862, %v12795, %v11082
    %v12860 = vsel %vm5862, %v12796, %v11084
    %v12861 = vsel %vm5862, %v12797, %v11086
    %v12862 = vsel %vm5862, %v12798, %v11088
    %v12863 = vsel %vm5862, %v12799, %v11090
    %v12864 = vsel %vm5862, %v12800, %v11092
    %v12865 = vsel %vm5862, %v12801, %v11094
    %v12866 = vsel %vm5862, %v12802, %v11096
    %v12867 = vsel %vm5862, %v12803, %v11098
    %v12868 = vsel %vm5862, %v12804, %v11100
    %v12869 = vsel %vm5862, %v12805, %v11102
    %v12870 = vsel %vm5862, %v12806, %v11104
    %v12871 = vsel %vm5862, %v12807, %v11106
    %v12872 = vsel %vm5862, %v12808, %v11108
    %v12873 = vsel %vm5862, %v12809, %v11110
    %v12874 = vsel %vm5862, %v12810, %v11112
    %v12875 = vsel %vm5862, %v12811, %v11114
    %v12876 = vsel %vm5862, %v12812, %v11116
    %v12877 = vsel %vm5862, %v12813, %v11118
    %v12878 = vsel %vm5862, %v12814, %v11120
    %v12879 = vsel %vm5862, %v12815, %v11122
    %v12880 = vsel %vm5862, %v12816, %v11124
    %v12881 = vsel %vm5862, %v12817, %v11126
    %v12882 = vsel %vm5862, %v12818, %v11128
    %v12883 = vsel %vm5862, %v12819, %v11130
    %v12884 = vsel %vm5862, %v12820, %v11132
    %v12885 = vsel %vm5862, %v12821, %v11134
    %v12886 = vsel %vm5862, %v12822, %v11136
    %v12887 = vsel %vm5862, %v12823, %v11138
    %v12888 = vsel %vm5862, %v12824, %v11140
    %v12889 = vsel %vm5862, %v12825, %v11142
    %v12890 = vsel %vm5862, %v12826, %v11144
    %v12891 = vsel %vm5862, %v12827, %v11146
    %v12892 = vsel %vm5862, %v12828, %v11148
    %v12893 = vsel %vm5862, %v12829, %v11150
    %v12894 = vsel %vm5862, %v12830, %v11152
    %v12895 = vsel %vm5862, %v12831, %v11154
    %v12896 = vsel %vm5862, %v12832, %v11156
    %v12897 = vsel %vm5862, %v12833, %v11158
    %v12898 = vsel %vm5862, %v12834, %v11160
    %v12899 = vsel %vm5862, %v12835, %v11162
    %v12900 = vsel %vm5862, %v12836, %v11164
    %v12901 = vsel %vm5862, %v12837, %v11166
    %v12902 = vsel %vm5862, %v12838, %v11168
    %v12903 = vsel %vm5862, %v12839, %v11170
    %v12904 = vsel %vm5862, %v12840, %v11172
    %v12905 = vsel %vm5862, %v12841, %v11174
    %v12906 = vsel %vm5862, %v12842, %v11176
    %v12907 = vsel %vm5862, %v12843, %v11178
    %v12908 = vsel %vm5862, %v12844, %v11180
    %v12909 = vsel %vm5927, %v12845, %v11310
    %v12910 = vsel %vm5927, %v12846, %v11312
    %v12911 = vsel %vm5927, %v12847, %v11314
    %v12912 = vsel %vm5927, %v12848, %v11316
    %v12913 = vsel %vm5927, %v12849, %v11318
    %v12914 = vsel %vm5927, %v12850, %v11320
    %v12915 = vsel %vm5927, %v12851, %v11322
    %v12916 = vsel %vm5927, %v12852, %v11324
    %v12917 = vsel %vm5927, %v12853, %v11326
    %v12918 = vsel %vm5927, %v12854, %v11328
    %v12919 = vsel %vm5927, %v12855, %v11330
    %v12920 = vsel %vm5927, %v12856, %v11332
    %v12921 = vsel %vm5927, %v12857, %v11334
    %v12922 = vsel %vm5927, %v12858, %v11336
    %v12923 = vsel %vm5927, %v12859, %v11338
    %v12924 = vsel %vm5927, %v12860, %v11340
    %v12925 = vsel %vm5927, %v12861, %v11342
    %v12926 = vsel %vm5927, %v12862, %v11344
    %v12927 = vsel %vm5927, %v12863, %v11346
    %v12928 = vsel %vm5927, %v12864, %v11348
    %v12929 = vsel %vm5927, %v12865, %v11350
    %v12930 = vsel %vm5927, %v12866, %v11352
    %v12931 = vsel %vm5927, %v12867, %v11354
    %v12932 = vsel %vm5927, %v12868, %v11356
    %v12933 = vsel %vm5927, %v12869, %v11358
    %v12934 = vsel %vm5927, %v12870, %v11360
    %v12935 = vsel %vm5927, %v12871, %v11362
    %v12936 = vsel %vm5927, %v12872, %v11364
    %v12937 = vsel %vm5927, %v12873, %v11366
    %v12938 = vsel %vm5927, %v12874, %v11368
    %v12939 = vsel %vm5927, %v12875, %v11370
    %v12940 = vsel %vm5927, %v12876, %v11372
    %v12941 = vsel %vm5927, %v12877, %v11374
    %v12942 = vsel %vm5927, %v12878, %v11376
    %v12943 = vsel %vm5927, %v12879, %v11378
    %v12944 = vsel %vm5927, %v12880, %v11380
    %v12945 = vsel %vm5927, %v12881, %v11382
    %v12946 = vsel %vm5927, %v12882, %v11384
    %v12947 = vsel %vm5927, %v12883, %v11386
    %v12948 = vsel %vm5927, %v12884, %v11388
    %v12949 = vsel %vm5927, %v12885, %v11390
    %v12950 = vsel %vm5927, %v12886, %v11392
    %v12951 = vsel %vm5927, %v12887, %v11394
    %v12952 = vsel %vm5927, %v12888, %v11396
    %v12953 = vsel %vm5927, %v12889, %v11398
    %v12954 = vsel %vm5927, %v12890, %v11400
    %v12955 = vsel %vm5927, %v12891, %v11402
    %v12956 = vsel %vm5927, %v12892, %v11404
    %v12957 = vsel %vm5927, %v12893, %v11406
    %v12958 = vsel %vm5927, %v12894, %v11408
    %v12959 = vsel %vm5927, %v12895, %v11410
    %v12960 = vsel %vm5927, %v12896, %v11412
    %v12961 = vsel %vm5927, %v12897, %v11414
    %v12962 = vsel %vm5927, %v12898, %v11416
    %v12963 = vsel %vm5927, %v12899, %v11418
    %v12964 = vsel %vm5927, %v12900, %v11420
    %v12965 = vsel %vm5927, %v12901, %v11422
    %v12966 = vsel %vm5927, %v12902, %v11424
    %v12967 = vsel %vm5927, %v12903, %v11426
    %v12968 = vsel %vm5927, %v12904, %v11428
    %v12969 = vsel %vm5927, %v12905, %v11430
    %v12970 = vsel %vm5927, %v12906, %v11432
    %v12971 = vsel %vm5927, %v12907, %v11434
    %v12972 = vsel %vm5927, %v12908, %v11436
    %v12973 = vsel %vm5992, %v12909, %v11566
    %v12974 = vsel %vm5992, %v12910, %v11568
    %v12975 = vsel %vm5992, %v12911, %v11570
    %v12976 = vsel %vm5992, %v12912, %v11572
    %v12977 = vsel %vm5992, %v12913, %v11574
    %v12978 = vsel %vm5992, %v12914, %v11576
    %v12979 = vsel %vm5992, %v12915, %v11578
    %v12980 = vsel %vm5992, %v12916, %v11580
    %v12981 = vsel %vm5992, %v12917, %v11582
    %v12982 = vsel %vm5992, %v12918, %v11584
    %v12983 = vsel %vm5992, %v12919, %v11586
    %v12984 = vsel %vm5992, %v12920, %v11588
    %v12985 = vsel %vm5992, %v12921, %v11590
    %v12986 = vsel %vm5992, %v12922, %v11592
    %v12987 = vsel %vm5992, %v12923, %v11594
    %v12988 = vsel %vm5992, %v12924, %v11596
    %v12989 = vsel %vm5992, %v12925, %v11598
    %v12990 = vsel %vm5992, %v12926, %v11600
    %v12991 = vsel %vm5992, %v12927, %v11602
    %v12992 = vsel %vm5992, %v12928, %v11604
    %v12993 = vsel %vm5992, %v12929, %v11606
    %v12994 = vsel %vm5992, %v12930, %v11608
    %v12995 = vsel %vm5992, %v12931, %v11610
    %v12996 = vsel %vm5992, %v12932, %v11612
    %v12997 = vsel %vm5992, %v12933, %v11614
    %v12998 = vsel %vm5992, %v12934, %v11616
    %v12999 = vsel %vm5992, %v12935, %v11618
    %v13000 = vsel %vm5992, %v12936, %v11620
    %v13001 = vsel %vm5992, %v12937, %v11622
    %v13002 = vsel %vm5992, %v12938, %v11624
    %v13003 = vsel %vm5992, %v12939, %v11626
    %v13004 = vsel %vm5992, %v12940, %v11628
    %v13005 = vsel %vm5992, %v12941, %v11630
    %v13006 = vsel %vm5992, %v12942, %v11632
    %v13007 = vsel %vm5992, %v12943, %v11634
    %v13008 = vsel %vm5992, %v12944, %v11636
    %v13009 = vsel %vm5992, %v12945, %v11638
    %v13010 = vsel %vm5992, %v12946, %v11640
    %v13011 = vsel %vm5992, %v12947, %v11642
    %v13012 = vsel %vm5992, %v12948, %v11644
    %v13013 = vsel %vm5992, %v12949, %v11646
    %v13014 = vsel %vm5992, %v12950, %v11648
    %v13015 = vsel %vm5992, %v12951, %v11650
    %v13016 = vsel %vm5992, %v12952, %v11652
    %v13017 = vsel %vm5992, %v12953, %v11654
    %v13018 = vsel %vm5992, %v12954, %v11656
    %v13019 = vsel %vm5992, %v12955, %v11658
    %v13020 = vsel %vm5992, %v12956, %v11660
    %v13021 = vsel %vm5992, %v12957, %v11662
    %v13022 = vsel %vm5992, %v12958, %v11664
    %v13023 = vsel %vm5992, %v12959, %v11666
    %v13024 = vsel %vm5992, %v12960, %v11668
    %v13025 = vsel %vm5992, %v12961, %v11670
    %v13026 = vsel %vm5992, %v12962, %v11672
    %v13027 = vsel %vm5992, %v12963, %v11674
    %v13028 = vsel %vm5992, %v12964, %v11676
    %v13029 = vsel %vm5992, %v12965, %v11678
    %v13030 = vsel %vm5992, %v12966, %v11680
    %v13031 = vsel %vm5992, %v12967, %v11682
    %v13032 = vsel %vm5992, %v12968, %v11684
    %v13033 = vsel %vm5992, %v12969, %v11686
    %v13034 = vsel %vm5992, %v12970, %v11688
    %v13035 = vsel %vm5992, %v12971, %v11690
    %v13036 = vsel %vm5992, %v12972, %v11692
    %v13037 = vsel %vm6057, %v12973, %v11822
    %v13038 = vsel %vm6057, %v12974, %v11824
    %v13039 = vsel %vm6057, %v12975, %v11826
    %v13040 = vsel %vm6057, %v12976, %v11828
    %v13041 = vsel %vm6057, %v12977, %v11830
    %v13042 = vsel %vm6057, %v12978, %v11832
    %v13043 = vsel %vm6057, %v12979, %v11834
    %v13044 = vsel %vm6057, %v12980, %v11836
    %v13045 = vsel %vm6057, %v12981, %v11838
    %v13046 = vsel %vm6057, %v12982, %v11840
    %v13047 = vsel %vm6057, %v12983, %v11842
    %v13048 = vsel %vm6057, %v12984, %v11844
    %v13049 = vsel %vm6057, %v12985, %v11846
    %v13050 = vsel %vm6057, %v12986, %v11848
    %v13051 = vsel %vm6057, %v12987, %v11850
    %v13052 = vsel %vm6057, %v12988, %v11852
    %v13053 = vsel %vm6057, %v12989, %v11854
    %v13054 = vsel %vm6057, %v12990, %v11856
    %v13055 = vsel %vm6057, %v12991, %v11858
    %v13056 = vsel %vm6057, %v12992, %v11860
    %v13057 = vsel %vm6057, %v12993, %v11862
    %v13058 = vsel %vm6057, %v12994, %v11864
    %v13059 = vsel %vm6057, %v12995, %v11866
    %v13060 = vsel %vm6057, %v12996, %v11868
    %v13061 = vsel %vm6057, %v12997, %v11870
    %v13062 = vsel %vm6057, %v12998, %v11872
    %v13063 = vsel %vm6057, %v12999, %v11874
    %v13064 = vsel %vm6057, %v13000, %v11876
    %v13065 = vsel %vm6057, %v13001, %v11878
    %v13066 = vsel %vm6057, %v13002, %v11880
    %v13067 = vsel %vm6057, %v13003, %v11882
    %v13068 = vsel %vm6057, %v13004, %v11884
    %v13069 = vsel %vm6057, %v13005, %v11886
    %v13070 = vsel %vm6057, %v13006, %v11888
    %v13071 = vsel %vm6057, %v13007, %v11890
    %v13072 = vsel %vm6057, %v13008, %v11892
    %v13073 = vsel %vm6057, %v13009, %v11894
    %v13074 = vsel %vm6057, %v13010, %v11896
    %v13075 = vsel %vm6057, %v13011, %v11898
    %v13076 = vsel %vm6057, %v13012, %v11900
    %v13077 = vsel %vm6057, %v13013, %v11902
    %v13078 = vsel %vm6057, %v13014, %v11904
    %v13079 = vsel %vm6057, %v13015, %v11906
    %v13080 = vsel %vm6057, %v13016, %v11908
    %v13081 = vsel %vm6057, %v13017, %v11910
    %v13082 = vsel %vm6057, %v13018, %v11912
    %v13083 = vsel %vm6057, %v13019, %v11914
    %v13084 = vsel %vm6057, %v13020, %v11916
    %v13085 = vsel %vm6057, %v13021, %v11918
    %v13086 = vsel %vm6057, %v13022, %v11920
    %v13087 = vsel %vm6057, %v13023, %v11922
    %v13088 = vsel %vm6057, %v13024, %v11924
    %v13089 = vsel %vm6057, %v13025, %v11926
    %v13090 = vsel %vm6057, %v13026, %v11928
    %v13091 = vsel %vm6057, %v13027, %v11930
    %v13092 = vsel %vm6057, %v13028, %v11932
    %v13093 = vsel %vm6057, %v13029, %v11934
    %v13094 = vsel %vm6057, %v13030, %v11936
    %v13095 = vsel %vm6057, %v13031, %v11938
    %v13096 = vsel %vm6057, %v13032, %v11940
    %v13097 = vsel %vm6057, %v13033, %v11942
    %v13098 = vsel %vm6057, %v13034, %v11944
    %v13099 = vsel %vm6057, %v13035, %v11946
    %v13100 = vsel %vm6057, %v13036, %v11948
    %v13101 = vsel %vm6122, %v13037, %v12078
    %v13102 = vsel %vm6122, %v13038, %v12080
    %v13103 = vsel %vm6122, %v13039, %v12082
    %v13104 = vsel %vm6122, %v13040, %v12084
    %v13105 = vsel %vm6122, %v13041, %v12086
    %v13106 = vsel %vm6122, %v13042, %v12088
    %v13107 = vsel %vm6122, %v13043, %v12090
    %v13108 = vsel %vm6122, %v13044, %v12092
    %v13109 = vsel %vm6122, %v13045, %v12094
    %v13110 = vsel %vm6122, %v13046, %v12096
    %v13111 = vsel %vm6122, %v13047, %v12098
    %v13112 = vsel %vm6122, %v13048, %v12100
    %v13113 = vsel %vm6122, %v13049, %v12102
    %v13114 = vsel %vm6122, %v13050, %v12104
    %v13115 = vsel %vm6122, %v13051, %v12106
    %v13116 = vsel %vm6122, %v13052, %v12108
    %v13117 = vsel %vm6122, %v13053, %v12110
    %v13118 = vsel %vm6122, %v13054, %v12112
    %v13119 = vsel %vm6122, %v13055, %v12114
    %v13120 = vsel %vm6122, %v13056, %v12116
    %v13121 = vsel %vm6122, %v13057, %v12118
    %v13122 = vsel %vm6122, %v13058, %v12120
    %v13123 = vsel %vm6122, %v13059, %v12122
    %v13124 = vsel %vm6122, %v13060, %v12124
    %v13125 = vsel %vm6122, %v13061, %v12126
    %v13126 = vsel %vm6122, %v13062, %v12128
    %v13127 = vsel %vm6122, %v13063, %v12130
    %v13128 = vsel %vm6122, %v13064, %v12132
    %v13129 = vsel %vm6122, %v13065, %v12134
    %v13130 = vsel %vm6122, %v13066, %v12136
    %v13131 = vsel %vm6122, %v13067, %v12138
    %v13132 = vsel %vm6122, %v13068, %v12140
    %v13133 = vsel %vm6122, %v13069, %v12142
    %v13134 = vsel %vm6122, %v13070, %v12144
    %v13135 = vsel %vm6122, %v13071, %v12146
    %v13136 = vsel %vm6122, %v13072, %v12148
    %v13137 = vsel %vm6122, %v13073, %v12150
    %v13138 = vsel %vm6122, %v13074, %v12152
    %v13139 = vsel %vm6122, %v13075, %v12154
    %v13140 = vsel %vm6122, %v13076, %v12156
    %v13141 = vsel %vm6122, %v13077, %v12158
    %v13142 = vsel %vm6122, %v13078, %v12160
    %v13143 = vsel %vm6122, %v13079, %v12162
    %v13144 = vsel %vm6122, %v13080, %v12164
    %v13145 = vsel %vm6122, %v13081, %v12166
    %v13146 = vsel %vm6122, %v13082, %v12168
    %v13147 = vsel %vm6122, %v13083, %v12170
    %v13148 = vsel %vm6122, %v13084, %v12172
    %v13149 = vsel %vm6122, %v13085, %v12174
    %v13150 = vsel %vm6122, %v13086, %v12176
    %v13151 = vsel %vm6122, %v13087, %v12178
    %v13152 = vsel %vm6122, %v13088, %v12180
    %v13153 = vsel %vm6122, %v13089, %v12182
    %v13154 = vsel %vm6122, %v13090, %v12184
    %v13155 = vsel %vm6122, %v13091, %v12186
    %v13156 = vsel %vm6122, %v13092, %v12188
    %v13157 = vsel %vm6122, %v13093, %v12190
    %v13158 = vsel %vm6122, %v13094, %v12192
    %v13159 = vsel %vm6122, %v13095, %v12194
    %v13160 = vsel %vm6122, %v13096, %v12196
    %v13161 = vsel %vm6122, %v13097, %v12198
    %v13162 = vsel %vm6122, %v13098, %v12200
    %v13163 = vsel %vm6122, %v13099, %v12202
    %v13164 = vsel %vm6122, %v13100, %v12204
    %v13165 = vsel %vm6187, %v13101, %v12334
    %v13166 = vsel %vm6187, %v13102, %v12336
    %v13167 = vsel %vm6187, %v13103, %v12338
    %v13168 = vsel %vm6187, %v13104, %v12340
    %v13169 = vsel %vm6187, %v13105, %v12342
    %v13170 = vsel %vm6187, %v13106, %v12344
    %v13171 = vsel %vm6187, %v13107, %v12346
    %v13172 = vsel %vm6187, %v13108, %v12348
    %v13173 = vsel %vm6187, %v13109, %v12350
    %v13174 = vsel %vm6187, %v13110, %v12352
    %v13175 = vsel %vm6187, %v13111, %v12354
    %v13176 = vsel %vm6187, %v13112, %v12356
    %v13177 = vsel %vm6187, %v13113, %v12358
    %v13178 = vsel %vm6187, %v13114, %v12360
    %v13179 = vsel %vm6187, %v13115, %v12362
    %v13180 = vsel %vm6187, %v13116, %v12364
    %v13181 = vsel %vm6187, %v13117, %v12366
    %v13182 = vsel %vm6187, %v13118, %v12368
    %v13183 = vsel %vm6187, %v13119, %v12370
    %v13184 = vsel %vm6187, %v13120, %v12372
    %v13185 = vsel %vm6187, %v13121, %v12374
    %v13186 = vsel %vm6187, %v13122, %v12376
    %v13187 = vsel %vm6187, %v13123, %v12378
    %v13188 = vsel %vm6187, %v13124, %v12380
    %v13189 = vsel %vm6187, %v13125, %v12382
    %v13190 = vsel %vm6187, %v13126, %v12384
    %v13191 = vsel %vm6187, %v13127, %v12386
    %v13192 = vsel %vm6187, %v13128, %v12388
    %v13193 = vsel %vm6187, %v13129, %v12390
    %v13194 = vsel %vm6187, %v13130, %v12392
    %v13195 = vsel %vm6187, %v13131, %v12394
    %v13196 = vsel %vm6187, %v13132, %v12396
    %v13197 = vsel %vm6187, %v13133, %v12398
    %v13198 = vsel %vm6187, %v13134, %v12400
    %v13199 = vsel %vm6187, %v13135, %v12402
    %v13200 = vsel %vm6187, %v13136, %v12404
    %v13201 = vsel %vm6187, %v13137, %v12406
    %v13202 = vsel %vm6187, %v13138, %v12408
    %v13203 = vsel %vm6187, %v13139, %v12410
    %v13204 = vsel %vm6187, %v13140, %v12412
    %v13205 = vsel %vm6187, %v13141, %v12414
    %v13206 = vsel %vm6187, %v13142, %v12416
    %v13207 = vsel %vm6187, %v13143, %v12418
    %v13208 = vsel %vm6187, %v13144, %v12420
    %v13209 = vsel %vm6187, %v13145, %v12422
    %v13210 = vsel %vm6187, %v13146, %v12424
    %v13211 = vsel %vm6187, %v13147, %v12426
    %v13212 = vsel %vm6187, %v13148, %v12428
    %v13213 = vsel %vm6187, %v13149, %v12430
    %v13214 = vsel %vm6187, %v13150, %v12432
    %v13215 = vsel %vm6187, %v13151, %v12434
    %v13216 = vsel %vm6187, %v13152, %v12436
    %v13217 = vsel %vm6187, %v13153, %v12438
    %v13218 = vsel %vm6187, %v13154, %v12440
    %v13219 = vsel %vm6187, %v13155, %v12442
    %v13220 = vsel %vm6187, %v13156, %v12444
    %v13221 = vsel %vm6187, %v13157, %v12446
    %v13222 = vsel %vm6187, %v13158, %v12448
    %v13223 = vsel %vm6187, %v13159, %v12450
    %v13224 = vsel %vm6187, %v13160, %v12452
    %v13225 = vsel %vm6187, %v13161, %v12454
    %v13226 = vsel %vm6187, %v13162, %v12456
    %v13227 = vsel %vm6187, %v13163, %v12458
    %v13228 = vsel %vm6187, %v13164, %v12460
    %v13229 = vsel %vm6252, %v13165, %v12590
    %v13230 = vsel %vm6252, %v13166, %v12592
    %v13231 = vsel %vm6252, %v13167, %v12594
    %v13232 = vsel %vm6252, %v13168, %v12596
    %v13233 = vsel %vm6252, %v13169, %v12598
    %v13234 = vsel %vm6252, %v13170, %v12600
    %v13235 = vsel %vm6252, %v13171, %v12602
    %v13236 = vsel %vm6252, %v13172, %v12604
    %v13237 = vsel %vm6252, %v13173, %v12606
    %v13238 = vsel %vm6252, %v13174, %v12608
    %v13239 = vsel %vm6252, %v13175, %v12610
    %v13240 = vsel %vm6252, %v13176, %v12612
    %v13241 = vsel %vm6252, %v13177, %v12614
    %v13242 = vsel %vm6252, %v13178, %v12616
    %v13243 = vsel %vm6252, %v13179, %v12618
    %v13244 = vsel %vm6252, %v13180, %v12620
    %v13245 = vsel %vm6252, %v13181, %v12622
    %v13246 = vsel %vm6252, %v13182, %v12624
    %v13247 = vsel %vm6252, %v13183, %v12626
    %v13248 = vsel %vm6252, %v13184, %v12628
    %v13249 = vsel %vm6252, %v13185, %v12630
    %v13250 = vsel %vm6252, %v13186, %v12632
    %v13251 = vsel %vm6252, %v13187, %v12634
    %v13252 = vsel %vm6252, %v13188, %v12636
    %v13253 = vsel %vm6252, %v13189, %v12638
    %v13254 = vsel %vm6252, %v13190, %v12640
    %v13255 = vsel %vm6252, %v13191, %v12642
    %v13256 = vsel %vm6252, %v13192, %v12644
    %v13257 = vsel %vm6252, %v13193, %v12646
    %v13258 = vsel %vm6252, %v13194, %v12648
    %v13259 = vsel %vm6252, %v13195, %v12650
    %v13260 = vsel %vm6252, %v13196, %v12652
    %v13261 = vsel %vm6252, %v13197, %v12654
    %v13262 = vsel %vm6252, %v13198, %v12656
    %v13263 = vsel %vm6252, %v13199, %v12658
    %v13264 = vsel %vm6252, %v13200, %v12660
    %v13265 = vsel %vm6252, %v13201, %v12662
    %v13266 = vsel %vm6252, %v13202, %v12664
    %v13267 = vsel %vm6252, %v13203, %v12666
    %v13268 = vsel %vm6252, %v13204, %v12668
    %v13269 = vsel %vm6252, %v13205, %v12670
    %v13270 = vsel %vm6252, %v13206, %v12672
    %v13271 = vsel %vm6252, %v13207, %v12674
    %v13272 = vsel %vm6252, %v13208, %v12676
    %v13273 = vsel %vm6252, %v13209, %v12678
    %v13274 = vsel %vm6252, %v13210, %v12680
    %v13275 = vsel %vm6252, %v13211, %v12682
    %v13276 = vsel %vm6252, %v13212, %v12684
    %v13277 = vsel %vm6252, %v13213, %v12686
    %v13278 = vsel %vm6252, %v13214, %v12688
    %v13279 = vsel %vm6252, %v13215, %v12690
    %v13280 = vsel %vm6252, %v13216, %v12692
    %v13281 = vsel %vm6252, %v13217, %v12694
    %v13282 = vsel %vm6252, %v13218, %v12696
    %v13283 = vsel %vm6252, %v13219, %v12698
    %v13284 = vsel %vm6252, %v13220, %v12700
    %v13285 = vsel %vm6252, %v13221, %v12702
    %v13286 = vsel %vm6252, %v13222, %v12704
    %v13287 = vsel %vm6252, %v13223, %v12706
    %v13288 = vsel %vm6252, %v13224, %v12708
    %v13289 = vsel %vm6252, %v13225, %v12710
    %v13290 = vsel %vm6252, %v13226, %v12712
    %v13291 = vsel %vm6252, %v13227, %v12714
    %v13292 = vsel %vm6252, %v13228, %v12716
    %v13293 = vsel %vm6317, %v13229, 0.0
    %v13294 = vsel %vm6317, %v13230, 0.0
    %v13295 = vsel %vm6317, %v13231, 0.0
    %v13296 = vsel %vm6317, %v13232, 0.0
    %v13297 = vsel %vm6317, %v13233, 0.0
    %v13298 = vsel %vm6317, %v13234, 0.0
    %v13299 = vsel %vm6317, %v13235, 0.0
    %v13300 = vsel %vm6317, %v13236, 0.0
    %v13301 = vsel %vm6317, %v13237, 0.0
    %v13302 = vsel %vm6317, %v13238, 0.0
    %v13303 = vsel %vm6317, %v13239, 0.0
    %v13304 = vsel %vm6317, %v13240, 0.0
    %v13305 = vsel %vm6317, %v13241, 0.0
    %v13306 = vsel %vm6317, %v13242, 0.0
    %v13307 = vsel %vm6317, %v13243, 0.0
    %v13308 = vsel %vm6317, %v13244, 0.0
    %v13309 = vsel %vm6317, %v13245, 0.0
    %v13310 = vsel %vm6317, %v13246, 0.0
    %v13311 = vsel %vm6317, %v13247, 0.0
    %v13312 = vsel %vm6317, %v13248, 0.0
    %v13313 = vsel %vm6317, %v13249, 0.0
    %v13314 = vsel %vm6317, %v13250, 0.0
    %v13315 = vsel %vm6317, %v13251, 0.0
    %v13316 = vsel %vm6317, %v13252, 0.0
    %v13317 = vsel %vm6317, %v13253, 0.0
    %v13318 = vsel %vm6317, %v13254, 0.0
    %v13319 = vsel %vm6317, %v13255, 0.0
    %v13320 = vsel %vm6317, %v13256, 0.0
    %v13321 = vsel %vm6317, %v13257, 0.0
    %v13322 = vsel %vm6317, %v13258, 0.0
    %v13323 = vsel %vm6317, %v13259, 0.0
    %v13324 = vsel %vm6317, %v13260, 0.0
    %v13325 = vsel %vm6317, %v13261, 0.0
    %v13326 = vsel %vm6317, %v13262, 0.0
    %v13327 = vsel %vm6317, %v13263, 0.0
    %v13328 = vsel %vm6317, %v13264, 0.0
    %v13329 = vsel %vm6317, %v13265, 0.0
    %v13330 = vsel %vm6317, %v13266, 0.0
    %v13331 = vsel %vm6317, %v13267, 0.0
    %v13332 = vsel %vm6317, %v13268, 0.0
    %v13333 = vsel %vm6317, %v13269, 0.0
    %v13334 = vsel %vm6317, %v13270, 0.0
    %v13335 = vsel %vm6317, %v13271, 0.0
    %v13336 = vsel %vm6317, %v13272, 0.0
    %v13337 = vsel %vm6317, %v13273, 0.0
    %v13338 = vsel %vm6317, %v13274, 0.0
    %v13339 = vsel %vm6317, %v13275, 0.0
    %v13340 = vsel %vm6317, %v13276, 0.0
    %v13341 = vsel %vm6317, %v13277, 0.0
    %v13342 = vsel %vm6317, %v13278, 0.0
    %v13343 = vsel %vm6317, %v13279, 0.0
    %v13344 = vsel %vm6317, %v13280, 0.0
    %v13345 = vsel %vm6317, %v13281, 0.0
    %v13346 = vsel %vm6317, %v13282, 0.0
    %v13347 = vsel %vm6317, %v13283, 0.0
    %v13348 = vsel %vm6317, %v13284, 0.0
    %v13349 = vsel %vm6317, %v13285, 0.0
    %v13350 = vsel %vm6317, %v13286, 0.0
    %v13351 = vsel %vm6317, %v13287, 0.0
    %v13352 = vsel %vm6317, %v13288, 0.0
    %v13353 = vsel %vm6317, %v13289, 0.0
    %v13354 = vsel %vm6317, %v13290, 0.0
    %v13355 = vsel %vm6317, %v13291, 0.0
    %v13356 = vsel %vm6317, %v13292, 0.0
    %v13357 = vld [vmem:[%s5] sm:$0xff]
    %v13358 = vld [vmem:[%s5 + $0x8] sm:$0xff]
    %v13359 = vld [vmem:[%s5 + $0x10] sm:$0xff]
    %v13360 = vld [vmem:[%s5 + $0x18] sm:$0xff]
    %v13361 = vld [vmem:[%s5 + $0x20] sm:$0xff]
    %v13362 = vld [vmem:[%s5 + $0x28] sm:$0xff]
    %v13363 = vld [vmem:[%s5 + $0x30] sm:$0xff]
    %v13364 = vld [vmem:[%s5 + $0x38] sm:$0xff]
    %v13365 = vld [vmem:[%s5 + $0x40] sm:$0xff]
    %v13366 = vld [vmem:[%s5 + $0x48] sm:$0xff]
    %v13367 = vld [vmem:[%s5 + $0x50] sm:$0xff]
    %v13368 = vld [vmem:[%s5 + $0x58] sm:$0xff]
    %v13369 = vld [vmem:[%s5 + $0x60] sm:$0xff]
    %v13370 = vld [vmem:[%s5 + $0x68] sm:$0xff]
    %v13371 = vld [vmem:[%s5 + $0x70] sm:$0xff]
    %v13372 = vld [vmem:[%s5 + $0x78] sm:$0xff]
    %13373 = vmatpush.msra.mxu0 %v13372
    %13374 = vmatpush.msra.mxu0 %v13371
    %13375 = vmatpush.msra.mxu0 %v13370
    %13376 = vmatpush.msra.mxu0 %v13369
    %13377 = vmatpush.msra.mxu0 %v13368
    %13378 = vmatpush.msra.mxu0 %v13367
    %13379 = vmatpush.msra.mxu0 %v13366
    %13380 = vmatpush.msra.mxu0 %v13365
    %13381 = vmatpush.msra.mxu0 %v13364
    %13382 = vmatpush.msra.mxu0 %v13363
    %13383 = vmatpush.msra.mxu0 %v13362
    %13384 = vmatpush.msra.mxu0 %v13361
    %13385 = vmatpush.msra.mxu0 %v13360
    %13386 = vmatpush.msra.mxu0 %v13359
    %13387 = vmatpush.msra.mxu0 %v13358
    %13388 = vmatpush.msra.mxu0 %v13357
    %13389 = vmatmul.f32.gmra.mxu0 %v13293
    %v13390 = vpop.f32.mrf.mxu0
    %v13391 = vadd.f32 0.0, %v13390
    %13392 = vmatmul.f32.gmra.mxu0 %v13294
    %v13393 = vpop.f32.mrf.mxu0
    %v13394 = vadd.f32 0.0, %v13393
    %13395 = vmatmul.f32.gmra.mxu0 %v13295
    %v13396 = vpop.f32.mrf.mxu0
    %v13397 = vadd.f32 0.0, %v13396
    %13398 = vmatmul.f32.gmra.mxu0 %v13296
    %v13399 = vpop.f32.mrf.mxu0
    %v13400 = vadd.f32 0.0, %v13399
    %13401 = vmatmul.f32.gmra.mxu0 %v13297
    %v13402 = vpop.f32.mrf.mxu0
    %v13403 = vadd.f32 0.0, %v13402
    %13404 = vmatmul.f32.gmra.mxu0 %v13298
    %v13405 = vpop.f32.mrf.mxu0
    %v13406 = vadd.f32 0.0, %v13405
    %13407 = vmatmul.f32.gmra.mxu0 %v13299
    %v13408 = vpop.f32.mrf.mxu0
    %v13409 = vadd.f32 0.0, %v13408
    %13410 = vmatmul.f32.gmra.mxu0 %v13300
    %v13411 = vpop.f32.mrf.mxu0
    %v13412 = vadd.f32 0.0, %v13411
    %13413 = vmatmul.f32.gmra.mxu0 %v13301
    %v13414 = vpop.f32.mrf.mxu0
    %v13415 = vadd.f32 0.0, %v13414
    %13416 = vmatmul.f32.gmra.mxu0 %v13302
    %v13417 = vpop.f32.mrf.mxu0
    %v13418 = vadd.f32 0.0, %v13417
    %13419 = vmatmul.f32.gmra.mxu0 %v13303
    %v13420 = vpop.f32.mrf.mxu0
    %v13421 = vadd.f32 0.0, %v13420
    %13422 = vmatmul.f32.gmra.mxu0 %v13304
    %v13423 = vpop.f32.mrf.mxu0
    %v13424 = vadd.f32 0.0, %v13423
    %13425 = vmatmul.f32.gmra.mxu0 %v13305
    %v13426 = vpop.f32.mrf.mxu0
    %v13427 = vadd.f32 0.0, %v13426
    %13428 = vmatmul.f32.gmra.mxu0 %v13306
    %v13429 = vpop.f32.mrf.mxu0
    %v13430 = vadd.f32 0.0, %v13429
    %13431 = vmatmul.f32.gmra.mxu0 %v13307
    %v13432 = vpop.f32.mrf.mxu0
    %v13433 = vadd.f32 0.0, %v13432
    %13434 = vmatmul.f32.gmra.mxu0 %v13308
    %v13435 = vpop.f32.mrf.mxu0
    %v13436 = vadd.f32 0.0, %v13435
    %13437 = vmatmul.f32.gmra.mxu0 %v13309
    %v13438 = vpop.f32.mrf.mxu0
    %v13439 = vadd.f32 0.0, %v13438
    %13440 = vmatmul.f32.gmra.mxu0 %v13310
    %v13441 = vpop.f32.mrf.mxu0
    %v13442 = vadd.f32 0.0, %v13441
    %13443 = vmatmul.f32.gmra.mxu0 %v13311
    %v13444 = vpop.f32.mrf.mxu0
    %v13445 = vadd.f32 0.0, %v13444
    %13446 = vmatmul.f32.gmra.mxu0 %v13312
    %v13447 = vpop.f32.mrf.mxu0
    %v13448 = vadd.f32 0.0, %v13447
    %13449 = vmatmul.f32.gmra.mxu0 %v13313
    %v13450 = vpop.f32.mrf.mxu0
    %v13451 = vadd.f32 0.0, %v13450
    %13452 = vmatmul.f32.gmra.mxu0 %v13314
    %v13453 = vpop.f32.mrf.mxu0
    %v13454 = vadd.f32 0.0, %v13453
    %13455 = vmatmul.f32.gmra.mxu0 %v13315
    %v13456 = vpop.f32.mrf.mxu0
    %v13457 = vadd.f32 0.0, %v13456
    %13458 = vmatmul.f32.gmra.mxu0 %v13316
    %v13459 = vpop.f32.mrf.mxu0
    %v13460 = vadd.f32 0.0, %v13459
    %13461 = vmatmul.f32.gmra.mxu0 %v13317
    %v13462 = vpop.f32.mrf.mxu0
    %v13463 = vadd.f32 0.0, %v13462
    %13464 = vmatmul.f32.gmra.mxu0 %v13318
    %v13465 = vpop.f32.mrf.mxu0
    %v13466 = vadd.f32 0.0, %v13465
    %13467 = vmatmul.f32.gmra.mxu0 %v13319
    %v13468 = vpop.f32.mrf.mxu0
    %v13469 = vadd.f32 0.0, %v13468
    %13470 = vmatmul.f32.gmra.mxu0 %v13320
    %v13471 = vpop.f32.mrf.mxu0
    %v13472 = vadd.f32 0.0, %v13471
    %13473 = vmatmul.f32.gmra.mxu0 %v13321
    %v13474 = vpop.f32.mrf.mxu0
    %v13475 = vadd.f32 0.0, %v13474
    %13476 = vmatmul.f32.gmra.mxu0 %v13322
    %v13477 = vpop.f32.mrf.mxu0
    %v13478 = vadd.f32 0.0, %v13477
    %13479 = vmatmul.f32.gmra.mxu0 %v13323
    %v13480 = vpop.f32.mrf.mxu0
    %v13481 = vadd.f32 0.0, %v13480
    %13482 = vmatmul.f32.gmra.mxu0 %v13324
    %v13483 = vpop.f32.mrf.mxu0
    %v13484 = vadd.f32 0.0, %v13483
    %13485 = vmatmul.f32.gmra.mxu0 %v13325
    %v13486 = vpop.f32.mrf.mxu0
    %v13487 = vadd.f32 0.0, %v13486
    %13488 = vmatmul.f32.gmra.mxu0 %v13326
    %v13489 = vpop.f32.mrf.mxu0
    %v13490 = vadd.f32 0.0, %v13489
    %13491 = vmatmul.f32.gmra.mxu0 %v13327
    %v13492 = vpop.f32.mrf.mxu0
    %v13493 = vadd.f32 0.0, %v13492
    %13494 = vmatmul.f32.gmra.mxu0 %v13328
    %v13495 = vpop.f32.mrf.mxu0
    %v13496 = vadd.f32 0.0, %v13495
    %13497 = vmatmul.f32.gmra.mxu0 %v13329
    %v13498 = vpop.f32.mrf.mxu0
    %v13499 = vadd.f32 0.0, %v13498
    %13500 = vmatmul.f32.gmra.mxu0 %v13330
    %v13501 = vpop.f32.mrf.mxu0
    %v13502 = vadd.f32 0.0, %v13501
    %13503 = vmatmul.f32.gmra.mxu0 %v13331
    %v13504 = vpop.f32.mrf.mxu0
    %v13505 = vadd.f32 0.0, %v13504
    %13506 = vmatmul.f32.gmra.mxu0 %v13332
    %v13507 = vpop.f32.mrf.mxu0
    %v13508 = vadd.f32 0.0, %v13507
    %13509 = vmatmul.f32.gmra.mxu0 %v13333
    %v13510 = vpop.f32.mrf.mxu0
    %v13511 = vadd.f32 0.0, %v13510
    %13512 = vmatmul.f32.gmra.mxu0 %v13334
    %v13513 = vpop.f32.mrf.mxu0
    %v13514 = vadd.f32 0.0, %v13513
    %13515 = vmatmul.f32.gmra.mxu0 %v13335
    %v13516 = vpop.f32.mrf.mxu0
    %v13517 = vadd.f32 0.0, %v13516
    %13518 = vmatmul.f32.gmra.mxu0 %v13336
    %v13519 = vpop.f32.mrf.mxu0
    %v13520 = vadd.f32 0.0, %v13519
    %13521 = vmatmul.f32.gmra.mxu0 %v13337
    %v13522 = vpop.f32.mrf.mxu0
    %v13523 = vadd.f32 0.0, %v13522
    %13524 = vmatmul.f32.gmra.mxu0 %v13338
    %v13525 = vpop.f32.mrf.mxu0
    %v13526 = vadd.f32 0.0, %v13525
    %13527 = vmatmul.f32.gmra.mxu0 %v13339
    %v13528 = vpop.f32.mrf.mxu0
    %v13529 = vadd.f32 0.0, %v13528
    %13530 = vmatmul.f32.gmra.mxu0 %v13340
    %v13531 = vpop.f32.mrf.mxu0
    %v13532 = vadd.f32 0.0, %v13531
    %13533 = vmatmul.f32.gmra.mxu0 %v13341
    %v13534 = vpop.f32.mrf.mxu0
    %v13535 = vadd.f32 0.0, %v13534
    %13536 = vmatmul.f32.gmra.mxu0 %v13342
    %v13537 = vpop.f32.mrf.mxu0
    %v13538 = vadd.f32 0.0, %v13537
    %13539 = vmatmul.f32.gmra.mxu0 %v13343
    %v13540 = vpop.f32.mrf.mxu0
    %v13541 = vadd.f32 0.0, %v13540
    %13542 = vmatmul.f32.gmra.mxu0 %v13344
    %v13543 = vpop.f32.mrf.mxu0
    %v13544 = vadd.f32 0.0, %v13543
    %13545 = vmatmul.f32.gmra.mxu0 %v13345
    %v13546 = vpop.f32.mrf.mxu0
    %v13547 = vadd.f32 0.0, %v13546
    %13548 = vmatmul.f32.gmra.mxu0 %v13346
    %v13549 = vpop.f32.mrf.mxu0
    %v13550 = vadd.f32 0.0, %v13549
    %13551 = vmatmul.f32.gmra.mxu0 %v13347
    %v13552 = vpop.f32.mrf.mxu0
    %v13553 = vadd.f32 0.0, %v13552
    %13554 = vmatmul.f32.gmra.mxu0 %v13348
    %v13555 = vpop.f32.mrf.mxu0
    %v13556 = vadd.f32 0.0, %v13555
    %13557 = vmatmul.f32.gmra.mxu0 %v13349
    %v13558 = vpop.f32.mrf.mxu0
    %v13559 = vadd.f32 0.0, %v13558
    %13560 = vmatmul.f32.gmra.mxu0 %v13350
    %v13561 = vpop.f32.mrf.mxu0
    %v13562 = vadd.f32 0.0, %v13561
    %13563 = vmatmul.f32.gmra.mxu0 %v13351
    %v13564 = vpop.f32.mrf.mxu0
    %v13565 = vadd.f32 0.0, %v13564
    %13566 = vmatmul.f32.gmra.mxu0 %v13352
    %v13567 = vpop.f32.mrf.mxu0
    %v13568 = vadd.f32 0.0, %v13567
    %13569 = vmatmul.f32.gmra.mxu0 %v13353
    %v13570 = vpop.f32.mrf.mxu0
    %v13571 = vadd.f32 0.0, %v13570
    %13572 = vmatmul.f32.gmra.mxu0 %v13354
    %v13573 = vpop.f32.mrf.mxu0
    %v13574 = vadd.f32 0.0, %v13573
    %13575 = vmatmul.f32.gmra.mxu0 %v13355
    %v13576 = vpop.f32.mrf.mxu0
    %v13577 = vadd.f32 0.0, %v13576
    %13578 = vmatmul.f32.gmra.mxu0 %v13356
    %v13579 = vpop.f32.mrf.mxu0
    %v13580 = vadd.f32 0.0, %v13579
    %13581 = vdwg.mxu0
    %v13582 = vadd.f32 %v13391, %v13394
    %v13583 = vadd.f32 %v13582, %v13397
    %v13584 = vadd.f32 %v13583, %v13400
    %v13585 = vadd.f32 %v13584, %v13403
    %v13586 = vadd.f32 %v13585, %v13406
    %v13587 = vadd.f32 %v13586, %v13409
    %v13588 = vadd.f32 %v13587, %v13412
    %v13589 = vadd.f32 %v13588, %v13415
    %v13590 = vadd.f32 %v13589, %v13418
    %v13591 = vadd.f32 %v13590, %v13421
    %v13592 = vadd.f32 %v13591, %v13424
    %v13593 = vadd.f32 %v13592, %v13427
    %v13594 = vadd.f32 %v13593, %v13430
    %v13595 = vadd.f32 %v13594, %v13433
    %v13596 = vadd.f32 %v13595, %v13436
    %v13597 = vadd.f32 %v13596, %v13439
    %v13598 = vadd.f32 %v13597, %v13442
    %v13599 = vadd.f32 %v13598, %v13445
    %v13600 = vadd.f32 %v13599, %v13448
    %v13601 = vadd.f32 %v13600, %v13451
    %v13602 = vadd.f32 %v13601, %v13454
    %v13603 = vadd.f32 %v13602, %v13457
    %v13604 = vadd.f32 %v13603, %v13460
    %v13605 = vadd.f32 %v13604, %v13463
    %v13606 = vadd.f32 %v13605, %v13466
    %v13607 = vadd.f32 %v13606, %v13469
    %v13608 = vadd.f32 %v13607, %v13472
    %v13609 = vadd.f32 %v13608, %v13475
    %v13610 = vadd.f32 %v13609, %v13478
    %v13611 = vadd.f32 %v13610, %v13481
    %v13612 = vadd.f32 %v13611, %v13484
    %v13613 = vadd.f32 %v13612, %v13487
    %v13614 = vadd.f32 %v13613, %v13490
    %v13615 = vadd.f32 %v13614, %v13493
    %v13616 = vadd.f32 %v13615, %v13496
    %v13617 = vadd.f32 %v13616, %v13499
    %v13618 = vadd.f32 %v13617, %v13502
    %v13619 = vadd.f32 %v13618, %v13505
    %v13620 = vadd.f32 %v13619, %v13508
    %v13621 = vadd.f32 %v13620, %v13511
    %v13622 = vadd.f32 %v13621, %v13514
    %v13623 = vadd.f32 %v13622, %v13517
    %v13624 = vadd.f32 %v13623, %v13520
    %v13625 = vadd.f32 %v13624, %v13523
    %v13626 = vadd.f32 %v13625, %v13526
    %v13627 = vadd.f32 %v13626, %v13529
    %v13628 = vadd.f32 %v13627, %v13532
    %v13629 = vadd.f32 %v13628, %v13535
    %v13630 = vadd.f32 %v13629, %v13538
    %v13631 = vadd.f32 %v13630, %v13541
    %v13632 = vadd.f32 %v13631, %v13544
    %v13633 = vadd.f32 %v13632, %v13547
    %v13634 = vadd.f32 %v13633, %v13550
    %v13635 = vadd.f32 %v13634, %v13553
    %v13636 = vadd.f32 %v13635, %v13556
    %v13637 = vadd.f32 %v13636, %v13559
    %v13638 = vadd.f32 %v13637, %v13562
    %v13639 = vadd.f32 %v13638, %v13565
    %v13640 = vadd.f32 %v13639, %v13568
    %v13641 = vadd.f32 %v13640, %v13571
    %v13642 = vadd.f32 %v13641, %v13574
    %v13643 = vadd.f32 %v13642, %v13577
    %v13644 = vadd.f32 %v13643, %v13580
    %v13645 = vrot.slane %v13644, 4
    %v13646 = vadd.f32 %v13644, %v13645
    %v13647 = vrot.slane %v13646, 2
    %v13648 = vadd.f32 %v13646, %v13647
    %v13649 = vrot.slane %v13648, 1
    %v13650 = vadd.f32 %v13648, %v13649
    %v13651 = vmul.f32 %v13650, 0.001953125
    %v13652 = vsub.f32 %v13391, %v13651
    %v13653 = vsub.f32 %v13394, %v13651
    %v13654 = vsub.f32 %v13397, %v13651
    %v13655 = vsub.f32 %v13400, %v13651
    %v13656 = vsub.f32 %v13403, %v13651
    %v13657 = vsub.f32 %v13406, %v13651
    %v13658 = vsub.f32 %v13409, %v13651
    %v13659 = vsub.f32 %v13412, %v13651
    %v13660 = vsub.f32 %v13415, %v13651
    %v13661 = vsub.f32 %v13418, %v13651
    %v13662 = vsub.f32 %v13421, %v13651
    %v13663 = vsub.f32 %v13424, %v13651
    %v13664 = vsub.f32 %v13427, %v13651
    %v13665 = vsub.f32 %v13430, %v13651
    %v13666 = vsub.f32 %v13433, %v13651
    %v13667 = vsub.f32 %v13436, %v13651
    %v13668 = vsub.f32 %v13439, %v13651
    %v13669 = vsub.f32 %v13442, %v13651
    %v13670 = vsub.f32 %v13445, %v13651
    %v13671 = vsub.f32 %v13448, %v13651
    %v13672 = vsub.f32 %v13451, %v13651
    %v13673 = vsub.f32 %v13454, %v13651
    %v13674 = vsub.f32 %v13457, %v13651
    %v13675 = vsub.f32 %v13460, %v13651
    %v13676 = vsub.f32 %v13463, %v13651
    %v13677 = vsub.f32 %v13466, %v13651
    %v13678 = vsub.f32 %v13469, %v13651
    %v13679 = vsub.f32 %v13472, %v13651
    %v13680 = vsub.f32 %v13475, %v13651
    %v13681 = vsub.f32 %v13478, %v13651
    %v13682 = vsub.f32 %v13481, %v13651
    %v13683 = vsub.f32 %v13484, %v13651
    %v13684 = vsub.f32 %v13487, %v13651
    %v13685 = vsub.f32 %v13490, %v13651
    %v13686 = vsub.f32 %v13493, %v13651
    %v13687 = vsub.f32 %v13496, %v13651
    %v13688 = vsub.f32 %v13499, %v13651
    %v13689 = vsub.f32 %v13502, %v13651
    %v13690 = vsub.f32 %v13505, %v13651
    %v13691 = vsub.f32 %v13508, %v13651
    %v13692 = vsub.f32 %v13511, %v13651
    %v13693 = vsub.f32 %v13514, %v13651
    %v13694 = vsub.f32 %v13517, %v13651
    %v13695 = vsub.f32 %v13520, %v13651
    %v13696 = vsub.f32 %v13523, %v13651
    %v13697 = vsub.f32 %v13526, %v13651
    %v13698 = vsub.f32 %v13529, %v13651
    %v13699 = vsub.f32 %v13532, %v13651
    %v13700 = vsub.f32 %v13535, %v13651
    %v13701 = vsub.f32 %v13538, %v13651
    %v13702 = vsub.f32 %v13541, %v13651
    %v13703 = vsub.f32 %v13544, %v13651
    %v13704 = vsub.f32 %v13547, %v13651
    %v13705 = vsub.f32 %v13550, %v13651
    %v13706 = vsub.f32 %v13553, %v13651
    %v13707 = vsub.f32 %v13556, %v13651
    %v13708 = vsub.f32 %v13559, %v13651
    %v13709 = vsub.f32 %v13562, %v13651
    %v13710 = vsub.f32 %v13565, %v13651
    %v13711 = vsub.f32 %v13568, %v13651
    %v13712 = vsub.f32 %v13571, %v13651
    %v13713 = vsub.f32 %v13574, %v13651
    %v13714 = vsub.f32 %v13577, %v13651
    %v13715 = vsub.f32 %v13580, %v13651
    %v13716 = vmul.f32 %v13652, %v13652
    %v13717 = vmul.f32 %v13653, %v13653
    %v13718 = vmul.f32 %v13654, %v13654
    %v13719 = vmul.f32 %v13655, %v13655
    %v13720 = vmul.f32 %v13656, %v13656
    %v13721 = vmul.f32 %v13657, %v13657
    %v13722 = vmul.f32 %v13658, %v13658
    %v13723 = vmul.f32 %v13659, %v13659
    %v13724 = vmul.f32 %v13660, %v13660
    %v13725 = vmul.f32 %v13661, %v13661
    %v13726 = vmul.f32 %v13662, %v13662
    %v13727 = vmul.f32 %v13663, %v13663
    %v13728 = vmul.f32 %v13664, %v13664
    %v13729 = vmul.f32 %v13665, %v13665
    %v13730 = vmul.f32 %v13666, %v13666
    %v13731 = vmul.f32 %v13667, %v13667
    %v13732 = vmul.f32 %v13668, %v13668
    %v13733 = vmul.f32 %v13669, %v13669
    %v13734 = vmul.f32 %v13670, %v13670
    %v13735 = vmul.f32 %v13671, %v13671
    %v13736 = vmul.f32 %v13672, %v13672
    %v13737 = vmul.f32 %v13673, %v13673
    %v13738 = vmul.f32 %v13674, %v13674
    %v13739 = vmul.f32 %v13675, %v13675
    %v13740 = vmul.f32 %v13676, %v13676
    %v13741 = vmul.f32 %v13677, %v13677
    %v13742 = vmul.f32 %v13678, %v13678
    %v13743 = vmul.f32 %v13679, %v13679
    %v13744 = vmul.f32 %v13680, %v13680
    %v13745 = vmul.f32 %v13681, %v13681
    %v13746 = vmul.f32 %v13682, %v13682
    %v13747 = vmul.f32 %v13683, %v13683
    %v13748 = vmul.f32 %v13684, %v13684
    %v13749 = vmul.f32 %v13685, %v13685
    %v13750 = vmul.f32 %v13686, %v13686
    %v13751 = vmul.f32 %v13687, %v13687
    %v13752 = vmul.f32 %v13688, %v13688
    %v13753 = vmul.f32 %v13689, %v13689
    %v13754 = vmul.f32 %v13690, %v13690
    %v13755 = vmul.f32 %v13691, %v13691
    %v13756 = vmul.f32 %v13692, %v13692
    %v13757 = vmul.f32 %v13693, %v13693
    %v13758 = vmul.f32 %v13694, %v13694
    %v13759 = vmul.f32 %v13695, %v13695
    %v13760 = vmul.f32 %v13696, %v13696
    %v13761 = vmul.f32 %v13697, %v13697
    %v13762 = vmul.f32 %v13698, %v13698
    %v13763 = vmul.f32 %v13699, %v13699
    %v13764 = vmul.f32 %v13700, %v13700
    %v13765 = vmul.f32 %v13701, %v13701
    %v13766 = vmul.f32 %v13702, %v13702
    %v13767 = vmul.f32 %v13703, %v13703
    %v13768 = vmul.f32 %v13704, %v13704
    %v13769 = vmul.f32 %v13705, %v13705
    %v13770 = vmul.f32 %v13706, %v13706
    %v13771 = vmul.f32 %v13707, %v13707
    %v13772 = vmul.f32 %v13708, %v13708
    %v13773 = vmul.f32 %v13709, %v13709
    %v13774 = vmul.f32 %v13710, %v13710
    %v13775 = vmul.f32 %v13711, %v13711
    %v13776 = vmul.f32 %v13712, %v13712
    %v13777 = vmul.f32 %v13713, %v13713
    %v13778 = vmul.f32 %v13714, %v13714
    %v13779 = vmul.f32 %v13715, %v13715
    %v13780 = vadd.f32 %v13716, %v13717
    %v13781 = vadd.f32 %v13780, %v13718
    %v13782 = vadd.f32 %v13781, %v13719
    %v13783 = vadd.f32 %v13782, %v13720
    %v13784 = vadd.f32 %v13783, %v13721
    %v13785 = vadd.f32 %v13784, %v13722
    %v13786 = vadd.f32 %v13785, %v13723
    %v13787 = vadd.f32 %v13786, %v13724
    %v13788 = vadd.f32 %v13787, %v13725
    %v13789 = vadd.f32 %v13788, %v13726
    %v13790 = vadd.f32 %v13789, %v13727
    %v13791 = vadd.f32 %v13790, %v13728
    %v13792 = vadd.f32 %v13791, %v13729
    %v13793 = vadd.f32 %v13792, %v13730
    %v13794 = vadd.f32 %v13793, %v13731
    %v13795 = vadd.f32 %v13794, %v13732
    %v13796 = vadd.f32 %v13795, %v13733
    %v13797 = vadd.f32 %v13796, %v13734
    %v13798 = vadd.f32 %v13797, %v13735
    %v13799 = vadd.f32 %v13798, %v13736
    %v13800 = vadd.f32 %v13799, %v13737
    %v13801 = vadd.f32 %v13800, %v13738
    %v13802 = vadd.f32 %v13801, %v13739
    %v13803 = vadd.f32 %v13802, %v13740
    %v13804 = vadd.f32 %v13803, %v13741
    %v13805 = vadd.f32 %v13804, %v13742
    %v13806 = vadd.f32 %v13805, %v13743
    %v13807 = vadd.f32 %v13806, %v13744
    %v13808 = vadd.f32 %v13807, %v13745
    %v13809 = vadd.f32 %v13808, %v13746
    %v13810 = vadd.f32 %v13809, %v13747
    %v13811 = vadd.f32 %v13810, %v13748
    %v13812 = vadd.f32 %v13811, %v13749
    %v13813 = vadd.f32 %v13812, %v13750
    %v13814 = vadd.f32 %v13813, %v13751
    %v13815 = vadd.f32 %v13814, %v13752
    %v13816 = vadd.f32 %v13815, %v13753
    %v13817 = vadd.f32 %v13816, %v13754
    %v13818 = vadd.f32 %v13817, %v13755
    %v13819 = vadd.f32 %v13818, %v13756
    %v13820 = vadd.f32 %v13819, %v13757
    %v13821 = vadd.f32 %v13820, %v13758
    %v13822 = vadd.f32 %v13821, %v13759
    %v13823 = vadd.f32 %v13822, %v13760
    %v13824 = vadd.f32 %v13823, %v13761
    %v13825 = vadd.f32 %v13824, %v13762
    %v13826 = vadd.f32 %v13825, %v13763
    %v13827 = vadd.f32 %v13826, %v13764
    %v13828 = vadd.f32 %v13827, %v13765
    %v13829 = vadd.f32 %v13828, %v13766
    %v13830 = vadd.f32 %v13829, %v13767
    %v13831 = vadd.f32 %v13830, %v13768
    %v13832 = vadd.f32 %v13831, %v13769
    %v13833 = vadd.f32 %v13832, %v13770
    %v13834 = vadd.f32 %v13833, %v13771
    %v13835 = vadd.f32 %v13834, %v13772
    %v13836 = vadd.f32 %v13835, %v13773
    %v13837 = vadd.f32 %v13836, %v13774
    %v13838 = vadd.f32 %v13837, %v13775
    %v13839 = vadd.f32 %v13838, %v13776
    %v13840 = vadd.f32 %v13839, %v13777
    %v13841 = vadd.f32 %v13840, %v13778
    %v13842 = vadd.f32 %v13841, %v13779
    %v13843 = vrot.slane %v13842, 4
    %v13844 = vadd.f32 %v13842, %v13843
    %v13845 = vrot.slane %v13844, 2
    %v13846 = vadd.f32 %v13844, %v13845
    %v13847 = vrot.slane %v13846, 1
    %v13848 = vadd.f32 %v13846, %v13847
    %v13849 = vmul.f32 %v13848, 0.001953125
    %v13850 = vadd.f32 %v13849, 1e-05
    %v13851 = vrsqrt.pop %v13850
    %v13852 = vmul.f32 %v13851, %v13850
    %v13853 = vmul.f32 %v13852, %v13851
    %v13854 = vmul.f32 0.5, %v13853
    %v13855 = vsub.f32 1.5, %v13854
    %v13856 = vmul.f32 %v13851, %v13855
    %vm13857 = vweird.f32 %v13850
    %vm13858 = vweird.f32 %v13851
    %vm13859 = vmor %vm13857, %vm13858
    %v13860 = vsel %vm13859, %v13851, %v13856
    %v13861 = vld [vmem:[%s6] sm:$0x1]
    %v13862 = vmul.f32 %v13860, %v13861
    %v13863 = vperm.slane %v13862, 0
    %v13864 = vmul.f32 %v13652, %v13863
    %v13865 = vmul.f32 %v13653, %v13863
    %v13866 = vmul.f32 %v13654, %v13863
    %v13867 = vmul.f32 %v13655, %v13863
    %v13868 = vmul.f32 %v13656, %v13863
    %v13869 = vmul.f32 %v13657, %v13863
    %v13870 = vmul.f32 %v13658, %v13863
    %v13871 = vmul.f32 %v13659, %v13863
    %v13872 = vmul.f32 %v13660, %v13863
    %v13873 = vmul.f32 %v13661, %v13863
    %v13874 = vmul.f32 %v13662, %v13863
    %v13875 = vmul.f32 %v13663, %v13863
    %v13876 = vmul.f32 %v13664, %v13863
    %v13877 = vmul.f32 %v13665, %v13863
    %v13878 = vmul.f32 %v13666, %v13863
    %v13879 = vmul.f32 %v13667, %v13863
    %v13880 = vmul.f32 %v13668, %v13863
    %v13881 = vmul.f32 %v13669, %v13863
    %v13882 = vmul.f32 %v13670, %v13863
    %v13883 = vmul.f32 %v13671, %v13863
    %v13884 = vmul.f32 %v13672, %v13863
    %v13885 = vmul.f32 %v13673, %v13863
    %v13886 = vmul.f32 %v13674, %v13863
    %v13887 = vmul.f32 %v13675, %v13863
    %v13888 = vmul.f32 %v13676, %v13863
    %v13889 = vmul.f32 %v13677, %v13863
    %v13890 = vmul.f32 %v13678, %v13863
    %v13891 = vmul.f32 %v13679, %v13863
    %v13892 = vmul.f32 %v13680, %v13863
    %v13893 = vmul.f32 %v13681, %v13863
    %v13894 = vmul.f32 %v13682, %v13863
    %v13895 = vmul.f32 %v13683, %v13863
    %v13896 = vmul.f32 %v13684, %v13863
    %v13897 = vmul.f32 %v13685, %v13863
    %v13898 = vmul.f32 %v13686, %v13863
    %v13899 = vmul.f32 %v13687, %v13863
    %v13900 = vmul.f32 %v13688, %v13863
    %v13901 = vmul.f32 %v13689, %v13863
    %v13902 = vmul.f32 %v13690, %v13863
    %v13903 = vmul.f32 %v13691, %v13863
    %v13904 = vmul.f32 %v13692, %v13863
    %v13905 = vmul.f32 %v13693, %v13863
    %v13906 = vmul.f32 %v13694, %v13863
    %v13907 = vmul.f32 %v13695, %v13863
    %v13908 = vmul.f32 %v13696, %v13863
    %v13909 = vmul.f32 %v13697, %v13863
    %v13910 = vmul.f32 %v13698, %v13863
    %v13911 = vmul.f32 %v13699, %v13863
    %v13912 = vmul.f32 %v13700, %v13863
    %v13913 = vmul.f32 %v13701, %v13863
    %v13914 = vmul.f32 %v13702, %v13863
    %v13915 = vmul.f32 %v13703, %v13863
    %v13916 = vmul.f32 %v13704, %v13863
    %v13917 = vmul.f32 %v13705, %v13863
    %v13918 = vmul.f32 %v13706, %v13863
    %v13919 = vmul.f32 %v13707, %v13863
    %v13920 = vmul.f32 %v13708, %v13863
    %v13921 = vmul.f32 %v13709, %v13863
    %v13922 = vmul.f32 %v13710, %v13863
    %v13923 = vmul.f32 %v13711, %v13863
    %v13924 = vmul.f32 %v13712, %v13863
    %v13925 = vmul.f32 %v13713, %v13863
    %v13926 = vmul.f32 %v13714, %v13863
    %v13927 = vmul.f32 %v13715, %v13863
    %v13928 = vld [vmem:[%s7] sm:$0x1]
    %v13930 = vperm.slane %v13928, 0
    %v13932 = vadd.f32 %v13864, %v13930
    %v13933 = vadd.f32 %v13865, %v13930
    %v13934 = vadd.f32 %v13866, %v13930
    %v13935 = vadd.f32 %v13867, %v13930
    %v13936 = vadd.f32 %v13868, %v13930
    %v13937 = vadd.f32 %v13869, %v13930
    %v13938 = vadd.f32 %v13870, %v13930
    %v13939 = vadd.f32 %v13871, %v13930
    %v13940 = vadd.f32 %v13872, %v13930
    %v13941 = vadd.f32 %v13873, %v13930
    %v13942 = vadd.f32 %v13874, %v13930
    %v13943 = vadd.f32 %v13875, %v13930
    %v13944 = vadd.f32 %v13876, %v13930
    %v13945 = vadd.f32 %v13877, %v13930
    %v13946 = vadd.f32 %v13878, %v13930
    %v13947 = vadd.f32 %v13879, %v13930
    %v13948 = vadd.f32 %v13880, %v13930
    %v13949 = vadd.f32 %v13881, %v13930
    %v13950 = vadd.f32 %v13882, %v13930
    %v13951 = vadd.f32 %v13883, %v13930
    %v13952 = vadd.f32 %v13884, %v13930
    %v13953 = vadd.f32 %v13885, %v13930
    %v13954 = vadd.f32 %v13886, %v13930
    %v13955 = vadd.f32 %v13887, %v13930
    %v13956 = vadd.f32 %v13888, %v13930
    %v13957 = vadd.f32 %v13889, %v13930
    %v13958 = vadd.f32 %v13890, %v13930
    %v13959 = vadd.f32 %v13891, %v13930
    %v13960 = vadd.f32 %v13892, %v13930
    %v13961 = vadd.f32 %v13893, %v13930
    %v13962 = vadd.f32 %v13894, %v13930
    %v13963 = vadd.f32 %v13895, %v13930
    %v13964 = vadd.f32 %v13896, %v13930
    %v13965 = vadd.f32 %v13897, %v13930
    %v13966 = vadd.f32 %v13898, %v13930
    %v13967 = vadd.f32 %v13899, %v13930
    %v13968 = vadd.f32 %v13900, %v13930
    %v13969 = vadd.f32 %v13901, %v13930
    %v13970 = vadd.f32 %v13902, %v13930
    %v13971 = vadd.f32 %v13903, %v13930
    %v13972 = vadd.f32 %v13904, %v13930
    %v13973 = vadd.f32 %v13905, %v13930
    %v13974 = vadd.f32 %v13906, %v13930
    %v13975 = vadd.f32 %v13907, %v13930
    %v13976 = vadd.f32 %v13908, %v13930
    %v13977 = vadd.f32 %v13909, %v13930
    %v13978 = vadd.f32 %v13910, %v13930
    %v13979 = vadd.f32 %v13911, %v13930
    %v13980 = vadd.f32 %v13912, %v13930
    %v13981 = vadd.f32 %v13913, %v13930
    %v13982 = vadd.f32 %v13914, %v13930
    %v13983 = vadd.f32 %v13915, %v13930
    %v13984 = vadd.f32 %v13916, %v13930
    %v13985 = vadd.f32 %v13917, %v13930
    %v13986 = vadd.f32 %v13918, %v13930
    %v13987 = vadd.f32 %v13919, %v13930
    %v13988 = vadd.f32 %v13920, %v13930
    %v13989 = vadd.f32 %v13921, %v13930
    %v13990 = vadd.f32 %v13922, %v13930
    %v13991 = vadd.f32 %v13923, %v13930
    %v13992 = vadd.f32 %v13924, %v13930
    %v13993 = vadd.f32 %v13925, %v13930
    %v13994 = vadd.f32 %v13926, %v13930
    %v13995 = vadd.f32 %v13927, %v13930
    %v13996 = vsel %vm30, %v38, 0.0
    %v13997 = vsel %vm30, %v39, 0.0
    %v13998 = vsel %vm30, %v40, 0.0
    %v13999 = vsel %vm30, %v41, 0.0
    %v14000 = vsel %vm30, %v42, 0.0
    %v14001 = vsel %vm30, %v43, 0.0
    %v14002 = vsel %vm30, %v44, 0.0
    %v14003 = vsel %vm30, %v45, 0.0
    %v14004 = vsel %vm30, %v46, 0.0
    %v14005 = vsel %vm30, %v47, 0.0
    %v14006 = vsel %vm30, %v48, 0.0
    %v14007 = vsel %vm30, %v49, 0.0
    %v14008 = vsel %vm30, %v50, 0.0
    %v14009 = vsel %vm30, %v51, 0.0
    %v14010 = vsel %vm30, %v52, 0.0
    %v14011 = vsel %vm30, %v53, 0.0
    %v14012 = vsel %vm30, %v54, 0.0
    %v14013 = vsel %vm30, %v55, 0.0
    %v14014 = vsel %vm30, %v56, 0.0
    %v14015 = vsel %vm30, %v57, 0.0
    %v14016 = vsel %vm30, %v58, 0.0
    %v14017 = vsel %vm30, %v59, 0.0
    %v14018 = vsel %vm30, %v60, 0.0
    %v14019 = vsel %vm30, %v61, 0.0
    %v14020 = vsel %vm30, %v62, 0.0
    %v14021 = vsel %vm30, %v63, 0.0
    %v14022 = vsel %vm30, %v64, 0.0
    %v14023 = vsel %vm30, %v65, 0.0
    %v14024 = vsel %vm30, %v66, 0.0
    %v14025 = vsel %vm30, %v67, 0.0
    %v14026 = vsel %vm30, %v68, 0.0
    %v14027 = vsel %vm30, %v69, 0.0
    %v14028 = vsel %vm30, %v70, 0.0
    %v14029 = vsel %vm30, %v71, 0.0
    %v14030 = vsel %vm30, %v72, 0.0
    %v14031 = vsel %vm30, %v73, 0.0
    %v14032 = vsel %vm30, %v74, 0.0
    %v14033 = vsel %vm30, %v75, 0.0
    %v14034 = vsel %vm30, %v76, 0.0
    %v14035 = vsel %vm30, %v77, 0.0
    %v14036 = vsel %vm30, %v78, 0.0
    %v14037 = vsel %vm30, %v79, 0.0
    %v14038 = vsel %vm30, %v80, 0.0
    %v14039 = vsel %vm30, %v81, 0.0
    %v14040 = vsel %vm30, %v82, 0.0
    %v14041 = vsel %vm30, %v83, 0.0
    %v14042 = vsel %vm30, %v84, 0.0
    %v14043 = vsel %vm30, %v85, 0.0
    %v14044 = vsel %vm30, %v86, 0.0
    %v14045 = vsel %vm30, %v87, 0.0
    %v14046 = vsel %vm30, %v88, 0.0
    %v14047 = vsel %vm30, %v89, 0.0
    %v14048 = vsel %vm30, %v90, 0.0
    %v14049 = vsel %vm30, %v91, 0.0
    %v14050 = vsel %vm30, %v92, 0.0
    %v14051 = vsel %vm30, %v93, 0.0
    %v14052 = vsel %vm30, %v94, 0.0
    %v14053 = vsel %vm30, %v95, 0.0
    %v14054 = vsel %vm30, %v96, 0.0
    %v14055 = vsel %vm30, %v97, 0.0
    %v14056 = vsel %vm30, %v98, 0.0
    %v14057 = vsel %vm30, %v99, 0.0
    %v14058 = vsel %vm30, %v100, 0.0
    %v14059 = vsel %vm30, %v101, 0.0
    %v14060 = vadd.f32 %v13932, %v13996
    %v14061 = vadd.f32 %v13933, %v13997
    %v14062 = vadd.f32 %v13934, %v13998
    %v14063 = vadd.f32 %v13935, %v13999
    %v14064 = vadd.f32 %v13936, %v14000
    %v14065 = vadd.f32 %v13937, %v14001
    %v14066 = vadd.f32 %v13938, %v14002
    %v14067 = vadd.f32 %v13939, %v14003
    %v14068 = vadd.f32 %v13940, %v14004
    %v14069 = vadd.f32 %v13941, %v14005
    %v14070 = vadd.f32 %v13942, %v14006
    %v14071 = vadd.f32 %v13943, %v14007
    %v14072 = vadd.f32 %v13944, %v14008
    %v14073 = vadd.f32 %v13945, %v14009
    %v14074 = vadd.f32 %v13946, %v14010
    %v14075 = vadd.f32 %v13947, %v14011
    %v14076 = vadd.f32 %v13948, %v14012
    %v14077 = vadd.f32 %v13949, %v14013
    %v14078 = vadd.f32 %v13950, %v14014
    %v14079 = vadd.f32 %v13951, %v14015
    %v14080 = vadd.f32 %v13952, %v14016
    %v14081 = vadd.f32 %v13953, %v14017
    %v14082 = vadd.f32 %v13954, %v14018
    %v14083 = vadd.f32 %v13955, %v14019
    %v14084 = vadd.f32 %v13956, %v14020
    %v14085 = vadd.f32 %v13957, %v14021
    %v14086 = vadd.f32 %v13958, %v14022
    %v14087 = vadd.f32 %v13959, %v14023
    %v14088 = vadd.f32 %v13960, %v14024
    %v14089 = vadd.f32 %v13961, %v14025
    %v14090 = vadd.f32 %v13962, %v14026
    %v14091 = vadd.f32 %v13963, %v14027
    %v14092 = vadd.f32 %v13964, %v14028
    %v14093 = vadd.f32 %v13965, %v14029
    %v14094 = vadd.f32 %v13966, %v14030
    %v14095 = vadd.f32 %v13967, %v14031
    %v14096 = vadd.f32 %v13968, %v14032
    %v14097 = vadd.f32 %v13969, %v14033
    %v14098 = vadd.f32 %v13970, %v14034
    %v14099 = vadd.f32 %v13971, %v14035
    %v14100 = vadd.f32 %v13972, %v14036
    %v14101 = vadd.f32 %v13973, %v14037
    %v14102 = vadd.f32 %v13974, %v14038
    %v14103 = vadd.f32 %v13975, %v14039
    %v14104 = vadd.f32 %v13976, %v14040
    %v14105 = vadd.f32 %v13977, %v14041
    %v14106 = vadd.f32 %v13978, %v14042
    %v14107 = vadd.f32 %v13979, %v14043
    %v14108 = vadd.f32 %v13980, %v14044
    %v14109 = vadd.f32 %v13981, %v14045
    %v14110 = vadd.f32 %v13982, %v14046
    %v14111 = vadd.f32 %v13983, %v14047
    %v14112 = vadd.f32 %v13984, %v14048
    %v14113 = vadd.f32 %v13985, %v14049
    %v14114 = vadd.f32 %v13986, %v14050
    %v14115 = vadd.f32 %v13987, %v14051
    %v14116 = vadd.f32 %v13988, %v14052
    %v14117 = vadd.f32 %v13989, %v14053
    %v14118 = vadd.f32 %v13990, %v14054
    %v14119 = vadd.f32 %v13991, %v14055
    %v14120 = vadd.f32 %v13992, %v14056
    %v14121 = vadd.f32 %v13993, %v14057
    %v14122 = vadd.f32 %v13994, %v14058
    %v14123 = vadd.f32 %v13995, %v14059
    %v14124 = vmax.f32 %v14060, 0.0
    %v14125 = vmax.f32 %v14061, 0.0
    %v14126 = vmax.f32 %v14062, 0.0
    %v14127 = vmax.f32 %v14063, 0.0
    %v14128 = vmax.f32 %v14064, 0.0
    %v14129 = vmax.f32 %v14065, 0.0
    %v14130 = vmax.f32 %v14066, 0.0
    %v14131 = vmax.f32 %v14067, 0.0
    %v14132 = vmax.f32 %v14068, 0.0
    %v14133 = vmax.f32 %v14069, 0.0
    %v14134 = vmax.f32 %v14070, 0.0
    %v14135 = vmax.f32 %v14071, 0.0
    %v14136 = vmax.f32 %v14072, 0.0
    %v14137 = vmax.f32 %v14073, 0.0
    %v14138 = vmax.f32 %v14074, 0.0
    %v14139 = vmax.f32 %v14075, 0.0
    %v14140 = vmax.f32 %v14076, 0.0
    %v14141 = vmax.f32 %v14077, 0.0
    %v14142 = vmax.f32 %v14078, 0.0
    %v14143 = vmax.f32 %v14079, 0.0
    %v14144 = vmax.f32 %v14080, 0.0
    %v14145 = vmax.f32 %v14081, 0.0
    %v14146 = vmax.f32 %v14082, 0.0
    %v14147 = vmax.f32 %v14083, 0.0
    %v14148 = vmax.f32 %v14084, 0.0
    %v14149 = vmax.f32 %v14085, 0.0
    %v14150 = vmax.f32 %v14086, 0.0
    %v14151 = vmax.f32 %v14087, 0.0
    %v14152 = vmax.f32 %v14088, 0.0
    %v14153 = vmax.f32 %v14089, 0.0
    %v14154 = vmax.f32 %v14090, 0.0
    %v14155 = vmax.f32 %v14091, 0.0
    %v14156 = vmax.f32 %v14092, 0.0
    %v14157 = vmax.f32 %v14093, 0.0
    %v14158 = vmax.f32 %v14094, 0.0
    %v14159 = vmax.f32 %v14095, 0.0
    %v14160 = vmax.f32 %v14096, 0.0
    %v14161 = vmax.f32 %v14097, 0.0
    %v14162 = vmax.f32 %v14098, 0.0
    %v14163 = vmax.f32 %v14099, 0.0
    %v14164 = vmax.f32 %v14100, 0.0
    %v14165 = vmax.f32 %v14101, 0.0
    %v14166 = vmax.f32 %v14102, 0.0
    %v14167 = vmax.f32 %v14103, 0.0
    %v14168 = vmax.f32 %v14104, 0.0
    %v14169 = vmax.f32 %v14105, 0.0
    %v14170 = vmax.f32 %v14106, 0.0
    %v14171 = vmax.f32 %v14107, 0.0
    %v14172 = vmax.f32 %v14108, 0.0
    %v14173 = vmax.f32 %v14109, 0.0
    %v14174 = vmax.f32 %v14110, 0.0
    %v14175 = vmax.f32 %v14111, 0.0
    %v14176 = vmax.f32 %v14112, 0.0
    %v14177 = vmax.f32 %v14113, 0.0
    %v14178 = vmax.f32 %v14114, 0.0
    %v14179 = vmax.f32 %v14115, 0.0
    %v14180 = vmax.f32 %v14116, 0.0
    %v14181 = vmax.f32 %v14117, 0.0
    %v14182 = vmax.f32 %v14118, 0.0
    %v14183 = vmax.f32 %v14119, 0.0
    %v14184 = vmax.f32 %v14120, 0.0
    %v14185 = vmax.f32 %v14121, 0.0
    %v14186 = vmax.f32 %v14122, 0.0
    %v14187 = vmax.f32 %v14123, 0.0
    %14188 = vst [vmem:[#allocation3] sm:$0xff] %v14124
    %14189 = vst [vmem:[#allocation3 + $0x8] sm:$0xff] %v14125
    %14190 = vst [vmem:[#allocation3 + $0x10] sm:$0xff] %v14126
    %14191 = vst [vmem:[#allocation3 + $0x18] sm:$0xff] %v14127
    %14192 = vst [vmem:[#allocation3 + $0x20] sm:$0xff] %v14128
    %14193 = vst [vmem:[#allocation3 + $0x28] sm:$0xff] %v14129
    %14194 = vst [vmem:[#allocation3 + $0x30] sm:$0xff] %v14130
    %14195 = vst [vmem:[#allocation3 + $0x38] sm:$0xff] %v14131
    %14196 = vst [vmem:[#allocation3 + $0x40] sm:$0xff] %v14132
    %14197 = vst [vmem:[#allocation3 + $0x48] sm:$0xff] %v14133
    %14198 = vst [vmem:[#allocation3 + $0x50] sm:$0xff] %v14134
    %14199 = vst [vmem:[#allocation3 + $0x58] sm:$0xff] %v14135
    %14200 = vst [vmem:[#allocation3 + $0x60] sm:$0xff] %v14136
    %14201 = vst [vmem:[#allocation3 + $0x68] sm:$0xff] %v14137
    %14202 = vst [vmem:[#allocation3 + $0x70] sm:$0xff] %v14138
    %14203 = vst [vmem:[#allocation3 + $0x78] sm:$0xff] %v14139
    %14204 = vst [vmem:[#allocation3 + $0x80] sm:$0xff] %v14140
    %14205 = vst [vmem:[#allocation3 + $0x88] sm:$0xff] %v14141
    %14206 = vst [vmem:[#allocation3 + $0x90] sm:$0xff] %v14142
    %14207 = vst [vmem:[#allocation3 + $0x98] sm:$0xff] %v14143
    %14208 = vst [vmem:[#allocation3 + $0xa0] sm:$0xff] %v14144
    %14209 = vst [vmem:[#allocation3 + $0xa8] sm:$0xff] %v14145
    %14210 = vst [vmem:[#allocation3 + $0xb0] sm:$0xff] %v14146
    %14211 = vst [vmem:[#allocation3 + $0xb8] sm:$0xff] %v14147
    %14212 = vst [vmem:[#allocation3 + $0xc0] sm:$0xff] %v14148
    %14213 = vst [vmem:[#allocation3 + $0xc8] sm:$0xff] %v14149
    %14214 = vst [vmem:[#allocation3 + $0xd0] sm:$0xff] %v14150
    %14215 = vst [vmem:[#allocation3 + $0xd8] sm:$0xff] %v14151
    %14216 = vst [vmem:[#allocation3 + $0xe0] sm:$0xff] %v14152
    %14217 = vst [vmem:[#allocation3 + $0xe8] sm:$0xff] %v14153
    %14218 = vst [vmem:[#allocation3 + $0xf0] sm:$0xff] %v14154
    %14219 = vst [vmem:[#allocation3 + $0xf8] sm:$0xff] %v14155
    %14220 = vst [vmem:[#allocation3 + $0x100] sm:$0xff] %v14156
    %14221 = vst [vmem:[#allocation3 + $0x108] sm:$0xff] %v14157
    %14222 = vst [vmem:[#allocation3 + $0x110] sm:$0xff] %v14158
    %14223 = vst [vmem:[#allocation3 + $0x118] sm:$0xff] %v14159
    %14224 = vst [vmem:[#allocation3 + $0x120] sm:$0xff] %v14160
    %14225 = vst [vmem:[#allocation3 + $0x128] sm:$0xff] %v14161
    %14226 = vst [vmem:[#allocation3 + $0x130] sm:$0xff] %v14162
    %14227 = vst [vmem:[#allocation3 + $0x138] sm:$0xff] %v14163
    %14228 = vst [vmem:[#allocation3 + $0x140] sm:$0xff] %v14164
    %14229 = vst [vmem:[#allocation3 + $0x148] sm:$0xff] %v14165
    %14230 = vst [vmem:[#allocation3 + $0x150] sm:$0xff] %v14166
    %14231 = vst [vmem:[#allocation3 + $0x158] sm:$0xff] %v14167
    %14232 = vst [vmem:[#allocation3 + $0x160] sm:$0xff] %v14168
    %14233 = vst [vmem:[#allocation3 + $0x168] sm:$0xff] %v14169
    %14234 = vst [vmem:[#allocation3 + $0x170] sm:$0xff] %v14170
    %14235 = vst [vmem:[#allocation3 + $0x178] sm:$0xff] %v14171
    %14236 = vst [vmem:[#allocation3 + $0x180] sm:$0xff] %v14172
    %14237 = vst [vmem:[#allocation3 + $0x188] sm:$0xff] %v14173
    %14238 = vst [vmem:[#allocation3 + $0x190] sm:$0xff] %v14174
    %14239 = vst [vmem:[#allocation3 + $0x198] sm:$0xff] %v14175
    %14240 = vst [vmem:[#allocation3 + $0x1a0] sm:$0xff] %v14176
    %14241 = vst [vmem:[#allocation3 + $0x1a8] sm:$0xff] %v14177
    %14242 = vst [vmem:[#allocation3 + $0x1b0] sm:$0xff] %v14178
    %14243 = vst [vmem:[#allocation3 + $0x1b8] sm:$0xff] %v14179
    %14244 = vst [vmem:[#allocation3 + $0x1c0] sm:$0xff] %v14180
    %14245 = vst [vmem:[#allocation3 + $0x1c8] sm:$0xff] %v14181
    %14246 = vst [vmem:[#allocation3 + $0x1d0] sm:$0xff] %v14182
    %14247 = vst [vmem:[#allocation3 + $0x1d8] sm:$0xff] %v14183
    %14248 = vst [vmem:[#allocation3 + $0x1e0] sm:$0xff] %v14184
    %14249 = vst [vmem:[#allocation3 + $0x1e8] sm:$0xff] %v14185
    %14250 = vst [vmem:[#allocation3 + $0x1f0] sm:$0xff] %v14186
    %14251 = vst [vmem:[#allocation3 + $0x1f8] sm:$0xff] %v14187
    // Predicated region
    $region34: #{tpu_custom_call.1} parent=1 // pred_check
      _
    $region35: #{tpu_custom_call.1} parent=1 // pred_check_branch
      %14253 = sbr.rel (0) target = $region37
    $region36: #{tpu_custom_call.1} parent=1 // pred_region
      %14255 = vsyncadd [#allocation4], 0
      %s14256 = sshll.u32 [#allocation3], 4
      %s14257 = int_to_ptr.vmem [resolvable:$true] %s14256
      %s14258 = sshll.u32 %s8, 4
      %s14259 = int_to_ptr.hbm [resolvable:$true] %s14258
      %14264 = dma.vmem_to_hbm [thread:$0]  %s14257, 8192, %s14259, [#allocation4], 128, 128, 8
    $region37: #{tpu_custom_call.1} parent=1 // pred_fallthru
      _
    // Predicated region
    $region38: #{tpu_custom_call.1} parent=1 // pred_check
      _
    $region39: #{tpu_custom_call.1} parent=1 // pred_check_branch
      %14266 = sbr.rel (0) target = $region41
    $region40: #{tpu_custom_call.1} parent=1 // pred_region
      %14268 = dma.done [#allocation4], 8192
    $region41: #{tpu_custom_call.1} parent=1 // pred_fallthru
      _
    %14269 = vsyncpa [#allocation4], 1

</llo_original>
